<compile_context>
chip_gen: v6e
topology: v6e:2x2x1
jax: 0.10.0
libtpu: 0.0.40
codegen_flags: <defaults>
</compile_context>

<pallas_src>
import functools

import jax
import jax.numpy as jnp
from jax import lax
from jax.experimental import pallas as pl
from jax.experimental.pallas import tpu as pltpu


def _attention_kernel(num_heads, head_dim, H, W, Tq,
                      x_ref, wq_ref, bq_ref, wkv_ref, bkv_ref,
                      rh_ref, rw_ref, wp_ref, bp_ref,
                      out_ref, kv_ref):
    dim = num_heads * head_dim
    HW = H * W
    th = Tq // W
    qt = pl.program_id(1)

    # ---- K|V projection for the whole sequence, once per batch element ----
    # Fused over heads: (HW, C) @ (C, 2*dim) is lane-dense on the MXU.
    # Softmax scale is pre-folded into the K half of wkv/bkv.
    @pl.when(qt == 0)
    def _():
        x_all = x_ref[0]                                                  # (HW, C) bf16
        kv = jnp.dot(x_all, wkv_ref[...],
                     preferred_element_type=jnp.float32) + bkv_ref[...]
        kv_ref[...] = kv.astype(kv_ref.dtype)

    # ---- Q projection for this query tile (all heads at once) ----
    row0 = pl.multiple_of(qt * Tq, Tq)
    x_q = x_ref[0, pl.ds(row0, Tq), :]                                    # (Tq, C) bf16
    q = jnp.dot(x_q, wq_ref[...],
                preferred_element_type=jnp.float32) + bq_ref[...]         # (Tq, dim) f32
    q = q.astype(jnp.bfloat16)

    rh = rh_ref[...]                                                      # (th, H, hd) bf16
    rw = rw_ref[...]                                                      # (W, W, hd) bf16

    o_heads = []
    for h in range(num_heads):
        q_h = q[:, h * head_dim:(h + 1) * head_dim]                       # (Tq, hd) bf16
        k_h = kv_ref[:, h * head_dim:(h + 1) * head_dim]                  # (HW, hd) bf16 (scaled)
        v_h = kv_ref[:, dim + h * head_dim:dim + (h + 1) * head_dim]      # (HW, hd) bf16

        # scores: (Tq, HW), f32 accumulation on the MXU
        attn = lax.dot_general(q_h, k_h, (((1,), (1,)), ((), ())),
                               preferred_element_type=jnp.float32)

        # decomposed relative-position bias from the unexpanded tables
        q3 = q_h.reshape(th, W, head_dim)                                 # (th, W, hd)
        rel_h = lax.dot_general(q3, rh, (((2,), (2,)), ((0,), (0,))),
                                preferred_element_type=jnp.float32)       # (th, W, H)
        q3w = jnp.swapaxes(q3, 0, 1)                                      # (W, th, hd)
        rel_w = lax.dot_general(q3w, rw, (((2,), (2,)), ((0,), (0,))),
                                preferred_element_type=jnp.float32)       # (W, th, W)
        rel_w = jnp.swapaxes(rel_w, 0, 1)                                 # (th, W, W)
        bias = (rel_h[:, :, :, None] + rel_w[:, :, None, :]).reshape(Tq, HW)
        attn = attn + bias

        # softmax: normalize after the PV matmul (EUP approx reciprocal)
        m = jnp.max(attn, axis=-1, keepdims=True)
        p = jnp.exp(attn - m)
        s = jnp.sum(p, axis=-1, keepdims=True)
        o_h = jnp.dot(p.astype(jnp.bfloat16), v_h,
                      preferred_element_type=jnp.float32)                 # (Tq, hd)
        o_h = o_h * pl.reciprocal(s, approx=True)
        o_heads.append(o_h.astype(jnp.bfloat16))

    # concat heads (head-major channels) -> single lane-dense output projection
    y = jnp.concatenate(o_heads, axis=-1)                                 # (Tq, dim) bf16
    out = jnp.dot(y, wp_ref[...],
                  preferred_element_type=jnp.float32) + bp_ref[...]       # (Tq, C_out) f32
    out_ref[0] = out.astype(out_ref.dtype)


def split_head_sam_attention(x, params, num_heads, head_dim, q_tile=None):
    """x: (B, H, W, C) float32 (NHWC, same as the PyTorch module input)."""
    B, H, W, C = x.shape
    HW = H * W
    dim = num_heads * head_dim
    scale = head_dim ** -0.5

    if q_tile is None:
        q_tile = HW
    assert q_tile % W == 0 and HW % q_tile == 0
    th = q_tile // W
    n_qt = HW // q_tile

    qkv_w = params["qkv_w"]       # (3*dim, C)  packed torch layout (out, in)
    qkv_b = params["qkv_b"]       # (3*dim,)
    proj_w = params["proj_w"]     # (C_out, dim)
    proj_b = params["proj_b"]     # (C_out,)
    C_out = proj_w.shape[0]

    # Fused, transposed projection weights.  Fold the softmax scale into K
    # (not Q: the rel-pos bias consumes the unscaled q).
    wq = qkv_w[0:dim, :].T                                  # (C, dim)
    bq = qkv_b[0:dim][None, :]                              # (1, dim)
    wk = qkv_w[dim:2 * dim, :].T * scale
    bk = qkv_b[dim:2 * dim] * scale
    wv = qkv_w[2 * dim:3 * dim, :].T
    bv = qkv_b[2 * dim:3 * dim]
    wkv = jnp.concatenate([wk, wv], axis=1)                 # (C, 2*dim)
    bkv = jnp.concatenate([bk, bv])[None, :]                # (1, 2*dim)
    wp = proj_w.T                                           # (dim, C_out)
    bp = proj_b[None, :]                                    # (1, C_out)

    # get_rel_pos with q_size == k_size (no interpolation): R[i, j] = rel_pos[i - j + L - 1]
    Rh = params["rel_pos_h"][(jnp.arange(H)[:, None] - jnp.arange(H)[None, :]) + (H - 1)]  # (H, H, hd)
    Rw = params["rel_pos_w"][(jnp.arange(W)[:, None] - jnp.arange(W)[None, :]) + (W - 1)]  # (W, W, hd)

    bf16 = jnp.bfloat16
    x_flat = x.reshape(B, HW, C).astype(bf16)

    kernel = functools.partial(_attention_kernel, num_heads, head_dim, H, W, q_tile)

    grid_spec = pltpu.PrefetchScalarGridSpec(
        num_scalar_prefetch=0,
        grid=(B, n_qt),
        in_specs=[
            pl.BlockSpec((1, HW, C), lambda b, qt: (b, 0, 0)),            # x (full seq, resident per b)
            pl.BlockSpec((C, dim), lambda b, qt: (0, 0)),                 # wq
            pl.BlockSpec((1, dim), lambda b, qt: (0, 0)),                 # bq
            pl.BlockSpec((C, 2 * dim), lambda b, qt: (0, 0)),             # wkv (K half pre-scaled)
            pl.BlockSpec((1, 2 * dim), lambda b, qt: (0, 0)),             # bkv
            pl.BlockSpec((th, H, head_dim), lambda b, qt: (qt, 0, 0)),    # Rh rows of this q tile
            pl.BlockSpec((W, W, head_dim), lambda b, qt: (0, 0, 0)),      # Rw (full, unexpanded)
            pl.BlockSpec((dim, C_out), lambda b, qt: (0, 0)),             # proj weight (transposed)
            pl.BlockSpec((1, C_out), lambda b, qt: (0, 0)),               # proj bias
        ],
        out_specs=pl.BlockSpec((1, q_tile, C_out), lambda b, qt: (b, qt, 0)),
        scratch_shapes=[pltpu.VMEM((HW, 2 * dim), bf16)],                 # K|V for the full sequence
    )

    out = pl.pallas_call(
        kernel,
        out_shape=jax.ShapeDtypeStruct((B, HW, C_out), jnp.float32),
        grid_spec=grid_spec,
        compiler_params=pltpu.CompilerParams(
            # qt is "arbitrary" because the K|V scratch carries across query
            # tiles; on v7x one would hoist the K/V projection to make it
            # "parallel" for the 2 TensorCores.
            dimension_semantics=("parallel", "arbitrary"),
            vmem_limit_bytes=32 * 1024 * 1024),
    )(x_flat,
      wq.astype(bf16), bq.astype(jnp.float32),
      wkv.astype(bf16), bkv.astype(jnp.float32),
      Rh.astype(bf16), Rw.astype(bf16),
      wp.astype(bf16), bp.astype(jnp.float32))

    return out.reshape(B, H, W, C_out)


def reference_forward(x, p, num_heads, head_dim):
    """Pure-JAX reproduction of the PyTorch forward (for verification)."""
    B, H, W, C = x.shape
    HW = H * W
    dim = num_heads * head_dim
    scale = head_dim ** -0.5
    pr = lax.Precision.HIGHEST
    xf = x.reshape(B, HW, C)
    qkv_w, qkv_b = p["qkv_w"], p["qkv_b"]
    Rh = p["rel_pos_h"][(jnp.arange(H)[:, None] - jnp.arange(H)[None, :]) + (H - 1)]
    Rw = p["rel_pos_w"][(jnp.arange(W)[:, None] - jnp.arange(W)[None, :]) + (W - 1)]
    heads = []
    for i in range(num_heads):
        sl_q = slice(i * head_dim, (i + 1) * head_dim)
        sl_k = slice(dim + i * head_dim, dim + (i + 1) * head_dim)
        sl_v = slice(2 * dim + i * head_dim, 2 * dim + (i + 1) * head_dim)
        q = jnp.einsum("bnc,dc->bnd", xf, qkv_w[sl_q], precision=pr) + qkv_b[sl_q]
        k = jnp.einsum("bnc,dc->bnd", xf, qkv_w[sl_k], precision=pr) + qkv_b[sl_k]
        v = jnp.einsum("bnc,dc->bnd", xf, qkv_w[sl_v], precision=pr) + qkv_b[sl_v]
        attn = jnp.einsum("bqd,bkd->bqk", q * scale, k, precision=pr)
        rq = q.reshape(B, H, W, head_dim)
        rel_h = jnp.einsum("bhwc,hkc->bhwk", rq, Rh, precision=pr)
        rel_w = jnp.einsum("bhwc,wkc->bhwk", rq, Rw, precision=pr)
        attn = (attn.reshape(B, H, W, H, W)
                + rel_h[:, :, :, :, None]
                + rel_w[:, :, :, None, :]).reshape(B, HW, HW)
        attn = jax.nn.softmax(attn, axis=-1)
        heads.append(jnp.einsum("bqk,bkd->bqd", attn, v, precision=pr))
    y = jnp.stack(heads, axis=2).reshape(B, HW, dim)   # head-major channels
    out = jnp.einsum("bnc,oc->bno", y, p["proj_w"], precision=pr) + p["proj_b"]
    return out.reshape(B, H, W, -1)


def make_params(key, dim, num_heads, H, W):
    head_dim = dim // num_heads
    ks = jax.random.split(key, 6)
    return dict(
        qkv_w=0.1 * jax.random.normal(ks[0], (3 * dim, dim), jnp.float32),   # packed qkv (torch layout)
        qkv_b=0.1 * jax.random.normal(ks[1], (3 * dim,), jnp.float32),
        proj_w=0.1 * jax.random.normal(ks[2], (dim, dim), jnp.float32),      # (out, in)
        proj_b=0.1 * jax.random.normal(ks[3], (dim,), jnp.float32),
        rel_pos_h=0.1 * jax.random.normal(ks[4], (2 * H - 1, head_dim), jnp.float32),
        rel_pos_w=0.1 * jax.random.normal(ks[5], (2 * W - 1, head_dim), jnp.float32),
    )


if __name__ == "__main__":
    B, H, W, dim, num_heads = 2, 8, 8, 32, 4
    head_dim = dim // num_heads

    key = jax.random.PRNGKey(0)
    k_params, k_x = jax.random.split(key)
    params = make_params(k_params, dim, num_heads, H, W)
    x = jax.random.normal(k_x, (B, H, W, dim), jnp.float32)   # NHWC input (matches module)

    # q_tile=32 -> 2 query tiles per batch element (exercises the tiling path)
    out = split_head_sam_attention(x, params, num_heads, head_dim, q_tile=32)
    out = jax.block_until_ready(out)

    ref = reference_forward(x, params, num_heads, head_dim)
    assert out.shape == (B, H, W, dim)
    err = jnp.max(jnp.abs(out - ref))
    assert jnp.allclose(out, ref, rtol=2e-2, atol=2e-2), f"max abs err {err}"

    print("KERNEL_OK")
</pallas_src>

<mosaic_0001>
module attributes {stable_mosaic.version = 11 : i64} {
  func.func @_attention_kernel(%arg0: i32, %arg1: i32, %arg2: memref<1x64x32xbf16, #tpu.memory_space<vmem>>, %arg3: memref<32x32xbf16, #tpu.memory_space<vmem>>, %arg4: memref<1x32xf32, #tpu.memory_space<vmem>>, %arg5: memref<32x64xbf16, #tpu.memory_space<vmem>>, %arg6: memref<1x64xf32, #tpu.memory_space<vmem>>, %arg7: memref<4x8x8xbf16, #tpu.memory_space<vmem>>, %arg8: memref<8x8x8xbf16, #tpu.memory_space<vmem>>, %arg9: memref<32x32xbf16, #tpu.memory_space<vmem>>, %arg10: memref<1x32xf32, #tpu.memory_space<vmem>>, %arg11: memref<1x32x32xf32, #tpu.memory_space<vmem>>, %arg12: memref<64x64xbf16, #tpu.memory_space<vmem>>) attributes {dimension_semantics = [#tpu.dimension_semantics<parallel>, #tpu.dimension_semantics<arbitrary>], iteration_bounds = array<i64: 2, 2>, scalar_prefetch = 0 : i64, scratch_operands = 1 : i64, tpu.core_type = #tpu.core_type<tc>, window_params = [{transform_indices = @transform_0, window_bounds = array<i64: 1, 64, 32>}, {pipeline_mode = #tpu.pipeline_mode<synchronous>, transform_indices = @transform_1, window_bounds = array<i64: 32, 32>}, {pipeline_mode = #tpu.pipeline_mode<synchronous>, transform_indices = @transform_2, window_bounds = array<i64: 1, 32>}, {pipeline_mode = #tpu.pipeline_mode<synchronous>, transform_indices = @transform_3, window_bounds = array<i64: 32, 64>}, {pipeline_mode = #tpu.pipeline_mode<synchronous>, transform_indices = @transform_4, window_bounds = array<i64: 1, 64>}, {transform_indices = @transform_5, window_bounds = array<i64: 4, 8, 8>}, {pipeline_mode = #tpu.pipeline_mode<synchronous>, transform_indices = @transform_6, window_bounds = array<i64: 8, 8, 8>}, {pipeline_mode = #tpu.pipeline_mode<synchronous>, transform_indices = @transform_7, window_bounds = array<i64: 32, 32>}, {pipeline_mode = #tpu.pipeline_mode<synchronous>, transform_indices = @transform_8, window_bounds = array<i64: 1, 32>}, {transform_indices = @transform_9, window_bounds = array<i64: 1, 32, 32>}]} {
    %c0_i32 = arith.constant 0 : i32
    %0 = arith.cmpi eq, %arg1, %c0_i32 : i32
    %1 = arith.extui %0 : i1 to i32
    %c0_i32_0 = arith.constant 0 : i32
    %2 = arith.cmpi ne, %1, %c0_i32_0 : i32
    scf.if %2 {
      %c0_53 = arith.constant 0 : index
      %c0_54 = arith.constant 0 : index
      %c0_55 = arith.constant 0 : index
      %141 = vector.load %arg2[%c0_53, %c0_54, %c0_55] : memref<1x64x32xbf16, #tpu.memory_space<vmem>>, vector<1x64x32xbf16>
      %142 = vector.shape_cast %141 : vector<1x64x32xbf16> to vector<64x32xbf16>
      %c0_56 = arith.constant 0 : index
      %c0_57 = arith.constant 0 : index
      %143 = vector.load %arg5[%c0_56, %c0_57] : memref<32x64xbf16, #tpu.memory_space<vmem>>, vector<32x64xbf16>
      %cst_58 = arith.constant dense<0.000000e+00> : vector<64x64xf32>
      %144 = tpu.matmul %142, %143, %cst_58 {dimension_numbers = #tpu.dot_dimension_numbers<[1], [0], [0], [1], [0, 0, 1, 1], [], []>} : vector<64x32xbf16>, vector<32x64xbf16>, vector<64x64xf32> -> vector<64x64xf32>
      %c0_59 = arith.constant 0 : index
      %c0_60 = arith.constant 0 : index
      %145 = vector.load %arg6[%c0_59, %c0_60] : memref<1x64xf32, #tpu.memory_space<vmem>>, vector<1x64xf32>
      %146 = vector.broadcast %145 : vector<1x64xf32> to vector<64x64xf32>
      %147 = arith.addf %144, %146 : vector<64x64xf32>
      %148 = arith.truncf %147 : vector<64x64xf32> to vector<64x64xbf16>
      %c0_61 = arith.constant 0 : index
      %c0_62 = arith.constant 0 : index
      %149 = vector.load %arg12[%c0_61, %c0_62] : memref<64x64xbf16, #tpu.memory_space<vmem>>, vector<64x64xbf16>
      tpu.vector_store %arg12[%c0_61, %c0_62], %148 {strides = array<i32>} : memref<64x64xbf16, #tpu.memory_space<vmem>>, vector<64x64xbf16>,
    } else {
    }
    %c32_i32 = arith.constant 32 : i32
    %3 = arith.muli %arg1, %c32_i32 : i32
    %4 = tpu.assume_multiple %3, 32 : i32
    %c0 = arith.constant 0 : index
    %5 = arith.index_cast %4 : i32 to index
    %c0_1 = arith.constant 0 : index
    %6 = vector.load %arg2[%c0, %5, %c0_1] : memref<1x64x32xbf16, #tpu.memory_space<vmem>>, vector<1x32x32xbf16>
    %7 = vector.shape_cast %6 : vector<1x32x32xbf16> to vector<32x32xbf16>
    %c0_2 = arith.constant 0 : index
    %c0_3 = arith.constant 0 : index
    %8 = vector.load %arg3[%c0_2, %c0_3] : memref<32x32xbf16, #tpu.memory_space<vmem>>, vector<32x32xbf16>
    %cst = arith.constant dense<0.000000e+00> : vector<32x32xf32>
    %9 = tpu.matmul %7, %8, %cst {dimension_numbers = #tpu.dot_dimension_numbers<[1], [0], [0], [1], [0, 0, 1, 1], [], []>} : vector<32x32xbf16>, vector<32x32xbf16>, vector<32x32xf32> -> vector<32x32xf32>
    %c0_4 = arith.constant 0 : index
    %c0_5 = arith.constant 0 : index
    %10 = vector.load %arg4[%c0_4, %c0_5] : memref<1x32xf32, #tpu.memory_space<vmem>>, vector<1x32xf32>
    %11 = vector.broadcast %10 : vector<1x32xf32> to vector<32x32xf32>
    %12 = arith.addf %9, %11 : vector<32x32xf32>
    %13 = arith.truncf %12 : vector<32x32xf32> to vector<32x32xbf16>
    %c0_6 = arith.constant 0 : index
    %c0_7 = arith.constant 0 : index
    %c0_8 = arith.constant 0 : index
    %14 = vector.load %arg7[%c0_6, %c0_7, %c0_8] : memref<4x8x8xbf16, #tpu.memory_space<vmem>>, vector<4x8x8xbf16>
    %c0_9 = arith.constant 0 : index
    %c0_10 = arith.constant 0 : index
    %c0_11 = arith.constant 0 : index
    %15 = vector.load %arg8[%c0_9, %c0_10, %c0_11] : memref<8x8x8xbf16, #tpu.memory_space<vmem>>, vector<8x8x8xbf16>
    %16 = vector.extract_strided_slice %13 {offsets = [0, 0], sizes = [32, 8], strides = [1, 1]} : vector<32x32xbf16> to vector<32x8xbf16>
    %c0_12 = arith.constant 0 : index
    %c0_13 = arith.constant 0 : index
    %17 = vector.load %arg12[%c0_12, %c0_13] : memref<64x64xbf16, #tpu.memory_space<vmem>>, vector<64x8xbf16>
    %c0_14 = arith.constant 0 : index
    %c32 = arith.constant 32 : index
    %18 = vector.load %arg12[%c0_14, %c32] : memref<64x64xbf16, #tpu.memory_space<vmem>>, vector<64x8xbf16>
    %cst_15 = arith.constant dense<0.000000e+00> : vector<32x64xf32>
    %19 = tpu.matmul %16, %17, %cst_15 {dimension_numbers = #tpu.dot_dimension_numbers<[1], [1], [0], [0], [0, 0, 1, 0], [], []>} : vector<32x8xbf16>, vector<64x8xbf16>, vector<32x64xf32> -> vector<32x64xf32>
    %20 = vector.shape_cast %16 : vector<32x8xbf16> to vector<4x8x8xbf16>
    %cst_16 = arith.constant dense<0.000000e+00> : vector<4x8x8xf32>
    %21 = tpu.matmul %20, %14, %cst_16 {dimension_numbers = #tpu.dot_dimension_numbers<[2], [2], [1], [1], [0, 0, 0, 1, 1, 1], [0], [0]>} : vector<4x8x8xbf16>, vector<4x8x8xbf16>, vector<4x8x8xf32> -> vector<4x8x8xf32>
    %22 = tpu.transpose %20, [1, 0, 2] : vector<4x8x8xbf16> -> vector<8x4x8xbf16>
    %cst_17 = arith.constant dense<0.000000e+00> : vector<8x4x8xf32>
    %23 = tpu.matmul %22, %15, %cst_17 {dimension_numbers = #tpu.dot_dimension_numbers<[2], [2], [1], [1], [0, 0, 0, 1, 1, 1], [0], [0]>} : vector<8x4x8xbf16>, vector<8x8x8xbf16>, vector<8x4x8xf32> -> vector<8x4x8xf32>
    %24 = tpu.transpose %23, [1, 0, 2] : vector<8x4x8xf32> -> vector<4x8x8xf32>
    %25 = vector.shape_cast %21 : vector<4x8x8xf32> to vector<4x8x8x1xf32>
    %26 = vector.shape_cast %24 : vector<4x8x8xf32> to vector<4x8x1x8xf32>
    %27 = vector.broadcast %25 : vector<4x8x8x1xf32> to vector<4x8x8x8xf32>
    %28 = vector.broadcast %26 : vector<4x8x1x8xf32> to vector<4x8x8x8xf32>
    %29 = arith.addf %27, %28 : vector<4x8x8x8xf32>
    %30 = vector.shape_cast %29 : vector<4x8x8x8xf32> to vector<32x64xf32>
    %31 = arith.addf %19, %30 : vector<32x64xf32>
    %cst_18 = arith.constant dense<0xFF800000> : vector<32xf32>
    %32 = vector.multi_reduction <maximumf>, %31, %cst_18 [1] : vector<32x64xf32> to vector<32xf32>
    %33 = vector.shape_cast %32 : vector<32xf32> to vector<32x1xf32>
    %34 = vector.broadcast %33 : vector<32x1xf32> to vector<32x64xf32>
    %35 = arith.subf %31, %34 : vector<32x64xf32>
    %36 = math.exp %35 : vector<32x64xf32>
    %cst_19 = arith.constant dense<0.000000e+00> : vector<32xf32>
    %37 = vector.multi_reduction <add>, %36, %cst_19 [1] : vector<32x64xf32> to vector<32xf32>
    %38 = vector.shape_cast %37 : vector<32xf32> to vector<32x1xf32>
    %39 = arith.truncf %36 : vector<32x64xf32> to vector<32x64xbf16>
    %cst_20 = arith.constant dense<0.000000e+00> : vector<32x8xf32>
    %40 = tpu.matmul %39, %18, %cst_20 {dimension_numbers = #tpu.dot_dimension_numbers<[1], [0], [0], [1], [0, 0, 1, 1], [], []>} : vector<32x64xbf16>, vector<64x8xbf16>, vector<32x8xf32> -> vector<32x8xf32>
    %41 = tpu.reciprocal %38 {approx = true} : vector<32x1xf32> -> vector<32x1xf32>
    %42 = vector.broadcast %41 : vector<32x1xf32> to vector<32x8xf32>
    %43 = arith.mulf %40, %42 : vector<32x8xf32>
    %44 = arith.truncf %43 : vector<32x8xf32> to vector<32x8xbf16>
    %45 = vector.extract_strided_slice %13 {offsets = [0, 8], sizes = [32, 8], strides = [1, 1]} : vector<32x32xbf16> to vector<32x8xbf16>
    %c0_21 = arith.constant 0 : index
    %c8 = arith.constant 8 : index
    %46 = vector.load %arg12[%c0_21, %c8] : memref<64x64xbf16, #tpu.memory_space<vmem>>, vector<64x8xbf16>
    %c0_22 = arith.constant 0 : index
    %c40 = arith.constant 40 : index
    %47 = vector.load %arg12[%c0_22, %c40] : memref<64x64xbf16, #tpu.memory_space<vmem>>, vector<64x8xbf16>
    %cst_23 = arith.constant dense<0.000000e+00> : vector<32x64xf32>
    %48 = tpu.matmul %45, %46, %cst_23 {dimension_numbers = #tpu.dot_dimension_numbers<[1], [1], [0], [0], [0, 0, 1, 0], [], []>} : vector<32x8xbf16>, vector<64x8xbf16>, vector<32x64xf32> -> vector<32x64xf32>
    %49 = vector.shape_cast %45 : vector<32x8xbf16> to vector<4x8x8xbf16>
    %cst_24 = arith.constant dense<0.000000e+00> : vector<4x8x8xf32>
    %50 = tpu.matmul %49, %14, %cst_24 {dimension_numbers = #tpu.dot_dimension_numbers<[2], [2], [1], [1], [0, 0, 0, 1, 1, 1], [0], [0]>} : vector<4x8x8xbf16>, vector<4x8x8xbf16>, vector<4x8x8xf32> -> vector<4x8x8xf32>
    %51 = tpu.transpose %49, [1, 0, 2] : vector<4x8x8xbf16> -> vector<8x4x8xbf16>
    %cst_25 = arith.constant dense<0.000000e+00> : vector<8x4x8xf32>
    %52 = tpu.matmul %51, %15, %cst_25 {dimension_numbers = #tpu.dot_dimension_numbers<[2], [2], [1], [1], [0, 0, 0, 1, 1, 1], [0], [0]>} : vector<8x4x8xbf16>, vector<8x8x8xbf16>, vector<8x4x8xf32> -> vector<8x4x8xf32>
    %53 = tpu.transpose %52, [1, 0, 2] : vector<8x4x8xf32> -> vector<4x8x8xf32>
    %54 = vector.shape_cast %50 : vector<4x8x8xf32> to vector<4x8x8x1xf32>
    %55 = vector.shape_cast %53 : vector<4x8x8xf32> to vector<4x8x1x8xf32>
    %56 = vector.broadcast %54 : vector<4x8x8x1xf32> to vector<4x8x8x8xf32>
    %57 = vector.broadcast %55 : vector<4x8x1x8xf32> to vector<4x8x8x8xf32>
    %58 = arith.addf %56, %57 : vector<4x8x8x8xf32>
    %59 = vector.shape_cast %58 : vector<4x8x8x8xf32> to vector<32x64xf32>
    %60 = arith.addf %48, %59 : vector<32x64xf32>
    %cst_26 = arith.constant dense<0xFF800000> : vector<32xf32>
    %61 = vector.multi_reduction <maximumf>, %60, %cst_26 [1] : vector<32x64xf32> to vector<32xf32>
    %62 = vector.shape_cast %61 : vector<32xf32> to vector<32x1xf32>
    %63 = vector.broadcast %62 : vector<32x1xf32> to vector<32x64xf32>
    %64 = arith.subf %60, %63 : vector<32x64xf32>
    %65 = math.exp %64 : vector<32x64xf32>
    %cst_27 = arith.constant dense<0.000000e+00> : vector<32xf32>
    %66 = vector.multi_reduction <add>, %65, %cst_27 [1] : vector<32x64xf32> to vector<32xf32>
    %67 = vector.shape_cast %66 : vector<32xf32> to vector<32x1xf32>
    %68 = arith.truncf %65 : vector<32x64xf32> to vector<32x64xbf16>
    %cst_28 = arith.constant dense<0.000000e+00> : vector<32x8xf32>
    %69 = tpu.matmul %68, %47, %cst_28 {dimension_numbers = #tpu.dot_dimension_numbers<[1], [0], [0], [1], [0, 0, 1, 1], [], []>} : vector<32x64xbf16>, vector<64x8xbf16>, vector<32x8xf32> -> vector<32x8xf32>
    %70 = tpu.reciprocal %67 {approx = true} : vector<32x1xf32> -> vector<32x1xf32>
    %71 = vector.broadcast %70 : vector<32x1xf32> to vector<32x8xf32>
    %72 = arith.mulf %69, %71 : vector<32x8xf32>
    %73 = arith.truncf %72 : vector<32x8xf32> to vector<32x8xbf16>
    %74 = vector.extract_strided_slice %13 {offsets = [0, 16], sizes = [32, 8], strides = [1, 1]} : vector<32x32xbf16> to vector<32x8xbf16>
    %c0_29 = arith.constant 0 : index
    %c16 = arith.constant 16 : index
    %75 = vector.load %arg12[%c0_29, %c16] : memref<64x64xbf16, #tpu.memory_space<vmem>>, vector<64x8xbf16>
    %c0_30 = arith.constant 0 : index
    %c48 = arith.constant 48 : index
    %76 = vector.load %arg12[%c0_30, %c48] : memref<64x64xbf16, #tpu.memory_space<vmem>>, vector<64x8xbf16>
    %cst_31 = arith.constant dense<0.000000e+00> : vector<32x64xf32>
    %77 = tpu.matmul %74, %75, %cst_31 {dimension_numbers = #tpu.dot_dimension_numbers<[1], [1], [0], [0], [0, 0, 1, 0], [], []>} : vector<32x8xbf16>, vector<64x8xbf16>, vector<32x64xf32> -> vector<32x64xf32>
    %78 = vector.shape_cast %74 : vector<32x8xbf16> to vector<4x8x8xbf16>
    %cst_32 = arith.constant dense<0.000000e+00> : vector<4x8x8xf32>
    %79 = tpu.matmul %78, %14, %cst_32 {dimension_numbers = #tpu.dot_dimension_numbers<[2], [2], [1], [1], [0, 0, 0, 1, 1, 1], [0], [0]>} : vector<4x8x8xbf16>, vector<4x8x8xbf16>, vector<4x8x8xf32> -> vector<4x8x8xf32>
    %80 = tpu.transpose %78, [1, 0, 2] : vector<4x8x8xbf16> -> vector<8x4x8xbf16>
    %cst_33 = arith.constant dense<0.000000e+00> : vector<8x4x8xf32>
    %81 = tpu.matmul %80, %15, %cst_33 {dimension_numbers = #tpu.dot_dimension_numbers<[2], [2], [1], [1], [0, 0, 0, 1, 1, 1], [0], [0]>} : vector<8x4x8xbf16>, vector<8x8x8xbf16>, vector<8x4x8xf32> -> vector<8x4x8xf32>
    %82 = tpu.transpose %81, [1, 0, 2] : vector<8x4x8xf32> -> vector<4x8x8xf32>
    %83 = vector.shape_cast %79 : vector<4x8x8xf32> to vector<4x8x8x1xf32>
    %84 = vector.shape_cast %82 : vector<4x8x8xf32> to vector<4x8x1x8xf32>
    %85 = vector.broadcast %83 : vector<4x8x8x1xf32> to vector<4x8x8x8xf32>
    %86 = vector.broadcast %84 : vector<4x8x1x8xf32> to vector<4x8x8x8xf32>
    %87 = arith.addf %85, %86 : vector<4x8x8x8xf32>
    %88 = vector.shape_cast %87 : vector<4x8x8x8xf32> to vector<32x64xf32>
    %89 = arith.addf %77, %88 : vector<32x64xf32>
    %cst_34 = arith.constant dense<0xFF800000> : vector<32xf32>
    %90 = vector.multi_reduction <maximumf>, %89, %cst_34 [1] : vector<32x64xf32> to vector<32xf32>
    %91 = vector.shape_cast %90 : vector<32xf32> to vector<32x1xf32>
    %92 = vector.broadcast %91 : vector<32x1xf32> to vector<32x64xf32>
    %93 = arith.subf %89, %92 : vector<32x64xf32>
    %94 = math.exp %93 : vector<32x64xf32>
    %cst_35 = arith.constant dense<0.000000e+00> : vector<32xf32>
    %95 = vector.multi_reduction <add>, %94, %cst_35 [1] : vector<32x64xf32> to vector<32xf32>
    %96 = vector.shape_cast %95 : vector<32xf32> to vector<32x1xf32>
    %97 = arith.truncf %94 : vector<32x64xf32> to vector<32x64xbf16>
    %cst_36 = arith.constant dense<0.000000e+00> : vector<32x8xf32>
    %98 = tpu.matmul %97, %76, %cst_36 {dimension_numbers = #tpu.dot_dimension_numbers<[1], [0], [0], [1], [0, 0, 1, 1], [], []>} : vector<32x64xbf16>, vector<64x8xbf16>, vector<32x8xf32> -> vector<32x8xf32>
    %99 = tpu.reciprocal %96 {approx = true} : vector<32x1xf32> -> vector<32x1xf32>
    %100 = vector.broadcast %99 : vector<32x1xf32> to vector<32x8xf32>
    %101 = arith.mulf %98, %100 : vector<32x8xf32>
    %102 = arith.truncf %101 : vector<32x8xf32> to vector<32x8xbf16>
    %103 = vector.extract_strided_slice %13 {offsets = [0, 24], sizes = [32, 8], strides = [1, 1]} : vector<32x32xbf16> to vector<32x8xbf16>
    %c0_37 = arith.constant 0 : index
    %c24 = arith.constant 24 : index
    %104 = vector.load %arg12[%c0_37, %c24] : memref<64x64xbf16, #tpu.memory_space<vmem>>, vector<64x8xbf16>
    %c0_38 = arith.constant 0 : index
    %c56 = arith.constant 56 : index
    %105 = vector.load %arg12[%c0_38, %c56] : memref<64x64xbf16, #tpu.memory_space<vmem>>, vector<64x8xbf16>
    %cst_39 = arith.constant dense<0.000000e+00> : vector<32x64xf32>
    %106 = tpu.matmul %103, %104, %cst_39 {dimension_numbers = #tpu.dot_dimension_numbers<[1], [1], [0], [0], [0, 0, 1, 0], [], []>} : vector<32x8xbf16>, vector<64x8xbf16>, vector<32x64xf32> -> vector<32x64xf32>
    %107 = vector.shape_cast %103 : vector<32x8xbf16> to vector<4x8x8xbf16>
    %cst_40 = arith.constant dense<0.000000e+00> : vector<4x8x8xf32>
    %108 = tpu.matmul %107, %14, %cst_40 {dimension_numbers = #tpu.dot_dimension_numbers<[2], [2], [1], [1], [0, 0, 0, 1, 1, 1], [0], [0]>} : vector<4x8x8xbf16>, vector<4x8x8xbf16>, vector<4x8x8xf32> -> vector<4x8x8xf32>
    %109 = tpu.transpose %107, [1, 0, 2] : vector<4x8x8xbf16> -> vector<8x4x8xbf16>
    %cst_41 = arith.constant dense<0.000000e+00> : vector<8x4x8xf32>
    %110 = tpu.matmul %109, %15, %cst_41 {dimension_numbers = #tpu.dot_dimension_numbers<[2], [2], [1], [1], [0, 0, 0, 1, 1, 1], [0], [0]>} : vector<8x4x8xbf16>, vector<8x8x8xbf16>, vector<8x4x8xf32> -> vector<8x4x8xf32>
    %111 = tpu.transpose %110, [1, 0, 2] : vector<8x4x8xf32> -> vector<4x8x8xf32>
    %112 = vector.shape_cast %108 : vector<4x8x8xf32> to vector<4x8x8x1xf32>
    %113 = vector.shape_cast %111 : vector<4x8x8xf32> to vector<4x8x1x8xf32>
    %114 = vector.broadcast %112 : vector<4x8x8x1xf32> to vector<4x8x8x8xf32>
    %115 = vector.broadcast %113 : vector<4x8x1x8xf32> to vector<4x8x8x8xf32>
    %116 = arith.addf %114, %115 : vector<4x8x8x8xf32>
    %117 = vector.shape_cast %116 : vector<4x8x8x8xf32> to vector<32x64xf32>
    %118 = arith.addf %106, %117 : vector<32x64xf32>
    %cst_42 = arith.constant dense<0xFF800000> : vector<32xf32>
    %119 = vector.multi_reduction <maximumf>, %118, %cst_42 [1] : vector<32x64xf32> to vector<32xf32>
    %120 = vector.shape_cast %119 : vector<32xf32> to vector<32x1xf32>
    %121 = vector.broadcast %120 : vector<32x1xf32> to vector<32x64xf32>
    %122 = arith.subf %118, %121 : vector<32x64xf32>
    %123 = math.exp %122 : vector<32x64xf32>
    %cst_43 = arith.constant dense<0.000000e+00> : vector<32xf32>
    %124 = vector.multi_reduction <add>, %123, %cst_43 [1] : vector<32x64xf32> to vector<32xf32>
    %125 = vector.shape_cast %124 : vector<32xf32> to vector<32x1xf32>
    %126 = arith.truncf %123 : vector<32x64xf32> to vector<32x64xbf16>
    %cst_44 = arith.constant dense<0.000000e+00> : vector<32x8xf32>
    %127 = tpu.matmul %126, %105, %cst_44 {dimension_numbers = #tpu.dot_dimension_numbers<[1], [0], [0], [1], [0, 0, 1, 1], [], []>} : vector<32x64xbf16>, vector<64x8xbf16>, vector<32x8xf32> -> vector<32x8xf32>
    %128 = tpu.reciprocal %125 {approx = true} : vector<32x1xf32> -> vector<32x1xf32>
    %129 = vector.broadcast %128 : vector<32x1xf32> to vector<32x8xf32>
    %130 = arith.mulf %127, %129 : vector<32x8xf32>
    %131 = arith.truncf %130 : vector<32x8xf32> to vector<32x8xbf16>
    %132 = tpu.concatenate %44, %73, %102, %131 in 1 : vector<32x8xbf16>, vector<32x8xbf16>, vector<32x8xbf16>, vector<32x8xbf16> -> vector<32x32xbf16>
    %c0_45 = arith.constant 0 : index
    %c0_46 = arith.constant 0 : index
    %133 = vector.load %arg9[%c0_45, %c0_46] : memref<32x32xbf16, #tpu.memory_space<vmem>>, vector<32x32xbf16>
    %cst_47 = arith.constant dense<0.000000e+00> : vector<32x32xf32>
    %134 = tpu.matmul %132, %133, %cst_47 {dimension_numbers = #tpu.dot_dimension_numbers<[1], [0], [0], [1], [0, 0, 1, 1], [], []>} : vector<32x32xbf16>, vector<32x32xbf16>, vector<32x32xf32> -> vector<32x32xf32>
    %c0_48 = arith.constant 0 : index
    %c0_49 = arith.constant 0 : index
    %135 = vector.load %arg10[%c0_48, %c0_49] : memref<1x32xf32, #tpu.memory_space<vmem>>, vector<1x32xf32>
    %136 = vector.broadcast %135 : vector<1x32xf32> to vector<32x32xf32>
    %137 = arith.addf %134, %136 : vector<32x32xf32>
    %c0_50 = arith.constant 0 : index
    %c0_51 = arith.constant 0 : index
    %c0_52 = arith.constant 0 : index
    %138 = vector.load %arg11[%c0_50, %c0_51, %c0_52] : memref<1x32x32xf32, #tpu.memory_space<vmem>>, vector<1x32x32xf32>
    %139 = vector.shape_cast %138 : vector<1x32x32xf32> to vector<32x32xf32>
    %140 = vector.shape_cast %137 : vector<32x32xf32> to vector<1x32x32xf32>
    tpu.vector_store %arg11[%c0_50, %c0_51, %c0_52], %140 {strides = array<i32>} : memref<1x32x32xf32, #tpu.memory_space<vmem>>, vector<1x32x32xf32>,
    return
  }
  func.func @transform_0(%arg0: i32, %arg1: i32) -> (i32, i32, i32) {
    %c0_i32 = arith.constant 0 : i32
    %c0_i32_0 = arith.constant 0 : i32
    %c0_i32_1 = arith.constant 0 : i32
    return %arg0, %c0_i32, %c0_i32_0 : i32, i32, i32
  }
  func.func @transform_1(%arg0: i32, %arg1: i32) -> (i32, i32) {
    %c0_i32 = arith.constant 0 : i32
    %c0_i32_0 = arith.constant 0 : i32
    %c0_i32_1 = arith.constant 0 : i32
    return %c0_i32, %c0_i32_0 : i32, i32
  }
  func.func @transform_2(%arg0: i32, %arg1: i32) -> (i32, i32) {
    %c0_i32 = arith.constant 0 : i32
    %c0_i32_0 = arith.constant 0 : i32
    %c0_i32_1 = arith.constant 0 : i32
    return %c0_i32, %c0_i32_0 : i32, i32
  }
  func.func @transform_3(%arg0: i32, %arg1: i32) -> (i32, i32) {
    %c0_i32 = arith.constant 0 : i32
    %c0_i32_0 = arith.constant 0 : i32
    %c0_i32_1 = arith.constant 0 : i32
    return %c0_i32, %c0_i32_0 : i32, i32
  }
  func.func @transform_4(%arg0: i32, %arg1: i32) -> (i32, i32) {
    %c0_i32 = arith.constant 0 : i32
    %c0_i32_0 = arith.constant 0 : i32
    %c0_i32_1 = arith.constant 0 : i32
    return %c0_i32, %c0_i32_0 : i32, i32
  }
  func.func @transform_5(%arg0: i32, %arg1: i32) -> (i32, i32, i32) {
    %c0_i32 = arith.constant 0 : i32
    %c0_i32_0 = arith.constant 0 : i32
    %c0_i32_1 = arith.constant 0 : i32
    return %arg1, %c0_i32, %c0_i32_0 : i32, i32, i32
  }
  func.func @transform_6(%arg0: i32, %arg1: i32) -> (i32, i32, i32) {
    %c0_i32 = arith.constant 0 : i32
    %c0_i32_0 = arith.constant 0 : i32
    %c0_i32_1 = arith.constant 0 : i32
    %c0_i32_2 = arith.constant 0 : i32
    return %c0_i32, %c0_i32_0, %c0_i32_1 : i32, i32, i32
  }
  func.func @transform_7(%arg0: i32, %arg1: i32) -> (i32, i32) {
    %c0_i32 = arith.constant 0 : i32
    %c0_i32_0 = arith.constant 0 : i32
    %c0_i32_1 = arith.constant 0 : i32
    return %c0_i32, %c0_i32_0 : i32, i32
  }
  func.func @transform_8(%arg0: i32, %arg1: i32) -> (i32, i32) {
    %c0_i32 = arith.constant 0 : i32
    %c0_i32_0 = arith.constant 0 : i32
    %c0_i32_1 = arith.constant 0 : i32
    return %c0_i32, %c0_i32_0 : i32, i32
  }
  func.func @transform_9(%arg0: i32, %arg1: i32) -> (i32, i32, i32) {
    %c0_i32 = arith.constant 0 : i32
    %c0_i32_0 = arith.constant 0 : i32
    return %arg0, %arg1, %c0_i32 : i32, i32, i32
  }
}

</mosaic_0001>

<llo_original>
// kernel: tpu_custom_call.1
$region0: #{tpu_custom_call.1}
  #allocation0 [shape = 'u32[]', space=smem, size = 0x4, offset = 0x4, fixed_abs, tag = 'smem constant byte address 0x4 - core index']
  #allocation1 [shape = 'u32[144,128]{1,0:T(1,128)}', space=vmem, size = 0x12000, scoped, tag = 'internal scratch']
  #allocation2 [shape = 'bf16[64,64]{1,0:T(8,128)(2,1)}', space=vmem, size = 0x4000, scoped, tag = 'scratch operand']
  %s0 = inlined_call_operand.vmem [shape: bf16[2,64,32], index: 0, kind: input, shape index: {}]
  %s1 = inlined_call_operand.vmem [shape: bf16[32,32], index: 1, kind: input, shape index: {}]
  %s2 = inlined_call_operand.vmem [shape: f32[1,32], index: 2, kind: input, shape index: {}]
  %s3 = inlined_call_operand.vmem [shape: bf16[32,64], index: 3, kind: input, shape index: {}]
  %s4 = inlined_call_operand.vmem [shape: f32[1,64], index: 4, kind: input, shape index: {}]
  %s5 = inlined_call_operand.vmem [shape: bf16[8,8,8], index: 5, kind: input, shape index: {}]
  %s6 = inlined_call_operand.vmem [shape: bf16[8,8,8], index: 6, kind: input, shape index: {}]
  %s7 = inlined_call_operand.hbm [shape: bf16[32,32], index: 7, kind: input, shape index: {}]
  %s8 = inlined_call_operand.vmem [shape: f32[1,32], index: 8, kind: input, shape index: {}]
  %s9 = inlined_call_operand.vmem [shape: f32[2,64,32], index: 9, kind: output, shape index: {}]
  %s10 = sld [smem:[#allocation0]]
  $region77: #{tpu_custom_call.1} parent=0
    _
  %s12 = ssub.s32 1, %s10
  %s13 = scalar_select 0, %s12, %s10
  $region1: #{tpu_custom_call.1} parent=0
    #allocation3 [shape = 'u8[8192]{0}', space=vmem, size = 0x2000, scoped, tag = 'input window, operand 7, single buffered']
    #allocation4 [shape = 's32[2]{0}', space=sflag, size = 0x8, scoped, tag = 'scoped memory for tpu_custom_call.1']
    %14 = vsyncpa [#allocation4], 0
    loop: start=0, step=1, limit=6
    $region2: #{tpu_custom_call.1} parent=1 // loop_pre_header
      _
    $region3: #{tpu_custom_call.1} parent=1 // loop_header
      %s16 = sphi 0, %s20
      %p17 = scmp.ge.s32.totalorder %s16, 6
      %s23 = sphi 0, %s35
      %s24 = sphi 0, %s31
      %s25 = sphi 0, %s23
      %s26 = sphi 0, %s24
      %s27 = sphi 0, %s25
      %s28 = sphi 0, %s26
      %s38 = sphi 0, %s40
      %s41 = sphi 0, %s38
      %s42 = sphi 0, %s41
      %s58 = sphi 0, %s42
      %s62 = sphi 0, %s62
      %s64 = sphi 0, %s62
      %s65 = sphi 0, %s64
      %s79 = sphi 0, %s65
      %s83 = sphi 0, %s83
      %s85 = sphi 0, %s83
      %s86 = sphi 0, %s85
      %s100 = sphi 0, %s86
      %s104 = sphi 0, %s104
      %s106 = sphi 0, %s104
      %s107 = sphi 0, %s106
      %s121 = sphi 0, %s107
      %s125 = sphi 0, %s125
      %s127 = sphi 0, %s125
      %s128 = sphi 0, %s127
      %s142 = sphi 0, %s128
      %s148 = sphi 0, %s150
      %s151 = sphi 0, %s148
      %s152 = sphi 0, %s151
      %s168 = sphi 0, %s152
      %s172 = sphi 0, %s172
      %s174 = sphi 0, %s172
      %s175 = sphi 0, %s174
      %s189 = sphi 0, %s175
      %s193 = sphi 0, %s193
      %s195 = sphi 0, %s193
      %s196 = sphi 0, %s195
      %s210 = sphi 0, %s196
      %s214 = sphi 0, %s214
      %s216 = sphi 0, %s214
      %s217 = sphi 0, %s216
      %s231 = sphi 0, %s217
      %s239 = sphi 0, %s241
      %s242 = sphi 0, %s239
      %s243 = sphi 0, %s242
      %s259 = sphi 0, %s243
    $region4: #{tpu_custom_call.1} parent=1 // loop_header_branch
      %19 = sbr.rel (%p17) target = $region8
    $region5: #{tpu_custom_call.1} parent=1 // loop_body
      %s21 = ssub.s32 %s16, 1
      %s22 = ssub.s32 %s16, 2
      %s29 = sadd.s32 1, %s24
      %p30 = scmp.ge.s32.totalorder %s29, 2
      %s31 = scalar_select %p30, 0, %s29
      %s32 = sadd.s32 1, %s23
      %s33 = scalar_select %p30, %s32, %s23
      %p34 = scmp.ge.s32.totalorder %s33, 2
      %s35 = scalar_select %p34, 0, %s33
      %s36 = ssub.s32 %s23, %s35
      %p37 = scmp.eq.s32.totalorder %s36, 0
      %s39 = sadd.s32 %s38, 1
      %s40 = scalar_select %p37, %s38, %s39
      %p43 = pneg %p37
      %p44 = scmp.eq.s32.totalorder %s16, 3
      %p45 = por %p43, %p44
      %p46 = scmp.ne.s32.totalorder %s38, %s41
      %p47 = scmp.eq.s32.totalorder %s16, 0
      %p48 = por %p46, %p47
      %p49 = scmp.ne.s32.totalorder %s38, %s41
      %p50 = scmp.eq.s32.totalorder %s21, 3
      %p51 = por %p49, %p50
      %p52 = scmp.ne.s32.totalorder %s41, %s42
      %p53 = scmp.eq.s32.totalorder %s21, 0
      %p54 = por %p52, %p53
      %p55 = scmp.ne.s32.totalorder %s41, %s42
      %p56 = scmp.eq.s32.totalorder %s22, 3
      %p57 = por %p55, %p56
      %p59 = scmp.ne.s32.totalorder %s42, %s58
      %p60 = scmp.eq.s32.totalorder %s22, 0
      %p61 = por %p59, %p60
      %s63 = sadd.s32 %s62, 1
      %p66 = scmp.eq.s32.totalorder %s16, 3
      %p67 = scmp.ne.s32.totalorder %s62, %s64
      %p68 = scmp.eq.s32.totalorder %s16, 0
      %p69 = por %p67, %p68
      %p70 = scmp.ne.s32.totalorder %s62, %s64
      %p71 = scmp.eq.s32.totalorder %s21, 3
      %p72 = por %p70, %p71
      %p73 = scmp.ne.s32.totalorder %s64, %s65
      %p74 = scmp.eq.s32.totalorder %s21, 0
      %p75 = por %p73, %p74
      %p76 = scmp.ne.s32.totalorder %s64, %s65
      %p77 = scmp.eq.s32.totalorder %s22, 3
      %p78 = por %p76, %p77
      %p80 = scmp.ne.s32.totalorder %s65, %s79
      %p81 = scmp.eq.s32.totalorder %s22, 0
      %p82 = por %p80, %p81
      %s84 = sadd.s32 %s83, 1
      %p87 = scmp.eq.s32.totalorder %s16, 3
      %p88 = scmp.ne.s32.totalorder %s83, %s85
      %p89 = scmp.eq.s32.totalorder %s16, 0
      %p90 = por %p88, %p89
      %p91 = scmp.ne.s32.totalorder %s83, %s85
      %p92 = scmp.eq.s32.totalorder %s21, 3
      %p93 = por %p91, %p92
      %p94 = scmp.ne.s32.totalorder %s85, %s86
      %p95 = scmp.eq.s32.totalorder %s21, 0
      %p96 = por %p94, %p95
      %p97 = scmp.ne.s32.totalorder %s85, %s86
      %p98 = scmp.eq.s32.totalorder %s22, 3
      %p99 = por %p97, %p98
      %p101 = scmp.ne.s32.totalorder %s86, %s100
      %p102 = scmp.eq.s32.totalorder %s22, 0
      %p103 = por %p101, %p102
      %s105 = sadd.s32 %s104, 1
      %p108 = scmp.eq.s32.totalorder %s16, 3
      %p109 = scmp.ne.s32.totalorder %s104, %s106
      %p110 = scmp.eq.s32.totalorder %s16, 0
      %p111 = por %p109, %p110
      %p112 = scmp.ne.s32.totalorder %s104, %s106
      %p113 = scmp.eq.s32.totalorder %s21, 3
      %p114 = por %p112, %p113
      %p115 = scmp.ne.s32.totalorder %s106, %s107
      %p116 = scmp.eq.s32.totalorder %s21, 0
      %p117 = por %p115, %p116
      %p118 = scmp.ne.s32.totalorder %s106, %s107
      %p119 = scmp.eq.s32.totalorder %s22, 3
      %p120 = por %p118, %p119
      %p122 = scmp.ne.s32.totalorder %s107, %s121
      %p123 = scmp.eq.s32.totalorder %s22, 0
      %p124 = por %p122, %p123
      %s126 = sadd.s32 %s125, 1
      %p129 = scmp.eq.s32.totalorder %s16, 3
      %p130 = scmp.ne.s32.totalorder %s125, %s127
      %p131 = scmp.eq.s32.totalorder %s16, 0
      %p132 = por %p130, %p131
      %p133 = scmp.ne.s32.totalorder %s125, %s127
      %p134 = scmp.eq.s32.totalorder %s21, 3
      %p135 = por %p133, %p134
      %p136 = scmp.ne.s32.totalorder %s127, %s128
      %p137 = scmp.eq.s32.totalorder %s21, 0
      %p138 = por %p136, %p137
      %p139 = scmp.ne.s32.totalorder %s127, %s128
      %p140 = scmp.eq.s32.totalorder %s22, 3
      %p141 = por %p139, %p140
      %p143 = scmp.ne.s32.totalorder %s128, %s142
      %p144 = scmp.eq.s32.totalorder %s22, 0
      %p145 = por %p143, %p144
      %s146 = ssub.s32 %s24, %s31
      %p147 = scmp.eq.s32.totalorder %s146, 0
      %s149 = sadd.s32 %s148, 1
      %s150 = scalar_select %p147, %s148, %s149
      %p153 = pneg %p147
      %p154 = scmp.eq.s32.totalorder %s16, 3
      %p155 = por %p153, %p154
      %p156 = scmp.ne.s32.totalorder %s148, %s151
      %p157 = scmp.eq.s32.totalorder %s16, 0
      %p158 = por %p156, %p157
      %p159 = scmp.ne.s32.totalorder %s148, %s151
      %p160 = scmp.eq.s32.totalorder %s21, 3
      %p161 = por %p159, %p160
      %p162 = scmp.ne.s32.totalorder %s151, %s152
      %p163 = scmp.eq.s32.totalorder %s21, 0
      %p164 = por %p162, %p163
      %p165 = scmp.ne.s32.totalorder %s151, %s152
      %p166 = scmp.eq.s32.totalorder %s22, 3
      %p167 = por %p165, %p166
      %p169 = scmp.ne.s32.totalorder %s152, %s168
      %p170 = scmp.eq.s32.totalorder %s22, 0
      %p171 = por %p169, %p170
      %s173 = sadd.s32 %s172, 1
      %p176 = scmp.eq.s32.totalorder %s16, 3
      %p177 = scmp.ne.s32.totalorder %s172, %s174
      %p178 = scmp.eq.s32.totalorder %s16, 0
      %p179 = por %p177, %p178
      %p180 = scmp.ne.s32.totalorder %s172, %s174
      %p181 = scmp.eq.s32.totalorder %s21, 3
      %p182 = por %p180, %p181
      %p183 = scmp.ne.s32.totalorder %s174, %s175
      %p184 = scmp.eq.s32.totalorder %s21, 0
      %p185 = por %p183, %p184
      %p186 = scmp.ne.s32.totalorder %s174, %s175
      %p187 = scmp.eq.s32.totalorder %s22, 3
      %p188 = por %p186, %p187
      %p190 = scmp.ne.s32.totalorder %s175, %s189
      %p191 = scmp.eq.s32.totalorder %s22, 0
      %p192 = por %p190, %p191
      %s194 = sadd.s32 %s193, 1
      %p197 = scmp.eq.s32.totalorder %s16, 3
      %p198 = scmp.ne.s32.totalorder %s193, %s195
      %p199 = scmp.eq.s32.totalorder %s16, 0
      %p200 = por %p198, %p199
      %p201 = scmp.ne.s32.totalorder %s193, %s195
      %p202 = scmp.eq.s32.totalorder %s21, 3
      %p203 = por %p201, %p202
      %p204 = scmp.ne.s32.totalorder %s195, %s196
      %p205 = scmp.eq.s32.totalorder %s21, 0
      %p206 = por %p204, %p205
      %p207 = scmp.ne.s32.totalorder %s195, %s196
      %p208 = scmp.eq.s32.totalorder %s22, 3
      %p209 = por %p207, %p208
      %p211 = scmp.ne.s32.totalorder %s196, %s210
      %p212 = scmp.eq.s32.totalorder %s22, 0
      %p213 = por %p211, %p212
      %s215 = sadd.s32 %s214, 1
      %p218 = scmp.eq.s32.totalorder %s16, 3
      %p219 = scmp.ne.s32.totalorder %s214, %s216
      %p220 = scmp.eq.s32.totalorder %s16, 0
      %p221 = por %p219, %p220
      %p222 = scmp.ne.s32.totalorder %s214, %s216
      %p223 = scmp.eq.s32.totalorder %s21, 3
      %p224 = por %p222, %p223
      %p225 = scmp.ne.s32.totalorder %s216, %s217
      %p226 = scmp.eq.s32.totalorder %s21, 0
      %p227 = por %p225, %p226
      %p228 = scmp.ne.s32.totalorder %s216, %s217
      %p229 = scmp.eq.s32.totalorder %s22, 3
      %p230 = por %p228, %p229
      %p232 = scmp.ne.s32.totalorder %s217, %s231
      %p233 = scmp.eq.s32.totalorder %s22, 0
      %p234 = por %p232, %p233
      %s235 = ssub.s32 %s23, %s35
      %s236 = ssub.s32 %s24, %s31
      %s237 = sor.u32 %s235, %s236
      %p238 = scmp.eq.s32.totalorder %s237, 0
      %s240 = sadd.s32 %s239, 1
      %s241 = scalar_select %p238, %s239, %s240
      %p244 = pneg %p238
      %p245 = scmp.eq.s32.totalorder %s16, 3
      %p246 = por %p244, %p245
      %p247 = scmp.ne.s32.totalorder %s239, %s242
      %p248 = scmp.eq.s32.totalorder %s16, 0
      %p249 = por %p247, %p248
      %p250 = scmp.ne.s32.totalorder %s239, %s242
      %p251 = scmp.eq.s32.totalorder %s21, 3
      %p252 = por %p250, %p251
      %p253 = scmp.ne.s32.totalorder %s242, %s243
      %p254 = scmp.eq.s32.totalorder %s21, 0
      %p255 = por %p253, %p254
      %p256 = scmp.ne.s32.totalorder %s242, %s243
      %p257 = scmp.eq.s32.totalorder %s22, 3
      %p258 = por %p256, %p257
      %p260 = scmp.ne.s32.totalorder %s243, %s259
      %p261 = scmp.eq.s32.totalorder %s22, 0
      %p262 = por %p260, %p261
      %p263 = scmp.le.s32.totalorder 1, %s16
      %p264 = scmp.lt.s32.totalorder %s16, 5
      %p265 = pnand %p263, %p264
      %p266 = pneg %p265
      // Predicated region
      $region9: #{tpu_custom_call.1} parent=5 // pred_check
        _
      $region10: #{tpu_custom_call.1} parent=5 // pred_check_branch
        %268 = sbr.rel (%p265) target = $region12
      $region11: #{tpu_custom_call.1} parent=5 // pred_region
        %s269 = ssub.s32 %s16, 1
        // Predicated region
        $region13: #{tpu_custom_call.1} parent=11 // pred_check
          %p270 = pneg %p75
        $region14: #{tpu_custom_call.1} parent=11 // pred_check_branch
          %272 = sbr.rel (%p270) target = $region16
        $region15: #{tpu_custom_call.1} parent=11 // pred_region
          _
        $region16: #{tpu_custom_call.1} parent=11 // pred_fallthru
          _
        // Predicated region
        $region17: #{tpu_custom_call.1} parent=11 // pred_check
          %p273 = pneg %p96
        $region18: #{tpu_custom_call.1} parent=11 // pred_check_branch
          %275 = sbr.rel (%p273) target = $region20
        $region19: #{tpu_custom_call.1} parent=11 // pred_region
          _
        $region20: #{tpu_custom_call.1} parent=11 // pred_fallthru
          _
        // Predicated region
        $region21: #{tpu_custom_call.1} parent=11 // pred_check
          %p276 = pneg %p117
        $region22: #{tpu_custom_call.1} parent=11 // pred_check_branch
          %278 = sbr.rel (%p276) target = $region24
        $region23: #{tpu_custom_call.1} parent=11 // pred_region
          _
        $region24: #{tpu_custom_call.1} parent=11 // pred_fallthru
          _
        // Predicated region
        $region25: #{tpu_custom_call.1} parent=11 // pred_check
          %p279 = pneg %p138
        $region26: #{tpu_custom_call.1} parent=11 // pred_check_branch
          %281 = sbr.rel (%p279) target = $region28
        $region27: #{tpu_custom_call.1} parent=11 // pred_region
          _
        $region28: #{tpu_custom_call.1} parent=11 // pred_fallthru
          _
        // Predicated region
        $region29: #{tpu_custom_call.1} parent=11 // pred_check
          %p282 = pneg %p185
        $region30: #{tpu_custom_call.1} parent=11 // pred_check_branch
          %284 = sbr.rel (%p282) target = $region32
        $region31: #{tpu_custom_call.1} parent=11 // pred_region
          _
        $region32: #{tpu_custom_call.1} parent=11 // pred_fallthru
          _
        // Predicated region
        $region33: #{tpu_custom_call.1} parent=11 // pred_check
          %p285 = pneg %p206
        $region34: #{tpu_custom_call.1} parent=11 // pred_check_branch
          %287 = sbr.rel (%p285) target = $region36
        $region35: #{tpu_custom_call.1} parent=11 // pred_region
          %s289 = ssub.s32 256, 256
          %290 = vsyncadd [#allocation4], %s289
          %s291 = sshll.u32 [#allocation3], 4
          %s292 = int_to_ptr.vmem [resolvable:$true] %s291
          %297 = dma.hbm_to_vmem [thread:$0]  %s7, 256, %s292, [#allocation4], 64, 64, 4
        $region36: #{tpu_custom_call.1} parent=11 // pred_fallthru
          _
        // Predicated region
        $region37: #{tpu_custom_call.1} parent=11 // pred_check
          %p298 = pneg %p227
        $region38: #{tpu_custom_call.1} parent=11 // pred_check_branch
          %300 = sbr.rel (%p298) target = $region40
        $region39: #{tpu_custom_call.1} parent=11 // pred_region
          _
        $region40: #{tpu_custom_call.1} parent=11 // pred_fallthru
          _
      $region12: #{tpu_custom_call.1} parent=5 // pred_fallthru
        _
      %p301 = scmp.lt.s32.totalorder %s16, 4
      // Predicated region
      $region41: #{tpu_custom_call.1} parent=5 // pred_check
        %p302 = pneg %p301
      $region42: #{tpu_custom_call.1} parent=5 // pred_check_branch
        %304 = sbr.rel (%p302) target = $region44
      $region43: #{tpu_custom_call.1} parent=5 // pred_region
        // Predicated region
        $region45: #{tpu_custom_call.1} parent=43 // pred_check
          %p305 = pneg %p48
        $region46: #{tpu_custom_call.1} parent=43 // pred_check_branch
          %307 = sbr.rel (%p305) target = $region48
        $region47: #{tpu_custom_call.1} parent=43 // pred_region
          %p308 = scmp.lt.s32.totalorder %s23, 1
          %s309 = scalar_select %p308, %s23, 1
          %s310 = smul.addr %s309, 8
          %s311 = smul.addr %s310, 4
          %s312 = scalar_lea.vmem %s0, %s311
        $region48: #{tpu_custom_call.1} parent=43 // pred_fallthru
          _
        // Predicated region
        $region49: #{tpu_custom_call.1} parent=43 // pred_check
          %p313 = pneg %p158
        $region50: #{tpu_custom_call.1} parent=43 // pred_check_branch
          %315 = sbr.rel (%p313) target = $region52
        $region51: #{tpu_custom_call.1} parent=43 // pred_region
          %s316 = smul.u32 4, %s24
          %p317 = scmp.lt.s32.totalorder %s316, 7
          %s318 = scalar_select %p317, %s316, 7
          %s319 = smul.addr %s318, 4
          %s320 = scalar_lea.vmem %s5, %s319
          %s321 = smul.u32 4, %s24
        $region52: #{tpu_custom_call.1} parent=43 // pred_fallthru
          _
      $region44: #{tpu_custom_call.1} parent=5 // pred_fallthru
        _
      %p322 = scmp.le.s32.totalorder 1, %s16
      %p323 = scmp.lt.s32.totalorder %s16, 5
      %p324 = pnand %p322, %p323
      %p325 = pneg %p324
      // Predicated region
      $region53: #{tpu_custom_call.1} parent=5 // pred_check
        _
      $region54: #{tpu_custom_call.1} parent=5 // pred_check_branch
        %327 = sbr.rel (%p324) target = $region56
      $region55: #{tpu_custom_call.1} parent=5 // pred_region
        %s328 = ssub.s32 %s16, 1
        // Predicated region
        $region57: #{tpu_custom_call.1} parent=55 // pred_check
          %p329 = pneg %p206
        $region58: #{tpu_custom_call.1} parent=55 // pred_check_branch
          %331 = sbr.rel (%p329) target = $region60
        $region59: #{tpu_custom_call.1} parent=55 // pred_region
          %332 = dma.done [#allocation4], 256
        $region60: #{tpu_custom_call.1} parent=55 // pred_fallthru
          _
        %p333 = scmp.lt.s32.totalorder %s25, 1
        %s334 = scalar_select %p333, %s25, 1
        %s335 = smul.addr %s334, 8
        %s336 = smul.addr %s335, 4
        %s337 = scalar_lea.vmem %s0, %s336
        %p338 = pneg %p54
        %p339 = pneg %p51
        %p340 = pneg %p75
        %p341 = pneg %p72
        %p342 = pneg %p96
        %p343 = pneg %p93
        %p344 = pneg %p117
        %p345 = pneg %p114
        %p346 = pneg %p138
        %p347 = pneg %p135
        %s348 = smul.u32 4, %s26
        %p349 = scmp.lt.s32.totalorder %s348, 7
        %s350 = scalar_select %p349, %s348, 7
        %s351 = smul.addr %s350, 4
        %s352 = scalar_lea.vmem %s5, %s351
        %p353 = pneg %p164
        %p354 = pneg %p161
        %p355 = pneg %p185
        %p356 = pneg %p182
        %p357 = pneg %p206
        %p358 = pneg %p203
        %p359 = pneg %p227
        %p360 = pneg %p224
        %p361 = pneg %p255
        %p362 = pneg %p252
        %s363 = smul.u32 4, %s26
        %p364 = scmp.lt.s32.totalorder %s25, 1
        %s365 = scalar_select %p364, %s25, 1
        %p366 = scmp.lt.s32.totalorder %s363, 7
        %s367 = scalar_select %p366, %s363, 7
        %s368 = smul.addr %s365, 8
        %s369 = sadd.s32 %s367, %s368
        %s370 = smul.addr %s369, 8
        %s371 = scalar_lea.vmem %s9, %s370
        %p372 = scmp.lt.s32.totalorder %s25, 1
        %s373 = scalar_select %p372, %s25, 1
        %s374 = smul.addr %s373, 8
        %s375 = smul.addr %s374, 4
        %s376 = scalar_lea.vmem %s0, %s375
        %s377 = smul.u32 4, %s26
        %p378 = scmp.lt.s32.totalorder %s377, 7
        %s379 = scalar_select %p378, %s377, 7
        %s380 = smul.addr %s379, 4
        %s381 = scalar_lea.vmem %s5, %s380
        %s382 = smul.u32 4, %s26
        %s383 = smul.u32 4, %s26
        %p384 = scmp.lt.s32.totalorder %s25, 1
        %s385 = scalar_select %p384, %s25, 1
        %p386 = scmp.lt.s32.totalorder %s383, 7
        %s387 = scalar_select %p386, %s383, 7
        %s388 = smul.addr %s385, 8
        %s389 = sadd.s32 %s387, %s388
        %s390 = smul.addr %s389, 8
        %s391 = scalar_lea.vmem %s9, %s390
        %s392 = smul.u32 4, %s26
        %p394 = scmp.eq.s32.totalorder %s26, 0
        // Predicated region
        $region61: #{tpu_custom_call.1} parent=55 // pred_check
          %p395 = pneg %p394
        $region62: #{tpu_custom_call.1} parent=55 // pred_check_branch
          %397 = sbr.rel (%p395) target = $region64
        $region63: #{tpu_custom_call.1} parent=55 // pred_region
          %v398 = vld [vmem:[%s376] sm:$0xf]
          %v399 = vld [vmem:[%s376 + $0x4] sm:$0xf]
          %v400 = vld [vmem:[%s376 + $0x8] sm:$0xf]
          %v401 = vld [vmem:[%s376 + $0xc] sm:$0xf]
          %v402 = vld [vmem:[%s376 + $0x10] sm:$0xf]
          %v403 = vld [vmem:[%s376 + $0x14] sm:$0xf]
          %v404 = vld [vmem:[%s376 + $0x18] sm:$0xf]
          %v405 = vld [vmem:[%s376 + $0x1c] sm:$0xf]
          %v406 = vld [vmem:[%s3] sm:$0xf]
          %v407 = vld [vmem:[%s3 + $0x4] sm:$0xf]
          %v408 = vld [vmem:[%s3 + $0x8] sm:$0xf]
          %v409 = vld [vmem:[%s3 + $0xc] sm:$0xf]
          %v410 = vld [vmem:[%s4] sm:$0x1]
          %v412 = vlaneseq
          %v413 = vshrl.u32 %v412, 7
          %v414 = vsub.s32 0, %v413
          %v415 = vrot.slane %v410, %v414
          %v425 = vunpack.c.l.b16 %v398
          %v426 = vunpack.c.l.b16 %v399
          %v427 = vunpack.c.l.b16 %v400
          %v428 = vunpack.c.l.b16 %v401
          %v429 = vunpack.c.l.b16 %v402
          %v430 = vunpack.c.l.b16 %v403
          %v431 = vunpack.c.l.b16 %v404
          %v432 = vunpack.c.l.b16 %v405
          %v433 = vpack.c.b16 %v426, %v425
          %v434 = vpack.c.b16 %v428, %v427
          %v435 = vpack.c.b16 %v430, %v429
          %v436 = vpack.c.b16 %v432, %v431
          %v441 = vunpack.c.l.b16 %v406
          %v442 = vunpack.c.l.b16 %v407
          %v443 = vunpack.c.l.b16 %v408
          %v444 = vunpack.c.l.b16 %v409
          %v445 = vpack.c.b16 %v442, %v441
          %v446 = vpack.c.b16 %v444, %v443
          %vm449 = vcmask 261120
          %v451 = vsel %vm449, %v433, 0
          %v454 = vsel %vm449, %v434, 0
          %v457 = vsel %vm449, %v435, 0
          %v460 = vsel %vm449, %v436, 0
          %462 = vmatprep.subr.bf16.mxu0 0
          %463 = vmatpush1.bf16.msra.mxu0 0
          %464 = vmatprep.subr.bf16.mxu0 0
          %465 = vmatpush1.bf16.msra.mxu0 0
          %466 = vmatprep.subr.bf16.mxu0 0
          %467 = vmatpush1.bf16.msra.mxu0 0
          %468 = vmatprep.subr.bf16.mxu0 0
          %469 = vmatpush1.bf16.msra.mxu0 0
          %470 = vmatprep.subr.bf16.mxu0 0
          %471 = vmatpush1.bf16.msra.mxu0 0
          %472 = vmatprep.subr.bf16.mxu0 0
          %473 = vmatpush1.bf16.msra.mxu0 0
          %474 = vmatprep.subr.bf16.mxu0 0
          %475 = vmatpush1.bf16.msra.mxu0 %v446
          %476 = vmatprep.subr.bf16.mxu0 0
          %477 = vmatpush1.bf16.msra.mxu0 %v445
          %478 = vmatprep.subr.bf16.mxu0 0
          %479 = vmatpush2.bf16.msra.mxu0 0
          %480 = vmatprep.subr.bf16.mxu0 0
          %481 = vmatpush2.bf16.msra.mxu0 0
          %482 = vmatprep.subr.bf16.mxu0 0
          %483 = vmatpush2.bf16.msra.mxu0 0
          %484 = vmatprep.subr.bf16.mxu0 0
          %485 = vmatpush2.bf16.msra.mxu0 0
          %486 = vmatprep.subr.bf16.mxu0 0
          %487 = vmatpush2.bf16.msra.mxu0 0
          %488 = vmatprep.subr.bf16.mxu0 0
          %489 = vmatpush2.bf16.msra.mxu0 0
          %490 = vmatprep.subr.bf16.mxu0 0
          %491 = vmatpush2.bf16.msra.mxu0 0
          %492 = vmatprep.subr.bf16.mxu0 0
          %493 = vmatpush2.bf16.msra.mxu0 0
          %494 = vmatprep.mubr.bf16.mxu0 0
          %495 = vmatmul.mubr.bf16.gmra.mxu0 %v451
          %v496 = vpop.f32.mrf.mxu0
          %v497 = vadd.f32 %v415, %v496
          %v498 = vpop.f32.mrf.mxu0
          %v499 = vpop.f32.mrf.mxu0
          %v500 = vadd.f32 %v415, %v499
          %v501 = vpop.f32.mrf.mxu0
          %502 = vmatprep.mubr.bf16.mxu0 0
          %503 = vmatmul.mubr.bf16.gmra.mxu0 %v454
          %v504 = vpop.f32.mrf.mxu0
          %v505 = vadd.f32 %v415, %v504
          %v506 = vpop.f32.mrf.mxu0
          %v507 = vpop.f32.mrf.mxu0
          %v508 = vadd.f32 %v415, %v507
          %v509 = vpop.f32.mrf.mxu0
          %510 = vmatprep.mubr.bf16.mxu0 0
          %511 = vmatmul.mubr.bf16.gmra.mxu0 %v457
          %v512 = vpop.f32.mrf.mxu0
          %v513 = vadd.f32 %v415, %v512
          %v514 = vpop.f32.mrf.mxu0
          %v515 = vpop.f32.mrf.mxu0
          %v516 = vadd.f32 %v415, %v515
          %v517 = vpop.f32.mrf.mxu0
          %518 = vmatprep.mubr.bf16.mxu0 0
          %519 = vmatmul.mubr.bf16.gmra.mxu0 %v460
          %v520 = vpop.f32.mrf.mxu0
          %v521 = vadd.f32 %v415, %v520
          %v522 = vpop.f32.mrf.mxu0
          %v523 = vpop.f32.mrf.mxu0
          %v524 = vadd.f32 %v415, %v523
          %v525 = vpop.f32.mrf.mxu0
          %526 = vdwg.mxu0
          %v527 = vpack.c.bf16 %v500, %v497
          %v528 = vpack.c.bf16 %v508, %v505
          %v529 = vpack.c.bf16 %v516, %v513
          %v530 = vpack.c.bf16 %v524, %v521
          %v535 = vunpack.c.l.b16 %v527
          %v536 = vunpack.c.h.b16 %v527
          %v537 = vunpack.c.l.b16 %v528
          %v538 = vunpack.c.h.b16 %v528
          %v539 = vunpack.c.l.b16 %v529
          %v540 = vunpack.c.h.b16 %v529
          %v541 = vunpack.c.l.b16 %v530
          %v542 = vunpack.c.h.b16 %v530
          %v543 = vpack.c.b16 %v535, %v535
          %v544 = vpack.c.b16 %v536, %v536
          %v545 = vpack.c.b16 %v537, %v537
          %v546 = vpack.c.b16 %v538, %v538
          %v547 = vpack.c.b16 %v539, %v539
          %v548 = vpack.c.b16 %v540, %v540
          %v549 = vpack.c.b16 %v541, %v541
          %v550 = vpack.c.b16 %v542, %v542
          %vm559 = vcmask 519168
          %560 = vst.msk [vmem:[#allocation2] sm:$0xf] %vm559, %v543
          %561 = vst.msk [vmem:[#allocation2 + $0x4] sm:$0xf] %vm559, %v544
          %562 = vst.msk [vmem:[#allocation2 + $0x8] sm:$0xf] %vm559, %v545
          %563 = vst.msk [vmem:[#allocation2 + $0xc] sm:$0xf] %vm559, %v546
          %564 = vst.msk [vmem:[#allocation2 + $0x10] sm:$0xf] %vm559, %v547
          %565 = vst.msk [vmem:[#allocation2 + $0x14] sm:$0xf] %vm559, %v548
          %566 = vst.msk [vmem:[#allocation2 + $0x18] sm:$0xf] %vm559, %v549
          %567 = vst.msk [vmem:[#allocation2 + $0x1c] sm:$0xf] %vm559, %v550
        $region64: #{tpu_custom_call.1} parent=55 // pred_fallthru
          _
        %s568 = smul.u32 %s26, 32
        %s569 = sshra.s32 %s568, 3
        %s570 = sand.u32 %s568, 7
        %s571 = smul.addr %s569, 4
        %s572 = scalar_lea.vmem %s376, %s571
        %v573 = vld [vmem:[%s572] sm:$0xf]
        %v574 = vld [vmem:[%s572 + $0x4] sm:$0xf]
        %v575 = vld [vmem:[%s572 + $0x8] sm:$0xf]
        %v576 = vld [vmem:[%s572 + $0xc] sm:$0xf]
        %v577 = vld [vmem:[%s1] sm:$0xf]
        %v578 = vld [vmem:[%s1 + $0x4] sm:$0xf]
        %v579 = vld [vmem:[%s1 + $0x8] sm:$0xf]
        %v580 = vld [vmem:[%s1 + $0xc] sm:$0xf]
        %v581 = vld [vmem:[%s2] sm:$0x1]
        %v583 = vlaneseq
        %v584 = vshrl.u32 %v583, 7
        %v585 = vsub.s32 0, %v584
        %v586 = vrot.slane %v581, %v585
        %v592 = vunpack.c.l.b16 %v573
        %v593 = vunpack.c.l.b16 %v574
        %v594 = vunpack.c.l.b16 %v575
        %v595 = vunpack.c.l.b16 %v576
        %v596 = vpack.c.b16 %v593, %v592
        %v597 = vpack.c.b16 %v595, %v594
        %v602 = vunpack.c.l.b16 %v577
        %v603 = vunpack.c.l.b16 %v578
        %v604 = vunpack.c.l.b16 %v579
        %v605 = vunpack.c.l.b16 %v580
        %v606 = vpack.c.b16 %v603, %v602
        %v607 = vpack.c.b16 %v605, %v604
        %vm610 = vcmask 261120
        %v612 = vsel %vm610, %v596, 0
        %v615 = vsel %vm610, %v597, 0
        %617 = vmatprep.subr.bf16.mxu0 0
        %618 = vmatpush1.bf16.msra.mxu0 0
        %619 = vmatprep.subr.bf16.mxu0 0
        %620 = vmatpush1.bf16.msra.mxu0 0
        %621 = vmatprep.subr.bf16.mxu0 0
        %622 = vmatpush1.bf16.msra.mxu0 0
        %623 = vmatprep.subr.bf16.mxu0 0
        %624 = vmatpush1.bf16.msra.mxu0 0
        %625 = vmatprep.subr.bf16.mxu0 0
        %626 = vmatpush1.bf16.msra.mxu0 0
        %627 = vmatprep.subr.bf16.mxu0 0
        %628 = vmatpush1.bf16.msra.mxu0 0
        %629 = vmatprep.subr.bf16.mxu0 0
        %630 = vmatpush1.bf16.msra.mxu0 %v607
        %631 = vmatprep.subr.bf16.mxu0 0
        %632 = vmatpush1.bf16.msra.mxu0 %v606
        %633 = vmatprep.subr.bf16.mxu0 0
        %634 = vmatpush2.bf16.msra.mxu0 0
        %635 = vmatprep.subr.bf16.mxu0 0
        %636 = vmatpush2.bf16.msra.mxu0 0
        %637 = vmatprep.subr.bf16.mxu0 0
        %638 = vmatpush2.bf16.msra.mxu0 0
        %639 = vmatprep.subr.bf16.mxu0 0
        %640 = vmatpush2.bf16.msra.mxu0 0
        %641 = vmatprep.subr.bf16.mxu0 0
        %642 = vmatpush2.bf16.msra.mxu0 0
        %643 = vmatprep.subr.bf16.mxu0 0
        %644 = vmatpush2.bf16.msra.mxu0 0
        %645 = vmatprep.subr.bf16.mxu0 0
        %646 = vmatpush2.bf16.msra.mxu0 0
        %647 = vmatprep.subr.bf16.mxu0 0
        %648 = vmatpush2.bf16.msra.mxu0 0
        %649 = vmatprep.mubr.bf16.mxu0 0
        %650 = vmatmul.mubr.bf16.gmra.mxu0 %v612
        %v651 = vpop.f32.mrf.mxu0
        %v652 = vadd.f32 %v586, %v651
        %v653 = vpop.f32.mrf.mxu0
        %v654 = vpop.f32.mrf.mxu0
        %v655 = vadd.f32 %v586, %v654
        %v656 = vpop.f32.mrf.mxu0
        %657 = vmatprep.mubr.bf16.mxu0 0
        %658 = vmatmul.mubr.bf16.gmra.mxu0 %v615
        %v659 = vpop.f32.mrf.mxu0
        %v660 = vadd.f32 %v586, %v659
        %v661 = vpop.f32.mrf.mxu0
        %v662 = vpop.f32.mrf.mxu0
        %v663 = vadd.f32 %v586, %v662
        %v664 = vpop.f32.mrf.mxu0
        %665 = vdwg.mxu0
        %v666 = vpack.c.bf16 %v655, %v652
        %v667 = vpack.c.bf16 %v663, %v660
        %v668 = vld [vmem:[%s381] sm:$0xf]
        %v669 = vld [vmem:[%s381 + $0x4] sm:$0xf]
        %v670 = vld [vmem:[%s381 + $0x8] sm:$0xf]
        %v671 = vld [vmem:[%s381 + $0xc] sm:$0xf]
        %v672 = vld [vmem:[%s6] sm:$0xf]
        %v673 = vld [vmem:[%s6 + $0x4] sm:$0xf]
        %v674 = vld [vmem:[%s6 + $0x8] sm:$0xf]
        %v675 = vld [vmem:[%s6 + $0xc] sm:$0xf]
        %v676 = vld [vmem:[%s6 + $0x10] sm:$0xf]
        %v677 = vld [vmem:[%s6 + $0x14] sm:$0xf]
        %v678 = vld [vmem:[%s6 + $0x18] sm:$0xf]
        %v679 = vld [vmem:[%s6 + $0x1c] sm:$0xf]
        %v680 = vld [vmem:[#allocation2] sm:$0xf]
        %v681 = vld [vmem:[#allocation2 + $0x4] sm:$0xf]
        %v682 = vld [vmem:[#allocation2 + $0x8] sm:$0xf]
        %v683 = vld [vmem:[#allocation2 + $0xc] sm:$0xf]
        %v684 = vld [vmem:[#allocation2 + $0x10] sm:$0xf]
        %v685 = vld [vmem:[#allocation2 + $0x14] sm:$0xf]
        %v686 = vld [vmem:[#allocation2 + $0x18] sm:$0xf]
        %v687 = vld [vmem:[#allocation2 + $0x1c] sm:$0xf]
        %v690 = vunpack.c.l.b16 %v666
        %v691 = vunpack.c.h.b16 %v666
        %v692 = vunpack.c.l.b16 %v667
        %v693 = vunpack.c.h.b16 %v667
        %v694 = vpack.c.b16 %v690, %v690
        %v695 = vpack.c.b16 %v691, %v691
        %v696 = vpack.c.b16 %v692, %v692
        %v697 = vpack.c.b16 %v693, %v693
        %vm698 = vcmask 64512
        %v700 = vsel %vm698, %v694, 0
        %v703 = vsel %vm698, %v668, 0
        %705 = vmatprep.subr.bf16.mxu0 0
        %706 = vmatpush1.bf16.xpose.msra.mxu0 0
        %707 = vmatprep.subr.bf16.mxu0 0
        %708 = vmatpush1.bf16.xpose.msra.mxu0 0
        %709 = vmatprep.subr.bf16.mxu0 0
        %710 = vmatpush1.bf16.xpose.msra.mxu0 0
        %711 = vmatprep.subr.bf16.mxu0 0
        %712 = vmatpush1.bf16.xpose.msra.mxu0 0
        %713 = vmatprep.subr.bf16.mxu0 0
        %714 = vmatpush1.bf16.xpose.msra.mxu0 0
        %715 = vmatprep.subr.bf16.mxu0 0
        %716 = vmatpush1.bf16.xpose.msra.mxu0 0
        %717 = vmatprep.subr.bf16.mxu0 0
        %718 = vmatpush1.bf16.xpose.msra.mxu0 0
        %719 = vmatprep.subr.bf16.mxu0 0
        %720 = vmatpush1.bf16.xpose.msra.mxu0 %v703
        %721 = vmatprep.subr.bf16.mxu0 0
        %722 = vmatpush2.bf16.xpose.msra.mxu0 0
        %723 = vmatprep.subr.bf16.mxu0 0
        %724 = vmatpush2.bf16.xpose.msra.mxu0 0
        %725 = vmatprep.subr.bf16.mxu0 0
        %726 = vmatpush2.bf16.xpose.msra.mxu0 0
        %727 = vmatprep.subr.bf16.mxu0 0
        %728 = vmatpush2.bf16.xpose.msra.mxu0 0
        %729 = vmatprep.subr.bf16.mxu0 0
        %730 = vmatpush2.bf16.xpose.msra.mxu0 0
        %731 = vmatprep.subr.bf16.mxu0 0
        %732 = vmatpush2.bf16.xpose.msra.mxu0 0
        %733 = vmatprep.subr.bf16.mxu0 0
        %734 = vmatpush2.bf16.xpose.msra.mxu0 0
        %735 = vmatprep.subr.bf16.mxu0 0
        %736 = vmatpush2.bf16.xpose.msra.mxu0 0
        %737 = vmatprep.mubr.bf16.mxu0 0
        %738 = vmatmul.mubr.bf16.gmra.mxu0 %v700
        %v739 = vpop.f32.mrf.mxu0
        %v740 = vadd.f32 0.0, %v739
        %v741 = vpop.f32.mrf.mxu0
        %v742 = vpop.f32.mrf.mxu0
        %v743 = vpop.f32.mrf.mxu0
        %744 = vdwg.mxu0
        %v746 = vsel %vm698, %v695, 0
        %v749 = vsel %vm698, %v669, 0
        %751 = vmatprep.subr.bf16.mxu0 0
        %752 = vmatpush1.bf16.xpose.msra.mxu0 0
        %753 = vmatprep.subr.bf16.mxu0 0
        %754 = vmatpush1.bf16.xpose.msra.mxu0 0
        %755 = vmatprep.subr.bf16.mxu0 0
        %756 = vmatpush1.bf16.xpose.msra.mxu0 0
        %757 = vmatprep.subr.bf16.mxu0 0
        %758 = vmatpush1.bf16.xpose.msra.mxu0 0
        %759 = vmatprep.subr.bf16.mxu0 0
        %760 = vmatpush1.bf16.xpose.msra.mxu0 0
        %761 = vmatprep.subr.bf16.mxu0 0
        %762 = vmatpush1.bf16.xpose.msra.mxu0 0
        %763 = vmatprep.subr.bf16.mxu0 0
        %764 = vmatpush1.bf16.xpose.msra.mxu0 0
        %765 = vmatprep.subr.bf16.mxu0 0
        %766 = vmatpush1.bf16.xpose.msra.mxu0 %v749
        %767 = vmatprep.subr.bf16.mxu0 0
        %768 = vmatpush2.bf16.xpose.msra.mxu0 0
        %769 = vmatprep.subr.bf16.mxu0 0
        %770 = vmatpush2.bf16.xpose.msra.mxu0 0
        %771 = vmatprep.subr.bf16.mxu0 0
        %772 = vmatpush2.bf16.xpose.msra.mxu0 0
        %773 = vmatprep.subr.bf16.mxu0 0
        %774 = vmatpush2.bf16.xpose.msra.mxu0 0
        %775 = vmatprep.subr.bf16.mxu0 0
        %776 = vmatpush2.bf16.xpose.msra.mxu0 0
        %777 = vmatprep.subr.bf16.mxu0 0
        %778 = vmatpush2.bf16.xpose.msra.mxu0 0
        %779 = vmatprep.subr.bf16.mxu0 0
        %780 = vmatpush2.bf16.xpose.msra.mxu0 0
        %781 = vmatprep.subr.bf16.mxu0 0
        %782 = vmatpush2.bf16.xpose.msra.mxu0 0
        %783 = vmatprep.mubr.bf16.mxu0 0
        %784 = vmatmul.mubr.bf16.gmra.mxu0 %v746
        %v785 = vpop.f32.mrf.mxu0
        %v786 = vadd.f32 0.0, %v785
        %v787 = vpop.f32.mrf.mxu0
        %v788 = vpop.f32.mrf.mxu0
        %v789 = vpop.f32.mrf.mxu0
        %790 = vdwg.mxu0
        %v792 = vsel %vm698, %v696, 0
        %v795 = vsel %vm698, %v670, 0
        %797 = vmatprep.subr.bf16.mxu0 0
        %798 = vmatpush1.bf16.xpose.msra.mxu0 0
        %799 = vmatprep.subr.bf16.mxu0 0
        %800 = vmatpush1.bf16.xpose.msra.mxu0 0
        %801 = vmatprep.subr.bf16.mxu0 0
        %802 = vmatpush1.bf16.xpose.msra.mxu0 0
        %803 = vmatprep.subr.bf16.mxu0 0
        %804 = vmatpush1.bf16.xpose.msra.mxu0 0
        %805 = vmatprep.subr.bf16.mxu0 0
        %806 = vmatpush1.bf16.xpose.msra.mxu0 0
        %807 = vmatprep.subr.bf16.mxu0 0
        %808 = vmatpush1.bf16.xpose.msra.mxu0 0
        %809 = vmatprep.subr.bf16.mxu0 0
        %810 = vmatpush1.bf16.xpose.msra.mxu0 0
        %811 = vmatprep.subr.bf16.mxu0 0
        %812 = vmatpush1.bf16.xpose.msra.mxu0 %v795
        %813 = vmatprep.subr.bf16.mxu0 0
        %814 = vmatpush2.bf16.xpose.msra.mxu0 0
        %815 = vmatprep.subr.bf16.mxu0 0
        %816 = vmatpush2.bf16.xpose.msra.mxu0 0
        %817 = vmatprep.subr.bf16.mxu0 0
        %818 = vmatpush2.bf16.xpose.msra.mxu0 0
        %819 = vmatprep.subr.bf16.mxu0 0
        %820 = vmatpush2.bf16.xpose.msra.mxu0 0
        %821 = vmatprep.subr.bf16.mxu0 0
        %822 = vmatpush2.bf16.xpose.msra.mxu0 0
        %823 = vmatprep.subr.bf16.mxu0 0
        %824 = vmatpush2.bf16.xpose.msra.mxu0 0
        %825 = vmatprep.subr.bf16.mxu0 0
        %826 = vmatpush2.bf16.xpose.msra.mxu0 0
        %827 = vmatprep.subr.bf16.mxu0 0
        %828 = vmatpush2.bf16.xpose.msra.mxu0 0
        %829 = vmatprep.mubr.bf16.mxu0 0
        %830 = vmatmul.mubr.bf16.gmra.mxu0 %v792
        %v831 = vpop.f32.mrf.mxu0
        %v832 = vadd.f32 0.0, %v831
        %v833 = vpop.f32.mrf.mxu0
        %v834 = vpop.f32.mrf.mxu0
        %v835 = vpop.f32.mrf.mxu0
        %836 = vdwg.mxu0
        %v838 = vsel %vm698, %v697, 0
        %v841 = vsel %vm698, %v671, 0
        %843 = vmatprep.subr.bf16.mxu0 0
        %844 = vmatpush1.bf16.xpose.msra.mxu0 0
        %845 = vmatprep.subr.bf16.mxu0 0
        %846 = vmatpush1.bf16.xpose.msra.mxu0 0
        %847 = vmatprep.subr.bf16.mxu0 0
        %848 = vmatpush1.bf16.xpose.msra.mxu0 0
        %849 = vmatprep.subr.bf16.mxu0 0
        %850 = vmatpush1.bf16.xpose.msra.mxu0 0
        %851 = vmatprep.subr.bf16.mxu0 0
        %852 = vmatpush1.bf16.xpose.msra.mxu0 0
        %853 = vmatprep.subr.bf16.mxu0 0
        %854 = vmatpush1.bf16.xpose.msra.mxu0 0
        %855 = vmatprep.subr.bf16.mxu0 0
        %856 = vmatpush1.bf16.xpose.msra.mxu0 0
        %857 = vmatprep.subr.bf16.mxu0 0
        %858 = vmatpush1.bf16.xpose.msra.mxu0 %v841
        %859 = vmatprep.subr.bf16.mxu0 0
        %860 = vmatpush2.bf16.xpose.msra.mxu0 0
        %861 = vmatprep.subr.bf16.mxu0 0
        %862 = vmatpush2.bf16.xpose.msra.mxu0 0
        %863 = vmatprep.subr.bf16.mxu0 0
        %864 = vmatpush2.bf16.xpose.msra.mxu0 0
        %865 = vmatprep.subr.bf16.mxu0 0
        %866 = vmatpush2.bf16.xpose.msra.mxu0 0
        %867 = vmatprep.subr.bf16.mxu0 0
        %868 = vmatpush2.bf16.xpose.msra.mxu0 0
        %869 = vmatprep.subr.bf16.mxu0 0
        %870 = vmatpush2.bf16.xpose.msra.mxu0 0
        %871 = vmatprep.subr.bf16.mxu0 0
        %872 = vmatpush2.bf16.xpose.msra.mxu0 0
        %873 = vmatprep.subr.bf16.mxu0 0
        %874 = vmatpush2.bf16.xpose.msra.mxu0 0
        %875 = vmatprep.mubr.bf16.mxu0 0
        %876 = vmatmul.mubr.bf16.gmra.mxu0 %v838
        %v877 = vpop.f32.mrf.mxu0
        %v878 = vadd.f32 0.0, %v877
        %v879 = vpop.f32.mrf.mxu0
        %v880 = vpop.f32.mrf.mxu0
        %v881 = vpop.f32.mrf.mxu0
        %882 = vdwg.mxu0
        %v883 = vpack.i.b16 %v695, %v694
        %v884 = vshrl.u32 %v694, 16
        %v885 = vshrl.u32 %v695, 16
        %v886 = vpack.i.b16 %v885, %v884
        %v887 = vpack.i.b16 %v697, %v696
        %v888 = vshrl.u32 %v696, 16
        %v889 = vshrl.u32 %v697, 16
        %v890 = vpack.i.b16 %v889, %v888
        %v893 = vunpack.c.l.s4 1983009808
        %v894 = vunpack.c.0.s8 %v893
        %v895 = vlaneseq
        %v896 = vshrl.u32 %v895, 7
        %v897 = vsub.s32 %v894, %v896
        %v898 = vrot.slane %v883, %v897
        %v901 = vunpack.c.l.s4 1983009808
        %v902 = vunpack.c.0.s8 %v901
        %v903 = vlaneseq
        %v904 = vshrl.u32 %v903, 7
        %v905 = vsub.s32 %v902, %v904
        %v906 = vrot.slane %v887, %v905
        %v907 = vcombine.low %v898, %v906
        %v908 = vcombine.high %v898, %v906
        %v910 = vunpack.c.l.s4 1934713408
        %v911 = vunpack.c.0.s8 %v910
        %v912 = vlaneseq
        %v913 = vshrl.u32 %v912, 7
        %v914 = vsub.s32 %v911, %v913
        %v915 = vrot.slane %v907, %v914
        %v917 = vunpack.c.l.s4 1934713408
        %v918 = vunpack.c.0.s8 %v917
        %v919 = vlaneseq
        %v920 = vshrl.u32 %v919, 7
        %v921 = vsub.s32 %v918, %v920
        %v922 = vrot.slane %v908, %v921
        %v923 = vcombine.high %v915, 0
        %v924 = vcombine.high %v922, 0
        %v927 = vunpack.c.l.s4 1983009808
        %v928 = vunpack.c.0.s8 %v927
        %v929 = vlaneseq
        %v930 = vshrl.u32 %v929, 7
        %v931 = vsub.s32 %v928, %v930
        %v932 = vrot.slane %v886, %v931
        %v935 = vunpack.c.l.s4 1983009808
        %v936 = vunpack.c.0.s8 %v935
        %v937 = vlaneseq
        %v938 = vshrl.u32 %v937, 7
        %v939 = vsub.s32 %v936, %v938
        %v940 = vrot.slane %v890, %v939
        %v941 = vcombine.low %v932, %v940
        %v942 = vcombine.high %v932, %v940
        %v944 = vunpack.c.l.s4 1934713408
        %v945 = vunpack.c.0.s8 %v944
        %v946 = vlaneseq
        %v947 = vshrl.u32 %v946, 7
        %v948 = vsub.s32 %v945, %v947
        %v949 = vrot.slane %v941, %v948
        %v951 = vunpack.c.l.s4 1934713408
        %v952 = vunpack.c.0.s8 %v951
        %v953 = vlaneseq
        %v954 = vshrl.u32 %v953, 7
        %v955 = vsub.s32 %v952, %v954
        %v956 = vrot.slane %v942, %v955
        %v957 = vcombine.high %v949, 0
        %v958 = vcombine.high %v956, 0
        %v960 = vsel %vm698, %v915, 0
        %v963 = vsel %vm698, %v672, 0
        %965 = vmatprep.subr.bf16.mxu0 0
        %966 = vmatpush1.bf16.xpose.msra.mxu0 0
        %967 = vmatprep.subr.bf16.mxu0 0
        %968 = vmatpush1.bf16.xpose.msra.mxu0 0
        %969 = vmatprep.subr.bf16.mxu0 0
        %970 = vmatpush1.bf16.xpose.msra.mxu0 0
        %971 = vmatprep.subr.bf16.mxu0 0
        %972 = vmatpush1.bf16.xpose.msra.mxu0 0
        %973 = vmatprep.subr.bf16.mxu0 0
        %974 = vmatpush1.bf16.xpose.msra.mxu0 0
        %975 = vmatprep.subr.bf16.mxu0 0
        %976 = vmatpush1.bf16.xpose.msra.mxu0 0
        %977 = vmatprep.subr.bf16.mxu0 0
        %978 = vmatpush1.bf16.xpose.msra.mxu0 0
        %979 = vmatprep.subr.bf16.mxu0 0
        %980 = vmatpush1.bf16.xpose.msra.mxu0 %v963
        %981 = vmatprep.subr.bf16.mxu0 0
        %982 = vmatpush2.bf16.xpose.msra.mxu0 0
        %983 = vmatprep.subr.bf16.mxu0 0
        %984 = vmatpush2.bf16.xpose.msra.mxu0 0
        %985 = vmatprep.subr.bf16.mxu0 0
        %986 = vmatpush2.bf16.xpose.msra.mxu0 0
        %987 = vmatprep.subr.bf16.mxu0 0
        %988 = vmatpush2.bf16.xpose.msra.mxu0 0
        %989 = vmatprep.subr.bf16.mxu0 0
        %990 = vmatpush2.bf16.xpose.msra.mxu0 0
        %991 = vmatprep.subr.bf16.mxu0 0
        %992 = vmatpush2.bf16.xpose.msra.mxu0 0
        %993 = vmatprep.subr.bf16.mxu0 0
        %994 = vmatpush2.bf16.xpose.msra.mxu0 0
        %995 = vmatprep.subr.bf16.mxu0 0
        %996 = vmatpush2.bf16.xpose.msra.mxu0 0
        %997 = vmatprep.mubr.bf16.mxu0 0
        %998 = vmatmul.mubr.bf16.gmra.mxu0 %v960
        %v999 = vpop.f32.mrf.mxu0
        %v1000 = vadd.f32 0.0, %v999
        %v1001 = vpop.f32.mrf.mxu0
        %v1002 = vpop.f32.mrf.mxu0
        %v1003 = vpop.f32.mrf.mxu0
        %1004 = vdwg.mxu0
        %v1006 = vsel %vm698, %v949, 0
        %v1009 = vsel %vm698, %v673, 0
        %1011 = vmatprep.subr.bf16.mxu0 0
        %1012 = vmatpush1.bf16.xpose.msra.mxu0 0
        %1013 = vmatprep.subr.bf16.mxu0 0
        %1014 = vmatpush1.bf16.xpose.msra.mxu0 0
        %1015 = vmatprep.subr.bf16.mxu0 0
        %1016 = vmatpush1.bf16.xpose.msra.mxu0 0
        %1017 = vmatprep.subr.bf16.mxu0 0
        %1018 = vmatpush1.bf16.xpose.msra.mxu0 0
        %1019 = vmatprep.subr.bf16.mxu0 0
        %1020 = vmatpush1.bf16.xpose.msra.mxu0 0
        %1021 = vmatprep.subr.bf16.mxu0 0
        %1022 = vmatpush1.bf16.xpose.msra.mxu0 0
        %1023 = vmatprep.subr.bf16.mxu0 0
        %1024 = vmatpush1.bf16.xpose.msra.mxu0 0
        %1025 = vmatprep.subr.bf16.mxu0 0
        %1026 = vmatpush1.bf16.xpose.msra.mxu0 %v1009
        %1027 = vmatprep.subr.bf16.mxu0 0
        %1028 = vmatpush2.bf16.xpose.msra.mxu0 0
        %1029 = vmatprep.subr.bf16.mxu0 0
        %1030 = vmatpush2.bf16.xpose.msra.mxu0 0
        %1031 = vmatprep.subr.bf16.mxu0 0
        %1032 = vmatpush2.bf16.xpose.msra.mxu0 0
        %1033 = vmatprep.subr.bf16.mxu0 0
        %1034 = vmatpush2.bf16.xpose.msra.mxu0 0
        %1035 = vmatprep.subr.bf16.mxu0 0
        %1036 = vmatpush2.bf16.xpose.msra.mxu0 0
        %1037 = vmatprep.subr.bf16.mxu0 0
        %1038 = vmatpush2.bf16.xpose.msra.mxu0 0
        %1039 = vmatprep.subr.bf16.mxu0 0
        %1040 = vmatpush2.bf16.xpose.msra.mxu0 0
        %1041 = vmatprep.subr.bf16.mxu0 0
        %1042 = vmatpush2.bf16.xpose.msra.mxu0 0
        %1043 = vmatprep.mubr.bf16.mxu0 0
        %1044 = vmatmul.mubr.bf16.gmra.mxu0 %v1006
        %v1045 = vpop.f32.mrf.mxu0
        %v1046 = vadd.f32 0.0, %v1045
        %v1047 = vpop.f32.mrf.mxu0
        %v1048 = vpop.f32.mrf.mxu0
        %v1049 = vpop.f32.mrf.mxu0
        %1050 = vdwg.mxu0
        %v1052 = vsel %vm698, %v923, 0
        %v1055 = vsel %vm698, %v674, 0
        %1057 = vmatprep.subr.bf16.mxu0 0
        %1058 = vmatpush1.bf16.xpose.msra.mxu0 0
        %1059 = vmatprep.subr.bf16.mxu0 0
        %1060 = vmatpush1.bf16.xpose.msra.mxu0 0
        %1061 = vmatprep.subr.bf16.mxu0 0
        %1062 = vmatpush1.bf16.xpose.msra.mxu0 0
        %1063 = vmatprep.subr.bf16.mxu0 0
        %1064 = vmatpush1.bf16.xpose.msra.mxu0 0
        %1065 = vmatprep.subr.bf16.mxu0 0
        %1066 = vmatpush1.bf16.xpose.msra.mxu0 0
        %1067 = vmatprep.subr.bf16.mxu0 0
        %1068 = vmatpush1.bf16.xpose.msra.mxu0 0
        %1069 = vmatprep.subr.bf16.mxu0 0
        %1070 = vmatpush1.bf16.xpose.msra.mxu0 0
        %1071 = vmatprep.subr.bf16.mxu0 0
        %1072 = vmatpush1.bf16.xpose.msra.mxu0 %v1055
        %1073 = vmatprep.subr.bf16.mxu0 0
        %1074 = vmatpush2.bf16.xpose.msra.mxu0 0
        %1075 = vmatprep.subr.bf16.mxu0 0
        %1076 = vmatpush2.bf16.xpose.msra.mxu0 0
        %1077 = vmatprep.subr.bf16.mxu0 0
        %1078 = vmatpush2.bf16.xpose.msra.mxu0 0
        %1079 = vmatprep.subr.bf16.mxu0 0
        %1080 = vmatpush2.bf16.xpose.msra.mxu0 0
        %1081 = vmatprep.subr.bf16.mxu0 0
        %1082 = vmatpush2.bf16.xpose.msra.mxu0 0
        %1083 = vmatprep.subr.bf16.mxu0 0
        %1084 = vmatpush2.bf16.xpose.msra.mxu0 0
        %1085 = vmatprep.subr.bf16.mxu0 0
        %1086 = vmatpush2.bf16.xpose.msra.mxu0 0
        %1087 = vmatprep.subr.bf16.mxu0 0
        %1088 = vmatpush2.bf16.xpose.msra.mxu0 0
        %1089 = vmatprep.mubr.bf16.mxu0 0
        %1090 = vmatmul.mubr.bf16.gmra.mxu0 %v1052
        %v1091 = vpop.f32.mrf.mxu0
        %v1092 = vadd.f32 0.0, %v1091
        %v1093 = vpop.f32.mrf.mxu0
        %v1094 = vpop.f32.mrf.mxu0
        %v1095 = vpop.f32.mrf.mxu0
        %1096 = vdwg.mxu0
        %v1098 = vsel %vm698, %v957, 0
        %v1101 = vsel %vm698, %v675, 0
        %1103 = vmatprep.subr.bf16.mxu0 0
        %1104 = vmatpush1.bf16.xpose.msra.mxu0 0
        %1105 = vmatprep.subr.bf16.mxu0 0
        %1106 = vmatpush1.bf16.xpose.msra.mxu0 0
        %1107 = vmatprep.subr.bf16.mxu0 0
        %1108 = vmatpush1.bf16.xpose.msra.mxu0 0
        %1109 = vmatprep.subr.bf16.mxu0 0
        %1110 = vmatpush1.bf16.xpose.msra.mxu0 0
        %1111 = vmatprep.subr.bf16.mxu0 0
        %1112 = vmatpush1.bf16.xpose.msra.mxu0 0
        %1113 = vmatprep.subr.bf16.mxu0 0
        %1114 = vmatpush1.bf16.xpose.msra.mxu0 0
        %1115 = vmatprep.subr.bf16.mxu0 0
        %1116 = vmatpush1.bf16.xpose.msra.mxu0 0
        %1117 = vmatprep.subr.bf16.mxu0 0
        %1118 = vmatpush1.bf16.xpose.msra.mxu0 %v1101
        %1119 = vmatprep.subr.bf16.mxu0 0
        %1120 = vmatpush2.bf16.xpose.msra.mxu0 0
        %1121 = vmatprep.subr.bf16.mxu0 0
        %1122 = vmatpush2.bf16.xpose.msra.mxu0 0
        %1123 = vmatprep.subr.bf16.mxu0 0
        %1124 = vmatpush2.bf16.xpose.msra.mxu0 0
        %1125 = vmatprep.subr.bf16.mxu0 0
        %1126 = vmatpush2.bf16.xpose.msra.mxu0 0
        %1127 = vmatprep.subr.bf16.mxu0 0
        %1128 = vmatpush2.bf16.xpose.msra.mxu0 0
        %1129 = vmatprep.subr.bf16.mxu0 0
        %1130 = vmatpush2.bf16.xpose.msra.mxu0 0
        %1131 = vmatprep.subr.bf16.mxu0 0
        %1132 = vmatpush2.bf16.xpose.msra.mxu0 0
        %1133 = vmatprep.subr.bf16.mxu0 0
        %1134 = vmatpush2.bf16.xpose.msra.mxu0 0
        %1135 = vmatprep.mubr.bf16.mxu0 0
        %1136 = vmatmul.mubr.bf16.gmra.mxu0 %v1098
        %v1137 = vpop.f32.mrf.mxu0
        %v1138 = vadd.f32 0.0, %v1137
        %v1139 = vpop.f32.mrf.mxu0
        %v1140 = vpop.f32.mrf.mxu0
        %v1141 = vpop.f32.mrf.mxu0
        %1142 = vdwg.mxu0
        %v1144 = vsel %vm698, %v922, 0
        %v1147 = vsel %vm698, %v676, 0
        %1149 = vmatprep.subr.bf16.mxu0 0
        %1150 = vmatpush1.bf16.xpose.msra.mxu0 0
        %1151 = vmatprep.subr.bf16.mxu0 0
        %1152 = vmatpush1.bf16.xpose.msra.mxu0 0
        %1153 = vmatprep.subr.bf16.mxu0 0
        %1154 = vmatpush1.bf16.xpose.msra.mxu0 0
        %1155 = vmatprep.subr.bf16.mxu0 0
        %1156 = vmatpush1.bf16.xpose.msra.mxu0 0
        %1157 = vmatprep.subr.bf16.mxu0 0
        %1158 = vmatpush1.bf16.xpose.msra.mxu0 0
        %1159 = vmatprep.subr.bf16.mxu0 0
        %1160 = vmatpush1.bf16.xpose.msra.mxu0 0
        %1161 = vmatprep.subr.bf16.mxu0 0
        %1162 = vmatpush1.bf16.xpose.msra.mxu0 0
        %1163 = vmatprep.subr.bf16.mxu0 0
        %1164 = vmatpush1.bf16.xpose.msra.mxu0 %v1147
        %1165 = vmatprep.subr.bf16.mxu0 0
        %1166 = vmatpush2.bf16.xpose.msra.mxu0 0
        %1167 = vmatprep.subr.bf16.mxu0 0
        %1168 = vmatpush2.bf16.xpose.msra.mxu0 0
        %1169 = vmatprep.subr.bf16.mxu0 0
        %1170 = vmatpush2.bf16.xpose.msra.mxu0 0
        %1171 = vmatprep.subr.bf16.mxu0 0
        %1172 = vmatpush2.bf16.xpose.msra.mxu0 0
        %1173 = vmatprep.subr.bf16.mxu0 0
        %1174 = vmatpush2.bf16.xpose.msra.mxu0 0
        %1175 = vmatprep.subr.bf16.mxu0 0
        %1176 = vmatpush2.bf16.xpose.msra.mxu0 0
        %1177 = vmatprep.subr.bf16.mxu0 0
        %1178 = vmatpush2.bf16.xpose.msra.mxu0 0
        %1179 = vmatprep.subr.bf16.mxu0 0
        %1180 = vmatpush2.bf16.xpose.msra.mxu0 0
        %1181 = vmatprep.mubr.bf16.mxu0 0
        %1182 = vmatmul.mubr.bf16.gmra.mxu0 %v1144
        %v1183 = vpop.f32.mrf.mxu0
        %v1184 = vadd.f32 0.0, %v1183
        %v1185 = vpop.f32.mrf.mxu0
        %v1186 = vpop.f32.mrf.mxu0
        %v1187 = vpop.f32.mrf.mxu0
        %1188 = vdwg.mxu0
        %v1190 = vsel %vm698, %v956, 0
        %v1193 = vsel %vm698, %v677, 0
        %1195 = vmatprep.subr.bf16.mxu0 0
        %1196 = vmatpush1.bf16.xpose.msra.mxu0 0
        %1197 = vmatprep.subr.bf16.mxu0 0
        %1198 = vmatpush1.bf16.xpose.msra.mxu0 0
        %1199 = vmatprep.subr.bf16.mxu0 0
        %1200 = vmatpush1.bf16.xpose.msra.mxu0 0
        %1201 = vmatprep.subr.bf16.mxu0 0
        %1202 = vmatpush1.bf16.xpose.msra.mxu0 0
        %1203 = vmatprep.subr.bf16.mxu0 0
        %1204 = vmatpush1.bf16.xpose.msra.mxu0 0
        %1205 = vmatprep.subr.bf16.mxu0 0
        %1206 = vmatpush1.bf16.xpose.msra.mxu0 0
        %1207 = vmatprep.subr.bf16.mxu0 0
        %1208 = vmatpush1.bf16.xpose.msra.mxu0 0
        %1209 = vmatprep.subr.bf16.mxu0 0
        %1210 = vmatpush1.bf16.xpose.msra.mxu0 %v1193
        %1211 = vmatprep.subr.bf16.mxu0 0
        %1212 = vmatpush2.bf16.xpose.msra.mxu0 0
        %1213 = vmatprep.subr.bf16.mxu0 0
        %1214 = vmatpush2.bf16.xpose.msra.mxu0 0
        %1215 = vmatprep.subr.bf16.mxu0 0
        %1216 = vmatpush2.bf16.xpose.msra.mxu0 0
        %1217 = vmatprep.subr.bf16.mxu0 0
        %1218 = vmatpush2.bf16.xpose.msra.mxu0 0
        %1219 = vmatprep.subr.bf16.mxu0 0
        %1220 = vmatpush2.bf16.xpose.msra.mxu0 0
        %1221 = vmatprep.subr.bf16.mxu0 0
        %1222 = vmatpush2.bf16.xpose.msra.mxu0 0
        %1223 = vmatprep.subr.bf16.mxu0 0
        %1224 = vmatpush2.bf16.xpose.msra.mxu0 0
        %1225 = vmatprep.subr.bf16.mxu0 0
        %1226 = vmatpush2.bf16.xpose.msra.mxu0 0
        %1227 = vmatprep.mubr.bf16.mxu0 0
        %1228 = vmatmul.mubr.bf16.gmra.mxu0 %v1190
        %v1229 = vpop.f32.mrf.mxu0
        %v1230 = vadd.f32 0.0, %v1229
        %v1231 = vpop.f32.mrf.mxu0
        %v1232 = vpop.f32.mrf.mxu0
        %v1233 = vpop.f32.mrf.mxu0
        %1234 = vdwg.mxu0
        %v1236 = vsel %vm698, %v924, 0
        %v1239 = vsel %vm698, %v678, 0
        %1241 = vmatprep.subr.bf16.mxu0 0
        %1242 = vmatpush1.bf16.xpose.msra.mxu0 0
        %1243 = vmatprep.subr.bf16.mxu0 0
        %1244 = vmatpush1.bf16.xpose.msra.mxu0 0
        %1245 = vmatprep.subr.bf16.mxu0 0
        %1246 = vmatpush1.bf16.xpose.msra.mxu0 0
        %1247 = vmatprep.subr.bf16.mxu0 0
        %1248 = vmatpush1.bf16.xpose.msra.mxu0 0
        %1249 = vmatprep.subr.bf16.mxu0 0
        %1250 = vmatpush1.bf16.xpose.msra.mxu0 0
        %1251 = vmatprep.subr.bf16.mxu0 0
        %1252 = vmatpush1.bf16.xpose.msra.mxu0 0
        %1253 = vmatprep.subr.bf16.mxu0 0
        %1254 = vmatpush1.bf16.xpose.msra.mxu0 0
        %1255 = vmatprep.subr.bf16.mxu0 0
        %1256 = vmatpush1.bf16.xpose.msra.mxu0 %v1239
        %1257 = vmatprep.subr.bf16.mxu0 0
        %1258 = vmatpush2.bf16.xpose.msra.mxu0 0
        %1259 = vmatprep.subr.bf16.mxu0 0
        %1260 = vmatpush2.bf16.xpose.msra.mxu0 0
        %1261 = vmatprep.subr.bf16.mxu0 0
        %1262 = vmatpush2.bf16.xpose.msra.mxu0 0
        %1263 = vmatprep.subr.bf16.mxu0 0
        %1264 = vmatpush2.bf16.xpose.msra.mxu0 0
        %1265 = vmatprep.subr.bf16.mxu0 0
        %1266 = vmatpush2.bf16.xpose.msra.mxu0 0
        %1267 = vmatprep.subr.bf16.mxu0 0
        %1268 = vmatpush2.bf16.xpose.msra.mxu0 0
        %1269 = vmatprep.subr.bf16.mxu0 0
        %1270 = vmatpush2.bf16.xpose.msra.mxu0 0
        %1271 = vmatprep.subr.bf16.mxu0 0
        %1272 = vmatpush2.bf16.xpose.msra.mxu0 0
        %1273 = vmatprep.mubr.bf16.mxu0 0
        %1274 = vmatmul.mubr.bf16.gmra.mxu0 %v1236
        %v1275 = vpop.f32.mrf.mxu0
        %v1276 = vadd.f32 0.0, %v1275
        %v1277 = vpop.f32.mrf.mxu0
        %v1278 = vpop.f32.mrf.mxu0
        %v1279 = vpop.f32.mrf.mxu0
        %1280 = vdwg.mxu0
        %v1282 = vsel %vm698, %v958, 0
        %v1285 = vsel %vm698, %v679, 0
        %1287 = vmatprep.subr.bf16.mxu0 0
        %1288 = vmatpush1.bf16.xpose.msra.mxu0 0
        %1289 = vmatprep.subr.bf16.mxu0 0
        %1290 = vmatpush1.bf16.xpose.msra.mxu0 0
        %1291 = vmatprep.subr.bf16.mxu0 0
        %1292 = vmatpush1.bf16.xpose.msra.mxu0 0
        %1293 = vmatprep.subr.bf16.mxu0 0
        %1294 = vmatpush1.bf16.xpose.msra.mxu0 0
        %1295 = vmatprep.subr.bf16.mxu0 0
        %1296 = vmatpush1.bf16.xpose.msra.mxu0 0
        %1297 = vmatprep.subr.bf16.mxu0 0
        %1298 = vmatpush1.bf16.xpose.msra.mxu0 0
        %1299 = vmatprep.subr.bf16.mxu0 0
        %1300 = vmatpush1.bf16.xpose.msra.mxu0 0
        %1301 = vmatprep.subr.bf16.mxu0 0
        %1302 = vmatpush1.bf16.xpose.msra.mxu0 %v1285
        %1303 = vmatprep.subr.bf16.mxu0 0
        %1304 = vmatpush2.bf16.xpose.msra.mxu0 0
        %1305 = vmatprep.subr.bf16.mxu0 0
        %1306 = vmatpush2.bf16.xpose.msra.mxu0 0
        %1307 = vmatprep.subr.bf16.mxu0 0
        %1308 = vmatpush2.bf16.xpose.msra.mxu0 0
        %1309 = vmatprep.subr.bf16.mxu0 0
        %1310 = vmatpush2.bf16.xpose.msra.mxu0 0
        %1311 = vmatprep.subr.bf16.mxu0 0
        %1312 = vmatpush2.bf16.xpose.msra.mxu0 0
        %1313 = vmatprep.subr.bf16.mxu0 0
        %1314 = vmatpush2.bf16.xpose.msra.mxu0 0
        %1315 = vmatprep.subr.bf16.mxu0 0
        %1316 = vmatpush2.bf16.xpose.msra.mxu0 0
        %1317 = vmatprep.subr.bf16.mxu0 0
        %1318 = vmatpush2.bf16.xpose.msra.mxu0 0
        %1319 = vmatprep.mubr.bf16.mxu0 0
        %1320 = vmatmul.mubr.bf16.gmra.mxu0 %v1282
        %v1321 = vpop.f32.mrf.mxu0
        %v1322 = vadd.f32 0.0, %v1321
        %v1323 = vpop.f32.mrf.mxu0
        %v1324 = vpop.f32.mrf.mxu0
        %v1325 = vpop.f32.mrf.mxu0
        %1326 = vdwg.mxu0
        %v1327 = vcombine.low %v1000, %v1092
        %v1329 = vunpack.c.l.s4 1983009808
        %v1330 = vunpack.c.0.s8 %v1329
        %v1331 = vlaneseq
        %v1332 = vshrl.u32 %v1331, 7
        %v1333 = vsub.s32 %v1330, %v1332
        %v1334 = vrot.slane %v1327, %v1333
        %v1335 = vcombine.low %v1046, %v1138
        %v1337 = vunpack.c.l.s4 1983009808
        %v1338 = vunpack.c.0.s8 %v1337
        %v1339 = vlaneseq
        %v1340 = vshrl.u32 %v1339, 7
        %v1341 = vsub.s32 %v1338, %v1340
        %v1342 = vrot.slane %v1335, %v1341
        %v1343 = vcombine.low %v1184, %v1276
        %v1345 = vunpack.c.l.s4 1983009808
        %v1346 = vunpack.c.0.s8 %v1345
        %v1347 = vlaneseq
        %v1348 = vshrl.u32 %v1347, 7
        %v1349 = vsub.s32 %v1346, %v1348
        %v1350 = vrot.slane %v1343, %v1349
        %v1351 = vcombine.low %v1230, %v1322
        %v1353 = vunpack.c.l.s4 1983009808
        %v1354 = vunpack.c.0.s8 %v1353
        %v1355 = vlaneseq
        %v1356 = vshrl.u32 %v1355, 7
        %v1357 = vsub.s32 %v1354, %v1356
        %v1358 = vrot.slane %v1351, %v1357
        %v1359 = vcombine.low %v1334, %v1342
        %v1360 = vcombine.high %v1334, %v1342
        %v1362 = vunpack.c.l.s4 1934713408
        %v1363 = vunpack.c.0.s8 %v1362
        %v1364 = vlaneseq
        %v1365 = vshrl.u32 %v1364, 7
        %v1366 = vsub.s32 %v1363, %v1365
        %v1367 = vrot.slane %v1359, %v1366
        %v1369 = vunpack.c.l.s4 1934713408
        %v1370 = vunpack.c.0.s8 %v1369
        %v1371 = vlaneseq
        %v1372 = vshrl.u32 %v1371, 7
        %v1373 = vsub.s32 %v1370, %v1372
        %v1374 = vrot.slane %v1360, %v1373
        %v1375 = vcombine.low %v1350, %v1358
        %v1376 = vcombine.high %v1350, %v1358
        %v1378 = vunpack.c.l.s4 1934713408
        %v1379 = vunpack.c.0.s8 %v1378
        %v1380 = vlaneseq
        %v1381 = vshrl.u32 %v1380, 7
        %v1382 = vsub.s32 %v1379, %v1381
        %v1383 = vrot.slane %v1375, %v1382
        %v1385 = vunpack.c.l.s4 1934713408
        %v1386 = vunpack.c.0.s8 %v1385
        %v1387 = vlaneseq
        %v1388 = vshrl.u32 %v1387, 7
        %v1389 = vsub.s32 %v1386, %v1388
        %v1390 = vrot.slane %v1376, %v1389
        %v1391 = vcombine.low %v1367, %v1383
        %v1392 = vcombine.high %v1367, %v1383
        %v1393 = vcombine.low %v1374, %v1390
        %v1394 = vcombine.high %v1374, %v1390
        %v1395 = vlaneseq
        %v1396 = vshrl.u32 %v1395, 7
        %v1397 = vsub.s32 0, %v1396
        %v1398 = vrot.slane %v740, %v1397
        %1400 = vbcast.lane.b32.xlu0 %v1398, 256
        %v1401 = vpop.permute.xlu0 %1400
        %v1402 = vlaneseq
        %v1403 = vshrl.u32 %v1402, 7
        %v1404 = vsub.s32 1, %v1403
        %v1405 = vrot.slane %v740, %v1404
        %1407 = vbcast.lane.b32.xlu0 %v1405, 256
        %v1408 = vpop.permute.xlu0 %1407
        %v1409 = vlaneseq
        %v1410 = vshrl.u32 %v1409, 7
        %v1411 = vsub.s32 2, %v1410
        %v1412 = vrot.slane %v740, %v1411
        %1414 = vbcast.lane.b32.xlu0 %v1412, 256
        %v1415 = vpop.permute.xlu0 %1414
        %v1416 = vlaneseq
        %v1417 = vshrl.u32 %v1416, 7
        %v1418 = vsub.s32 3, %v1417
        %v1419 = vrot.slane %v740, %v1418
        %1421 = vbcast.lane.b32.xlu0 %v1419, 256
        %v1422 = vpop.permute.xlu0 %1421
        %v1423 = vlaneseq
        %v1424 = vshrl.u32 %v1423, 7
        %v1425 = vsub.s32 4, %v1424
        %v1426 = vrot.slane %v740, %v1425
        %1428 = vbcast.lane.b32.xlu0 %v1426, 256
        %v1429 = vpop.permute.xlu0 %1428
        %v1430 = vlaneseq
        %v1431 = vshrl.u32 %v1430, 7
        %v1432 = vsub.s32 5, %v1431
        %v1433 = vrot.slane %v740, %v1432
        %1435 = vbcast.lane.b32.xlu0 %v1433, 256
        %v1436 = vpop.permute.xlu0 %1435
        %v1437 = vlaneseq
        %v1438 = vshrl.u32 %v1437, 7
        %v1439 = vsub.s32 6, %v1438
        %v1440 = vrot.slane %v740, %v1439
        %1442 = vbcast.lane.b32.xlu0 %v1440, 256
        %v1443 = vpop.permute.xlu0 %1442
        %v1444 = vlaneseq
        %v1445 = vshrl.u32 %v1444, 7
        %v1446 = vsub.s32 7, %v1445
        %v1447 = vrot.slane %v740, %v1446
        %1449 = vbcast.lane.b32.xlu0 %v1447, 256
        %v1450 = vpop.permute.xlu0 %1449
        %v1451 = vlaneseq
        %v1452 = vshrl.u32 %v1451, 7
        %v1453 = vsub.s32 0, %v1452
        %v1454 = vrot.slane %v786, %v1453
        %1456 = vbcast.lane.b32.xlu0 %v1454, 256
        %v1457 = vpop.permute.xlu0 %1456
        %v1458 = vlaneseq
        %v1459 = vshrl.u32 %v1458, 7
        %v1460 = vsub.s32 1, %v1459
        %v1461 = vrot.slane %v786, %v1460
        %1463 = vbcast.lane.b32.xlu0 %v1461, 256
        %v1464 = vpop.permute.xlu0 %1463
        %v1465 = vlaneseq
        %v1466 = vshrl.u32 %v1465, 7
        %v1467 = vsub.s32 2, %v1466
        %v1468 = vrot.slane %v786, %v1467
        %1470 = vbcast.lane.b32.xlu0 %v1468, 256
        %v1471 = vpop.permute.xlu0 %1470
        %v1472 = vlaneseq
        %v1473 = vshrl.u32 %v1472, 7
        %v1474 = vsub.s32 3, %v1473
        %v1475 = vrot.slane %v786, %v1474
        %1477 = vbcast.lane.b32.xlu0 %v1475, 256
        %v1478 = vpop.permute.xlu0 %1477
        %v1479 = vlaneseq
        %v1480 = vshrl.u32 %v1479, 7
        %v1481 = vsub.s32 4, %v1480
        %v1482 = vrot.slane %v786, %v1481
        %1484 = vbcast.lane.b32.xlu0 %v1482, 256
        %v1485 = vpop.permute.xlu0 %1484
        %v1486 = vlaneseq
        %v1487 = vshrl.u32 %v1486, 7
        %v1488 = vsub.s32 5, %v1487
        %v1489 = vrot.slane %v786, %v1488
        %1491 = vbcast.lane.b32.xlu0 %v1489, 256
        %v1492 = vpop.permute.xlu0 %1491
        %v1493 = vlaneseq
        %v1494 = vshrl.u32 %v1493, 7
        %v1495 = vsub.s32 6, %v1494
        %v1496 = vrot.slane %v786, %v1495
        %1498 = vbcast.lane.b32.xlu0 %v1496, 256
        %v1499 = vpop.permute.xlu0 %1498
        %v1500 = vlaneseq
        %v1501 = vshrl.u32 %v1500, 7
        %v1502 = vsub.s32 7, %v1501
        %v1503 = vrot.slane %v786, %v1502
        %1505 = vbcast.lane.b32.xlu0 %v1503, 256
        %v1506 = vpop.permute.xlu0 %1505
        %v1507 = vlaneseq
        %v1508 = vshrl.u32 %v1507, 7
        %v1509 = vsub.s32 0, %v1508
        %v1510 = vrot.slane %v832, %v1509
        %1512 = vbcast.lane.b32.xlu0 %v1510, 256
        %v1513 = vpop.permute.xlu0 %1512
        %v1514 = vlaneseq
        %v1515 = vshrl.u32 %v1514, 7
        %v1516 = vsub.s32 1, %v1515
        %v1517 = vrot.slane %v832, %v1516
        %1519 = vbcast.lane.b32.xlu0 %v1517, 256
        %v1520 = vpop.permute.xlu0 %1519
        %v1521 = vlaneseq
        %v1522 = vshrl.u32 %v1521, 7
        %v1523 = vsub.s32 2, %v1522
        %v1524 = vrot.slane %v832, %v1523
        %1526 = vbcast.lane.b32.xlu0 %v1524, 256
        %v1527 = vpop.permute.xlu0 %1526
        %v1528 = vlaneseq
        %v1529 = vshrl.u32 %v1528, 7
        %v1530 = vsub.s32 3, %v1529
        %v1531 = vrot.slane %v832, %v1530
        %1533 = vbcast.lane.b32.xlu0 %v1531, 256
        %v1534 = vpop.permute.xlu0 %1533
        %v1535 = vlaneseq
        %v1536 = vshrl.u32 %v1535, 7
        %v1537 = vsub.s32 4, %v1536
        %v1538 = vrot.slane %v832, %v1537
        %1540 = vbcast.lane.b32.xlu0 %v1538, 256
        %v1541 = vpop.permute.xlu0 %1540
        %v1542 = vlaneseq
        %v1543 = vshrl.u32 %v1542, 7
        %v1544 = vsub.s32 5, %v1543
        %v1545 = vrot.slane %v832, %v1544
        %1547 = vbcast.lane.b32.xlu0 %v1545, 256
        %v1548 = vpop.permute.xlu0 %1547
        %v1549 = vlaneseq
        %v1550 = vshrl.u32 %v1549, 7
        %v1551 = vsub.s32 6, %v1550
        %v1552 = vrot.slane %v832, %v1551
        %1554 = vbcast.lane.b32.xlu0 %v1552, 256
        %v1555 = vpop.permute.xlu0 %1554
        %v1556 = vlaneseq
        %v1557 = vshrl.u32 %v1556, 7
        %v1558 = vsub.s32 7, %v1557
        %v1559 = vrot.slane %v832, %v1558
        %1561 = vbcast.lane.b32.xlu0 %v1559, 256
        %v1562 = vpop.permute.xlu0 %1561
        %v1563 = vlaneseq
        %v1564 = vshrl.u32 %v1563, 7
        %v1565 = vsub.s32 0, %v1564
        %v1566 = vrot.slane %v878, %v1565
        %1568 = vbcast.lane.b32.xlu0 %v1566, 256
        %v1569 = vpop.permute.xlu0 %1568
        %v1570 = vlaneseq
        %v1571 = vshrl.u32 %v1570, 7
        %v1572 = vsub.s32 1, %v1571
        %v1573 = vrot.slane %v878, %v1572
        %1575 = vbcast.lane.b32.xlu0 %v1573, 256
        %v1576 = vpop.permute.xlu0 %1575
        %v1577 = vlaneseq
        %v1578 = vshrl.u32 %v1577, 7
        %v1579 = vsub.s32 2, %v1578
        %v1580 = vrot.slane %v878, %v1579
        %1582 = vbcast.lane.b32.xlu0 %v1580, 256
        %v1583 = vpop.permute.xlu0 %1582
        %v1584 = vlaneseq
        %v1585 = vshrl.u32 %v1584, 7
        %v1586 = vsub.s32 3, %v1585
        %v1587 = vrot.slane %v878, %v1586
        %1589 = vbcast.lane.b32.xlu0 %v1587, 256
        %v1590 = vpop.permute.xlu0 %1589
        %v1591 = vlaneseq
        %v1592 = vshrl.u32 %v1591, 7
        %v1593 = vsub.s32 4, %v1592
        %v1594 = vrot.slane %v878, %v1593
        %1596 = vbcast.lane.b32.xlu0 %v1594, 256
        %v1597 = vpop.permute.xlu0 %1596
        %v1598 = vlaneseq
        %v1599 = vshrl.u32 %v1598, 7
        %v1600 = vsub.s32 5, %v1599
        %v1601 = vrot.slane %v878, %v1600
        %1603 = vbcast.lane.b32.xlu0 %v1601, 256
        %v1604 = vpop.permute.xlu0 %1603
        %v1605 = vlaneseq
        %v1606 = vshrl.u32 %v1605, 7
        %v1607 = vsub.s32 6, %v1606
        %v1608 = vrot.slane %v878, %v1607
        %1610 = vbcast.lane.b32.xlu0 %v1608, 256
        %v1611 = vpop.permute.xlu0 %1610
        %v1612 = vlaneseq
        %v1613 = vshrl.u32 %v1612, 7
        %v1614 = vsub.s32 7, %v1613
        %v1615 = vrot.slane %v878, %v1614
        %1617 = vbcast.lane.b32.xlu0 %v1615, 256
        %v1618 = vpop.permute.xlu0 %1617
        %v1623 = vcombine.high %v1391, %v1391
        %v1625 = vunpack.c.l.s4 1966171168
        %v1626 = vunpack.c.0.s8 %v1625
        %v1627 = vlaneseq
        %v1628 = vshrl.u32 %v1627, 7
        %v1629 = vsub.s32 %v1626, %v1628
        %v1630 = vrot.slane %v1391, %v1629
        %v1632 = vunpack.c.l.s4 1966171168
        %v1633 = vunpack.c.0.s8 %v1632
        %v1634 = vlaneseq
        %v1635 = vshrl.u32 %v1634, 7
        %v1636 = vsub.s32 %v1633, %v1635
        %v1637 = vrot.slane %v1623, %v1636
        %v1638 = vcombine.high %v1630, %v1630
        %v1639 = vcombine.high %v1637, %v1637
        %v1641 = vunpack.c.l.s4 1966171168
        %v1642 = vunpack.c.0.s8 %v1641
        %v1643 = vlaneseq
        %v1644 = vshrl.u32 %v1643, 7
        %v1645 = vsub.s32 %v1642, %v1644
        %v1646 = vrot.slane %v1630, %v1645
        %v1648 = vunpack.c.l.s4 1966171168
        %v1649 = vunpack.c.0.s8 %v1648
        %v1650 = vlaneseq
        %v1651 = vshrl.u32 %v1650, 7
        %v1652 = vsub.s32 %v1649, %v1651
        %v1653 = vrot.slane %v1637, %v1652
        %v1655 = vunpack.c.l.s4 1966171168
        %v1656 = vunpack.c.0.s8 %v1655
        %v1657 = vlaneseq
        %v1658 = vshrl.u32 %v1657, 7
        %v1659 = vsub.s32 %v1656, %v1658
        %v1660 = vrot.slane %v1638, %v1659
        %v1662 = vunpack.c.l.s4 1966171168
        %v1663 = vunpack.c.0.s8 %v1662
        %v1664 = vlaneseq
        %v1665 = vshrl.u32 %v1664, 7
        %v1666 = vsub.s32 %v1663, %v1665
        %v1667 = vrot.slane %v1639, %v1666
        %v1668 = vcombine.high %v1646, %v1646
        %v1669 = vcombine.high %v1653, %v1653
        %v1670 = vcombine.high %v1660, %v1660
        %v1671 = vcombine.high %v1667, %v1667
        %v1672 = vcombine.high %v1392, %v1392
        %v1674 = vunpack.c.l.s4 1966171168
        %v1675 = vunpack.c.0.s8 %v1674
        %v1676 = vlaneseq
        %v1677 = vshrl.u32 %v1676, 7
        %v1678 = vsub.s32 %v1675, %v1677
        %v1679 = vrot.slane %v1392, %v1678
        %v1681 = vunpack.c.l.s4 1966171168
        %v1682 = vunpack.c.0.s8 %v1681
        %v1683 = vlaneseq
        %v1684 = vshrl.u32 %v1683, 7
        %v1685 = vsub.s32 %v1682, %v1684
        %v1686 = vrot.slane %v1672, %v1685
        %v1687 = vcombine.high %v1679, %v1679
        %v1688 = vcombine.high %v1686, %v1686
        %v1690 = vunpack.c.l.s4 1966171168
        %v1691 = vunpack.c.0.s8 %v1690
        %v1692 = vlaneseq
        %v1693 = vshrl.u32 %v1692, 7
        %v1694 = vsub.s32 %v1691, %v1693
        %v1695 = vrot.slane %v1679, %v1694
        %v1697 = vunpack.c.l.s4 1966171168
        %v1698 = vunpack.c.0.s8 %v1697
        %v1699 = vlaneseq
        %v1700 = vshrl.u32 %v1699, 7
        %v1701 = vsub.s32 %v1698, %v1700
        %v1702 = vrot.slane %v1686, %v1701
        %v1704 = vunpack.c.l.s4 1966171168
        %v1705 = vunpack.c.0.s8 %v1704
        %v1706 = vlaneseq
        %v1707 = vshrl.u32 %v1706, 7
        %v1708 = vsub.s32 %v1705, %v1707
        %v1709 = vrot.slane %v1687, %v1708
        %v1711 = vunpack.c.l.s4 1966171168
        %v1712 = vunpack.c.0.s8 %v1711
        %v1713 = vlaneseq
        %v1714 = vshrl.u32 %v1713, 7
        %v1715 = vsub.s32 %v1712, %v1714
        %v1716 = vrot.slane %v1688, %v1715
        %v1717 = vcombine.high %v1695, %v1695
        %v1718 = vcombine.high %v1702, %v1702
        %v1719 = vcombine.high %v1709, %v1709
        %v1720 = vcombine.high %v1716, %v1716
        %v1721 = vcombine.high %v1393, %v1393
        %v1723 = vunpack.c.l.s4 1966171168
        %v1724 = vunpack.c.0.s8 %v1723
        %v1725 = vlaneseq
        %v1726 = vshrl.u32 %v1725, 7
        %v1727 = vsub.s32 %v1724, %v1726
        %v1728 = vrot.slane %v1393, %v1727
        %v1730 = vunpack.c.l.s4 1966171168
        %v1731 = vunpack.c.0.s8 %v1730
        %v1732 = vlaneseq
        %v1733 = vshrl.u32 %v1732, 7
        %v1734 = vsub.s32 %v1731, %v1733
        %v1735 = vrot.slane %v1721, %v1734
        %v1736 = vcombine.high %v1728, %v1728
        %v1737 = vcombine.high %v1735, %v1735
        %v1739 = vunpack.c.l.s4 1966171168
        %v1740 = vunpack.c.0.s8 %v1739
        %v1741 = vlaneseq
        %v1742 = vshrl.u32 %v1741, 7
        %v1743 = vsub.s32 %v1740, %v1742
        %v1744 = vrot.slane %v1728, %v1743
        %v1746 = vunpack.c.l.s4 1966171168
        %v1747 = vunpack.c.0.s8 %v1746
        %v1748 = vlaneseq
        %v1749 = vshrl.u32 %v1748, 7
        %v1750 = vsub.s32 %v1747, %v1749
        %v1751 = vrot.slane %v1735, %v1750
        %v1753 = vunpack.c.l.s4 1966171168
        %v1754 = vunpack.c.0.s8 %v1753
        %v1755 = vlaneseq
        %v1756 = vshrl.u32 %v1755, 7
        %v1757 = vsub.s32 %v1754, %v1756
        %v1758 = vrot.slane %v1736, %v1757
        %v1760 = vunpack.c.l.s4 1966171168
        %v1761 = vunpack.c.0.s8 %v1760
        %v1762 = vlaneseq
        %v1763 = vshrl.u32 %v1762, 7
        %v1764 = vsub.s32 %v1761, %v1763
        %v1765 = vrot.slane %v1737, %v1764
        %v1766 = vcombine.high %v1744, %v1744
        %v1767 = vcombine.high %v1751, %v1751
        %v1768 = vcombine.high %v1758, %v1758
        %v1769 = vcombine.high %v1765, %v1765
        %v1770 = vcombine.high %v1394, %v1394
        %v1772 = vunpack.c.l.s4 1966171168
        %v1773 = vunpack.c.0.s8 %v1772
        %v1774 = vlaneseq
        %v1775 = vshrl.u32 %v1774, 7
        %v1776 = vsub.s32 %v1773, %v1775
        %v1777 = vrot.slane %v1394, %v1776
        %v1779 = vunpack.c.l.s4 1966171168
        %v1780 = vunpack.c.0.s8 %v1779
        %v1781 = vlaneseq
        %v1782 = vshrl.u32 %v1781, 7
        %v1783 = vsub.s32 %v1780, %v1782
        %v1784 = vrot.slane %v1770, %v1783
        %v1785 = vcombine.high %v1777, %v1777
        %v1786 = vcombine.high %v1784, %v1784
        %v1788 = vunpack.c.l.s4 1966171168
        %v1789 = vunpack.c.0.s8 %v1788
        %v1790 = vlaneseq
        %v1791 = vshrl.u32 %v1790, 7
        %v1792 = vsub.s32 %v1789, %v1791
        %v1793 = vrot.slane %v1777, %v1792
        %v1795 = vunpack.c.l.s4 1966171168
        %v1796 = vunpack.c.0.s8 %v1795
        %v1797 = vlaneseq
        %v1798 = vshrl.u32 %v1797, 7
        %v1799 = vsub.s32 %v1796, %v1798
        %v1800 = vrot.slane %v1784, %v1799
        %v1802 = vunpack.c.l.s4 1966171168
        %v1803 = vunpack.c.0.s8 %v1802
        %v1804 = vlaneseq
        %v1805 = vshrl.u32 %v1804, 7
        %v1806 = vsub.s32 %v1803, %v1805
        %v1807 = vrot.slane %v1785, %v1806
        %v1809 = vunpack.c.l.s4 1966171168
        %v1810 = vunpack.c.0.s8 %v1809
        %v1811 = vlaneseq
        %v1812 = vshrl.u32 %v1811, 7
        %v1813 = vsub.s32 %v1810, %v1812
        %v1814 = vrot.slane %v1786, %v1813
        %v1815 = vcombine.high %v1793, %v1793
        %v1816 = vcombine.high %v1800, %v1800
        %v1817 = vcombine.high %v1807, %v1807
        %v1818 = vcombine.high %v1814, %v1814
        %v1819 = vlaneseq
        %v1820 = vshrl.u32 %v1819, 7
        %v1821 = vsub.s32 0, %v1820
        %v1822 = vrot.slane %v1646, %v1821
        %v1823 = vlaneseq
        %v1824 = vshrl.u32 %v1823, 7
        %v1825 = vsub.s32 0, %v1824
        %v1826 = vrot.slane %v1660, %v1825
        %v1827 = vlaneseq
        %v1828 = vshrl.u32 %v1827, 7
        %v1829 = vsub.s32 0, %v1828
        %v1830 = vrot.slane %v1668, %v1829
        %v1831 = vlaneseq
        %v1832 = vshrl.u32 %v1831, 7
        %v1833 = vsub.s32 0, %v1832
        %v1834 = vrot.slane %v1670, %v1833
        %v1835 = vlaneseq
        %v1836 = vshrl.u32 %v1835, 7
        %v1837 = vsub.s32 0, %v1836
        %v1838 = vrot.slane %v1653, %v1837
        %v1839 = vlaneseq
        %v1840 = vshrl.u32 %v1839, 7
        %v1841 = vsub.s32 0, %v1840
        %v1842 = vrot.slane %v1667, %v1841
        %v1843 = vlaneseq
        %v1844 = vshrl.u32 %v1843, 7
        %v1845 = vsub.s32 0, %v1844
        %v1846 = vrot.slane %v1669, %v1845
        %v1847 = vlaneseq
        %v1848 = vshrl.u32 %v1847, 7
        %v1849 = vsub.s32 0, %v1848
        %v1850 = vrot.slane %v1671, %v1849
        %v1851 = vlaneseq
        %v1852 = vshrl.u32 %v1851, 7
        %v1853 = vsub.s32 0, %v1852
        %v1854 = vrot.slane %v1695, %v1853
        %v1855 = vlaneseq
        %v1856 = vshrl.u32 %v1855, 7
        %v1857 = vsub.s32 0, %v1856
        %v1858 = vrot.slane %v1709, %v1857
        %v1859 = vlaneseq
        %v1860 = vshrl.u32 %v1859, 7
        %v1861 = vsub.s32 0, %v1860
        %v1862 = vrot.slane %v1717, %v1861
        %v1863 = vlaneseq
        %v1864 = vshrl.u32 %v1863, 7
        %v1865 = vsub.s32 0, %v1864
        %v1866 = vrot.slane %v1719, %v1865
        %v1867 = vlaneseq
        %v1868 = vshrl.u32 %v1867, 7
        %v1869 = vsub.s32 0, %v1868
        %v1870 = vrot.slane %v1702, %v1869
        %v1871 = vlaneseq
        %v1872 = vshrl.u32 %v1871, 7
        %v1873 = vsub.s32 0, %v1872
        %v1874 = vrot.slane %v1716, %v1873
        %v1875 = vlaneseq
        %v1876 = vshrl.u32 %v1875, 7
        %v1877 = vsub.s32 0, %v1876
        %v1878 = vrot.slane %v1718, %v1877
        %v1879 = vlaneseq
        %v1880 = vshrl.u32 %v1879, 7
        %v1881 = vsub.s32 0, %v1880
        %v1882 = vrot.slane %v1720, %v1881
        %v1883 = vlaneseq
        %v1884 = vshrl.u32 %v1883, 7
        %v1885 = vsub.s32 0, %v1884
        %v1886 = vrot.slane %v1744, %v1885
        %v1887 = vlaneseq
        %v1888 = vshrl.u32 %v1887, 7
        %v1889 = vsub.s32 0, %v1888
        %v1890 = vrot.slane %v1758, %v1889
        %v1891 = vlaneseq
        %v1892 = vshrl.u32 %v1891, 7
        %v1893 = vsub.s32 0, %v1892
        %v1894 = vrot.slane %v1766, %v1893
        %v1895 = vlaneseq
        %v1896 = vshrl.u32 %v1895, 7
        %v1897 = vsub.s32 0, %v1896
        %v1898 = vrot.slane %v1768, %v1897
        %v1899 = vlaneseq
        %v1900 = vshrl.u32 %v1899, 7
        %v1901 = vsub.s32 0, %v1900
        %v1902 = vrot.slane %v1751, %v1901
        %v1903 = vlaneseq
        %v1904 = vshrl.u32 %v1903, 7
        %v1905 = vsub.s32 0, %v1904
        %v1906 = vrot.slane %v1765, %v1905
        %v1907 = vlaneseq
        %v1908 = vshrl.u32 %v1907, 7
        %v1909 = vsub.s32 0, %v1908
        %v1910 = vrot.slane %v1767, %v1909
        %v1911 = vlaneseq
        %v1912 = vshrl.u32 %v1911, 7
        %v1913 = vsub.s32 0, %v1912
        %v1914 = vrot.slane %v1769, %v1913
        %v1915 = vlaneseq
        %v1916 = vshrl.u32 %v1915, 7
        %v1917 = vsub.s32 0, %v1916
        %v1918 = vrot.slane %v1793, %v1917
        %v1919 = vlaneseq
        %v1920 = vshrl.u32 %v1919, 7
        %v1921 = vsub.s32 0, %v1920
        %v1922 = vrot.slane %v1807, %v1921
        %v1923 = vlaneseq
        %v1924 = vshrl.u32 %v1923, 7
        %v1925 = vsub.s32 0, %v1924
        %v1926 = vrot.slane %v1815, %v1925
        %v1927 = vlaneseq
        %v1928 = vshrl.u32 %v1927, 7
        %v1929 = vsub.s32 0, %v1928
        %v1930 = vrot.slane %v1817, %v1929
        %v1931 = vlaneseq
        %v1932 = vshrl.u32 %v1931, 7
        %v1933 = vsub.s32 0, %v1932
        %v1934 = vrot.slane %v1800, %v1933
        %v1935 = vlaneseq
        %v1936 = vshrl.u32 %v1935, 7
        %v1937 = vsub.s32 0, %v1936
        %v1938 = vrot.slane %v1814, %v1937
        %v1939 = vlaneseq
        %v1940 = vshrl.u32 %v1939, 7
        %v1941 = vsub.s32 0, %v1940
        %v1942 = vrot.slane %v1816, %v1941
        %v1943 = vlaneseq
        %v1944 = vshrl.u32 %v1943, 7
        %v1945 = vsub.s32 0, %v1944
        %v1946 = vrot.slane %v1818, %v1945
        %v1979 = vadd.f32 %v1401, %v1822
        %v1980 = vadd.f32 %v1408, %v1826
        %v1981 = vadd.f32 %v1415, %v1830
        %v1982 = vadd.f32 %v1422, %v1834
        %v1983 = vadd.f32 %v1429, %v1838
        %v1984 = vadd.f32 %v1436, %v1842
        %v1985 = vadd.f32 %v1443, %v1846
        %v1986 = vadd.f32 %v1450, %v1850
        %v1987 = vadd.f32 %v1457, %v1854
        %v1988 = vadd.f32 %v1464, %v1858
        %v1989 = vadd.f32 %v1471, %v1862
        %v1990 = vadd.f32 %v1478, %v1866
        %v1991 = vadd.f32 %v1485, %v1870
        %v1992 = vadd.f32 %v1492, %v1874
        %v1993 = vadd.f32 %v1499, %v1878
        %v1994 = vadd.f32 %v1506, %v1882
        %v1995 = vadd.f32 %v1513, %v1886
        %v1996 = vadd.f32 %v1520, %v1890
        %v1997 = vadd.f32 %v1527, %v1894
        %v1998 = vadd.f32 %v1534, %v1898
        %v1999 = vadd.f32 %v1541, %v1902
        %v2000 = vadd.f32 %v1548, %v1906
        %v2001 = vadd.f32 %v1555, %v1910
        %v2002 = vadd.f32 %v1562, %v1914
        %v2003 = vadd.f32 %v1569, %v1918
        %v2004 = vadd.f32 %v1576, %v1922
        %v2005 = vadd.f32 %v1583, %v1926
        %v2006 = vadd.f32 %v1590, %v1930
        %v2007 = vadd.f32 %v1597, %v1934
        %v2008 = vadd.f32 %v1604, %v1938
        %v2009 = vadd.f32 %v1611, %v1942
        %v2010 = vadd.f32 %v1618, %v1946
        %v2011 = vcombine.low %v1979, %v1981
        %v2012 = vcombine.high %v1979, %v1981
        %v2014 = vunpack.c.l.s4 1983009808
        %v2015 = vunpack.c.0.s8 %v2014
        %v2016 = vlaneseq
        %v2017 = vshrl.u32 %v2016, 7
        %v2018 = vsub.s32 %v2015, %v2017
        %v2019 = vrot.slane %v2011, %v2018
        %v2021 = vunpack.c.l.s4 1983009808
        %v2022 = vunpack.c.0.s8 %v2021
        %v2023 = vlaneseq
        %v2024 = vshrl.u32 %v2023, 7
        %v2025 = vsub.s32 %v2022, %v2024
        %v2026 = vrot.slane %v2012, %v2025
        %v2027 = vcombine.low %v1980, %v1982
        %v2028 = vcombine.high %v1980, %v1982
        %v2030 = vunpack.c.l.s4 1983009808
        %v2031 = vunpack.c.0.s8 %v2030
        %v2032 = vlaneseq
        %v2033 = vshrl.u32 %v2032, 7
        %v2034 = vsub.s32 %v2031, %v2033
        %v2035 = vrot.slane %v2027, %v2034
        %v2037 = vunpack.c.l.s4 1983009808
        %v2038 = vunpack.c.0.s8 %v2037
        %v2039 = vlaneseq
        %v2040 = vshrl.u32 %v2039, 7
        %v2041 = vsub.s32 %v2038, %v2040
        %v2042 = vrot.slane %v2028, %v2041
        %v2043 = vcombine.low %v1983, %v1985
        %v2044 = vcombine.high %v1983, %v1985
        %v2046 = vunpack.c.l.s4 1983009808
        %v2047 = vunpack.c.0.s8 %v2046
        %v2048 = vlaneseq
        %v2049 = vshrl.u32 %v2048, 7
        %v2050 = vsub.s32 %v2047, %v2049
        %v2051 = vrot.slane %v2043, %v2050
        %v2053 = vunpack.c.l.s4 1983009808
        %v2054 = vunpack.c.0.s8 %v2053
        %v2055 = vlaneseq
        %v2056 = vshrl.u32 %v2055, 7
        %v2057 = vsub.s32 %v2054, %v2056
        %v2058 = vrot.slane %v2044, %v2057
        %v2059 = vcombine.low %v1984, %v1986
        %v2060 = vcombine.high %v1984, %v1986
        %v2062 = vunpack.c.l.s4 1983009808
        %v2063 = vunpack.c.0.s8 %v2062
        %v2064 = vlaneseq
        %v2065 = vshrl.u32 %v2064, 7
        %v2066 = vsub.s32 %v2063, %v2065
        %v2067 = vrot.slane %v2059, %v2066
        %v2069 = vunpack.c.l.s4 1983009808
        %v2070 = vunpack.c.0.s8 %v2069
        %v2071 = vlaneseq
        %v2072 = vshrl.u32 %v2071, 7
        %v2073 = vsub.s32 %v2070, %v2072
        %v2074 = vrot.slane %v2060, %v2073
        %v2075 = vcombine.low %v2019, %v2035
        %v2076 = vcombine.high %v2019, %v2035
        %v2078 = vunpack.c.l.s4 1934713408
        %v2079 = vunpack.c.0.s8 %v2078
        %v2080 = vlaneseq
        %v2081 = vshrl.u32 %v2080, 7
        %v2082 = vsub.s32 %v2079, %v2081
        %v2083 = vrot.slane %v2075, %v2082
        %v2085 = vunpack.c.l.s4 1934713408
        %v2086 = vunpack.c.0.s8 %v2085
        %v2087 = vlaneseq
        %v2088 = vshrl.u32 %v2087, 7
        %v2089 = vsub.s32 %v2086, %v2088
        %v2090 = vrot.slane %v2076, %v2089
        %v2091 = vcombine.low %v2026, %v2042
        %v2092 = vcombine.high %v2026, %v2042
        %v2094 = vunpack.c.l.s4 1934713408
        %v2095 = vunpack.c.0.s8 %v2094
        %v2096 = vlaneseq
        %v2097 = vshrl.u32 %v2096, 7
        %v2098 = vsub.s32 %v2095, %v2097
        %v2099 = vrot.slane %v2091, %v2098
        %v2101 = vunpack.c.l.s4 1934713408
        %v2102 = vunpack.c.0.s8 %v2101
        %v2103 = vlaneseq
        %v2104 = vshrl.u32 %v2103, 7
        %v2105 = vsub.s32 %v2102, %v2104
        %v2106 = vrot.slane %v2092, %v2105
        %v2107 = vcombine.low %v2051, %v2067
        %v2108 = vcombine.high %v2051, %v2067
        %v2110 = vunpack.c.l.s4 1934713408
        %v2111 = vunpack.c.0.s8 %v2110
        %v2112 = vlaneseq
        %v2113 = vshrl.u32 %v2112, 7
        %v2114 = vsub.s32 %v2111, %v2113
        %v2115 = vrot.slane %v2107, %v2114
        %v2117 = vunpack.c.l.s4 1934713408
        %v2118 = vunpack.c.0.s8 %v2117
        %v2119 = vlaneseq
        %v2120 = vshrl.u32 %v2119, 7
        %v2121 = vsub.s32 %v2118, %v2120
        %v2122 = vrot.slane %v2108, %v2121
        %v2123 = vcombine.low %v2058, %v2074
        %v2124 = vcombine.high %v2058, %v2074
        %v2126 = vunpack.c.l.s4 1934713408
        %v2127 = vunpack.c.0.s8 %v2126
        %v2128 = vlaneseq
        %v2129 = vshrl.u32 %v2128, 7
        %v2130 = vsub.s32 %v2127, %v2129
        %v2131 = vrot.slane %v2123, %v2130
        %v2133 = vunpack.c.l.s4 1934713408
        %v2134 = vunpack.c.0.s8 %v2133
        %v2135 = vlaneseq
        %v2136 = vshrl.u32 %v2135, 7
        %v2137 = vsub.s32 %v2134, %v2136
        %v2138 = vrot.slane %v2124, %v2137
        %v2139 = vcombine.low %v2083, %v2115
        %v2140 = vcombine.high %v2083, %v2115
        %v2141 = vcombine.low %v2090, %v2122
        %v2142 = vcombine.high %v2090, %v2122
        %v2143 = vcombine.low %v2099, %v2131
        %v2144 = vcombine.high %v2099, %v2131
        %v2145 = vcombine.low %v2106, %v2138
        %v2146 = vcombine.high %v2106, %v2138
        %v2147 = vcombine.low %v1987, %v1989
        %v2148 = vcombine.high %v1987, %v1989
        %v2150 = vunpack.c.l.s4 1983009808
        %v2151 = vunpack.c.0.s8 %v2150
        %v2152 = vlaneseq
        %v2153 = vshrl.u32 %v2152, 7
        %v2154 = vsub.s32 %v2151, %v2153
        %v2155 = vrot.slane %v2147, %v2154
        %v2157 = vunpack.c.l.s4 1983009808
        %v2158 = vunpack.c.0.s8 %v2157
        %v2159 = vlaneseq
        %v2160 = vshrl.u32 %v2159, 7
        %v2161 = vsub.s32 %v2158, %v2160
        %v2162 = vrot.slane %v2148, %v2161
        %v2163 = vcombine.low %v1988, %v1990
        %v2164 = vcombine.high %v1988, %v1990
        %v2166 = vunpack.c.l.s4 1983009808
        %v2167 = vunpack.c.0.s8 %v2166
        %v2168 = vlaneseq
        %v2169 = vshrl.u32 %v2168, 7
        %v2170 = vsub.s32 %v2167, %v2169
        %v2171 = vrot.slane %v2163, %v2170
        %v2173 = vunpack.c.l.s4 1983009808
        %v2174 = vunpack.c.0.s8 %v2173
        %v2175 = vlaneseq
        %v2176 = vshrl.u32 %v2175, 7
        %v2177 = vsub.s32 %v2174, %v2176
        %v2178 = vrot.slane %v2164, %v2177
        %v2179 = vcombine.low %v1991, %v1993
        %v2180 = vcombine.high %v1991, %v1993
        %v2182 = vunpack.c.l.s4 1983009808
        %v2183 = vunpack.c.0.s8 %v2182
        %v2184 = vlaneseq
        %v2185 = vshrl.u32 %v2184, 7
        %v2186 = vsub.s32 %v2183, %v2185
        %v2187 = vrot.slane %v2179, %v2186
        %v2189 = vunpack.c.l.s4 1983009808
        %v2190 = vunpack.c.0.s8 %v2189
        %v2191 = vlaneseq
        %v2192 = vshrl.u32 %v2191, 7
        %v2193 = vsub.s32 %v2190, %v2192
        %v2194 = vrot.slane %v2180, %v2193
        %v2195 = vcombine.low %v1992, %v1994
        %v2196 = vcombine.high %v1992, %v1994
        %v2198 = vunpack.c.l.s4 1983009808
        %v2199 = vunpack.c.0.s8 %v2198
        %v2200 = vlaneseq
        %v2201 = vshrl.u32 %v2200, 7
        %v2202 = vsub.s32 %v2199, %v2201
        %v2203 = vrot.slane %v2195, %v2202
        %v2205 = vunpack.c.l.s4 1983009808
        %v2206 = vunpack.c.0.s8 %v2205
        %v2207 = vlaneseq
        %v2208 = vshrl.u32 %v2207, 7
        %v2209 = vsub.s32 %v2206, %v2208
        %v2210 = vrot.slane %v2196, %v2209
        %v2211 = vcombine.low %v2155, %v2171
        %v2212 = vcombine.high %v2155, %v2171
        %v2214 = vunpack.c.l.s4 1934713408
        %v2215 = vunpack.c.0.s8 %v2214
        %v2216 = vlaneseq
        %v2217 = vshrl.u32 %v2216, 7
        %v2218 = vsub.s32 %v2215, %v2217
        %v2219 = vrot.slane %v2211, %v2218
        %v2221 = vunpack.c.l.s4 1934713408
        %v2222 = vunpack.c.0.s8 %v2221
        %v2223 = vlaneseq
        %v2224 = vshrl.u32 %v2223, 7
        %v2225 = vsub.s32 %v2222, %v2224
        %v2226 = vrot.slane %v2212, %v2225
        %v2227 = vcombine.low %v2162, %v2178
        %v2228 = vcombine.high %v2162, %v2178
        %v2230 = vunpack.c.l.s4 1934713408
        %v2231 = vunpack.c.0.s8 %v2230
        %v2232 = vlaneseq
        %v2233 = vshrl.u32 %v2232, 7
        %v2234 = vsub.s32 %v2231, %v2233
        %v2235 = vrot.slane %v2227, %v2234
        %v2237 = vunpack.c.l.s4 1934713408
        %v2238 = vunpack.c.0.s8 %v2237
        %v2239 = vlaneseq
        %v2240 = vshrl.u32 %v2239, 7
        %v2241 = vsub.s32 %v2238, %v2240
        %v2242 = vrot.slane %v2228, %v2241
        %v2243 = vcombine.low %v2187, %v2203
        %v2244 = vcombine.high %v2187, %v2203
        %v2246 = vunpack.c.l.s4 1934713408
        %v2247 = vunpack.c.0.s8 %v2246
        %v2248 = vlaneseq
        %v2249 = vshrl.u32 %v2248, 7
        %v2250 = vsub.s32 %v2247, %v2249
        %v2251 = vrot.slane %v2243, %v2250
        %v2253 = vunpack.c.l.s4 1934713408
        %v2254 = vunpack.c.0.s8 %v2253
        %v2255 = vlaneseq
        %v2256 = vshrl.u32 %v2255, 7
        %v2257 = vsub.s32 %v2254, %v2256
        %v2258 = vrot.slane %v2244, %v2257
        %v2259 = vcombine.low %v2194, %v2210
        %v2260 = vcombine.high %v2194, %v2210
        %v2262 = vunpack.c.l.s4 1934713408
        %v2263 = vunpack.c.0.s8 %v2262
        %v2264 = vlaneseq
        %v2265 = vshrl.u32 %v2264, 7
        %v2266 = vsub.s32 %v2263, %v2265
        %v2267 = vrot.slane %v2259, %v2266
        %v2269 = vunpack.c.l.s4 1934713408
        %v2270 = vunpack.c.0.s8 %v2269
        %v2271 = vlaneseq
        %v2272 = vshrl.u32 %v2271, 7
        %v2273 = vsub.s32 %v2270, %v2272
        %v2274 = vrot.slane %v2260, %v2273
        %v2275 = vcombine.low %v2219, %v2251
        %v2276 = vcombine.high %v2219, %v2251
        %v2277 = vcombine.low %v2226, %v2258
        %v2278 = vcombine.high %v2226, %v2258
        %v2279 = vcombine.low %v2235, %v2267
        %v2280 = vcombine.high %v2235, %v2267
        %v2281 = vcombine.low %v2242, %v2274
        %v2282 = vcombine.high %v2242, %v2274
        %v2283 = vcombine.low %v1995, %v1997
        %v2284 = vcombine.high %v1995, %v1997
        %v2286 = vunpack.c.l.s4 1983009808
        %v2287 = vunpack.c.0.s8 %v2286
        %v2288 = vlaneseq
        %v2289 = vshrl.u32 %v2288, 7
        %v2290 = vsub.s32 %v2287, %v2289
        %v2291 = vrot.slane %v2283, %v2290
        %v2293 = vunpack.c.l.s4 1983009808
        %v2294 = vunpack.c.0.s8 %v2293
        %v2295 = vlaneseq
        %v2296 = vshrl.u32 %v2295, 7
        %v2297 = vsub.s32 %v2294, %v2296
        %v2298 = vrot.slane %v2284, %v2297
        %v2299 = vcombine.low %v1996, %v1998
        %v2300 = vcombine.high %v1996, %v1998
        %v2302 = vunpack.c.l.s4 1983009808
        %v2303 = vunpack.c.0.s8 %v2302
        %v2304 = vlaneseq
        %v2305 = vshrl.u32 %v2304, 7
        %v2306 = vsub.s32 %v2303, %v2305
        %v2307 = vrot.slane %v2299, %v2306
        %v2309 = vunpack.c.l.s4 1983009808
        %v2310 = vunpack.c.0.s8 %v2309
        %v2311 = vlaneseq
        %v2312 = vshrl.u32 %v2311, 7
        %v2313 = vsub.s32 %v2310, %v2312
        %v2314 = vrot.slane %v2300, %v2313
        %v2315 = vcombine.low %v1999, %v2001
        %v2316 = vcombine.high %v1999, %v2001
        %v2318 = vunpack.c.l.s4 1983009808
        %v2319 = vunpack.c.0.s8 %v2318
        %v2320 = vlaneseq
        %v2321 = vshrl.u32 %v2320, 7
        %v2322 = vsub.s32 %v2319, %v2321
        %v2323 = vrot.slane %v2315, %v2322
        %v2325 = vunpack.c.l.s4 1983009808
        %v2326 = vunpack.c.0.s8 %v2325
        %v2327 = vlaneseq
        %v2328 = vshrl.u32 %v2327, 7
        %v2329 = vsub.s32 %v2326, %v2328
        %v2330 = vrot.slane %v2316, %v2329
        %v2331 = vcombine.low %v2000, %v2002
        %v2332 = vcombine.high %v2000, %v2002
        %v2334 = vunpack.c.l.s4 1983009808
        %v2335 = vunpack.c.0.s8 %v2334
        %v2336 = vlaneseq
        %v2337 = vshrl.u32 %v2336, 7
        %v2338 = vsub.s32 %v2335, %v2337
        %v2339 = vrot.slane %v2331, %v2338
        %v2341 = vunpack.c.l.s4 1983009808
        %v2342 = vunpack.c.0.s8 %v2341
        %v2343 = vlaneseq
        %v2344 = vshrl.u32 %v2343, 7
        %v2345 = vsub.s32 %v2342, %v2344
        %v2346 = vrot.slane %v2332, %v2345
        %v2347 = vcombine.low %v2291, %v2307
        %v2348 = vcombine.high %v2291, %v2307
        %v2350 = vunpack.c.l.s4 1934713408
        %v2351 = vunpack.c.0.s8 %v2350
        %v2352 = vlaneseq
        %v2353 = vshrl.u32 %v2352, 7
        %v2354 = vsub.s32 %v2351, %v2353
        %v2355 = vrot.slane %v2347, %v2354
        %v2357 = vunpack.c.l.s4 1934713408
        %v2358 = vunpack.c.0.s8 %v2357
        %v2359 = vlaneseq
        %v2360 = vshrl.u32 %v2359, 7
        %v2361 = vsub.s32 %v2358, %v2360
        %v2362 = vrot.slane %v2348, %v2361
        %v2363 = vcombine.low %v2298, %v2314
        %v2364 = vcombine.high %v2298, %v2314
        %v2366 = vunpack.c.l.s4 1934713408
        %v2367 = vunpack.c.0.s8 %v2366
        %v2368 = vlaneseq
        %v2369 = vshrl.u32 %v2368, 7
        %v2370 = vsub.s32 %v2367, %v2369
        %v2371 = vrot.slane %v2363, %v2370
        %v2373 = vunpack.c.l.s4 1934713408
        %v2374 = vunpack.c.0.s8 %v2373
        %v2375 = vlaneseq
        %v2376 = vshrl.u32 %v2375, 7
        %v2377 = vsub.s32 %v2374, %v2376
        %v2378 = vrot.slane %v2364, %v2377
        %v2379 = vcombine.low %v2323, %v2339
        %v2380 = vcombine.high %v2323, %v2339
        %v2382 = vunpack.c.l.s4 1934713408
        %v2383 = vunpack.c.0.s8 %v2382
        %v2384 = vlaneseq
        %v2385 = vshrl.u32 %v2384, 7
        %v2386 = vsub.s32 %v2383, %v2385
        %v2387 = vrot.slane %v2379, %v2386
        %v2389 = vunpack.c.l.s4 1934713408
        %v2390 = vunpack.c.0.s8 %v2389
        %v2391 = vlaneseq
        %v2392 = vshrl.u32 %v2391, 7
        %v2393 = vsub.s32 %v2390, %v2392
        %v2394 = vrot.slane %v2380, %v2393
        %v2395 = vcombine.low %v2330, %v2346
        %v2396 = vcombine.high %v2330, %v2346
        %v2398 = vunpack.c.l.s4 1934713408
        %v2399 = vunpack.c.0.s8 %v2398
        %v2400 = vlaneseq
        %v2401 = vshrl.u32 %v2400, 7
        %v2402 = vsub.s32 %v2399, %v2401
        %v2403 = vrot.slane %v2395, %v2402
        %v2405 = vunpack.c.l.s4 1934713408
        %v2406 = vunpack.c.0.s8 %v2405
        %v2407 = vlaneseq
        %v2408 = vshrl.u32 %v2407, 7
        %v2409 = vsub.s32 %v2406, %v2408
        %v2410 = vrot.slane %v2396, %v2409
        %v2411 = vcombine.low %v2355, %v2387
        %v2412 = vcombine.high %v2355, %v2387
        %v2413 = vcombine.low %v2362, %v2394
        %v2414 = vcombine.high %v2362, %v2394
        %v2415 = vcombine.low %v2371, %v2403
        %v2416 = vcombine.high %v2371, %v2403
        %v2417 = vcombine.low %v2378, %v2410
        %v2418 = vcombine.high %v2378, %v2410
        %v2419 = vcombine.low %v2003, %v2005
        %v2420 = vcombine.high %v2003, %v2005
        %v2422 = vunpack.c.l.s4 1983009808
        %v2423 = vunpack.c.0.s8 %v2422
        %v2424 = vlaneseq
        %v2425 = vshrl.u32 %v2424, 7
        %v2426 = vsub.s32 %v2423, %v2425
        %v2427 = vrot.slane %v2419, %v2426
        %v2429 = vunpack.c.l.s4 1983009808
        %v2430 = vunpack.c.0.s8 %v2429
        %v2431 = vlaneseq
        %v2432 = vshrl.u32 %v2431, 7
        %v2433 = vsub.s32 %v2430, %v2432
        %v2434 = vrot.slane %v2420, %v2433
        %v2435 = vcombine.low %v2004, %v2006
        %v2436 = vcombine.high %v2004, %v2006
        %v2438 = vunpack.c.l.s4 1983009808
        %v2439 = vunpack.c.0.s8 %v2438
        %v2440 = vlaneseq
        %v2441 = vshrl.u32 %v2440, 7
        %v2442 = vsub.s32 %v2439, %v2441
        %v2443 = vrot.slane %v2435, %v2442
        %v2445 = vunpack.c.l.s4 1983009808
        %v2446 = vunpack.c.0.s8 %v2445
        %v2447 = vlaneseq
        %v2448 = vshrl.u32 %v2447, 7
        %v2449 = vsub.s32 %v2446, %v2448
        %v2450 = vrot.slane %v2436, %v2449
        %v2451 = vcombine.low %v2007, %v2009
        %v2452 = vcombine.high %v2007, %v2009
        %v2454 = vunpack.c.l.s4 1983009808
        %v2455 = vunpack.c.0.s8 %v2454
        %v2456 = vlaneseq
        %v2457 = vshrl.u32 %v2456, 7
        %v2458 = vsub.s32 %v2455, %v2457
        %v2459 = vrot.slane %v2451, %v2458
        %v2461 = vunpack.c.l.s4 1983009808
        %v2462 = vunpack.c.0.s8 %v2461
        %v2463 = vlaneseq
        %v2464 = vshrl.u32 %v2463, 7
        %v2465 = vsub.s32 %v2462, %v2464
        %v2466 = vrot.slane %v2452, %v2465
        %v2467 = vcombine.low %v2008, %v2010
        %v2468 = vcombine.high %v2008, %v2010
        %v2470 = vunpack.c.l.s4 1983009808
        %v2471 = vunpack.c.0.s8 %v2470
        %v2472 = vlaneseq
        %v2473 = vshrl.u32 %v2472, 7
        %v2474 = vsub.s32 %v2471, %v2473
        %v2475 = vrot.slane %v2467, %v2474
        %v2477 = vunpack.c.l.s4 1983009808
        %v2478 = vunpack.c.0.s8 %v2477
        %v2479 = vlaneseq
        %v2480 = vshrl.u32 %v2479, 7
        %v2481 = vsub.s32 %v2478, %v2480
        %v2482 = vrot.slane %v2468, %v2481
        %v2483 = vcombine.low %v2427, %v2443
        %v2484 = vcombine.high %v2427, %v2443
        %v2486 = vunpack.c.l.s4 1934713408
        %v2487 = vunpack.c.0.s8 %v2486
        %v2488 = vlaneseq
        %v2489 = vshrl.u32 %v2488, 7
        %v2490 = vsub.s32 %v2487, %v2489
        %v2491 = vrot.slane %v2483, %v2490
        %v2493 = vunpack.c.l.s4 1934713408
        %v2494 = vunpack.c.0.s8 %v2493
        %v2495 = vlaneseq
        %v2496 = vshrl.u32 %v2495, 7
        %v2497 = vsub.s32 %v2494, %v2496
        %v2498 = vrot.slane %v2484, %v2497
        %v2499 = vcombine.low %v2434, %v2450
        %v2500 = vcombine.high %v2434, %v2450
        %v2502 = vunpack.c.l.s4 1934713408
        %v2503 = vunpack.c.0.s8 %v2502
        %v2504 = vlaneseq
        %v2505 = vshrl.u32 %v2504, 7
        %v2506 = vsub.s32 %v2503, %v2505
        %v2507 = vrot.slane %v2499, %v2506
        %v2509 = vunpack.c.l.s4 1934713408
        %v2510 = vunpack.c.0.s8 %v2509
        %v2511 = vlaneseq
        %v2512 = vshrl.u32 %v2511, 7
        %v2513 = vsub.s32 %v2510, %v2512
        %v2514 = vrot.slane %v2500, %v2513
        %v2515 = vcombine.low %v2459, %v2475
        %v2516 = vcombine.high %v2459, %v2475
        %v2518 = vunpack.c.l.s4 1934713408
        %v2519 = vunpack.c.0.s8 %v2518
        %v2520 = vlaneseq
        %v2521 = vshrl.u32 %v2520, 7
        %v2522 = vsub.s32 %v2519, %v2521
        %v2523 = vrot.slane %v2515, %v2522
        %v2525 = vunpack.c.l.s4 1934713408
        %v2526 = vunpack.c.0.s8 %v2525
        %v2527 = vlaneseq
        %v2528 = vshrl.u32 %v2527, 7
        %v2529 = vsub.s32 %v2526, %v2528
        %v2530 = vrot.slane %v2516, %v2529
        %v2531 = vcombine.low %v2466, %v2482
        %v2532 = vcombine.high %v2466, %v2482
        %v2534 = vunpack.c.l.s4 1934713408
        %v2535 = vunpack.c.0.s8 %v2534
        %v2536 = vlaneseq
        %v2537 = vshrl.u32 %v2536, 7
        %v2538 = vsub.s32 %v2535, %v2537
        %v2539 = vrot.slane %v2531, %v2538
        %v2541 = vunpack.c.l.s4 1934713408
        %v2542 = vunpack.c.0.s8 %v2541
        %v2543 = vlaneseq
        %v2544 = vshrl.u32 %v2543, 7
        %v2545 = vsub.s32 %v2542, %v2544
        %v2546 = vrot.slane %v2532, %v2545
        %v2547 = vcombine.low %v2491, %v2523
        %v2548 = vcombine.high %v2491, %v2523
        %v2549 = vcombine.low %v2498, %v2530
        %v2550 = vcombine.high %v2498, %v2530
        %v2551 = vcombine.low %v2507, %v2539
        %v2552 = vcombine.high %v2507, %v2539
        %v2553 = vcombine.low %v2514, %v2546
        %v2554 = vcombine.high %v2514, %v2546
        %2559 = vrot.lane.b32.xlu0 %v2140, 8
        %v2560 = vpop.permute.xlu0 %2559
        %2561 = vrot.lane.b32.xlu0 %v2276, 8
        %v2562 = vpop.permute.xlu0 %2561
        %2563 = vrot.lane.b32.xlu0 %v2412, 8
        %v2564 = vpop.permute.xlu0 %2563
        %2565 = vrot.lane.b32.xlu0 %v2548, 8
        %v2566 = vpop.permute.xlu0 %2565
        %2575 = vrot.lane.b32.xlu0 %v2141, 16
        %v2576 = vpop.permute.xlu0 %2575
        %2577 = vrot.lane.b32.xlu0 %v2277, 16
        %v2578 = vpop.permute.xlu0 %2577
        %2579 = vrot.lane.b32.xlu0 %v2413, 16
        %v2580 = vpop.permute.xlu0 %2579
        %2581 = vrot.lane.b32.xlu0 %v2549, 16
        %v2582 = vpop.permute.xlu0 %2581
        %2591 = vrot.lane.b32.xlu0 %v2142, 24
        %v2592 = vpop.permute.xlu0 %2591
        %2593 = vrot.lane.b32.xlu0 %v2278, 24
        %v2594 = vpop.permute.xlu0 %2593
        %2595 = vrot.lane.b32.xlu0 %v2414, 24
        %v2596 = vpop.permute.xlu0 %2595
        %2597 = vrot.lane.b32.xlu0 %v2550, 24
        %v2598 = vpop.permute.xlu0 %2597
        %2607 = vrot.lane.b32.xlu0 %v2143, 32
        %v2608 = vpop.permute.xlu0 %2607
        %2609 = vrot.lane.b32.xlu0 %v2279, 32
        %v2610 = vpop.permute.xlu0 %2609
        %2611 = vrot.lane.b32.xlu0 %v2415, 32
        %v2612 = vpop.permute.xlu0 %2611
        %2613 = vrot.lane.b32.xlu0 %v2551, 32
        %v2614 = vpop.permute.xlu0 %2613
        %2623 = vrot.lane.b32.xlu0 %v2144, 40
        %v2624 = vpop.permute.xlu0 %2623
        %2625 = vrot.lane.b32.xlu0 %v2280, 40
        %v2626 = vpop.permute.xlu0 %2625
        %2627 = vrot.lane.b32.xlu0 %v2416, 40
        %v2628 = vpop.permute.xlu0 %2627
        %2629 = vrot.lane.b32.xlu0 %v2552, 40
        %v2630 = vpop.permute.xlu0 %2629
        %2639 = vrot.lane.b32.xlu0 %v2145, 48
        %v2640 = vpop.permute.xlu0 %2639
        %2641 = vrot.lane.b32.xlu0 %v2281, 48
        %v2642 = vpop.permute.xlu0 %2641
        %2643 = vrot.lane.b32.xlu0 %v2417, 48
        %v2644 = vpop.permute.xlu0 %2643
        %2645 = vrot.lane.b32.xlu0 %v2553, 48
        %v2646 = vpop.permute.xlu0 %2645
        %2655 = vrot.lane.b32.xlu0 %v2146, 56
        %v2656 = vpop.permute.xlu0 %2655
        %2657 = vrot.lane.b32.xlu0 %v2282, 56
        %v2658 = vpop.permute.xlu0 %2657
        %2659 = vrot.lane.b32.xlu0 %v2418, 56
        %v2660 = vpop.permute.xlu0 %2659
        %2661 = vrot.lane.b32.xlu0 %v2554, 56
        %v2662 = vpop.permute.xlu0 %2661
        %v2667 = vsel %vm698, %v2139, %v2560
        %v2668 = vsel %vm698, %v2275, %v2562
        %v2669 = vsel %vm698, %v2411, %v2564
        %v2670 = vsel %vm698, %v2547, %v2566
        %vm2671 = vcmask 130048
        %v2672 = vsel %vm2671, %v2667, %v2576
        %v2673 = vsel %vm2671, %v2668, %v2578
        %v2674 = vsel %vm2671, %v2669, %v2580
        %v2675 = vsel %vm2671, %v2670, %v2582
        %vm2676 = vcmask 195584
        %v2677 = vsel %vm2676, %v2672, %v2592
        %v2678 = vsel %vm2676, %v2673, %v2594
        %v2679 = vsel %vm2676, %v2674, %v2596
        %v2680 = vsel %vm2676, %v2675, %v2598
        %v2681 = vsel %vm610, %v2677, %v2608
        %v2682 = vsel %vm610, %v2678, %v2610
        %v2683 = vsel %vm610, %v2679, %v2612
        %v2684 = vsel %vm610, %v2680, %v2614
        %vm2685 = vcmask 326656
        %v2686 = vsel %vm2685, %v2681, %v2624
        %v2687 = vsel %vm2685, %v2682, %v2626
        %v2688 = vsel %vm2685, %v2683, %v2628
        %v2689 = vsel %vm2685, %v2684, %v2630
        %vm2690 = vcmask 392192
        %v2691 = vsel %vm2690, %v2686, %v2640
        %v2692 = vsel %vm2690, %v2687, %v2642
        %v2693 = vsel %vm2690, %v2688, %v2644
        %v2694 = vsel %vm2690, %v2689, %v2646
        %vm2695 = vcmask 457728
        %v2696 = vsel %vm2695, %v2691, %v2656
        %v2697 = vsel %vm2695, %v2692, %v2658
        %v2698 = vsel %vm2695, %v2693, %v2660
        %v2699 = vsel %vm2695, %v2694, %v2662
        %v2708 = vunpack.c.l.b16 %v680
        %v2709 = vunpack.c.l.b16 %v681
        %v2710 = vunpack.c.l.b16 %v682
        %v2711 = vunpack.c.l.b16 %v683
        %v2712 = vunpack.c.l.b16 %v684
        %v2713 = vunpack.c.l.b16 %v685
        %v2714 = vunpack.c.l.b16 %v686
        %v2715 = vunpack.c.l.b16 %v687
        %v2716 = vpack.c.b16 %v2709, %v2708
        %v2717 = vpack.c.b16 %v2711, %v2710
        %v2718 = vpack.c.b16 %v2713, %v2712
        %v2719 = vpack.c.b16 %v2715, %v2714
        %v2721 = vsel %vm698, %v666, 0
        %v2724 = vsel %vm698, %v667, 0
        %v2727 = vsel %vm698, %v2716, 0
        %v2730 = vsel %vm698, %v2717, 0
        %v2733 = vsel %vm698, %v2718, 0
        %v2736 = vsel %vm698, %v2719, 0
        %2738 = vmatprep.subr.bf16.mxu0 0
        %2739 = vmatpush1.bf16.xpose.msra.mxu0 0
        %2740 = vmatprep.subr.bf16.mxu0 0
        %2741 = vmatpush1.bf16.xpose.msra.mxu0 0
        %2742 = vmatprep.subr.bf16.mxu0 0
        %2743 = vmatpush1.bf16.xpose.msra.mxu0 0
        %2744 = vmatprep.subr.bf16.mxu0 0
        %2745 = vmatpush1.bf16.xpose.msra.mxu0 0
        %2746 = vmatprep.subr.bf16.mxu0 0
        %2747 = vmatpush1.bf16.xpose.msra.mxu0 %v2736
        %2748 = vmatprep.subr.bf16.mxu0 0
        %2749 = vmatpush1.bf16.xpose.msra.mxu0 %v2733
        %2750 = vmatprep.subr.bf16.mxu0 0
        %2751 = vmatpush1.bf16.xpose.msra.mxu0 %v2730
        %2752 = vmatprep.subr.bf16.mxu0 0
        %2753 = vmatpush1.bf16.xpose.msra.mxu0 %v2727
        %2754 = vmatprep.subr.bf16.mxu0 0
        %2755 = vmatpush2.bf16.xpose.msra.mxu0 0
        %2756 = vmatprep.subr.bf16.mxu0 0
        %2757 = vmatpush2.bf16.xpose.msra.mxu0 0
        %2758 = vmatprep.subr.bf16.mxu0 0
        %2759 = vmatpush2.bf16.xpose.msra.mxu0 0
        %2760 = vmatprep.subr.bf16.mxu0 0
        %2761 = vmatpush2.bf16.xpose.msra.mxu0 0
        %2762 = vmatprep.subr.bf16.mxu0 0
        %2763 = vmatpush2.bf16.xpose.msra.mxu0 0
        %2764 = vmatprep.subr.bf16.mxu0 0
        %2765 = vmatpush2.bf16.xpose.msra.mxu0 0
        %2766 = vmatprep.subr.bf16.mxu0 0
        %2767 = vmatpush2.bf16.xpose.msra.mxu0 0
        %2768 = vmatprep.subr.bf16.mxu0 0
        %2769 = vmatpush2.bf16.xpose.msra.mxu0 0
        %2770 = vmatprep.mubr.bf16.mxu0 0
        %2771 = vmatmul.mubr.bf16.gmra.mxu0 %v2721
        %v2772 = vpop.f32.mrf.mxu0
        %v2773 = vadd.f32 %v2696, %v2772
        %v2774 = vpop.f32.mrf.mxu0
        %v2775 = vpop.f32.mrf.mxu0
        %v2776 = vadd.f32 %v2697, %v2775
        %v2777 = vpop.f32.mrf.mxu0
        %2778 = vmatprep.mubr.bf16.mxu0 0
        %2779 = vmatmul.mubr.bf16.gmra.mxu0 %v2724
        %v2780 = vpop.f32.mrf.mxu0
        %v2781 = vadd.f32 %v2698, %v2780
        %v2782 = vpop.f32.mrf.mxu0
        %v2783 = vpop.f32.mrf.mxu0
        %v2784 = vadd.f32 %v2699, %v2783
        %v2785 = vpop.f32.mrf.mxu0
        %2786 = vdwg.mxu0
        %vm2787 = vcmask 523264
        %v2788 = vsel %vm2787, %v2773, -inf
        %2789 = vmax.xlane.f32.xlu0 %v2788
        %v2790 = vpop.xlane.xlu0 %2789
        %v2791 = vsel %vm2787, %v2776, -inf
        %2792 = vmax.xlane.f32.xlu0 %v2791
        %v2793 = vpop.xlane.xlu0 %2792
        %v2794 = vsel %vm2787, %v2781, -inf
        %2795 = vmax.xlane.f32.xlu0 %v2794
        %v2796 = vpop.xlane.xlu0 %2795
        %v2797 = vsel %vm2787, %v2784, -inf
        %2798 = vmax.xlane.f32.xlu0 %v2797
        %v2799 = vpop.xlane.xlu0 %2798
        %v2800 = vsub.f32 %v2773, %v2790
        %v2801 = vsub.f32 %v2776, %v2793
        %v2802 = vsub.f32 %v2781, %v2796
        %v2803 = vsub.f32 %v2784, %v2799
        %v2804 = vmul.f32 %v2800, 1.442695
        %v2805 = vpow.pop %v2804
        %v2806 = vmul.f32 %v2801, 1.442695
        %v2807 = vpow.pop %v2806
        %v2808 = vmul.f32 %v2802, 1.442695
        %v2809 = vpow.pop %v2808
        %v2810 = vmul.f32 %v2803, 1.442695
        %v2811 = vpow.pop %v2810
        %v2812 = vsel %vm2787, %v2805, 0.0
        %2813 = vadd.xlane.f32.xlu0 %v2812
        %v2814 = vpop.xlane.xlu0 %2813
        %v2815 = vsel %vm2787, %v2807, 0.0
        %2816 = vadd.xlane.f32.xlu0 %v2815
        %v2817 = vpop.xlane.xlu0 %2816
        %v2818 = vsel %vm2787, %v2809, 0.0
        %2819 = vadd.xlane.f32.xlu0 %v2818
        %v2820 = vpop.xlane.xlu0 %2819
        %v2821 = vsel %vm2787, %v2811, 0.0
        %2822 = vadd.xlane.f32.xlu0 %v2821
        %v2823 = vpop.xlane.xlu0 %2822
        %v2824 = vpack.c.bf16 %v2807, %v2805
        %v2825 = vpack.c.bf16 %v2811, %v2809
        %2826 = vrot.lane.b32.xlu0 %v2716, 96
        %v2827 = vpop.permute.xlu0 %2826
        %2828 = vrot.lane.b32.xlu0 %v2717, 96
        %v2829 = vpop.permute.xlu0 %2828
        %2830 = vrot.lane.b32.xlu0 %v2718, 96
        %v2831 = vpop.permute.xlu0 %2830
        %2832 = vrot.lane.b32.xlu0 %v2719, 96
        %v2833 = vpop.permute.xlu0 %2832
        %v2839 = vsel %vm2787, %v2824, 0
        %v2842 = vsel %vm2787, %v2825, 0
        %2844 = vmatprep.subr.bf16.mxu0 0
        %2845 = vmatpush1.bf16.msra.mxu0 0
        %2846 = vmatprep.subr.bf16.mxu0 0
        %2847 = vmatpush1.bf16.msra.mxu0 0
        %2848 = vmatprep.subr.bf16.mxu0 0
        %2849 = vmatpush1.bf16.msra.mxu0 0
        %2850 = vmatprep.subr.bf16.mxu0 0
        %2851 = vmatpush1.bf16.msra.mxu0 0
        %2852 = vmatprep.subr.bf16.mxu0 0
        %2853 = vmatpush1.bf16.msra.mxu0 %v2833
        %2854 = vmatprep.subr.bf16.mxu0 0
        %2855 = vmatpush1.bf16.msra.mxu0 %v2831
        %2856 = vmatprep.subr.bf16.mxu0 0
        %2857 = vmatpush1.bf16.msra.mxu0 %v2829
        %2858 = vmatprep.subr.bf16.mxu0 0
        %2859 = vmatpush1.bf16.msra.mxu0 %v2827
        %2860 = vmatprep.subr.bf16.mxu0 0
        %2861 = vmatpush2.bf16.msra.mxu0 0
        %2862 = vmatprep.subr.bf16.mxu0 0
        %2863 = vmatpush2.bf16.msra.mxu0 0
        %2864 = vmatprep.subr.bf16.mxu0 0
        %2865 = vmatpush2.bf16.msra.mxu0 0
        %2866 = vmatprep.subr.bf16.mxu0 0
        %2867 = vmatpush2.bf16.msra.mxu0 0
        %2868 = vmatprep.subr.bf16.mxu0 0
        %2869 = vmatpush2.bf16.msra.mxu0 0
        %2870 = vmatprep.subr.bf16.mxu0 0
        %2871 = vmatpush2.bf16.msra.mxu0 0
        %2872 = vmatprep.subr.bf16.mxu0 0
        %2873 = vmatpush2.bf16.msra.mxu0 0
        %2874 = vmatprep.subr.bf16.mxu0 0
        %2875 = vmatpush2.bf16.msra.mxu0 0
        %2876 = vmatprep.mubr.bf16.mxu0 0
        %2877 = vmatmul.mubr.bf16.gmra.mxu0 %v2839
        %v2878 = vpop.f32.mrf.mxu0
        %v2879 = vadd.f32 0.0, %v2878
        %v2880 = vpop.f32.mrf.mxu0
        %v2881 = vpop.f32.mrf.mxu0
        %v2882 = vadd.f32 0.0, %v2881
        %v2883 = vpop.f32.mrf.mxu0
        %2884 = vmatprep.mubr.bf16.mxu0 0
        %2885 = vmatmul.mubr.bf16.gmra.mxu0 %v2842
        %v2886 = vpop.f32.mrf.mxu0
        %v2887 = vadd.f32 0.0, %v2886
        %v2888 = vpop.f32.mrf.mxu0
        %v2889 = vpop.f32.mrf.mxu0
        %v2890 = vadd.f32 0.0, %v2889
        %v2891 = vpop.f32.mrf.mxu0
        %2892 = vdwg.mxu0
        %v2893 = vrcp.pop %v2814
        %v2894 = vrcp.pop %v2817
        %v2895 = vrcp.pop %v2820
        %v2896 = vrcp.pop %v2823
        %v2897 = vmul.f32 %v2879, %v2893
        %v2898 = vmul.f32 %v2882, %v2894
        %v2899 = vmul.f32 %v2887, %v2895
        %v2900 = vmul.f32 %v2890, %v2896
        %v2901 = vpack.c.bf16 %v2898, %v2897
        %v2902 = vpack.c.bf16 %v2900, %v2899
        %v2903 = vld [vmem:[#allocation2] sm:$0xf]
        %v2904 = vld [vmem:[#allocation2 + $0x4] sm:$0xf]
        %v2905 = vld [vmem:[#allocation2 + $0x8] sm:$0xf]
        %v2906 = vld [vmem:[#allocation2 + $0xc] sm:$0xf]
        %v2907 = vld [vmem:[#allocation2 + $0x10] sm:$0xf]
        %v2908 = vld [vmem:[#allocation2 + $0x14] sm:$0xf]
        %v2909 = vld [vmem:[#allocation2 + $0x18] sm:$0xf]
        %v2910 = vld [vmem:[#allocation2 + $0x1c] sm:$0xf]
        %2911 = vrot.lane.b32.xlu0 %v694, 120
        %v2912 = vpop.permute.xlu0 %2911
        %v2914 = vsel %vm698, %v2912, 0
        %2916 = vmatprep.subr.bf16.mxu0 0
        %2917 = vmatpush1.bf16.xpose.msra.mxu0 0
        %2918 = vmatprep.subr.bf16.mxu0 0
        %2919 = vmatpush1.bf16.xpose.msra.mxu0 0
        %2920 = vmatprep.subr.bf16.mxu0 0
        %2921 = vmatpush1.bf16.xpose.msra.mxu0 0
        %2922 = vmatprep.subr.bf16.mxu0 0
        %2923 = vmatpush1.bf16.xpose.msra.mxu0 0
        %2924 = vmatprep.subr.bf16.mxu0 0
        %2925 = vmatpush1.bf16.xpose.msra.mxu0 0
        %2926 = vmatprep.subr.bf16.mxu0 0
        %2927 = vmatpush1.bf16.xpose.msra.mxu0 0
        %2928 = vmatprep.subr.bf16.mxu0 0
        %2929 = vmatpush1.bf16.xpose.msra.mxu0 0
        %2930 = vmatprep.subr.bf16.mxu0 0
        %2931 = vmatpush1.bf16.xpose.msra.mxu0 %v703
        %2932 = vmatprep.subr.bf16.mxu0 0
        %2933 = vmatpush2.bf16.xpose.msra.mxu0 0
        %2934 = vmatprep.subr.bf16.mxu0 0
        %2935 = vmatpush2.bf16.xpose.msra.mxu0 0
        %2936 = vmatprep.subr.bf16.mxu0 0
        %2937 = vmatpush2.bf16.xpose.msra.mxu0 0
        %2938 = vmatprep.subr.bf16.mxu0 0
        %2939 = vmatpush2.bf16.xpose.msra.mxu0 0
        %2940 = vmatprep.subr.bf16.mxu0 0
        %2941 = vmatpush2.bf16.xpose.msra.mxu0 0
        %2942 = vmatprep.subr.bf16.mxu0 0
        %2943 = vmatpush2.bf16.xpose.msra.mxu0 0
        %2944 = vmatprep.subr.bf16.mxu0 0
        %2945 = vmatpush2.bf16.xpose.msra.mxu0 0
        %2946 = vmatprep.subr.bf16.mxu0 0
        %2947 = vmatpush2.bf16.xpose.msra.mxu0 0
        %2948 = vmatprep.mubr.bf16.mxu0 0
        %2949 = vmatmul.mubr.bf16.gmra.mxu0 %v2914
        %v2950 = vpop.f32.mrf.mxu0
        %v2951 = vadd.f32 0.0, %v2950
        %v2952 = vpop.f32.mrf.mxu0
        %v2953 = vpop.f32.mrf.mxu0
        %v2954 = vpop.f32.mrf.mxu0
        %2955 = vdwg.mxu0
        %2956 = vrot.lane.b32.xlu0 %v695, 120
        %v2957 = vpop.permute.xlu0 %2956
        %v2959 = vsel %vm698, %v2957, 0
        %2961 = vmatprep.subr.bf16.mxu0 0
        %2962 = vmatpush1.bf16.xpose.msra.mxu0 0
        %2963 = vmatprep.subr.bf16.mxu0 0
        %2964 = vmatpush1.bf16.xpose.msra.mxu0 0
        %2965 = vmatprep.subr.bf16.mxu0 0
        %2966 = vmatpush1.bf16.xpose.msra.mxu0 0
        %2967 = vmatprep.subr.bf16.mxu0 0
        %2968 = vmatpush1.bf16.xpose.msra.mxu0 0
        %2969 = vmatprep.subr.bf16.mxu0 0
        %2970 = vmatpush1.bf16.xpose.msra.mxu0 0
        %2971 = vmatprep.subr.bf16.mxu0 0
        %2972 = vmatpush1.bf16.xpose.msra.mxu0 0
        %2973 = vmatprep.subr.bf16.mxu0 0
        %2974 = vmatpush1.bf16.xpose.msra.mxu0 0
        %2975 = vmatprep.subr.bf16.mxu0 0
        %2976 = vmatpush1.bf16.xpose.msra.mxu0 %v749
        %2977 = vmatprep.subr.bf16.mxu0 0
        %2978 = vmatpush2.bf16.xpose.msra.mxu0 0
        %2979 = vmatprep.subr.bf16.mxu0 0
        %2980 = vmatpush2.bf16.xpose.msra.mxu0 0
        %2981 = vmatprep.subr.bf16.mxu0 0
        %2982 = vmatpush2.bf16.xpose.msra.mxu0 0
        %2983 = vmatprep.subr.bf16.mxu0 0
        %2984 = vmatpush2.bf16.xpose.msra.mxu0 0
        %2985 = vmatprep.subr.bf16.mxu0 0
        %2986 = vmatpush2.bf16.xpose.msra.mxu0 0
        %2987 = vmatprep.subr.bf16.mxu0 0
        %2988 = vmatpush2.bf16.xpose.msra.mxu0 0
        %2989 = vmatprep.subr.bf16.mxu0 0
        %2990 = vmatpush2.bf16.xpose.msra.mxu0 0
        %2991 = vmatprep.subr.bf16.mxu0 0
        %2992 = vmatpush2.bf16.xpose.msra.mxu0 0
        %2993 = vmatprep.mubr.bf16.mxu0 0
        %2994 = vmatmul.mubr.bf16.gmra.mxu0 %v2959
        %v2995 = vpop.f32.mrf.mxu0
        %v2996 = vadd.f32 0.0, %v2995
        %v2997 = vpop.f32.mrf.mxu0
        %v2998 = vpop.f32.mrf.mxu0
        %v2999 = vpop.f32.mrf.mxu0
        %3000 = vdwg.mxu0
        %3001 = vrot.lane.b32.xlu0 %v696, 120
        %v3002 = vpop.permute.xlu0 %3001
        %v3004 = vsel %vm698, %v3002, 0
        %3006 = vmatprep.subr.bf16.mxu0 0
        %3007 = vmatpush1.bf16.xpose.msra.mxu0 0
        %3008 = vmatprep.subr.bf16.mxu0 0
        %3009 = vmatpush1.bf16.xpose.msra.mxu0 0
        %3010 = vmatprep.subr.bf16.mxu0 0
        %3011 = vmatpush1.bf16.xpose.msra.mxu0 0
        %3012 = vmatprep.subr.bf16.mxu0 0
        %3013 = vmatpush1.bf16.xpose.msra.mxu0 0
        %3014 = vmatprep.subr.bf16.mxu0 0
        %3015 = vmatpush1.bf16.xpose.msra.mxu0 0
        %3016 = vmatprep.subr.bf16.mxu0 0
        %3017 = vmatpush1.bf16.xpose.msra.mxu0 0
        %3018 = vmatprep.subr.bf16.mxu0 0
        %3019 = vmatpush1.bf16.xpose.msra.mxu0 0
        %3020 = vmatprep.subr.bf16.mxu0 0
        %3021 = vmatpush1.bf16.xpose.msra.mxu0 %v795
        %3022 = vmatprep.subr.bf16.mxu0 0
        %3023 = vmatpush2.bf16.xpose.msra.mxu0 0
        %3024 = vmatprep.subr.bf16.mxu0 0
        %3025 = vmatpush2.bf16.xpose.msra.mxu0 0
        %3026 = vmatprep.subr.bf16.mxu0 0
        %3027 = vmatpush2.bf16.xpose.msra.mxu0 0
        %3028 = vmatprep.subr.bf16.mxu0 0
        %3029 = vmatpush2.bf16.xpose.msra.mxu0 0
        %3030 = vmatprep.subr.bf16.mxu0 0
        %3031 = vmatpush2.bf16.xpose.msra.mxu0 0
        %3032 = vmatprep.subr.bf16.mxu0 0
        %3033 = vmatpush2.bf16.xpose.msra.mxu0 0
        %3034 = vmatprep.subr.bf16.mxu0 0
        %3035 = vmatpush2.bf16.xpose.msra.mxu0 0
        %3036 = vmatprep.subr.bf16.mxu0 0
        %3037 = vmatpush2.bf16.xpose.msra.mxu0 0
        %3038 = vmatprep.mubr.bf16.mxu0 0
        %3039 = vmatmul.mubr.bf16.gmra.mxu0 %v3004
        %v3040 = vpop.f32.mrf.mxu0
        %v3041 = vadd.f32 0.0, %v3040
        %v3042 = vpop.f32.mrf.mxu0
        %v3043 = vpop.f32.mrf.mxu0
        %v3044 = vpop.f32.mrf.mxu0
        %3045 = vdwg.mxu0
        %3046 = vrot.lane.b32.xlu0 %v697, 120
        %v3047 = vpop.permute.xlu0 %3046
        %v3049 = vsel %vm698, %v3047, 0
        %3051 = vmatprep.subr.bf16.mxu0 0
        %3052 = vmatpush1.bf16.xpose.msra.mxu0 0
        %3053 = vmatprep.subr.bf16.mxu0 0
        %3054 = vmatpush1.bf16.xpose.msra.mxu0 0
        %3055 = vmatprep.subr.bf16.mxu0 0
        %3056 = vmatpush1.bf16.xpose.msra.mxu0 0
        %3057 = vmatprep.subr.bf16.mxu0 0
        %3058 = vmatpush1.bf16.xpose.msra.mxu0 0
        %3059 = vmatprep.subr.bf16.mxu0 0
        %3060 = vmatpush1.bf16.xpose.msra.mxu0 0
        %3061 = vmatprep.subr.bf16.mxu0 0
        %3062 = vmatpush1.bf16.xpose.msra.mxu0 0
        %3063 = vmatprep.subr.bf16.mxu0 0
        %3064 = vmatpush1.bf16.xpose.msra.mxu0 0
        %3065 = vmatprep.subr.bf16.mxu0 0
        %3066 = vmatpush1.bf16.xpose.msra.mxu0 %v841
        %3067 = vmatprep.subr.bf16.mxu0 0
        %3068 = vmatpush2.bf16.xpose.msra.mxu0 0
        %3069 = vmatprep.subr.bf16.mxu0 0
        %3070 = vmatpush2.bf16.xpose.msra.mxu0 0
        %3071 = vmatprep.subr.bf16.mxu0 0
        %3072 = vmatpush2.bf16.xpose.msra.mxu0 0
        %3073 = vmatprep.subr.bf16.mxu0 0
        %3074 = vmatpush2.bf16.xpose.msra.mxu0 0
        %3075 = vmatprep.subr.bf16.mxu0 0
        %3076 = vmatpush2.bf16.xpose.msra.mxu0 0
        %3077 = vmatprep.subr.bf16.mxu0 0
        %3078 = vmatpush2.bf16.xpose.msra.mxu0 0
        %3079 = vmatprep.subr.bf16.mxu0 0
        %3080 = vmatpush2.bf16.xpose.msra.mxu0 0
        %3081 = vmatprep.subr.bf16.mxu0 0
        %3082 = vmatpush2.bf16.xpose.msra.mxu0 0
        %3083 = vmatprep.mubr.bf16.mxu0 0
        %3084 = vmatmul.mubr.bf16.gmra.mxu0 %v3049
        %v3085 = vpop.f32.mrf.mxu0
        %v3086 = vadd.f32 0.0, %v3085
        %v3087 = vpop.f32.mrf.mxu0
        %v3088 = vpop.f32.mrf.mxu0
        %v3089 = vpop.f32.mrf.mxu0
        %3090 = vdwg.mxu0
        %v3091 = vpack.i.b16 %v2957, %v2912
        %v3092 = vshrl.u32 %v2912, 16
        %v3093 = vshrl.u32 %v2957, 16
        %v3094 = vpack.i.b16 %v3093, %v3092
        %v3095 = vpack.i.b16 %v3047, %v3002
        %v3096 = vshrl.u32 %v3002, 16
        %v3097 = vshrl.u32 %v3047, 16
        %v3098 = vpack.i.b16 %v3097, %v3096
        %v3101 = vunpack.c.l.s4 1983009808
        %v3102 = vunpack.c.0.s8 %v3101
        %v3103 = vlaneseq
        %v3104 = vshrl.u32 %v3103, 7
        %v3105 = vsub.s32 %v3102, %v3104
        %v3106 = vrot.slane %v3091, %v3105
        %v3109 = vunpack.c.l.s4 1983009808
        %v3110 = vunpack.c.0.s8 %v3109
        %v3111 = vlaneseq
        %v3112 = vshrl.u32 %v3111, 7
        %v3113 = vsub.s32 %v3110, %v3112
        %v3114 = vrot.slane %v3095, %v3113
        %v3115 = vcombine.low %v3106, %v3114
        %v3116 = vcombine.high %v3106, %v3114
        %v3118 = vunpack.c.l.s4 1934713408
        %v3119 = vunpack.c.0.s8 %v3118
        %v3120 = vlaneseq
        %v3121 = vshrl.u32 %v3120, 7
        %v3122 = vsub.s32 %v3119, %v3121
        %v3123 = vrot.slane %v3115, %v3122
        %v3125 = vunpack.c.l.s4 1934713408
        %v3126 = vunpack.c.0.s8 %v3125
        %v3127 = vlaneseq
        %v3128 = vshrl.u32 %v3127, 7
        %v3129 = vsub.s32 %v3126, %v3128
        %v3130 = vrot.slane %v3116, %v3129
        %v3131 = vcombine.high %v3123, 0
        %v3132 = vcombine.high %v3130, 0
        %v3135 = vunpack.c.l.s4 1983009808
        %v3136 = vunpack.c.0.s8 %v3135
        %v3137 = vlaneseq
        %v3138 = vshrl.u32 %v3137, 7
        %v3139 = vsub.s32 %v3136, %v3138
        %v3140 = vrot.slane %v3094, %v3139
        %v3143 = vunpack.c.l.s4 1983009808
        %v3144 = vunpack.c.0.s8 %v3143
        %v3145 = vlaneseq
        %v3146 = vshrl.u32 %v3145, 7
        %v3147 = vsub.s32 %v3144, %v3146
        %v3148 = vrot.slane %v3098, %v3147
        %v3149 = vcombine.low %v3140, %v3148
        %v3150 = vcombine.high %v3140, %v3148
        %v3152 = vunpack.c.l.s4 1934713408
        %v3153 = vunpack.c.0.s8 %v3152
        %v3154 = vlaneseq
        %v3155 = vshrl.u32 %v3154, 7
        %v3156 = vsub.s32 %v3153, %v3155
        %v3157 = vrot.slane %v3149, %v3156
        %v3159 = vunpack.c.l.s4 1934713408
        %v3160 = vunpack.c.0.s8 %v3159
        %v3161 = vlaneseq
        %v3162 = vshrl.u32 %v3161, 7
        %v3163 = vsub.s32 %v3160, %v3162
        %v3164 = vrot.slane %v3150, %v3163
        %v3165 = vcombine.high %v3157, 0
        %v3166 = vcombine.high %v3164, 0
        %v3168 = vsel %vm698, %v3123, 0
        %3170 = vmatprep.subr.bf16.mxu0 0
        %3171 = vmatpush1.bf16.xpose.msra.mxu0 0
        %3172 = vmatprep.subr.bf16.mxu0 0
        %3173 = vmatpush1.bf16.xpose.msra.mxu0 0
        %3174 = vmatprep.subr.bf16.mxu0 0
        %3175 = vmatpush1.bf16.xpose.msra.mxu0 0
        %3176 = vmatprep.subr.bf16.mxu0 0
        %3177 = vmatpush1.bf16.xpose.msra.mxu0 0
        %3178 = vmatprep.subr.bf16.mxu0 0
        %3179 = vmatpush1.bf16.xpose.msra.mxu0 0
        %3180 = vmatprep.subr.bf16.mxu0 0
        %3181 = vmatpush1.bf16.xpose.msra.mxu0 0
        %3182 = vmatprep.subr.bf16.mxu0 0
        %3183 = vmatpush1.bf16.xpose.msra.mxu0 0
        %3184 = vmatprep.subr.bf16.mxu0 0
        %3185 = vmatpush1.bf16.xpose.msra.mxu0 %v963
        %3186 = vmatprep.subr.bf16.mxu0 0
        %3187 = vmatpush2.bf16.xpose.msra.mxu0 0
        %3188 = vmatprep.subr.bf16.mxu0 0
        %3189 = vmatpush2.bf16.xpose.msra.mxu0 0
        %3190 = vmatprep.subr.bf16.mxu0 0
        %3191 = vmatpush2.bf16.xpose.msra.mxu0 0
        %3192 = vmatprep.subr.bf16.mxu0 0
        %3193 = vmatpush2.bf16.xpose.msra.mxu0 0
        %3194 = vmatprep.subr.bf16.mxu0 0
        %3195 = vmatpush2.bf16.xpose.msra.mxu0 0
        %3196 = vmatprep.subr.bf16.mxu0 0
        %3197 = vmatpush2.bf16.xpose.msra.mxu0 0
        %3198 = vmatprep.subr.bf16.mxu0 0
        %3199 = vmatpush2.bf16.xpose.msra.mxu0 0
        %3200 = vmatprep.subr.bf16.mxu0 0
        %3201 = vmatpush2.bf16.xpose.msra.mxu0 0
        %3202 = vmatprep.mubr.bf16.mxu0 0
        %3203 = vmatmul.mubr.bf16.gmra.mxu0 %v3168
        %v3204 = vpop.f32.mrf.mxu0
        %v3205 = vadd.f32 0.0, %v3204
        %v3206 = vpop.f32.mrf.mxu0
        %v3207 = vpop.f32.mrf.mxu0
        %v3208 = vpop.f32.mrf.mxu0
        %3209 = vdwg.mxu0
        %v3211 = vsel %vm698, %v3157, 0
        %3213 = vmatprep.subr.bf16.mxu0 0
        %3214 = vmatpush1.bf16.xpose.msra.mxu0 0
        %3215 = vmatprep.subr.bf16.mxu0 0
        %3216 = vmatpush1.bf16.xpose.msra.mxu0 0
        %3217 = vmatprep.subr.bf16.mxu0 0
        %3218 = vmatpush1.bf16.xpose.msra.mxu0 0
        %3219 = vmatprep.subr.bf16.mxu0 0
        %3220 = vmatpush1.bf16.xpose.msra.mxu0 0
        %3221 = vmatprep.subr.bf16.mxu0 0
        %3222 = vmatpush1.bf16.xpose.msra.mxu0 0
        %3223 = vmatprep.subr.bf16.mxu0 0
        %3224 = vmatpush1.bf16.xpose.msra.mxu0 0
        %3225 = vmatprep.subr.bf16.mxu0 0
        %3226 = vmatpush1.bf16.xpose.msra.mxu0 0
        %3227 = vmatprep.subr.bf16.mxu0 0
        %3228 = vmatpush1.bf16.xpose.msra.mxu0 %v1009
        %3229 = vmatprep.subr.bf16.mxu0 0
        %3230 = vmatpush2.bf16.xpose.msra.mxu0 0
        %3231 = vmatprep.subr.bf16.mxu0 0
        %3232 = vmatpush2.bf16.xpose.msra.mxu0 0
        %3233 = vmatprep.subr.bf16.mxu0 0
        %3234 = vmatpush2.bf16.xpose.msra.mxu0 0
        %3235 = vmatprep.subr.bf16.mxu0 0
        %3236 = vmatpush2.bf16.xpose.msra.mxu0 0
        %3237 = vmatprep.subr.bf16.mxu0 0
        %3238 = vmatpush2.bf16.xpose.msra.mxu0 0
        %3239 = vmatprep.subr.bf16.mxu0 0
        %3240 = vmatpush2.bf16.xpose.msra.mxu0 0
        %3241 = vmatprep.subr.bf16.mxu0 0
        %3242 = vmatpush2.bf16.xpose.msra.mxu0 0
        %3243 = vmatprep.subr.bf16.mxu0 0
        %3244 = vmatpush2.bf16.xpose.msra.mxu0 0
        %3245 = vmatprep.mubr.bf16.mxu0 0
        %3246 = vmatmul.mubr.bf16.gmra.mxu0 %v3211
        %v3247 = vpop.f32.mrf.mxu0
        %v3248 = vadd.f32 0.0, %v3247
        %v3249 = vpop.f32.mrf.mxu0
        %v3250 = vpop.f32.mrf.mxu0
        %v3251 = vpop.f32.mrf.mxu0
        %3252 = vdwg.mxu0
        %v3254 = vsel %vm698, %v3131, 0
        %3256 = vmatprep.subr.bf16.mxu0 0
        %3257 = vmatpush1.bf16.xpose.msra.mxu0 0
        %3258 = vmatprep.subr.bf16.mxu0 0
        %3259 = vmatpush1.bf16.xpose.msra.mxu0 0
        %3260 = vmatprep.subr.bf16.mxu0 0
        %3261 = vmatpush1.bf16.xpose.msra.mxu0 0
        %3262 = vmatprep.subr.bf16.mxu0 0
        %3263 = vmatpush1.bf16.xpose.msra.mxu0 0
        %3264 = vmatprep.subr.bf16.mxu0 0
        %3265 = vmatpush1.bf16.xpose.msra.mxu0 0
        %3266 = vmatprep.subr.bf16.mxu0 0
        %3267 = vmatpush1.bf16.xpose.msra.mxu0 0
        %3268 = vmatprep.subr.bf16.mxu0 0
        %3269 = vmatpush1.bf16.xpose.msra.mxu0 0
        %3270 = vmatprep.subr.bf16.mxu0 0
        %3271 = vmatpush1.bf16.xpose.msra.mxu0 %v1055
        %3272 = vmatprep.subr.bf16.mxu0 0
        %3273 = vmatpush2.bf16.xpose.msra.mxu0 0
        %3274 = vmatprep.subr.bf16.mxu0 0
        %3275 = vmatpush2.bf16.xpose.msra.mxu0 0
        %3276 = vmatprep.subr.bf16.mxu0 0
        %3277 = vmatpush2.bf16.xpose.msra.mxu0 0
        %3278 = vmatprep.subr.bf16.mxu0 0
        %3279 = vmatpush2.bf16.xpose.msra.mxu0 0
        %3280 = vmatprep.subr.bf16.mxu0 0
        %3281 = vmatpush2.bf16.xpose.msra.mxu0 0
        %3282 = vmatprep.subr.bf16.mxu0 0
        %3283 = vmatpush2.bf16.xpose.msra.mxu0 0
        %3284 = vmatprep.subr.bf16.mxu0 0
        %3285 = vmatpush2.bf16.xpose.msra.mxu0 0
        %3286 = vmatprep.subr.bf16.mxu0 0
        %3287 = vmatpush2.bf16.xpose.msra.mxu0 0
        %3288 = vmatprep.mubr.bf16.mxu0 0
        %3289 = vmatmul.mubr.bf16.gmra.mxu0 %v3254
        %v3290 = vpop.f32.mrf.mxu0
        %v3291 = vadd.f32 0.0, %v3290
        %v3292 = vpop.f32.mrf.mxu0
        %v3293 = vpop.f32.mrf.mxu0
        %v3294 = vpop.f32.mrf.mxu0
        %3295 = vdwg.mxu0
        %v3297 = vsel %vm698, %v3165, 0
        %3299 = vmatprep.subr.bf16.mxu0 0
        %3300 = vmatpush1.bf16.xpose.msra.mxu0 0
        %3301 = vmatprep.subr.bf16.mxu0 0
        %3302 = vmatpush1.bf16.xpose.msra.mxu0 0
        %3303 = vmatprep.subr.bf16.mxu0 0
        %3304 = vmatpush1.bf16.xpose.msra.mxu0 0
        %3305 = vmatprep.subr.bf16.mxu0 0
        %3306 = vmatpush1.bf16.xpose.msra.mxu0 0
        %3307 = vmatprep.subr.bf16.mxu0 0
        %3308 = vmatpush1.bf16.xpose.msra.mxu0 0
        %3309 = vmatprep.subr.bf16.mxu0 0
        %3310 = vmatpush1.bf16.xpose.msra.mxu0 0
        %3311 = vmatprep.subr.bf16.mxu0 0
        %3312 = vmatpush1.bf16.xpose.msra.mxu0 0
        %3313 = vmatprep.subr.bf16.mxu0 0
        %3314 = vmatpush1.bf16.xpose.msra.mxu0 %v1101
        %3315 = vmatprep.subr.bf16.mxu0 0
        %3316 = vmatpush2.bf16.xpose.msra.mxu0 0
        %3317 = vmatprep.subr.bf16.mxu0 0
        %3318 = vmatpush2.bf16.xpose.msra.mxu0 0
        %3319 = vmatprep.subr.bf16.mxu0 0
        %3320 = vmatpush2.bf16.xpose.msra.mxu0 0
        %3321 = vmatprep.subr.bf16.mxu0 0
        %3322 = vmatpush2.bf16.xpose.msra.mxu0 0
        %3323 = vmatprep.subr.bf16.mxu0 0
        %3324 = vmatpush2.bf16.xpose.msra.mxu0 0
        %3325 = vmatprep.subr.bf16.mxu0 0
        %3326 = vmatpush2.bf16.xpose.msra.mxu0 0
        %3327 = vmatprep.subr.bf16.mxu0 0
        %3328 = vmatpush2.bf16.xpose.msra.mxu0 0
        %3329 = vmatprep.subr.bf16.mxu0 0
        %3330 = vmatpush2.bf16.xpose.msra.mxu0 0
        %3331 = vmatprep.mubr.bf16.mxu0 0
        %3332 = vmatmul.mubr.bf16.gmra.mxu0 %v3297
        %v3333 = vpop.f32.mrf.mxu0
        %v3334 = vadd.f32 0.0, %v3333
        %v3335 = vpop.f32.mrf.mxu0
        %v3336 = vpop.f32.mrf.mxu0
        %v3337 = vpop.f32.mrf.mxu0
        %3338 = vdwg.mxu0
        %v3340 = vsel %vm698, %v3130, 0
        %3342 = vmatprep.subr.bf16.mxu0 0
        %3343 = vmatpush1.bf16.xpose.msra.mxu0 0
        %3344 = vmatprep.subr.bf16.mxu0 0
        %3345 = vmatpush1.bf16.xpose.msra.mxu0 0
        %3346 = vmatprep.subr.bf16.mxu0 0
        %3347 = vmatpush1.bf16.xpose.msra.mxu0 0
        %3348 = vmatprep.subr.bf16.mxu0 0
        %3349 = vmatpush1.bf16.xpose.msra.mxu0 0
        %3350 = vmatprep.subr.bf16.mxu0 0
        %3351 = vmatpush1.bf16.xpose.msra.mxu0 0
        %3352 = vmatprep.subr.bf16.mxu0 0
        %3353 = vmatpush1.bf16.xpose.msra.mxu0 0
        %3354 = vmatprep.subr.bf16.mxu0 0
        %3355 = vmatpush1.bf16.xpose.msra.mxu0 0
        %3356 = vmatprep.subr.bf16.mxu0 0
        %3357 = vmatpush1.bf16.xpose.msra.mxu0 %v1147
        %3358 = vmatprep.subr.bf16.mxu0 0
        %3359 = vmatpush2.bf16.xpose.msra.mxu0 0
        %3360 = vmatprep.subr.bf16.mxu0 0
        %3361 = vmatpush2.bf16.xpose.msra.mxu0 0
        %3362 = vmatprep.subr.bf16.mxu0 0
        %3363 = vmatpush2.bf16.xpose.msra.mxu0 0
        %3364 = vmatprep.subr.bf16.mxu0 0
        %3365 = vmatpush2.bf16.xpose.msra.mxu0 0
        %3366 = vmatprep.subr.bf16.mxu0 0
        %3367 = vmatpush2.bf16.xpose.msra.mxu0 0
        %3368 = vmatprep.subr.bf16.mxu0 0
        %3369 = vmatpush2.bf16.xpose.msra.mxu0 0
        %3370 = vmatprep.subr.bf16.mxu0 0
        %3371 = vmatpush2.bf16.xpose.msra.mxu0 0
        %3372 = vmatprep.subr.bf16.mxu0 0
        %3373 = vmatpush2.bf16.xpose.msra.mxu0 0
        %3374 = vmatprep.mubr.bf16.mxu0 0
        %3375 = vmatmul.mubr.bf16.gmra.mxu0 %v3340
        %v3376 = vpop.f32.mrf.mxu0
        %v3377 = vadd.f32 0.0, %v3376
        %v3378 = vpop.f32.mrf.mxu0
        %v3379 = vpop.f32.mrf.mxu0
        %v3380 = vpop.f32.mrf.mxu0
        %3381 = vdwg.mxu0
        %v3383 = vsel %vm698, %v3164, 0
        %3385 = vmatprep.subr.bf16.mxu0 0
        %3386 = vmatpush1.bf16.xpose.msra.mxu0 0
        %3387 = vmatprep.subr.bf16.mxu0 0
        %3388 = vmatpush1.bf16.xpose.msra.mxu0 0
        %3389 = vmatprep.subr.bf16.mxu0 0
        %3390 = vmatpush1.bf16.xpose.msra.mxu0 0
        %3391 = vmatprep.subr.bf16.mxu0 0
        %3392 = vmatpush1.bf16.xpose.msra.mxu0 0
        %3393 = vmatprep.subr.bf16.mxu0 0
        %3394 = vmatpush1.bf16.xpose.msra.mxu0 0
        %3395 = vmatprep.subr.bf16.mxu0 0
        %3396 = vmatpush1.bf16.xpose.msra.mxu0 0
        %3397 = vmatprep.subr.bf16.mxu0 0
        %3398 = vmatpush1.bf16.xpose.msra.mxu0 0
        %3399 = vmatprep.subr.bf16.mxu0 0
        %3400 = vmatpush1.bf16.xpose.msra.mxu0 %v1193
        %3401 = vmatprep.subr.bf16.mxu0 0
        %3402 = vmatpush2.bf16.xpose.msra.mxu0 0
        %3403 = vmatprep.subr.bf16.mxu0 0
        %3404 = vmatpush2.bf16.xpose.msra.mxu0 0
        %3405 = vmatprep.subr.bf16.mxu0 0
        %3406 = vmatpush2.bf16.xpose.msra.mxu0 0
        %3407 = vmatprep.subr.bf16.mxu0 0
        %3408 = vmatpush2.bf16.xpose.msra.mxu0 0
        %3409 = vmatprep.subr.bf16.mxu0 0
        %3410 = vmatpush2.bf16.xpose.msra.mxu0 0
        %3411 = vmatprep.subr.bf16.mxu0 0
        %3412 = vmatpush2.bf16.xpose.msra.mxu0 0
        %3413 = vmatprep.subr.bf16.mxu0 0
        %3414 = vmatpush2.bf16.xpose.msra.mxu0 0
        %3415 = vmatprep.subr.bf16.mxu0 0
        %3416 = vmatpush2.bf16.xpose.msra.mxu0 0
        %3417 = vmatprep.mubr.bf16.mxu0 0
        %3418 = vmatmul.mubr.bf16.gmra.mxu0 %v3383
        %v3419 = vpop.f32.mrf.mxu0
        %v3420 = vadd.f32 0.0, %v3419
        %v3421 = vpop.f32.mrf.mxu0
        %v3422 = vpop.f32.mrf.mxu0
        %v3423 = vpop.f32.mrf.mxu0
        %3424 = vdwg.mxu0
        %v3426 = vsel %vm698, %v3132, 0
        %3428 = vmatprep.subr.bf16.mxu0 0
        %3429 = vmatpush1.bf16.xpose.msra.mxu0 0
        %3430 = vmatprep.subr.bf16.mxu0 0
        %3431 = vmatpush1.bf16.xpose.msra.mxu0 0
        %3432 = vmatprep.subr.bf16.mxu0 0
        %3433 = vmatpush1.bf16.xpose.msra.mxu0 0
        %3434 = vmatprep.subr.bf16.mxu0 0
        %3435 = vmatpush1.bf16.xpose.msra.mxu0 0
        %3436 = vmatprep.subr.bf16.mxu0 0
        %3437 = vmatpush1.bf16.xpose.msra.mxu0 0
        %3438 = vmatprep.subr.bf16.mxu0 0
        %3439 = vmatpush1.bf16.xpose.msra.mxu0 0
        %3440 = vmatprep.subr.bf16.mxu0 0
        %3441 = vmatpush1.bf16.xpose.msra.mxu0 0
        %3442 = vmatprep.subr.bf16.mxu0 0
        %3443 = vmatpush1.bf16.xpose.msra.mxu0 %v1239
        %3444 = vmatprep.subr.bf16.mxu0 0
        %3445 = vmatpush2.bf16.xpose.msra.mxu0 0
        %3446 = vmatprep.subr.bf16.mxu0 0
        %3447 = vmatpush2.bf16.xpose.msra.mxu0 0
        %3448 = vmatprep.subr.bf16.mxu0 0
        %3449 = vmatpush2.bf16.xpose.msra.mxu0 0
        %3450 = vmatprep.subr.bf16.mxu0 0
        %3451 = vmatpush2.bf16.xpose.msra.mxu0 0
        %3452 = vmatprep.subr.bf16.mxu0 0
        %3453 = vmatpush2.bf16.xpose.msra.mxu0 0
        %3454 = vmatprep.subr.bf16.mxu0 0
        %3455 = vmatpush2.bf16.xpose.msra.mxu0 0
        %3456 = vmatprep.subr.bf16.mxu0 0
        %3457 = vmatpush2.bf16.xpose.msra.mxu0 0
        %3458 = vmatprep.subr.bf16.mxu0 0
        %3459 = vmatpush2.bf16.xpose.msra.mxu0 0
        %3460 = vmatprep.mubr.bf16.mxu0 0
        %3461 = vmatmul.mubr.bf16.gmra.mxu0 %v3426
        %v3462 = vpop.f32.mrf.mxu0
        %v3463 = vadd.f32 0.0, %v3462
        %v3464 = vpop.f32.mrf.mxu0
        %v3465 = vpop.f32.mrf.mxu0
        %v3466 = vpop.f32.mrf.mxu0
        %3467 = vdwg.mxu0
        %v3469 = vsel %vm698, %v3166, 0
        %3471 = vmatprep.subr.bf16.mxu0 0
        %3472 = vmatpush1.bf16.xpose.msra.mxu0 0
        %3473 = vmatprep.subr.bf16.mxu0 0
        %3474 = vmatpush1.bf16.xpose.msra.mxu0 0
        %3475 = vmatprep.subr.bf16.mxu0 0
        %3476 = vmatpush1.bf16.xpose.msra.mxu0 0
        %3477 = vmatprep.subr.bf16.mxu0 0
        %3478 = vmatpush1.bf16.xpose.msra.mxu0 0
        %3479 = vmatprep.subr.bf16.mxu0 0
        %3480 = vmatpush1.bf16.xpose.msra.mxu0 0
        %3481 = vmatprep.subr.bf16.mxu0 0
        %3482 = vmatpush1.bf16.xpose.msra.mxu0 0
        %3483 = vmatprep.subr.bf16.mxu0 0
        %3484 = vmatpush1.bf16.xpose.msra.mxu0 0
        %3485 = vmatprep.subr.bf16.mxu0 0
        %3486 = vmatpush1.bf16.xpose.msra.mxu0 %v1285
        %3487 = vmatprep.subr.bf16.mxu0 0
        %3488 = vmatpush2.bf16.xpose.msra.mxu0 0
        %3489 = vmatprep.subr.bf16.mxu0 0
        %3490 = vmatpush2.bf16.xpose.msra.mxu0 0
        %3491 = vmatprep.subr.bf16.mxu0 0
        %3492 = vmatpush2.bf16.xpose.msra.mxu0 0
        %3493 = vmatprep.subr.bf16.mxu0 0
        %3494 = vmatpush2.bf16.xpose.msra.mxu0 0
        %3495 = vmatprep.subr.bf16.mxu0 0
        %3496 = vmatpush2.bf16.xpose.msra.mxu0 0
        %3497 = vmatprep.subr.bf16.mxu0 0
        %3498 = vmatpush2.bf16.xpose.msra.mxu0 0
        %3499 = vmatprep.subr.bf16.mxu0 0
        %3500 = vmatpush2.bf16.xpose.msra.mxu0 0
        %3501 = vmatprep.subr.bf16.mxu0 0
        %3502 = vmatpush2.bf16.xpose.msra.mxu0 0
        %3503 = vmatprep.mubr.bf16.mxu0 0
        %3504 = vmatmul.mubr.bf16.gmra.mxu0 %v3469
        %v3505 = vpop.f32.mrf.mxu0
        %v3506 = vadd.f32 0.0, %v3505
        %v3507 = vpop.f32.mrf.mxu0
        %v3508 = vpop.f32.mrf.mxu0
        %v3509 = vpop.f32.mrf.mxu0
        %3510 = vdwg.mxu0
        %v3511 = vcombine.low %v3205, %v3291
        %v3513 = vunpack.c.l.s4 1983009808
        %v3514 = vunpack.c.0.s8 %v3513
        %v3515 = vlaneseq
        %v3516 = vshrl.u32 %v3515, 7
        %v3517 = vsub.s32 %v3514, %v3516
        %v3518 = vrot.slane %v3511, %v3517
        %v3519 = vcombine.low %v3248, %v3334
        %v3521 = vunpack.c.l.s4 1983009808
        %v3522 = vunpack.c.0.s8 %v3521
        %v3523 = vlaneseq
        %v3524 = vshrl.u32 %v3523, 7
        %v3525 = vsub.s32 %v3522, %v3524
        %v3526 = vrot.slane %v3519, %v3525
        %v3527 = vcombine.low %v3377, %v3463
        %v3529 = vunpack.c.l.s4 1983009808
        %v3530 = vunpack.c.0.s8 %v3529
        %v3531 = vlaneseq
        %v3532 = vshrl.u32 %v3531, 7
        %v3533 = vsub.s32 %v3530, %v3532
        %v3534 = vrot.slane %v3527, %v3533
        %v3535 = vcombine.low %v3420, %v3506
        %v3537 = vunpack.c.l.s4 1983009808
        %v3538 = vunpack.c.0.s8 %v3537
        %v3539 = vlaneseq
        %v3540 = vshrl.u32 %v3539, 7
        %v3541 = vsub.s32 %v3538, %v3540
        %v3542 = vrot.slane %v3535, %v3541
        %v3543 = vcombine.low %v3518, %v3526
        %v3544 = vcombine.high %v3518, %v3526
        %v3546 = vunpack.c.l.s4 1934713408
        %v3547 = vunpack.c.0.s8 %v3546
        %v3548 = vlaneseq
        %v3549 = vshrl.u32 %v3548, 7
        %v3550 = vsub.s32 %v3547, %v3549
        %v3551 = vrot.slane %v3543, %v3550
        %v3553 = vunpack.c.l.s4 1934713408
        %v3554 = vunpack.c.0.s8 %v3553
        %v3555 = vlaneseq
        %v3556 = vshrl.u32 %v3555, 7
        %v3557 = vsub.s32 %v3554, %v3556
        %v3558 = vrot.slane %v3544, %v3557
        %v3559 = vcombine.low %v3534, %v3542
        %v3560 = vcombine.high %v3534, %v3542
        %v3562 = vunpack.c.l.s4 1934713408
        %v3563 = vunpack.c.0.s8 %v3562
        %v3564 = vlaneseq
        %v3565 = vshrl.u32 %v3564, 7
        %v3566 = vsub.s32 %v3563, %v3565
        %v3567 = vrot.slane %v3559, %v3566
        %v3569 = vunpack.c.l.s4 1934713408
        %v3570 = vunpack.c.0.s8 %v3569
        %v3571 = vlaneseq
        %v3572 = vshrl.u32 %v3571, 7
        %v3573 = vsub.s32 %v3570, %v3572
        %v3574 = vrot.slane %v3560, %v3573
        %v3575 = vcombine.low %v3551, %v3567
        %v3576 = vcombine.high %v3551, %v3567
        %v3577 = vcombine.low %v3558, %v3574
        %v3578 = vcombine.high %v3558, %v3574
        %v3579 = vlaneseq
        %v3580 = vshrl.u32 %v3579, 7
        %v3581 = vsub.s32 0, %v3580
        %v3582 = vrot.slane %v2951, %v3581
        %3584 = vbcast.lane.b32.xlu0 %v3582, 256
        %v3585 = vpop.permute.xlu0 %3584
        %v3586 = vlaneseq
        %v3587 = vshrl.u32 %v3586, 7
        %v3588 = vsub.s32 1, %v3587
        %v3589 = vrot.slane %v2951, %v3588
        %3591 = vbcast.lane.b32.xlu0 %v3589, 256
        %v3592 = vpop.permute.xlu0 %3591
        %v3593 = vlaneseq
        %v3594 = vshrl.u32 %v3593, 7
        %v3595 = vsub.s32 2, %v3594
        %v3596 = vrot.slane %v2951, %v3595
        %3598 = vbcast.lane.b32.xlu0 %v3596, 256
        %v3599 = vpop.permute.xlu0 %3598
        %v3600 = vlaneseq
        %v3601 = vshrl.u32 %v3600, 7
        %v3602 = vsub.s32 3, %v3601
        %v3603 = vrot.slane %v2951, %v3602
        %3605 = vbcast.lane.b32.xlu0 %v3603, 256
        %v3606 = vpop.permute.xlu0 %3605
        %v3607 = vlaneseq
        %v3608 = vshrl.u32 %v3607, 7
        %v3609 = vsub.s32 4, %v3608
        %v3610 = vrot.slane %v2951, %v3609
        %3612 = vbcast.lane.b32.xlu0 %v3610, 256
        %v3613 = vpop.permute.xlu0 %3612
        %v3614 = vlaneseq
        %v3615 = vshrl.u32 %v3614, 7
        %v3616 = vsub.s32 5, %v3615
        %v3617 = vrot.slane %v2951, %v3616
        %3619 = vbcast.lane.b32.xlu0 %v3617, 256
        %v3620 = vpop.permute.xlu0 %3619
        %v3621 = vlaneseq
        %v3622 = vshrl.u32 %v3621, 7
        %v3623 = vsub.s32 6, %v3622
        %v3624 = vrot.slane %v2951, %v3623
        %3626 = vbcast.lane.b32.xlu0 %v3624, 256
        %v3627 = vpop.permute.xlu0 %3626
        %v3628 = vlaneseq
        %v3629 = vshrl.u32 %v3628, 7
        %v3630 = vsub.s32 7, %v3629
        %v3631 = vrot.slane %v2951, %v3630
        %3633 = vbcast.lane.b32.xlu0 %v3631, 256
        %v3634 = vpop.permute.xlu0 %3633
        %v3635 = vlaneseq
        %v3636 = vshrl.u32 %v3635, 7
        %v3637 = vsub.s32 0, %v3636
        %v3638 = vrot.slane %v2996, %v3637
        %3640 = vbcast.lane.b32.xlu0 %v3638, 256
        %v3641 = vpop.permute.xlu0 %3640
        %v3642 = vlaneseq
        %v3643 = vshrl.u32 %v3642, 7
        %v3644 = vsub.s32 1, %v3643
        %v3645 = vrot.slane %v2996, %v3644
        %3647 = vbcast.lane.b32.xlu0 %v3645, 256
        %v3648 = vpop.permute.xlu0 %3647
        %v3649 = vlaneseq
        %v3650 = vshrl.u32 %v3649, 7
        %v3651 = vsub.s32 2, %v3650
        %v3652 = vrot.slane %v2996, %v3651
        %3654 = vbcast.lane.b32.xlu0 %v3652, 256
        %v3655 = vpop.permute.xlu0 %3654
        %v3656 = vlaneseq
        %v3657 = vshrl.u32 %v3656, 7
        %v3658 = vsub.s32 3, %v3657
        %v3659 = vrot.slane %v2996, %v3658
        %3661 = vbcast.lane.b32.xlu0 %v3659, 256
        %v3662 = vpop.permute.xlu0 %3661
        %v3663 = vlaneseq
        %v3664 = vshrl.u32 %v3663, 7
        %v3665 = vsub.s32 4, %v3664
        %v3666 = vrot.slane %v2996, %v3665
        %3668 = vbcast.lane.b32.xlu0 %v3666, 256
        %v3669 = vpop.permute.xlu0 %3668
        %v3670 = vlaneseq
        %v3671 = vshrl.u32 %v3670, 7
        %v3672 = vsub.s32 5, %v3671
        %v3673 = vrot.slane %v2996, %v3672
        %3675 = vbcast.lane.b32.xlu0 %v3673, 256
        %v3676 = vpop.permute.xlu0 %3675
        %v3677 = vlaneseq
        %v3678 = vshrl.u32 %v3677, 7
        %v3679 = vsub.s32 6, %v3678
        %v3680 = vrot.slane %v2996, %v3679
        %3682 = vbcast.lane.b32.xlu0 %v3680, 256
        %v3683 = vpop.permute.xlu0 %3682
        %v3684 = vlaneseq
        %v3685 = vshrl.u32 %v3684, 7
        %v3686 = vsub.s32 7, %v3685
        %v3687 = vrot.slane %v2996, %v3686
        %3689 = vbcast.lane.b32.xlu0 %v3687, 256
        %v3690 = vpop.permute.xlu0 %3689
        %v3691 = vlaneseq
        %v3692 = vshrl.u32 %v3691, 7
        %v3693 = vsub.s32 0, %v3692
        %v3694 = vrot.slane %v3041, %v3693
        %3696 = vbcast.lane.b32.xlu0 %v3694, 256
        %v3697 = vpop.permute.xlu0 %3696
        %v3698 = vlaneseq
        %v3699 = vshrl.u32 %v3698, 7
        %v3700 = vsub.s32 1, %v3699
        %v3701 = vrot.slane %v3041, %v3700
        %3703 = vbcast.lane.b32.xlu0 %v3701, 256
        %v3704 = vpop.permute.xlu0 %3703
        %v3705 = vlaneseq
        %v3706 = vshrl.u32 %v3705, 7
        %v3707 = vsub.s32 2, %v3706
        %v3708 = vrot.slane %v3041, %v3707
        %3710 = vbcast.lane.b32.xlu0 %v3708, 256
        %v3711 = vpop.permute.xlu0 %3710
        %v3712 = vlaneseq
        %v3713 = vshrl.u32 %v3712, 7
        %v3714 = vsub.s32 3, %v3713
        %v3715 = vrot.slane %v3041, %v3714
        %3717 = vbcast.lane.b32.xlu0 %v3715, 256
        %v3718 = vpop.permute.xlu0 %3717
        %v3719 = vlaneseq
        %v3720 = vshrl.u32 %v3719, 7
        %v3721 = vsub.s32 4, %v3720
        %v3722 = vrot.slane %v3041, %v3721
        %3724 = vbcast.lane.b32.xlu0 %v3722, 256
        %v3725 = vpop.permute.xlu0 %3724
        %v3726 = vlaneseq
        %v3727 = vshrl.u32 %v3726, 7
        %v3728 = vsub.s32 5, %v3727
        %v3729 = vrot.slane %v3041, %v3728
        %3731 = vbcast.lane.b32.xlu0 %v3729, 256
        %v3732 = vpop.permute.xlu0 %3731
        %v3733 = vlaneseq
        %v3734 = vshrl.u32 %v3733, 7
        %v3735 = vsub.s32 6, %v3734
        %v3736 = vrot.slane %v3041, %v3735
        %3738 = vbcast.lane.b32.xlu0 %v3736, 256
        %v3739 = vpop.permute.xlu0 %3738
        %v3740 = vlaneseq
        %v3741 = vshrl.u32 %v3740, 7
        %v3742 = vsub.s32 7, %v3741
        %v3743 = vrot.slane %v3041, %v3742
        %3745 = vbcast.lane.b32.xlu0 %v3743, 256
        %v3746 = vpop.permute.xlu0 %3745
        %v3747 = vlaneseq
        %v3748 = vshrl.u32 %v3747, 7
        %v3749 = vsub.s32 0, %v3748
        %v3750 = vrot.slane %v3086, %v3749
        %3752 = vbcast.lane.b32.xlu0 %v3750, 256
        %v3753 = vpop.permute.xlu0 %3752
        %v3754 = vlaneseq
        %v3755 = vshrl.u32 %v3754, 7
        %v3756 = vsub.s32 1, %v3755
        %v3757 = vrot.slane %v3086, %v3756
        %3759 = vbcast.lane.b32.xlu0 %v3757, 256
        %v3760 = vpop.permute.xlu0 %3759
        %v3761 = vlaneseq
        %v3762 = vshrl.u32 %v3761, 7
        %v3763 = vsub.s32 2, %v3762
        %v3764 = vrot.slane %v3086, %v3763
        %3766 = vbcast.lane.b32.xlu0 %v3764, 256
        %v3767 = vpop.permute.xlu0 %3766
        %v3768 = vlaneseq
        %v3769 = vshrl.u32 %v3768, 7
        %v3770 = vsub.s32 3, %v3769
        %v3771 = vrot.slane %v3086, %v3770
        %3773 = vbcast.lane.b32.xlu0 %v3771, 256
        %v3774 = vpop.permute.xlu0 %3773
        %v3775 = vlaneseq
        %v3776 = vshrl.u32 %v3775, 7
        %v3777 = vsub.s32 4, %v3776
        %v3778 = vrot.slane %v3086, %v3777
        %3780 = vbcast.lane.b32.xlu0 %v3778, 256
        %v3781 = vpop.permute.xlu0 %3780
        %v3782 = vlaneseq
        %v3783 = vshrl.u32 %v3782, 7
        %v3784 = vsub.s32 5, %v3783
        %v3785 = vrot.slane %v3086, %v3784
        %3787 = vbcast.lane.b32.xlu0 %v3785, 256
        %v3788 = vpop.permute.xlu0 %3787
        %v3789 = vlaneseq
        %v3790 = vshrl.u32 %v3789, 7
        %v3791 = vsub.s32 6, %v3790
        %v3792 = vrot.slane %v3086, %v3791
        %3794 = vbcast.lane.b32.xlu0 %v3792, 256
        %v3795 = vpop.permute.xlu0 %3794
        %v3796 = vlaneseq
        %v3797 = vshrl.u32 %v3796, 7
        %v3798 = vsub.s32 7, %v3797
        %v3799 = vrot.slane %v3086, %v3798
        %3801 = vbcast.lane.b32.xlu0 %v3799, 256
        %v3802 = vpop.permute.xlu0 %3801
        %v3807 = vcombine.high %v3575, %v3575
        %v3809 = vunpack.c.l.s4 1966171168
        %v3810 = vunpack.c.0.s8 %v3809
        %v3811 = vlaneseq
        %v3812 = vshrl.u32 %v3811, 7
        %v3813 = vsub.s32 %v3810, %v3812
        %v3814 = vrot.slane %v3575, %v3813
        %v3816 = vunpack.c.l.s4 1966171168
        %v3817 = vunpack.c.0.s8 %v3816
        %v3818 = vlaneseq
        %v3819 = vshrl.u32 %v3818, 7
        %v3820 = vsub.s32 %v3817, %v3819
        %v3821 = vrot.slane %v3807, %v3820
        %v3822 = vcombine.high %v3814, %v3814
        %v3823 = vcombine.high %v3821, %v3821
        %v3825 = vunpack.c.l.s4 1966171168
        %v3826 = vunpack.c.0.s8 %v3825
        %v3827 = vlaneseq
        %v3828 = vshrl.u32 %v3827, 7
        %v3829 = vsub.s32 %v3826, %v3828
        %v3830 = vrot.slane %v3814, %v3829
        %v3832 = vunpack.c.l.s4 1966171168
        %v3833 = vunpack.c.0.s8 %v3832
        %v3834 = vlaneseq
        %v3835 = vshrl.u32 %v3834, 7
        %v3836 = vsub.s32 %v3833, %v3835
        %v3837 = vrot.slane %v3821, %v3836
        %v3839 = vunpack.c.l.s4 1966171168
        %v3840 = vunpack.c.0.s8 %v3839
        %v3841 = vlaneseq
        %v3842 = vshrl.u32 %v3841, 7
        %v3843 = vsub.s32 %v3840, %v3842
        %v3844 = vrot.slane %v3822, %v3843
        %v3846 = vunpack.c.l.s4 1966171168
        %v3847 = vunpack.c.0.s8 %v3846
        %v3848 = vlaneseq
        %v3849 = vshrl.u32 %v3848, 7
        %v3850 = vsub.s32 %v3847, %v3849
        %v3851 = vrot.slane %v3823, %v3850
        %v3852 = vcombine.high %v3830, %v3830
        %v3853 = vcombine.high %v3837, %v3837
        %v3854 = vcombine.high %v3844, %v3844
        %v3855 = vcombine.high %v3851, %v3851
        %v3856 = vcombine.high %v3576, %v3576
        %v3858 = vunpack.c.l.s4 1966171168
        %v3859 = vunpack.c.0.s8 %v3858
        %v3860 = vlaneseq
        %v3861 = vshrl.u32 %v3860, 7
        %v3862 = vsub.s32 %v3859, %v3861
        %v3863 = vrot.slane %v3576, %v3862
        %v3865 = vunpack.c.l.s4 1966171168
        %v3866 = vunpack.c.0.s8 %v3865
        %v3867 = vlaneseq
        %v3868 = vshrl.u32 %v3867, 7
        %v3869 = vsub.s32 %v3866, %v3868
        %v3870 = vrot.slane %v3856, %v3869
        %v3871 = vcombine.high %v3863, %v3863
        %v3872 = vcombine.high %v3870, %v3870
        %v3874 = vunpack.c.l.s4 1966171168
        %v3875 = vunpack.c.0.s8 %v3874
        %v3876 = vlaneseq
        %v3877 = vshrl.u32 %v3876, 7
        %v3878 = vsub.s32 %v3875, %v3877
        %v3879 = vrot.slane %v3863, %v3878
        %v3881 = vunpack.c.l.s4 1966171168
        %v3882 = vunpack.c.0.s8 %v3881
        %v3883 = vlaneseq
        %v3884 = vshrl.u32 %v3883, 7
        %v3885 = vsub.s32 %v3882, %v3884
        %v3886 = vrot.slane %v3870, %v3885
        %v3888 = vunpack.c.l.s4 1966171168
        %v3889 = vunpack.c.0.s8 %v3888
        %v3890 = vlaneseq
        %v3891 = vshrl.u32 %v3890, 7
        %v3892 = vsub.s32 %v3889, %v3891
        %v3893 = vrot.slane %v3871, %v3892
        %v3895 = vunpack.c.l.s4 1966171168
        %v3896 = vunpack.c.0.s8 %v3895
        %v3897 = vlaneseq
        %v3898 = vshrl.u32 %v3897, 7
        %v3899 = vsub.s32 %v3896, %v3898
        %v3900 = vrot.slane %v3872, %v3899
        %v3901 = vcombine.high %v3879, %v3879
        %v3902 = vcombine.high %v3886, %v3886
        %v3903 = vcombine.high %v3893, %v3893
        %v3904 = vcombine.high %v3900, %v3900
        %v3905 = vcombine.high %v3577, %v3577
        %v3907 = vunpack.c.l.s4 1966171168
        %v3908 = vunpack.c.0.s8 %v3907
        %v3909 = vlaneseq
        %v3910 = vshrl.u32 %v3909, 7
        %v3911 = vsub.s32 %v3908, %v3910
        %v3912 = vrot.slane %v3577, %v3911
        %v3914 = vunpack.c.l.s4 1966171168
        %v3915 = vunpack.c.0.s8 %v3914
        %v3916 = vlaneseq
        %v3917 = vshrl.u32 %v3916, 7
        %v3918 = vsub.s32 %v3915, %v3917
        %v3919 = vrot.slane %v3905, %v3918
        %v3920 = vcombine.high %v3912, %v3912
        %v3921 = vcombine.high %v3919, %v3919
        %v3923 = vunpack.c.l.s4 1966171168
        %v3924 = vunpack.c.0.s8 %v3923
        %v3925 = vlaneseq
        %v3926 = vshrl.u32 %v3925, 7
        %v3927 = vsub.s32 %v3924, %v3926
        %v3928 = vrot.slane %v3912, %v3927
        %v3930 = vunpack.c.l.s4 1966171168
        %v3931 = vunpack.c.0.s8 %v3930
        %v3932 = vlaneseq
        %v3933 = vshrl.u32 %v3932, 7
        %v3934 = vsub.s32 %v3931, %v3933
        %v3935 = vrot.slane %v3919, %v3934
        %v3937 = vunpack.c.l.s4 1966171168
        %v3938 = vunpack.c.0.s8 %v3937
        %v3939 = vlaneseq
        %v3940 = vshrl.u32 %v3939, 7
        %v3941 = vsub.s32 %v3938, %v3940
        %v3942 = vrot.slane %v3920, %v3941
        %v3944 = vunpack.c.l.s4 1966171168
        %v3945 = vunpack.c.0.s8 %v3944
        %v3946 = vlaneseq
        %v3947 = vshrl.u32 %v3946, 7
        %v3948 = vsub.s32 %v3945, %v3947
        %v3949 = vrot.slane %v3921, %v3948
        %v3950 = vcombine.high %v3928, %v3928
        %v3951 = vcombine.high %v3935, %v3935
        %v3952 = vcombine.high %v3942, %v3942
        %v3953 = vcombine.high %v3949, %v3949
        %v3954 = vcombine.high %v3578, %v3578
        %v3956 = vunpack.c.l.s4 1966171168
        %v3957 = vunpack.c.0.s8 %v3956
        %v3958 = vlaneseq
        %v3959 = vshrl.u32 %v3958, 7
        %v3960 = vsub.s32 %v3957, %v3959
        %v3961 = vrot.slane %v3578, %v3960
        %v3963 = vunpack.c.l.s4 1966171168
        %v3964 = vunpack.c.0.s8 %v3963
        %v3965 = vlaneseq
        %v3966 = vshrl.u32 %v3965, 7
        %v3967 = vsub.s32 %v3964, %v3966
        %v3968 = vrot.slane %v3954, %v3967
        %v3969 = vcombine.high %v3961, %v3961
        %v3970 = vcombine.high %v3968, %v3968
        %v3972 = vunpack.c.l.s4 1966171168
        %v3973 = vunpack.c.0.s8 %v3972
        %v3974 = vlaneseq
        %v3975 = vshrl.u32 %v3974, 7
        %v3976 = vsub.s32 %v3973, %v3975
        %v3977 = vrot.slane %v3961, %v3976
        %v3979 = vunpack.c.l.s4 1966171168
        %v3980 = vunpack.c.0.s8 %v3979
        %v3981 = vlaneseq
        %v3982 = vshrl.u32 %v3981, 7
        %v3983 = vsub.s32 %v3980, %v3982
        %v3984 = vrot.slane %v3968, %v3983
        %v3986 = vunpack.c.l.s4 1966171168
        %v3987 = vunpack.c.0.s8 %v3986
        %v3988 = vlaneseq
        %v3989 = vshrl.u32 %v3988, 7
        %v3990 = vsub.s32 %v3987, %v3989
        %v3991 = vrot.slane %v3969, %v3990
        %v3993 = vunpack.c.l.s4 1966171168
        %v3994 = vunpack.c.0.s8 %v3993
        %v3995 = vlaneseq
        %v3996 = vshrl.u32 %v3995, 7
        %v3997 = vsub.s32 %v3994, %v3996
        %v3998 = vrot.slane %v3970, %v3997
        %v3999 = vcombine.high %v3977, %v3977
        %v4000 = vcombine.high %v3984, %v3984
        %v4001 = vcombine.high %v3991, %v3991
        %v4002 = vcombine.high %v3998, %v3998
        %v4003 = vlaneseq
        %v4004 = vshrl.u32 %v4003, 7
        %v4005 = vsub.s32 0, %v4004
        %v4006 = vrot.slane %v3830, %v4005
        %v4007 = vlaneseq
        %v4008 = vshrl.u32 %v4007, 7
        %v4009 = vsub.s32 0, %v4008
        %v4010 = vrot.slane %v3844, %v4009
        %v4011 = vlaneseq
        %v4012 = vshrl.u32 %v4011, 7
        %v4013 = vsub.s32 0, %v4012
        %v4014 = vrot.slane %v3852, %v4013
        %v4015 = vlaneseq
        %v4016 = vshrl.u32 %v4015, 7
        %v4017 = vsub.s32 0, %v4016
        %v4018 = vrot.slane %v3854, %v4017
        %v4019 = vlaneseq
        %v4020 = vshrl.u32 %v4019, 7
        %v4021 = vsub.s32 0, %v4020
        %v4022 = vrot.slane %v3837, %v4021
        %v4023 = vlaneseq
        %v4024 = vshrl.u32 %v4023, 7
        %v4025 = vsub.s32 0, %v4024
        %v4026 = vrot.slane %v3851, %v4025
        %v4027 = vlaneseq
        %v4028 = vshrl.u32 %v4027, 7
        %v4029 = vsub.s32 0, %v4028
        %v4030 = vrot.slane %v3853, %v4029
        %v4031 = vlaneseq
        %v4032 = vshrl.u32 %v4031, 7
        %v4033 = vsub.s32 0, %v4032
        %v4034 = vrot.slane %v3855, %v4033
        %v4035 = vlaneseq
        %v4036 = vshrl.u32 %v4035, 7
        %v4037 = vsub.s32 0, %v4036
        %v4038 = vrot.slane %v3879, %v4037
        %v4039 = vlaneseq
        %v4040 = vshrl.u32 %v4039, 7
        %v4041 = vsub.s32 0, %v4040
        %v4042 = vrot.slane %v3893, %v4041
        %v4043 = vlaneseq
        %v4044 = vshrl.u32 %v4043, 7
        %v4045 = vsub.s32 0, %v4044
        %v4046 = vrot.slane %v3901, %v4045
        %v4047 = vlaneseq
        %v4048 = vshrl.u32 %v4047, 7
        %v4049 = vsub.s32 0, %v4048
        %v4050 = vrot.slane %v3903, %v4049
        %v4051 = vlaneseq
        %v4052 = vshrl.u32 %v4051, 7
        %v4053 = vsub.s32 0, %v4052
        %v4054 = vrot.slane %v3886, %v4053
        %v4055 = vlaneseq
        %v4056 = vshrl.u32 %v4055, 7
        %v4057 = vsub.s32 0, %v4056
        %v4058 = vrot.slane %v3900, %v4057
        %v4059 = vlaneseq
        %v4060 = vshrl.u32 %v4059, 7
        %v4061 = vsub.s32 0, %v4060
        %v4062 = vrot.slane %v3902, %v4061
        %v4063 = vlaneseq
        %v4064 = vshrl.u32 %v4063, 7
        %v4065 = vsub.s32 0, %v4064
        %v4066 = vrot.slane %v3904, %v4065
        %v4067 = vlaneseq
        %v4068 = vshrl.u32 %v4067, 7
        %v4069 = vsub.s32 0, %v4068
        %v4070 = vrot.slane %v3928, %v4069
        %v4071 = vlaneseq
        %v4072 = vshrl.u32 %v4071, 7
        %v4073 = vsub.s32 0, %v4072
        %v4074 = vrot.slane %v3942, %v4073
        %v4075 = vlaneseq
        %v4076 = vshrl.u32 %v4075, 7
        %v4077 = vsub.s32 0, %v4076
        %v4078 = vrot.slane %v3950, %v4077
        %v4079 = vlaneseq
        %v4080 = vshrl.u32 %v4079, 7
        %v4081 = vsub.s32 0, %v4080
        %v4082 = vrot.slane %v3952, %v4081
        %v4083 = vlaneseq
        %v4084 = vshrl.u32 %v4083, 7
        %v4085 = vsub.s32 0, %v4084
        %v4086 = vrot.slane %v3935, %v4085
        %v4087 = vlaneseq
        %v4088 = vshrl.u32 %v4087, 7
        %v4089 = vsub.s32 0, %v4088
        %v4090 = vrot.slane %v3949, %v4089
        %v4091 = vlaneseq
        %v4092 = vshrl.u32 %v4091, 7
        %v4093 = vsub.s32 0, %v4092
        %v4094 = vrot.slane %v3951, %v4093
        %v4095 = vlaneseq
        %v4096 = vshrl.u32 %v4095, 7
        %v4097 = vsub.s32 0, %v4096
        %v4098 = vrot.slane %v3953, %v4097
        %v4099 = vlaneseq
        %v4100 = vshrl.u32 %v4099, 7
        %v4101 = vsub.s32 0, %v4100
        %v4102 = vrot.slane %v3977, %v4101
        %v4103 = vlaneseq
        %v4104 = vshrl.u32 %v4103, 7
        %v4105 = vsub.s32 0, %v4104
        %v4106 = vrot.slane %v3991, %v4105
        %v4107 = vlaneseq
        %v4108 = vshrl.u32 %v4107, 7
        %v4109 = vsub.s32 0, %v4108
        %v4110 = vrot.slane %v3999, %v4109
        %v4111 = vlaneseq
        %v4112 = vshrl.u32 %v4111, 7
        %v4113 = vsub.s32 0, %v4112
        %v4114 = vrot.slane %v4001, %v4113
        %v4115 = vlaneseq
        %v4116 = vshrl.u32 %v4115, 7
        %v4117 = vsub.s32 0, %v4116
        %v4118 = vrot.slane %v3984, %v4117
        %v4119 = vlaneseq
        %v4120 = vshrl.u32 %v4119, 7
        %v4121 = vsub.s32 0, %v4120
        %v4122 = vrot.slane %v3998, %v4121
        %v4123 = vlaneseq
        %v4124 = vshrl.u32 %v4123, 7
        %v4125 = vsub.s32 0, %v4124
        %v4126 = vrot.slane %v4000, %v4125
        %v4127 = vlaneseq
        %v4128 = vshrl.u32 %v4127, 7
        %v4129 = vsub.s32 0, %v4128
        %v4130 = vrot.slane %v4002, %v4129
        %v4163 = vadd.f32 %v3585, %v4006
        %v4164 = vadd.f32 %v3592, %v4010
        %v4165 = vadd.f32 %v3599, %v4014
        %v4166 = vadd.f32 %v3606, %v4018
        %v4167 = vadd.f32 %v3613, %v4022
        %v4168 = vadd.f32 %v3620, %v4026
        %v4169 = vadd.f32 %v3627, %v4030
        %v4170 = vadd.f32 %v3634, %v4034
        %v4171 = vadd.f32 %v3641, %v4038
        %v4172 = vadd.f32 %v3648, %v4042
        %v4173 = vadd.f32 %v3655, %v4046
        %v4174 = vadd.f32 %v3662, %v4050
        %v4175 = vadd.f32 %v3669, %v4054
        %v4176 = vadd.f32 %v3676, %v4058
        %v4177 = vadd.f32 %v3683, %v4062
        %v4178 = vadd.f32 %v3690, %v4066
        %v4179 = vadd.f32 %v3697, %v4070
        %v4180 = vadd.f32 %v3704, %v4074
        %v4181 = vadd.f32 %v3711, %v4078
        %v4182 = vadd.f32 %v3718, %v4082
        %v4183 = vadd.f32 %v3725, %v4086
        %v4184 = vadd.f32 %v3732, %v4090
        %v4185 = vadd.f32 %v3739, %v4094
        %v4186 = vadd.f32 %v3746, %v4098
        %v4187 = vadd.f32 %v3753, %v4102
        %v4188 = vadd.f32 %v3760, %v4106
        %v4189 = vadd.f32 %v3767, %v4110
        %v4190 = vadd.f32 %v3774, %v4114
        %v4191 = vadd.f32 %v3781, %v4118
        %v4192 = vadd.f32 %v3788, %v4122
        %v4193 = vadd.f32 %v3795, %v4126
        %v4194 = vadd.f32 %v3802, %v4130
        %v4195 = vcombine.low %v4163, %v4165
        %v4196 = vcombine.high %v4163, %v4165
        %v4198 = vunpack.c.l.s4 1983009808
        %v4199 = vunpack.c.0.s8 %v4198
        %v4200 = vlaneseq
        %v4201 = vshrl.u32 %v4200, 7
        %v4202 = vsub.s32 %v4199, %v4201
        %v4203 = vrot.slane %v4195, %v4202
        %v4205 = vunpack.c.l.s4 1983009808
        %v4206 = vunpack.c.0.s8 %v4205
        %v4207 = vlaneseq
        %v4208 = vshrl.u32 %v4207, 7
        %v4209 = vsub.s32 %v4206, %v4208
        %v4210 = vrot.slane %v4196, %v4209
        %v4211 = vcombine.low %v4164, %v4166
        %v4212 = vcombine.high %v4164, %v4166
        %v4214 = vunpack.c.l.s4 1983009808
        %v4215 = vunpack.c.0.s8 %v4214
        %v4216 = vlaneseq
        %v4217 = vshrl.u32 %v4216, 7
        %v4218 = vsub.s32 %v4215, %v4217
        %v4219 = vrot.slane %v4211, %v4218
        %v4221 = vunpack.c.l.s4 1983009808
        %v4222 = vunpack.c.0.s8 %v4221
        %v4223 = vlaneseq
        %v4224 = vshrl.u32 %v4223, 7
        %v4225 = vsub.s32 %v4222, %v4224
        %v4226 = vrot.slane %v4212, %v4225
        %v4227 = vcombine.low %v4167, %v4169
        %v4228 = vcombine.high %v4167, %v4169
        %v4230 = vunpack.c.l.s4 1983009808
        %v4231 = vunpack.c.0.s8 %v4230
        %v4232 = vlaneseq
        %v4233 = vshrl.u32 %v4232, 7
        %v4234 = vsub.s32 %v4231, %v4233
        %v4235 = vrot.slane %v4227, %v4234
        %v4237 = vunpack.c.l.s4 1983009808
        %v4238 = vunpack.c.0.s8 %v4237
        %v4239 = vlaneseq
        %v4240 = vshrl.u32 %v4239, 7
        %v4241 = vsub.s32 %v4238, %v4240
        %v4242 = vrot.slane %v4228, %v4241
        %v4243 = vcombine.low %v4168, %v4170
        %v4244 = vcombine.high %v4168, %v4170
        %v4246 = vunpack.c.l.s4 1983009808
        %v4247 = vunpack.c.0.s8 %v4246
        %v4248 = vlaneseq
        %v4249 = vshrl.u32 %v4248, 7
        %v4250 = vsub.s32 %v4247, %v4249
        %v4251 = vrot.slane %v4243, %v4250
        %v4253 = vunpack.c.l.s4 1983009808
        %v4254 = vunpack.c.0.s8 %v4253
        %v4255 = vlaneseq
        %v4256 = vshrl.u32 %v4255, 7
        %v4257 = vsub.s32 %v4254, %v4256
        %v4258 = vrot.slane %v4244, %v4257
        %v4259 = vcombine.low %v4203, %v4219
        %v4260 = vcombine.high %v4203, %v4219
        %v4262 = vunpack.c.l.s4 1934713408
        %v4263 = vunpack.c.0.s8 %v4262
        %v4264 = vlaneseq
        %v4265 = vshrl.u32 %v4264, 7
        %v4266 = vsub.s32 %v4263, %v4265
        %v4267 = vrot.slane %v4259, %v4266
        %v4269 = vunpack.c.l.s4 1934713408
        %v4270 = vunpack.c.0.s8 %v4269
        %v4271 = vlaneseq
        %v4272 = vshrl.u32 %v4271, 7
        %v4273 = vsub.s32 %v4270, %v4272
        %v4274 = vrot.slane %v4260, %v4273
        %v4275 = vcombine.low %v4210, %v4226
        %v4276 = vcombine.high %v4210, %v4226
        %v4278 = vunpack.c.l.s4 1934713408
        %v4279 = vunpack.c.0.s8 %v4278
        %v4280 = vlaneseq
        %v4281 = vshrl.u32 %v4280, 7
        %v4282 = vsub.s32 %v4279, %v4281
        %v4283 = vrot.slane %v4275, %v4282
        %v4285 = vunpack.c.l.s4 1934713408
        %v4286 = vunpack.c.0.s8 %v4285
        %v4287 = vlaneseq
        %v4288 = vshrl.u32 %v4287, 7
        %v4289 = vsub.s32 %v4286, %v4288
        %v4290 = vrot.slane %v4276, %v4289
        %v4291 = vcombine.low %v4235, %v4251
        %v4292 = vcombine.high %v4235, %v4251
        %v4294 = vunpack.c.l.s4 1934713408
        %v4295 = vunpack.c.0.s8 %v4294
        %v4296 = vlaneseq
        %v4297 = vshrl.u32 %v4296, 7
        %v4298 = vsub.s32 %v4295, %v4297
        %v4299 = vrot.slane %v4291, %v4298
        %v4301 = vunpack.c.l.s4 1934713408
        %v4302 = vunpack.c.0.s8 %v4301
        %v4303 = vlaneseq
        %v4304 = vshrl.u32 %v4303, 7
        %v4305 = vsub.s32 %v4302, %v4304
        %v4306 = vrot.slane %v4292, %v4305
        %v4307 = vcombine.low %v4242, %v4258
        %v4308 = vcombine.high %v4242, %v4258
        %v4310 = vunpack.c.l.s4 1934713408
        %v4311 = vunpack.c.0.s8 %v4310
        %v4312 = vlaneseq
        %v4313 = vshrl.u32 %v4312, 7
        %v4314 = vsub.s32 %v4311, %v4313
        %v4315 = vrot.slane %v4307, %v4314
        %v4317 = vunpack.c.l.s4 1934713408
        %v4318 = vunpack.c.0.s8 %v4317
        %v4319 = vlaneseq
        %v4320 = vshrl.u32 %v4319, 7
        %v4321 = vsub.s32 %v4318, %v4320
        %v4322 = vrot.slane %v4308, %v4321
        %v4323 = vcombine.low %v4267, %v4299
        %v4324 = vcombine.high %v4267, %v4299
        %v4325 = vcombine.low %v4274, %v4306
        %v4326 = vcombine.high %v4274, %v4306
        %v4327 = vcombine.low %v4283, %v4315
        %v4328 = vcombine.high %v4283, %v4315
        %v4329 = vcombine.low %v4290, %v4322
        %v4330 = vcombine.high %v4290, %v4322
        %v4331 = vcombine.low %v4171, %v4173
        %v4332 = vcombine.high %v4171, %v4173
        %v4334 = vunpack.c.l.s4 1983009808
        %v4335 = vunpack.c.0.s8 %v4334
        %v4336 = vlaneseq
        %v4337 = vshrl.u32 %v4336, 7
        %v4338 = vsub.s32 %v4335, %v4337
        %v4339 = vrot.slane %v4331, %v4338
        %v4341 = vunpack.c.l.s4 1983009808
        %v4342 = vunpack.c.0.s8 %v4341
        %v4343 = vlaneseq
        %v4344 = vshrl.u32 %v4343, 7
        %v4345 = vsub.s32 %v4342, %v4344
        %v4346 = vrot.slane %v4332, %v4345
        %v4347 = vcombine.low %v4172, %v4174
        %v4348 = vcombine.high %v4172, %v4174
        %v4350 = vunpack.c.l.s4 1983009808
        %v4351 = vunpack.c.0.s8 %v4350
        %v4352 = vlaneseq
        %v4353 = vshrl.u32 %v4352, 7
        %v4354 = vsub.s32 %v4351, %v4353
        %v4355 = vrot.slane %v4347, %v4354
        %v4357 = vunpack.c.l.s4 1983009808
        %v4358 = vunpack.c.0.s8 %v4357
        %v4359 = vlaneseq
        %v4360 = vshrl.u32 %v4359, 7
        %v4361 = vsub.s32 %v4358, %v4360
        %v4362 = vrot.slane %v4348, %v4361
        %v4363 = vcombine.low %v4175, %v4177
        %v4364 = vcombine.high %v4175, %v4177
        %v4366 = vunpack.c.l.s4 1983009808
        %v4367 = vunpack.c.0.s8 %v4366
        %v4368 = vlaneseq
        %v4369 = vshrl.u32 %v4368, 7
        %v4370 = vsub.s32 %v4367, %v4369
        %v4371 = vrot.slane %v4363, %v4370
        %v4373 = vunpack.c.l.s4 1983009808
        %v4374 = vunpack.c.0.s8 %v4373
        %v4375 = vlaneseq
        %v4376 = vshrl.u32 %v4375, 7
        %v4377 = vsub.s32 %v4374, %v4376
        %v4378 = vrot.slane %v4364, %v4377
        %v4379 = vcombine.low %v4176, %v4178
        %v4380 = vcombine.high %v4176, %v4178
        %v4382 = vunpack.c.l.s4 1983009808
        %v4383 = vunpack.c.0.s8 %v4382
        %v4384 = vlaneseq
        %v4385 = vshrl.u32 %v4384, 7
        %v4386 = vsub.s32 %v4383, %v4385
        %v4387 = vrot.slane %v4379, %v4386
        %v4389 = vunpack.c.l.s4 1983009808
        %v4390 = vunpack.c.0.s8 %v4389
        %v4391 = vlaneseq
        %v4392 = vshrl.u32 %v4391, 7
        %v4393 = vsub.s32 %v4390, %v4392
        %v4394 = vrot.slane %v4380, %v4393
        %v4395 = vcombine.low %v4339, %v4355
        %v4396 = vcombine.high %v4339, %v4355
        %v4398 = vunpack.c.l.s4 1934713408
        %v4399 = vunpack.c.0.s8 %v4398
        %v4400 = vlaneseq
        %v4401 = vshrl.u32 %v4400, 7
        %v4402 = vsub.s32 %v4399, %v4401
        %v4403 = vrot.slane %v4395, %v4402
        %v4405 = vunpack.c.l.s4 1934713408
        %v4406 = vunpack.c.0.s8 %v4405
        %v4407 = vlaneseq
        %v4408 = vshrl.u32 %v4407, 7
        %v4409 = vsub.s32 %v4406, %v4408
        %v4410 = vrot.slane %v4396, %v4409
        %v4411 = vcombine.low %v4346, %v4362
        %v4412 = vcombine.high %v4346, %v4362
        %v4414 = vunpack.c.l.s4 1934713408
        %v4415 = vunpack.c.0.s8 %v4414
        %v4416 = vlaneseq
        %v4417 = vshrl.u32 %v4416, 7
        %v4418 = vsub.s32 %v4415, %v4417
        %v4419 = vrot.slane %v4411, %v4418
        %v4421 = vunpack.c.l.s4 1934713408
        %v4422 = vunpack.c.0.s8 %v4421
        %v4423 = vlaneseq
        %v4424 = vshrl.u32 %v4423, 7
        %v4425 = vsub.s32 %v4422, %v4424
        %v4426 = vrot.slane %v4412, %v4425
        %v4427 = vcombine.low %v4371, %v4387
        %v4428 = vcombine.high %v4371, %v4387
        %v4430 = vunpack.c.l.s4 1934713408
        %v4431 = vunpack.c.0.s8 %v4430
        %v4432 = vlaneseq
        %v4433 = vshrl.u32 %v4432, 7
        %v4434 = vsub.s32 %v4431, %v4433
        %v4435 = vrot.slane %v4427, %v4434
        %v4437 = vunpack.c.l.s4 1934713408
        %v4438 = vunpack.c.0.s8 %v4437
        %v4439 = vlaneseq
        %v4440 = vshrl.u32 %v4439, 7
        %v4441 = vsub.s32 %v4438, %v4440
        %v4442 = vrot.slane %v4428, %v4441
        %v4443 = vcombine.low %v4378, %v4394
        %v4444 = vcombine.high %v4378, %v4394
        %v4446 = vunpack.c.l.s4 1934713408
        %v4447 = vunpack.c.0.s8 %v4446
        %v4448 = vlaneseq
        %v4449 = vshrl.u32 %v4448, 7
        %v4450 = vsub.s32 %v4447, %v4449
        %v4451 = vrot.slane %v4443, %v4450
        %v4453 = vunpack.c.l.s4 1934713408
        %v4454 = vunpack.c.0.s8 %v4453
        %v4455 = vlaneseq
        %v4456 = vshrl.u32 %v4455, 7
        %v4457 = vsub.s32 %v4454, %v4456
        %v4458 = vrot.slane %v4444, %v4457
        %v4459 = vcombine.low %v4403, %v4435
        %v4460 = vcombine.high %v4403, %v4435
        %v4461 = vcombine.low %v4410, %v4442
        %v4462 = vcombine.high %v4410, %v4442
        %v4463 = vcombine.low %v4419, %v4451
        %v4464 = vcombine.high %v4419, %v4451
        %v4465 = vcombine.low %v4426, %v4458
        %v4466 = vcombine.high %v4426, %v4458
        %v4467 = vcombine.low %v4179, %v4181
        %v4468 = vcombine.high %v4179, %v4181
        %v4470 = vunpack.c.l.s4 1983009808
        %v4471 = vunpack.c.0.s8 %v4470
        %v4472 = vlaneseq
        %v4473 = vshrl.u32 %v4472, 7
        %v4474 = vsub.s32 %v4471, %v4473
        %v4475 = vrot.slane %v4467, %v4474
        %v4477 = vunpack.c.l.s4 1983009808
        %v4478 = vunpack.c.0.s8 %v4477
        %v4479 = vlaneseq
        %v4480 = vshrl.u32 %v4479, 7
        %v4481 = vsub.s32 %v4478, %v4480
        %v4482 = vrot.slane %v4468, %v4481
        %v4483 = vcombine.low %v4180, %v4182
        %v4484 = vcombine.high %v4180, %v4182
        %v4486 = vunpack.c.l.s4 1983009808
        %v4487 = vunpack.c.0.s8 %v4486
        %v4488 = vlaneseq
        %v4489 = vshrl.u32 %v4488, 7
        %v4490 = vsub.s32 %v4487, %v4489
        %v4491 = vrot.slane %v4483, %v4490
        %v4493 = vunpack.c.l.s4 1983009808
        %v4494 = vunpack.c.0.s8 %v4493
        %v4495 = vlaneseq
        %v4496 = vshrl.u32 %v4495, 7
        %v4497 = vsub.s32 %v4494, %v4496
        %v4498 = vrot.slane %v4484, %v4497
        %v4499 = vcombine.low %v4183, %v4185
        %v4500 = vcombine.high %v4183, %v4185
        %v4502 = vunpack.c.l.s4 1983009808
        %v4503 = vunpack.c.0.s8 %v4502
        %v4504 = vlaneseq
        %v4505 = vshrl.u32 %v4504, 7
        %v4506 = vsub.s32 %v4503, %v4505
        %v4507 = vrot.slane %v4499, %v4506
        %v4509 = vunpack.c.l.s4 1983009808
        %v4510 = vunpack.c.0.s8 %v4509
        %v4511 = vlaneseq
        %v4512 = vshrl.u32 %v4511, 7
        %v4513 = vsub.s32 %v4510, %v4512
        %v4514 = vrot.slane %v4500, %v4513
        %v4515 = vcombine.low %v4184, %v4186
        %v4516 = vcombine.high %v4184, %v4186
        %v4518 = vunpack.c.l.s4 1983009808
        %v4519 = vunpack.c.0.s8 %v4518
        %v4520 = vlaneseq
        %v4521 = vshrl.u32 %v4520, 7
        %v4522 = vsub.s32 %v4519, %v4521
        %v4523 = vrot.slane %v4515, %v4522
        %v4525 = vunpack.c.l.s4 1983009808
        %v4526 = vunpack.c.0.s8 %v4525
        %v4527 = vlaneseq
        %v4528 = vshrl.u32 %v4527, 7
        %v4529 = vsub.s32 %v4526, %v4528
        %v4530 = vrot.slane %v4516, %v4529
        %v4531 = vcombine.low %v4475, %v4491
        %v4532 = vcombine.high %v4475, %v4491
        %v4534 = vunpack.c.l.s4 1934713408
        %v4535 = vunpack.c.0.s8 %v4534
        %v4536 = vlaneseq
        %v4537 = vshrl.u32 %v4536, 7
        %v4538 = vsub.s32 %v4535, %v4537
        %v4539 = vrot.slane %v4531, %v4538
        %v4541 = vunpack.c.l.s4 1934713408
        %v4542 = vunpack.c.0.s8 %v4541
        %v4543 = vlaneseq
        %v4544 = vshrl.u32 %v4543, 7
        %v4545 = vsub.s32 %v4542, %v4544
        %v4546 = vrot.slane %v4532, %v4545
        %v4547 = vcombine.low %v4482, %v4498
        %v4548 = vcombine.high %v4482, %v4498
        %v4550 = vunpack.c.l.s4 1934713408
        %v4551 = vunpack.c.0.s8 %v4550
        %v4552 = vlaneseq
        %v4553 = vshrl.u32 %v4552, 7
        %v4554 = vsub.s32 %v4551, %v4553
        %v4555 = vrot.slane %v4547, %v4554
        %v4557 = vunpack.c.l.s4 1934713408
        %v4558 = vunpack.c.0.s8 %v4557
        %v4559 = vlaneseq
        %v4560 = vshrl.u32 %v4559, 7
        %v4561 = vsub.s32 %v4558, %v4560
        %v4562 = vrot.slane %v4548, %v4561
        %v4563 = vcombine.low %v4507, %v4523
        %v4564 = vcombine.high %v4507, %v4523
        %v4566 = vunpack.c.l.s4 1934713408
        %v4567 = vunpack.c.0.s8 %v4566
        %v4568 = vlaneseq
        %v4569 = vshrl.u32 %v4568, 7
        %v4570 = vsub.s32 %v4567, %v4569
        %v4571 = vrot.slane %v4563, %v4570
        %v4573 = vunpack.c.l.s4 1934713408
        %v4574 = vunpack.c.0.s8 %v4573
        %v4575 = vlaneseq
        %v4576 = vshrl.u32 %v4575, 7
        %v4577 = vsub.s32 %v4574, %v4576
        %v4578 = vrot.slane %v4564, %v4577
        %v4579 = vcombine.low %v4514, %v4530
        %v4580 = vcombine.high %v4514, %v4530
        %v4582 = vunpack.c.l.s4 1934713408
        %v4583 = vunpack.c.0.s8 %v4582
        %v4584 = vlaneseq
        %v4585 = vshrl.u32 %v4584, 7
        %v4586 = vsub.s32 %v4583, %v4585
        %v4587 = vrot.slane %v4579, %v4586
        %v4589 = vunpack.c.l.s4 1934713408
        %v4590 = vunpack.c.0.s8 %v4589
        %v4591 = vlaneseq
        %v4592 = vshrl.u32 %v4591, 7
        %v4593 = vsub.s32 %v4590, %v4592
        %v4594 = vrot.slane %v4580, %v4593
        %v4595 = vcombine.low %v4539, %v4571
        %v4596 = vcombine.high %v4539, %v4571
        %v4597 = vcombine.low %v4546, %v4578
        %v4598 = vcombine.high %v4546, %v4578
        %v4599 = vcombine.low %v4555, %v4587
        %v4600 = vcombine.high %v4555, %v4587
        %v4601 = vcombine.low %v4562, %v4594
        %v4602 = vcombine.high %v4562, %v4594
        %v4603 = vcombine.low %v4187, %v4189
        %v4604 = vcombine.high %v4187, %v4189
        %v4606 = vunpack.c.l.s4 1983009808
        %v4607 = vunpack.c.0.s8 %v4606
        %v4608 = vlaneseq
        %v4609 = vshrl.u32 %v4608, 7
        %v4610 = vsub.s32 %v4607, %v4609
        %v4611 = vrot.slane %v4603, %v4610
        %v4613 = vunpack.c.l.s4 1983009808
        %v4614 = vunpack.c.0.s8 %v4613
        %v4615 = vlaneseq
        %v4616 = vshrl.u32 %v4615, 7
        %v4617 = vsub.s32 %v4614, %v4616
        %v4618 = vrot.slane %v4604, %v4617
        %v4619 = vcombine.low %v4188, %v4190
        %v4620 = vcombine.high %v4188, %v4190
        %v4622 = vunpack.c.l.s4 1983009808
        %v4623 = vunpack.c.0.s8 %v4622
        %v4624 = vlaneseq
        %v4625 = vshrl.u32 %v4624, 7
        %v4626 = vsub.s32 %v4623, %v4625
        %v4627 = vrot.slane %v4619, %v4626
        %v4629 = vunpack.c.l.s4 1983009808
        %v4630 = vunpack.c.0.s8 %v4629
        %v4631 = vlaneseq
        %v4632 = vshrl.u32 %v4631, 7
        %v4633 = vsub.s32 %v4630, %v4632
        %v4634 = vrot.slane %v4620, %v4633
        %v4635 = vcombine.low %v4191, %v4193
        %v4636 = vcombine.high %v4191, %v4193
        %v4638 = vunpack.c.l.s4 1983009808
        %v4639 = vunpack.c.0.s8 %v4638
        %v4640 = vlaneseq
        %v4641 = vshrl.u32 %v4640, 7
        %v4642 = vsub.s32 %v4639, %v4641
        %v4643 = vrot.slane %v4635, %v4642
        %v4645 = vunpack.c.l.s4 1983009808
        %v4646 = vunpack.c.0.s8 %v4645
        %v4647 = vlaneseq
        %v4648 = vshrl.u32 %v4647, 7
        %v4649 = vsub.s32 %v4646, %v4648
        %v4650 = vrot.slane %v4636, %v4649
        %v4651 = vcombine.low %v4192, %v4194
        %v4652 = vcombine.high %v4192, %v4194
        %v4654 = vunpack.c.l.s4 1983009808
        %v4655 = vunpack.c.0.s8 %v4654
        %v4656 = vlaneseq
        %v4657 = vshrl.u32 %v4656, 7
        %v4658 = vsub.s32 %v4655, %v4657
        %v4659 = vrot.slane %v4651, %v4658
        %v4661 = vunpack.c.l.s4 1983009808
        %v4662 = vunpack.c.0.s8 %v4661
        %v4663 = vlaneseq
        %v4664 = vshrl.u32 %v4663, 7
        %v4665 = vsub.s32 %v4662, %v4664
        %v4666 = vrot.slane %v4652, %v4665
        %v4667 = vcombine.low %v4611, %v4627
        %v4668 = vcombine.high %v4611, %v4627
        %v4670 = vunpack.c.l.s4 1934713408
        %v4671 = vunpack.c.0.s8 %v4670
        %v4672 = vlaneseq
        %v4673 = vshrl.u32 %v4672, 7
        %v4674 = vsub.s32 %v4671, %v4673
        %v4675 = vrot.slane %v4667, %v4674
        %v4677 = vunpack.c.l.s4 1934713408
        %v4678 = vunpack.c.0.s8 %v4677
        %v4679 = vlaneseq
        %v4680 = vshrl.u32 %v4679, 7
        %v4681 = vsub.s32 %v4678, %v4680
        %v4682 = vrot.slane %v4668, %v4681
        %v4683 = vcombine.low %v4618, %v4634
        %v4684 = vcombine.high %v4618, %v4634
        %v4686 = vunpack.c.l.s4 1934713408
        %v4687 = vunpack.c.0.s8 %v4686
        %v4688 = vlaneseq
        %v4689 = vshrl.u32 %v4688, 7
        %v4690 = vsub.s32 %v4687, %v4689
        %v4691 = vrot.slane %v4683, %v4690
        %v4693 = vunpack.c.l.s4 1934713408
        %v4694 = vunpack.c.0.s8 %v4693
        %v4695 = vlaneseq
        %v4696 = vshrl.u32 %v4695, 7
        %v4697 = vsub.s32 %v4694, %v4696
        %v4698 = vrot.slane %v4684, %v4697
        %v4699 = vcombine.low %v4643, %v4659
        %v4700 = vcombine.high %v4643, %v4659
        %v4702 = vunpack.c.l.s4 1934713408
        %v4703 = vunpack.c.0.s8 %v4702
        %v4704 = vlaneseq
        %v4705 = vshrl.u32 %v4704, 7
        %v4706 = vsub.s32 %v4703, %v4705
        %v4707 = vrot.slane %v4699, %v4706
        %v4709 = vunpack.c.l.s4 1934713408
        %v4710 = vunpack.c.0.s8 %v4709
        %v4711 = vlaneseq
        %v4712 = vshrl.u32 %v4711, 7
        %v4713 = vsub.s32 %v4710, %v4712
        %v4714 = vrot.slane %v4700, %v4713
        %v4715 = vcombine.low %v4650, %v4666
        %v4716 = vcombine.high %v4650, %v4666
        %v4718 = vunpack.c.l.s4 1934713408
        %v4719 = vunpack.c.0.s8 %v4718
        %v4720 = vlaneseq
        %v4721 = vshrl.u32 %v4720, 7
        %v4722 = vsub.s32 %v4719, %v4721
        %v4723 = vrot.slane %v4715, %v4722
        %v4725 = vunpack.c.l.s4 1934713408
        %v4726 = vunpack.c.0.s8 %v4725
        %v4727 = vlaneseq
        %v4728 = vshrl.u32 %v4727, 7
        %v4729 = vsub.s32 %v4726, %v4728
        %v4730 = vrot.slane %v4716, %v4729
        %v4731 = vcombine.low %v4675, %v4707
        %v4732 = vcombine.high %v4675, %v4707
        %v4733 = vcombine.low %v4682, %v4714
        %v4734 = vcombine.high %v4682, %v4714
        %v4735 = vcombine.low %v4691, %v4723
        %v4736 = vcombine.high %v4691, %v4723
        %v4737 = vcombine.low %v4698, %v4730
        %v4738 = vcombine.high %v4698, %v4730
        %4743 = vrot.lane.b32.xlu0 %v4324, 8
        %v4744 = vpop.permute.xlu0 %4743
        %4745 = vrot.lane.b32.xlu0 %v4460, 8
        %v4746 = vpop.permute.xlu0 %4745
        %4747 = vrot.lane.b32.xlu0 %v4596, 8
        %v4748 = vpop.permute.xlu0 %4747
        %4749 = vrot.lane.b32.xlu0 %v4732, 8
        %v4750 = vpop.permute.xlu0 %4749
        %4759 = vrot.lane.b32.xlu0 %v4325, 16
        %v4760 = vpop.permute.xlu0 %4759
        %4761 = vrot.lane.b32.xlu0 %v4461, 16
        %v4762 = vpop.permute.xlu0 %4761
        %4763 = vrot.lane.b32.xlu0 %v4597, 16
        %v4764 = vpop.permute.xlu0 %4763
        %4765 = vrot.lane.b32.xlu0 %v4733, 16
        %v4766 = vpop.permute.xlu0 %4765
        %4775 = vrot.lane.b32.xlu0 %v4326, 24
        %v4776 = vpop.permute.xlu0 %4775
        %4777 = vrot.lane.b32.xlu0 %v4462, 24
        %v4778 = vpop.permute.xlu0 %4777
        %4779 = vrot.lane.b32.xlu0 %v4598, 24
        %v4780 = vpop.permute.xlu0 %4779
        %4781 = vrot.lane.b32.xlu0 %v4734, 24
        %v4782 = vpop.permute.xlu0 %4781
        %4791 = vrot.lane.b32.xlu0 %v4327, 32
        %v4792 = vpop.permute.xlu0 %4791
        %4793 = vrot.lane.b32.xlu0 %v4463, 32
        %v4794 = vpop.permute.xlu0 %4793
        %4795 = vrot.lane.b32.xlu0 %v4599, 32
        %v4796 = vpop.permute.xlu0 %4795
        %4797 = vrot.lane.b32.xlu0 %v4735, 32
        %v4798 = vpop.permute.xlu0 %4797
        %4807 = vrot.lane.b32.xlu0 %v4328, 40
        %v4808 = vpop.permute.xlu0 %4807
        %4809 = vrot.lane.b32.xlu0 %v4464, 40
        %v4810 = vpop.permute.xlu0 %4809
        %4811 = vrot.lane.b32.xlu0 %v4600, 40
        %v4812 = vpop.permute.xlu0 %4811
        %4813 = vrot.lane.b32.xlu0 %v4736, 40
        %v4814 = vpop.permute.xlu0 %4813
        %4823 = vrot.lane.b32.xlu0 %v4329, 48
        %v4824 = vpop.permute.xlu0 %4823
        %4825 = vrot.lane.b32.xlu0 %v4465, 48
        %v4826 = vpop.permute.xlu0 %4825
        %4827 = vrot.lane.b32.xlu0 %v4601, 48
        %v4828 = vpop.permute.xlu0 %4827
        %4829 = vrot.lane.b32.xlu0 %v4737, 48
        %v4830 = vpop.permute.xlu0 %4829
        %4839 = vrot.lane.b32.xlu0 %v4330, 56
        %v4840 = vpop.permute.xlu0 %4839
        %4841 = vrot.lane.b32.xlu0 %v4466, 56
        %v4842 = vpop.permute.xlu0 %4841
        %4843 = vrot.lane.b32.xlu0 %v4602, 56
        %v4844 = vpop.permute.xlu0 %4843
        %4845 = vrot.lane.b32.xlu0 %v4738, 56
        %v4846 = vpop.permute.xlu0 %4845
        %v4851 = vsel %vm698, %v4323, %v4744
        %v4852 = vsel %vm698, %v4459, %v4746
        %v4853 = vsel %vm698, %v4595, %v4748
        %v4854 = vsel %vm698, %v4731, %v4750
        %v4855 = vsel %vm2671, %v4851, %v4760
        %v4856 = vsel %vm2671, %v4852, %v4762
        %v4857 = vsel %vm2671, %v4853, %v4764
        %v4858 = vsel %vm2671, %v4854, %v4766
        %v4859 = vsel %vm2676, %v4855, %v4776
        %v4860 = vsel %vm2676, %v4856, %v4778
        %v4861 = vsel %vm2676, %v4857, %v4780
        %v4862 = vsel %vm2676, %v4858, %v4782
        %v4863 = vsel %vm610, %v4859, %v4792
        %v4864 = vsel %vm610, %v4860, %v4794
        %v4865 = vsel %vm610, %v4861, %v4796
        %v4866 = vsel %vm610, %v4862, %v4798
        %v4867 = vsel %vm2685, %v4863, %v4808
        %v4868 = vsel %vm2685, %v4864, %v4810
        %v4869 = vsel %vm2685, %v4865, %v4812
        %v4870 = vsel %vm2685, %v4866, %v4814
        %v4871 = vsel %vm2690, %v4867, %v4824
        %v4872 = vsel %vm2690, %v4868, %v4826
        %v4873 = vsel %vm2690, %v4869, %v4828
        %v4874 = vsel %vm2690, %v4870, %v4830
        %v4875 = vsel %vm2695, %v4871, %v4840
        %v4876 = vsel %vm2695, %v4872, %v4842
        %v4877 = vsel %vm2695, %v4873, %v4844
        %v4878 = vsel %vm2695, %v4874, %v4846
        %4879 = vrot.lane.b32.xlu0 %v666, 120
        %v4880 = vpop.permute.xlu0 %4879
        %4881 = vrot.lane.b32.xlu0 %v667, 120
        %v4882 = vpop.permute.xlu0 %4881
        %v4891 = vunpack.c.l.b16 %v2903
        %v4892 = vunpack.c.l.b16 %v2904
        %v4893 = vunpack.c.l.b16 %v2905
        %v4894 = vunpack.c.l.b16 %v2906
        %v4895 = vunpack.c.l.b16 %v2907
        %v4896 = vunpack.c.l.b16 %v2908
        %v4897 = vunpack.c.l.b16 %v2909
        %v4898 = vunpack.c.l.b16 %v2910
        %v4899 = vpack.c.b16 %v4892, %v4891
        %v4900 = vpack.c.b16 %v4894, %v4893
        %v4901 = vpack.c.b16 %v4896, %v4895
        %v4902 = vpack.c.b16 %v4898, %v4897
        %4903 = vrot.lane.b32.xlu0 %v4899, 120
        %v4904 = vpop.permute.xlu0 %4903
        %4905 = vrot.lane.b32.xlu0 %v4900, 120
        %v4906 = vpop.permute.xlu0 %4905
        %4907 = vrot.lane.b32.xlu0 %v4901, 120
        %v4908 = vpop.permute.xlu0 %4907
        %4909 = vrot.lane.b32.xlu0 %v4902, 120
        %v4910 = vpop.permute.xlu0 %4909
        %v4912 = vsel %vm698, %v4880, 0
        %v4915 = vsel %vm698, %v4882, 0
        %v4918 = vsel %vm698, %v4904, 0
        %v4921 = vsel %vm698, %v4906, 0
        %v4924 = vsel %vm698, %v4908, 0
        %v4927 = vsel %vm698, %v4910, 0
        %4929 = vmatprep.subr.bf16.mxu0 0
        %4930 = vmatpush1.bf16.xpose.msra.mxu0 0
        %4931 = vmatprep.subr.bf16.mxu0 0
        %4932 = vmatpush1.bf16.xpose.msra.mxu0 0
        %4933 = vmatprep.subr.bf16.mxu0 0
        %4934 = vmatpush1.bf16.xpose.msra.mxu0 0
        %4935 = vmatprep.subr.bf16.mxu0 0
        %4936 = vmatpush1.bf16.xpose.msra.mxu0 0
        %4937 = vmatprep.subr.bf16.mxu0 0
        %4938 = vmatpush1.bf16.xpose.msra.mxu0 %v4927
        %4939 = vmatprep.subr.bf16.mxu0 0
        %4940 = vmatpush1.bf16.xpose.msra.mxu0 %v4924
        %4941 = vmatprep.subr.bf16.mxu0 0
        %4942 = vmatpush1.bf16.xpose.msra.mxu0 %v4921
        %4943 = vmatprep.subr.bf16.mxu0 0
        %4944 = vmatpush1.bf16.xpose.msra.mxu0 %v4918
        %4945 = vmatprep.subr.bf16.mxu0 0
        %4946 = vmatpush2.bf16.xpose.msra.mxu0 0
        %4947 = vmatprep.subr.bf16.mxu0 0
        %4948 = vmatpush2.bf16.xpose.msra.mxu0 0
        %4949 = vmatprep.subr.bf16.mxu0 0
        %4950 = vmatpush2.bf16.xpose.msra.mxu0 0
        %4951 = vmatprep.subr.bf16.mxu0 0
        %4952 = vmatpush2.bf16.xpose.msra.mxu0 0
        %4953 = vmatprep.subr.bf16.mxu0 0
        %4954 = vmatpush2.bf16.xpose.msra.mxu0 0
        %4955 = vmatprep.subr.bf16.mxu0 0
        %4956 = vmatpush2.bf16.xpose.msra.mxu0 0
        %4957 = vmatprep.subr.bf16.mxu0 0
        %4958 = vmatpush2.bf16.xpose.msra.mxu0 0
        %4959 = vmatprep.subr.bf16.mxu0 0
        %4960 = vmatpush2.bf16.xpose.msra.mxu0 0
        %4961 = vmatprep.mubr.bf16.mxu0 0
        %4962 = vmatmul.mubr.bf16.gmra.mxu0 %v4912
        %v4963 = vpop.f32.mrf.mxu0
        %v4964 = vadd.f32 %v4875, %v4963
        %v4965 = vpop.f32.mrf.mxu0
        %v4966 = vpop.f32.mrf.mxu0
        %v4967 = vadd.f32 %v4876, %v4966
        %v4968 = vpop.f32.mrf.mxu0
        %4969 = vmatprep.mubr.bf16.mxu0 0
        %4970 = vmatmul.mubr.bf16.gmra.mxu0 %v4915
        %v4971 = vpop.f32.mrf.mxu0
        %v4972 = vadd.f32 %v4877, %v4971
        %v4973 = vpop.f32.mrf.mxu0
        %v4974 = vpop.f32.mrf.mxu0
        %v4975 = vadd.f32 %v4878, %v4974
        %v4976 = vpop.f32.mrf.mxu0
        %4977 = vdwg.mxu0
        %v4978 = vsel %vm2787, %v4964, -inf
        %4979 = vmax.xlane.f32.xlu0 %v4978
        %v4980 = vpop.xlane.xlu0 %4979
        %v4981 = vsel %vm2787, %v4967, -inf
        %4982 = vmax.xlane.f32.xlu0 %v4981
        %v4983 = vpop.xlane.xlu0 %4982
        %v4984 = vsel %vm2787, %v4972, -inf
        %4985 = vmax.xlane.f32.xlu0 %v4984
        %v4986 = vpop.xlane.xlu0 %4985
        %v4987 = vsel %vm2787, %v4975, -inf
        %4988 = vmax.xlane.f32.xlu0 %v4987
        %v4989 = vpop.xlane.xlu0 %4988
        %v4990 = vsub.f32 %v4964, %v4980
        %v4991 = vsub.f32 %v4967, %v4983
        %v4992 = vsub.f32 %v4972, %v4986
        %v4993 = vsub.f32 %v4975, %v4989
        %v4994 = vmul.f32 %v4990, 1.442695
        %v4995 = vpow.pop %v4994
        %v4996 = vmul.f32 %v4991, 1.442695
        %v4997 = vpow.pop %v4996
        %v4998 = vmul.f32 %v4992, 1.442695
        %v4999 = vpow.pop %v4998
        %v5000 = vmul.f32 %v4993, 1.442695
        %v5001 = vpow.pop %v5000
        %v5002 = vsel %vm2787, %v4995, 0.0
        %5003 = vadd.xlane.f32.xlu0 %v5002
        %v5004 = vpop.xlane.xlu0 %5003
        %v5005 = vsel %vm2787, %v4997, 0.0
        %5006 = vadd.xlane.f32.xlu0 %v5005
        %v5007 = vpop.xlane.xlu0 %5006
        %v5008 = vsel %vm2787, %v4999, 0.0
        %5009 = vadd.xlane.f32.xlu0 %v5008
        %v5010 = vpop.xlane.xlu0 %5009
        %v5011 = vsel %vm2787, %v5001, 0.0
        %5012 = vadd.xlane.f32.xlu0 %v5011
        %v5013 = vpop.xlane.xlu0 %5012
        %v5014 = vpack.c.bf16 %v4997, %v4995
        %v5015 = vpack.c.bf16 %v5001, %v4999
        %5016 = vrot.lane.b32.xlu0 %v4899, 88
        %v5017 = vpop.permute.xlu0 %5016
        %5018 = vrot.lane.b32.xlu0 %v4900, 88
        %v5019 = vpop.permute.xlu0 %5018
        %5020 = vrot.lane.b32.xlu0 %v4901, 88
        %v5021 = vpop.permute.xlu0 %5020
        %5022 = vrot.lane.b32.xlu0 %v4902, 88
        %v5023 = vpop.permute.xlu0 %5022
        %v5029 = vsel %vm2787, %v5014, 0
        %v5032 = vsel %vm2787, %v5015, 0
        %5034 = vmatprep.subr.bf16.mxu0 0
        %5035 = vmatpush1.bf16.msra.mxu0 0
        %5036 = vmatprep.subr.bf16.mxu0 0
        %5037 = vmatpush1.bf16.msra.mxu0 0
        %5038 = vmatprep.subr.bf16.mxu0 0
        %5039 = vmatpush1.bf16.msra.mxu0 0
        %5040 = vmatprep.subr.bf16.mxu0 0
        %5041 = vmatpush1.bf16.msra.mxu0 0
        %5042 = vmatprep.subr.bf16.mxu0 0
        %5043 = vmatpush1.bf16.msra.mxu0 %v5023
        %5044 = vmatprep.subr.bf16.mxu0 0
        %5045 = vmatpush1.bf16.msra.mxu0 %v5021
        %5046 = vmatprep.subr.bf16.mxu0 0
        %5047 = vmatpush1.bf16.msra.mxu0 %v5019
        %5048 = vmatprep.subr.bf16.mxu0 0
        %5049 = vmatpush1.bf16.msra.mxu0 %v5017
        %5050 = vmatprep.subr.bf16.mxu0 0
        %5051 = vmatpush2.bf16.msra.mxu0 0
        %5052 = vmatprep.subr.bf16.mxu0 0
        %5053 = vmatpush2.bf16.msra.mxu0 0
        %5054 = vmatprep.subr.bf16.mxu0 0
        %5055 = vmatpush2.bf16.msra.mxu0 0
        %5056 = vmatprep.subr.bf16.mxu0 0
        %5057 = vmatpush2.bf16.msra.mxu0 0
        %5058 = vmatprep.subr.bf16.mxu0 0
        %5059 = vmatpush2.bf16.msra.mxu0 0
        %5060 = vmatprep.subr.bf16.mxu0 0
        %5061 = vmatpush2.bf16.msra.mxu0 0
        %5062 = vmatprep.subr.bf16.mxu0 0
        %5063 = vmatpush2.bf16.msra.mxu0 0
        %5064 = vmatprep.subr.bf16.mxu0 0
        %5065 = vmatpush2.bf16.msra.mxu0 0
        %5066 = vmatprep.mubr.bf16.mxu0 0
        %5067 = vmatmul.mubr.bf16.gmra.mxu0 %v5029
        %v5068 = vpop.f32.mrf.mxu0
        %v5069 = vadd.f32 0.0, %v5068
        %v5070 = vpop.f32.mrf.mxu0
        %v5071 = vpop.f32.mrf.mxu0
        %v5072 = vadd.f32 0.0, %v5071
        %v5073 = vpop.f32.mrf.mxu0
        %5074 = vmatprep.mubr.bf16.mxu0 0
        %5075 = vmatmul.mubr.bf16.gmra.mxu0 %v5032
        %v5076 = vpop.f32.mrf.mxu0
        %v5077 = vadd.f32 0.0, %v5076
        %v5078 = vpop.f32.mrf.mxu0
        %v5079 = vpop.f32.mrf.mxu0
        %v5080 = vadd.f32 0.0, %v5079
        %v5081 = vpop.f32.mrf.mxu0
        %5082 = vdwg.mxu0
        %v5083 = vrcp.pop %v5004
        %v5084 = vrcp.pop %v5007
        %v5085 = vrcp.pop %v5010
        %v5086 = vrcp.pop %v5013
        %v5087 = vmul.f32 %v5069, %v5083
        %v5088 = vmul.f32 %v5072, %v5084
        %v5089 = vmul.f32 %v5077, %v5085
        %v5090 = vmul.f32 %v5080, %v5086
        %v5091 = vpack.c.bf16 %v5088, %v5087
        %v5092 = vpack.c.bf16 %v5090, %v5089
        %v5093 = vld [vmem:[#allocation2] sm:$0xf]
        %v5094 = vld [vmem:[#allocation2 + $0x4] sm:$0xf]
        %v5095 = vld [vmem:[#allocation2 + $0x8] sm:$0xf]
        %v5096 = vld [vmem:[#allocation2 + $0xc] sm:$0xf]
        %v5097 = vld [vmem:[#allocation2 + $0x10] sm:$0xf]
        %v5098 = vld [vmem:[#allocation2 + $0x14] sm:$0xf]
        %v5099 = vld [vmem:[#allocation2 + $0x18] sm:$0xf]
        %v5100 = vld [vmem:[#allocation2 + $0x1c] sm:$0xf]
        %5101 = vrot.lane.b32.xlu0 %v694, 112
        %v5102 = vpop.permute.xlu0 %5101
        %v5104 = vsel %vm698, %v5102, 0
        %5106 = vmatprep.subr.bf16.mxu0 0
        %5107 = vmatpush1.bf16.xpose.msra.mxu0 0
        %5108 = vmatprep.subr.bf16.mxu0 0
        %5109 = vmatpush1.bf16.xpose.msra.mxu0 0
        %5110 = vmatprep.subr.bf16.mxu0 0
        %5111 = vmatpush1.bf16.xpose.msra.mxu0 0
        %5112 = vmatprep.subr.bf16.mxu0 0
        %5113 = vmatpush1.bf16.xpose.msra.mxu0 0
        %5114 = vmatprep.subr.bf16.mxu0 0
        %5115 = vmatpush1.bf16.xpose.msra.mxu0 0
        %5116 = vmatprep.subr.bf16.mxu0 0
        %5117 = vmatpush1.bf16.xpose.msra.mxu0 0
        %5118 = vmatprep.subr.bf16.mxu0 0
        %5119 = vmatpush1.bf16.xpose.msra.mxu0 0
        %5120 = vmatprep.subr.bf16.mxu0 0
        %5121 = vmatpush1.bf16.xpose.msra.mxu0 %v703
        %5122 = vmatprep.subr.bf16.mxu0 0
        %5123 = vmatpush2.bf16.xpose.msra.mxu0 0
        %5124 = vmatprep.subr.bf16.mxu0 0
        %5125 = vmatpush2.bf16.xpose.msra.mxu0 0
        %5126 = vmatprep.subr.bf16.mxu0 0
        %5127 = vmatpush2.bf16.xpose.msra.mxu0 0
        %5128 = vmatprep.subr.bf16.mxu0 0
        %5129 = vmatpush2.bf16.xpose.msra.mxu0 0
        %5130 = vmatprep.subr.bf16.mxu0 0
        %5131 = vmatpush2.bf16.xpose.msra.mxu0 0
        %5132 = vmatprep.subr.bf16.mxu0 0
        %5133 = vmatpush2.bf16.xpose.msra.mxu0 0
        %5134 = vmatprep.subr.bf16.mxu0 0
        %5135 = vmatpush2.bf16.xpose.msra.mxu0 0
        %5136 = vmatprep.subr.bf16.mxu0 0
        %5137 = vmatpush2.bf16.xpose.msra.mxu0 0
        %5138 = vmatprep.mubr.bf16.mxu0 0
        %5139 = vmatmul.mubr.bf16.gmra.mxu0 %v5104
        %v5140 = vpop.f32.mrf.mxu0
        %v5141 = vadd.f32 0.0, %v5140
        %v5142 = vpop.f32.mrf.mxu0
        %v5143 = vpop.f32.mrf.mxu0
        %v5144 = vpop.f32.mrf.mxu0
        %5145 = vdwg.mxu0
        %5146 = vrot.lane.b32.xlu0 %v695, 112
        %v5147 = vpop.permute.xlu0 %5146
        %v5149 = vsel %vm698, %v5147, 0
        %5151 = vmatprep.subr.bf16.mxu0 0
        %5152 = vmatpush1.bf16.xpose.msra.mxu0 0
        %5153 = vmatprep.subr.bf16.mxu0 0
        %5154 = vmatpush1.bf16.xpose.msra.mxu0 0
        %5155 = vmatprep.subr.bf16.mxu0 0
        %5156 = vmatpush1.bf16.xpose.msra.mxu0 0
        %5157 = vmatprep.subr.bf16.mxu0 0
        %5158 = vmatpush1.bf16.xpose.msra.mxu0 0
        %5159 = vmatprep.subr.bf16.mxu0 0
        %5160 = vmatpush1.bf16.xpose.msra.mxu0 0
        %5161 = vmatprep.subr.bf16.mxu0 0
        %5162 = vmatpush1.bf16.xpose.msra.mxu0 0
        %5163 = vmatprep.subr.bf16.mxu0 0
        %5164 = vmatpush1.bf16.xpose.msra.mxu0 0
        %5165 = vmatprep.subr.bf16.mxu0 0
        %5166 = vmatpush1.bf16.xpose.msra.mxu0 %v749
        %5167 = vmatprep.subr.bf16.mxu0 0
        %5168 = vmatpush2.bf16.xpose.msra.mxu0 0
        %5169 = vmatprep.subr.bf16.mxu0 0
        %5170 = vmatpush2.bf16.xpose.msra.mxu0 0
        %5171 = vmatprep.subr.bf16.mxu0 0
        %5172 = vmatpush2.bf16.xpose.msra.mxu0 0
        %5173 = vmatprep.subr.bf16.mxu0 0
        %5174 = vmatpush2.bf16.xpose.msra.mxu0 0
        %5175 = vmatprep.subr.bf16.mxu0 0
        %5176 = vmatpush2.bf16.xpose.msra.mxu0 0
        %5177 = vmatprep.subr.bf16.mxu0 0
        %5178 = vmatpush2.bf16.xpose.msra.mxu0 0
        %5179 = vmatprep.subr.bf16.mxu0 0
        %5180 = vmatpush2.bf16.xpose.msra.mxu0 0
        %5181 = vmatprep.subr.bf16.mxu0 0
        %5182 = vmatpush2.bf16.xpose.msra.mxu0 0
        %5183 = vmatprep.mubr.bf16.mxu0 0
        %5184 = vmatmul.mubr.bf16.gmra.mxu0 %v5149
        %v5185 = vpop.f32.mrf.mxu0
        %v5186 = vadd.f32 0.0, %v5185
        %v5187 = vpop.f32.mrf.mxu0
        %v5188 = vpop.f32.mrf.mxu0
        %v5189 = vpop.f32.mrf.mxu0
        %5190 = vdwg.mxu0
        %5191 = vrot.lane.b32.xlu0 %v696, 112
        %v5192 = vpop.permute.xlu0 %5191
        %v5194 = vsel %vm698, %v5192, 0
        %5196 = vmatprep.subr.bf16.mxu0 0
        %5197 = vmatpush1.bf16.xpose.msra.mxu0 0
        %5198 = vmatprep.subr.bf16.mxu0 0
        %5199 = vmatpush1.bf16.xpose.msra.mxu0 0
        %5200 = vmatprep.subr.bf16.mxu0 0
        %5201 = vmatpush1.bf16.xpose.msra.mxu0 0
        %5202 = vmatprep.subr.bf16.mxu0 0
        %5203 = vmatpush1.bf16.xpose.msra.mxu0 0
        %5204 = vmatprep.subr.bf16.mxu0 0
        %5205 = vmatpush1.bf16.xpose.msra.mxu0 0
        %5206 = vmatprep.subr.bf16.mxu0 0
        %5207 = vmatpush1.bf16.xpose.msra.mxu0 0
        %5208 = vmatprep.subr.bf16.mxu0 0
        %5209 = vmatpush1.bf16.xpose.msra.mxu0 0
        %5210 = vmatprep.subr.bf16.mxu0 0
        %5211 = vmatpush1.bf16.xpose.msra.mxu0 %v795
        %5212 = vmatprep.subr.bf16.mxu0 0
        %5213 = vmatpush2.bf16.xpose.msra.mxu0 0
        %5214 = vmatprep.subr.bf16.mxu0 0
        %5215 = vmatpush2.bf16.xpose.msra.mxu0 0
        %5216 = vmatprep.subr.bf16.mxu0 0
        %5217 = vmatpush2.bf16.xpose.msra.mxu0 0
        %5218 = vmatprep.subr.bf16.mxu0 0
        %5219 = vmatpush2.bf16.xpose.msra.mxu0 0
        %5220 = vmatprep.subr.bf16.mxu0 0
        %5221 = vmatpush2.bf16.xpose.msra.mxu0 0
        %5222 = vmatprep.subr.bf16.mxu0 0
        %5223 = vmatpush2.bf16.xpose.msra.mxu0 0
        %5224 = vmatprep.subr.bf16.mxu0 0
        %5225 = vmatpush2.bf16.xpose.msra.mxu0 0
        %5226 = vmatprep.subr.bf16.mxu0 0
        %5227 = vmatpush2.bf16.xpose.msra.mxu0 0
        %5228 = vmatprep.mubr.bf16.mxu0 0
        %5229 = vmatmul.mubr.bf16.gmra.mxu0 %v5194
        %v5230 = vpop.f32.mrf.mxu0
        %v5231 = vadd.f32 0.0, %v5230
        %v5232 = vpop.f32.mrf.mxu0
        %v5233 = vpop.f32.mrf.mxu0
        %v5234 = vpop.f32.mrf.mxu0
        %5235 = vdwg.mxu0
        %5236 = vrot.lane.b32.xlu0 %v697, 112
        %v5237 = vpop.permute.xlu0 %5236
        %v5239 = vsel %vm698, %v5237, 0
        %5241 = vmatprep.subr.bf16.mxu0 0
        %5242 = vmatpush1.bf16.xpose.msra.mxu0 0
        %5243 = vmatprep.subr.bf16.mxu0 0
        %5244 = vmatpush1.bf16.xpose.msra.mxu0 0
        %5245 = vmatprep.subr.bf16.mxu0 0
        %5246 = vmatpush1.bf16.xpose.msra.mxu0 0
        %5247 = vmatprep.subr.bf16.mxu0 0
        %5248 = vmatpush1.bf16.xpose.msra.mxu0 0
        %5249 = vmatprep.subr.bf16.mxu0 0
        %5250 = vmatpush1.bf16.xpose.msra.mxu0 0
        %5251 = vmatprep.subr.bf16.mxu0 0
        %5252 = vmatpush1.bf16.xpose.msra.mxu0 0
        %5253 = vmatprep.subr.bf16.mxu0 0
        %5254 = vmatpush1.bf16.xpose.msra.mxu0 0
        %5255 = vmatprep.subr.bf16.mxu0 0
        %5256 = vmatpush1.bf16.xpose.msra.mxu0 %v841
        %5257 = vmatprep.subr.bf16.mxu0 0
        %5258 = vmatpush2.bf16.xpose.msra.mxu0 0
        %5259 = vmatprep.subr.bf16.mxu0 0
        %5260 = vmatpush2.bf16.xpose.msra.mxu0 0
        %5261 = vmatprep.subr.bf16.mxu0 0
        %5262 = vmatpush2.bf16.xpose.msra.mxu0 0
        %5263 = vmatprep.subr.bf16.mxu0 0
        %5264 = vmatpush2.bf16.xpose.msra.mxu0 0
        %5265 = vmatprep.subr.bf16.mxu0 0
        %5266 = vmatpush2.bf16.xpose.msra.mxu0 0
        %5267 = vmatprep.subr.bf16.mxu0 0
        %5268 = vmatpush2.bf16.xpose.msra.mxu0 0
        %5269 = vmatprep.subr.bf16.mxu0 0
        %5270 = vmatpush2.bf16.xpose.msra.mxu0 0
        %5271 = vmatprep.subr.bf16.mxu0 0
        %5272 = vmatpush2.bf16.xpose.msra.mxu0 0
        %5273 = vmatprep.mubr.bf16.mxu0 0
        %5274 = vmatmul.mubr.bf16.gmra.mxu0 %v5239
        %v5275 = vpop.f32.mrf.mxu0
        %v5276 = vadd.f32 0.0, %v5275
        %v5277 = vpop.f32.mrf.mxu0
        %v5278 = vpop.f32.mrf.mxu0
        %v5279 = vpop.f32.mrf.mxu0
        %5280 = vdwg.mxu0
        %v5281 = vpack.i.b16 %v5147, %v5102
        %v5282 = vshrl.u32 %v5102, 16
        %v5283 = vshrl.u32 %v5147, 16
        %v5284 = vpack.i.b16 %v5283, %v5282
        %v5285 = vpack.i.b16 %v5237, %v5192
        %v5286 = vshrl.u32 %v5192, 16
        %v5287 = vshrl.u32 %v5237, 16
        %v5288 = vpack.i.b16 %v5287, %v5286
        %v5291 = vunpack.c.l.s4 1983009808
        %v5292 = vunpack.c.0.s8 %v5291
        %v5293 = vlaneseq
        %v5294 = vshrl.u32 %v5293, 7
        %v5295 = vsub.s32 %v5292, %v5294
        %v5296 = vrot.slane %v5281, %v5295
        %v5299 = vunpack.c.l.s4 1983009808
        %v5300 = vunpack.c.0.s8 %v5299
        %v5301 = vlaneseq
        %v5302 = vshrl.u32 %v5301, 7
        %v5303 = vsub.s32 %v5300, %v5302
        %v5304 = vrot.slane %v5285, %v5303
        %v5305 = vcombine.low %v5296, %v5304
        %v5306 = vcombine.high %v5296, %v5304
        %v5308 = vunpack.c.l.s4 1934713408
        %v5309 = vunpack.c.0.s8 %v5308
        %v5310 = vlaneseq
        %v5311 = vshrl.u32 %v5310, 7
        %v5312 = vsub.s32 %v5309, %v5311
        %v5313 = vrot.slane %v5305, %v5312
        %v5315 = vunpack.c.l.s4 1934713408
        %v5316 = vunpack.c.0.s8 %v5315
        %v5317 = vlaneseq
        %v5318 = vshrl.u32 %v5317, 7
        %v5319 = vsub.s32 %v5316, %v5318
        %v5320 = vrot.slane %v5306, %v5319
        %v5321 = vcombine.high %v5313, 0
        %v5322 = vcombine.high %v5320, 0
        %v5325 = vunpack.c.l.s4 1983009808
        %v5326 = vunpack.c.0.s8 %v5325
        %v5327 = vlaneseq
        %v5328 = vshrl.u32 %v5327, 7
        %v5329 = vsub.s32 %v5326, %v5328
        %v5330 = vrot.slane %v5284, %v5329
        %v5333 = vunpack.c.l.s4 1983009808
        %v5334 = vunpack.c.0.s8 %v5333
        %v5335 = vlaneseq
        %v5336 = vshrl.u32 %v5335, 7
        %v5337 = vsub.s32 %v5334, %v5336
        %v5338 = vrot.slane %v5288, %v5337
        %v5339 = vcombine.low %v5330, %v5338
        %v5340 = vcombine.high %v5330, %v5338
        %v5342 = vunpack.c.l.s4 1934713408
        %v5343 = vunpack.c.0.s8 %v5342
        %v5344 = vlaneseq
        %v5345 = vshrl.u32 %v5344, 7
        %v5346 = vsub.s32 %v5343, %v5345
        %v5347 = vrot.slane %v5339, %v5346
        %v5349 = vunpack.c.l.s4 1934713408
        %v5350 = vunpack.c.0.s8 %v5349
        %v5351 = vlaneseq
        %v5352 = vshrl.u32 %v5351, 7
        %v5353 = vsub.s32 %v5350, %v5352
        %v5354 = vrot.slane %v5340, %v5353
        %v5355 = vcombine.high %v5347, 0
        %v5356 = vcombine.high %v5354, 0
        %v5358 = vsel %vm698, %v5313, 0
        %5360 = vmatprep.subr.bf16.mxu0 0
        %5361 = vmatpush1.bf16.xpose.msra.mxu0 0
        %5362 = vmatprep.subr.bf16.mxu0 0
        %5363 = vmatpush1.bf16.xpose.msra.mxu0 0
        %5364 = vmatprep.subr.bf16.mxu0 0
        %5365 = vmatpush1.bf16.xpose.msra.mxu0 0
        %5366 = vmatprep.subr.bf16.mxu0 0
        %5367 = vmatpush1.bf16.xpose.msra.mxu0 0
        %5368 = vmatprep.subr.bf16.mxu0 0
        %5369 = vmatpush1.bf16.xpose.msra.mxu0 0
        %5370 = vmatprep.subr.bf16.mxu0 0
        %5371 = vmatpush1.bf16.xpose.msra.mxu0 0
        %5372 = vmatprep.subr.bf16.mxu0 0
        %5373 = vmatpush1.bf16.xpose.msra.mxu0 0
        %5374 = vmatprep.subr.bf16.mxu0 0
        %5375 = vmatpush1.bf16.xpose.msra.mxu0 %v963
        %5376 = vmatprep.subr.bf16.mxu0 0
        %5377 = vmatpush2.bf16.xpose.msra.mxu0 0
        %5378 = vmatprep.subr.bf16.mxu0 0
        %5379 = vmatpush2.bf16.xpose.msra.mxu0 0
        %5380 = vmatprep.subr.bf16.mxu0 0
        %5381 = vmatpush2.bf16.xpose.msra.mxu0 0
        %5382 = vmatprep.subr.bf16.mxu0 0
        %5383 = vmatpush2.bf16.xpose.msra.mxu0 0
        %5384 = vmatprep.subr.bf16.mxu0 0
        %5385 = vmatpush2.bf16.xpose.msra.mxu0 0
        %5386 = vmatprep.subr.bf16.mxu0 0
        %5387 = vmatpush2.bf16.xpose.msra.mxu0 0
        %5388 = vmatprep.subr.bf16.mxu0 0
        %5389 = vmatpush2.bf16.xpose.msra.mxu0 0
        %5390 = vmatprep.subr.bf16.mxu0 0
        %5391 = vmatpush2.bf16.xpose.msra.mxu0 0
        %5392 = vmatprep.mubr.bf16.mxu0 0
        %5393 = vmatmul.mubr.bf16.gmra.mxu0 %v5358
        %v5394 = vpop.f32.mrf.mxu0
        %v5395 = vadd.f32 0.0, %v5394
        %v5396 = vpop.f32.mrf.mxu0
        %v5397 = vpop.f32.mrf.mxu0
        %v5398 = vpop.f32.mrf.mxu0
        %5399 = vdwg.mxu0
        %v5401 = vsel %vm698, %v5347, 0
        %5403 = vmatprep.subr.bf16.mxu0 0
        %5404 = vmatpush1.bf16.xpose.msra.mxu0 0
        %5405 = vmatprep.subr.bf16.mxu0 0
        %5406 = vmatpush1.bf16.xpose.msra.mxu0 0
        %5407 = vmatprep.subr.bf16.mxu0 0
        %5408 = vmatpush1.bf16.xpose.msra.mxu0 0
        %5409 = vmatprep.subr.bf16.mxu0 0
        %5410 = vmatpush1.bf16.xpose.msra.mxu0 0
        %5411 = vmatprep.subr.bf16.mxu0 0
        %5412 = vmatpush1.bf16.xpose.msra.mxu0 0
        %5413 = vmatprep.subr.bf16.mxu0 0
        %5414 = vmatpush1.bf16.xpose.msra.mxu0 0
        %5415 = vmatprep.subr.bf16.mxu0 0
        %5416 = vmatpush1.bf16.xpose.msra.mxu0 0
        %5417 = vmatprep.subr.bf16.mxu0 0
        %5418 = vmatpush1.bf16.xpose.msra.mxu0 %v1009
        %5419 = vmatprep.subr.bf16.mxu0 0
        %5420 = vmatpush2.bf16.xpose.msra.mxu0 0
        %5421 = vmatprep.subr.bf16.mxu0 0
        %5422 = vmatpush2.bf16.xpose.msra.mxu0 0
        %5423 = vmatprep.subr.bf16.mxu0 0
        %5424 = vmatpush2.bf16.xpose.msra.mxu0 0
        %5425 = vmatprep.subr.bf16.mxu0 0
        %5426 = vmatpush2.bf16.xpose.msra.mxu0 0
        %5427 = vmatprep.subr.bf16.mxu0 0
        %5428 = vmatpush2.bf16.xpose.msra.mxu0 0
        %5429 = vmatprep.subr.bf16.mxu0 0
        %5430 = vmatpush2.bf16.xpose.msra.mxu0 0
        %5431 = vmatprep.subr.bf16.mxu0 0
        %5432 = vmatpush2.bf16.xpose.msra.mxu0 0
        %5433 = vmatprep.subr.bf16.mxu0 0
        %5434 = vmatpush2.bf16.xpose.msra.mxu0 0
        %5435 = vmatprep.mubr.bf16.mxu0 0
        %5436 = vmatmul.mubr.bf16.gmra.mxu0 %v5401
        %v5437 = vpop.f32.mrf.mxu0
        %v5438 = vadd.f32 0.0, %v5437
        %v5439 = vpop.f32.mrf.mxu0
        %v5440 = vpop.f32.mrf.mxu0
        %v5441 = vpop.f32.mrf.mxu0
        %5442 = vdwg.mxu0
        %v5444 = vsel %vm698, %v5321, 0
        %5446 = vmatprep.subr.bf16.mxu0 0
        %5447 = vmatpush1.bf16.xpose.msra.mxu0 0
        %5448 = vmatprep.subr.bf16.mxu0 0
        %5449 = vmatpush1.bf16.xpose.msra.mxu0 0
        %5450 = vmatprep.subr.bf16.mxu0 0
        %5451 = vmatpush1.bf16.xpose.msra.mxu0 0
        %5452 = vmatprep.subr.bf16.mxu0 0
        %5453 = vmatpush1.bf16.xpose.msra.mxu0 0
        %5454 = vmatprep.subr.bf16.mxu0 0
        %5455 = vmatpush1.bf16.xpose.msra.mxu0 0
        %5456 = vmatprep.subr.bf16.mxu0 0
        %5457 = vmatpush1.bf16.xpose.msra.mxu0 0
        %5458 = vmatprep.subr.bf16.mxu0 0
        %5459 = vmatpush1.bf16.xpose.msra.mxu0 0
        %5460 = vmatprep.subr.bf16.mxu0 0
        %5461 = vmatpush1.bf16.xpose.msra.mxu0 %v1055
        %5462 = vmatprep.subr.bf16.mxu0 0
        %5463 = vmatpush2.bf16.xpose.msra.mxu0 0
        %5464 = vmatprep.subr.bf16.mxu0 0
        %5465 = vmatpush2.bf16.xpose.msra.mxu0 0
        %5466 = vmatprep.subr.bf16.mxu0 0
        %5467 = vmatpush2.bf16.xpose.msra.mxu0 0
        %5468 = vmatprep.subr.bf16.mxu0 0
        %5469 = vmatpush2.bf16.xpose.msra.mxu0 0
        %5470 = vmatprep.subr.bf16.mxu0 0
        %5471 = vmatpush2.bf16.xpose.msra.mxu0 0
        %5472 = vmatprep.subr.bf16.mxu0 0
        %5473 = vmatpush2.bf16.xpose.msra.mxu0 0
        %5474 = vmatprep.subr.bf16.mxu0 0
        %5475 = vmatpush2.bf16.xpose.msra.mxu0 0
        %5476 = vmatprep.subr.bf16.mxu0 0
        %5477 = vmatpush2.bf16.xpose.msra.mxu0 0
        %5478 = vmatprep.mubr.bf16.mxu0 0
        %5479 = vmatmul.mubr.bf16.gmra.mxu0 %v5444
        %v5480 = vpop.f32.mrf.mxu0
        %v5481 = vadd.f32 0.0, %v5480
        %v5482 = vpop.f32.mrf.mxu0
        %v5483 = vpop.f32.mrf.mxu0
        %v5484 = vpop.f32.mrf.mxu0
        %5485 = vdwg.mxu0
        %v5487 = vsel %vm698, %v5355, 0
        %5489 = vmatprep.subr.bf16.mxu0 0
        %5490 = vmatpush1.bf16.xpose.msra.mxu0 0
        %5491 = vmatprep.subr.bf16.mxu0 0
        %5492 = vmatpush1.bf16.xpose.msra.mxu0 0
        %5493 = vmatprep.subr.bf16.mxu0 0
        %5494 = vmatpush1.bf16.xpose.msra.mxu0 0
        %5495 = vmatprep.subr.bf16.mxu0 0
        %5496 = vmatpush1.bf16.xpose.msra.mxu0 0
        %5497 = vmatprep.subr.bf16.mxu0 0
        %5498 = vmatpush1.bf16.xpose.msra.mxu0 0
        %5499 = vmatprep.subr.bf16.mxu0 0
        %5500 = vmatpush1.bf16.xpose.msra.mxu0 0
        %5501 = vmatprep.subr.bf16.mxu0 0
        %5502 = vmatpush1.bf16.xpose.msra.mxu0 0
        %5503 = vmatprep.subr.bf16.mxu0 0
        %5504 = vmatpush1.bf16.xpose.msra.mxu0 %v1101
        %5505 = vmatprep.subr.bf16.mxu0 0
        %5506 = vmatpush2.bf16.xpose.msra.mxu0 0
        %5507 = vmatprep.subr.bf16.mxu0 0
        %5508 = vmatpush2.bf16.xpose.msra.mxu0 0
        %5509 = vmatprep.subr.bf16.mxu0 0
        %5510 = vmatpush2.bf16.xpose.msra.mxu0 0
        %5511 = vmatprep.subr.bf16.mxu0 0
        %5512 = vmatpush2.bf16.xpose.msra.mxu0 0
        %5513 = vmatprep.subr.bf16.mxu0 0
        %5514 = vmatpush2.bf16.xpose.msra.mxu0 0
        %5515 = vmatprep.subr.bf16.mxu0 0
        %5516 = vmatpush2.bf16.xpose.msra.mxu0 0
        %5517 = vmatprep.subr.bf16.mxu0 0
        %5518 = vmatpush2.bf16.xpose.msra.mxu0 0
        %5519 = vmatprep.subr.bf16.mxu0 0
        %5520 = vmatpush2.bf16.xpose.msra.mxu0 0
        %5521 = vmatprep.mubr.bf16.mxu0 0
        %5522 = vmatmul.mubr.bf16.gmra.mxu0 %v5487
        %v5523 = vpop.f32.mrf.mxu0
        %v5524 = vadd.f32 0.0, %v5523
        %v5525 = vpop.f32.mrf.mxu0
        %v5526 = vpop.f32.mrf.mxu0
        %v5527 = vpop.f32.mrf.mxu0
        %5528 = vdwg.mxu0
        %v5530 = vsel %vm698, %v5320, 0
        %5532 = vmatprep.subr.bf16.mxu0 0
        %5533 = vmatpush1.bf16.xpose.msra.mxu0 0
        %5534 = vmatprep.subr.bf16.mxu0 0
        %5535 = vmatpush1.bf16.xpose.msra.mxu0 0
        %5536 = vmatprep.subr.bf16.mxu0 0
        %5537 = vmatpush1.bf16.xpose.msra.mxu0 0
        %5538 = vmatprep.subr.bf16.mxu0 0
        %5539 = vmatpush1.bf16.xpose.msra.mxu0 0
        %5540 = vmatprep.subr.bf16.mxu0 0
        %5541 = vmatpush1.bf16.xpose.msra.mxu0 0
        %5542 = vmatprep.subr.bf16.mxu0 0
        %5543 = vmatpush1.bf16.xpose.msra.mxu0 0
        %5544 = vmatprep.subr.bf16.mxu0 0
        %5545 = vmatpush1.bf16.xpose.msra.mxu0 0
        %5546 = vmatprep.subr.bf16.mxu0 0
        %5547 = vmatpush1.bf16.xpose.msra.mxu0 %v1147
        %5548 = vmatprep.subr.bf16.mxu0 0
        %5549 = vmatpush2.bf16.xpose.msra.mxu0 0
        %5550 = vmatprep.subr.bf16.mxu0 0
        %5551 = vmatpush2.bf16.xpose.msra.mxu0 0
        %5552 = vmatprep.subr.bf16.mxu0 0
        %5553 = vmatpush2.bf16.xpose.msra.mxu0 0
        %5554 = vmatprep.subr.bf16.mxu0 0
        %5555 = vmatpush2.bf16.xpose.msra.mxu0 0
        %5556 = vmatprep.subr.bf16.mxu0 0
        %5557 = vmatpush2.bf16.xpose.msra.mxu0 0
        %5558 = vmatprep.subr.bf16.mxu0 0
        %5559 = vmatpush2.bf16.xpose.msra.mxu0 0
        %5560 = vmatprep.subr.bf16.mxu0 0
        %5561 = vmatpush2.bf16.xpose.msra.mxu0 0
        %5562 = vmatprep.subr.bf16.mxu0 0
        %5563 = vmatpush2.bf16.xpose.msra.mxu0 0
        %5564 = vmatprep.mubr.bf16.mxu0 0
        %5565 = vmatmul.mubr.bf16.gmra.mxu0 %v5530
        %v5566 = vpop.f32.mrf.mxu0
        %v5567 = vadd.f32 0.0, %v5566
        %v5568 = vpop.f32.mrf.mxu0
        %v5569 = vpop.f32.mrf.mxu0
        %v5570 = vpop.f32.mrf.mxu0
        %5571 = vdwg.mxu0
        %v5573 = vsel %vm698, %v5354, 0
        %5575 = vmatprep.subr.bf16.mxu0 0
        %5576 = vmatpush1.bf16.xpose.msra.mxu0 0
        %5577 = vmatprep.subr.bf16.mxu0 0
        %5578 = vmatpush1.bf16.xpose.msra.mxu0 0
        %5579 = vmatprep.subr.bf16.mxu0 0
        %5580 = vmatpush1.bf16.xpose.msra.mxu0 0
        %5581 = vmatprep.subr.bf16.mxu0 0
        %5582 = vmatpush1.bf16.xpose.msra.mxu0 0
        %5583 = vmatprep.subr.bf16.mxu0 0
        %5584 = vmatpush1.bf16.xpose.msra.mxu0 0
        %5585 = vmatprep.subr.bf16.mxu0 0
        %5586 = vmatpush1.bf16.xpose.msra.mxu0 0
        %5587 = vmatprep.subr.bf16.mxu0 0
        %5588 = vmatpush1.bf16.xpose.msra.mxu0 0
        %5589 = vmatprep.subr.bf16.mxu0 0
        %5590 = vmatpush1.bf16.xpose.msra.mxu0 %v1193
        %5591 = vmatprep.subr.bf16.mxu0 0
        %5592 = vmatpush2.bf16.xpose.msra.mxu0 0
        %5593 = vmatprep.subr.bf16.mxu0 0
        %5594 = vmatpush2.bf16.xpose.msra.mxu0 0
        %5595 = vmatprep.subr.bf16.mxu0 0
        %5596 = vmatpush2.bf16.xpose.msra.mxu0 0
        %5597 = vmatprep.subr.bf16.mxu0 0
        %5598 = vmatpush2.bf16.xpose.msra.mxu0 0
        %5599 = vmatprep.subr.bf16.mxu0 0
        %5600 = vmatpush2.bf16.xpose.msra.mxu0 0
        %5601 = vmatprep.subr.bf16.mxu0 0
        %5602 = vmatpush2.bf16.xpose.msra.mxu0 0
        %5603 = vmatprep.subr.bf16.mxu0 0
        %5604 = vmatpush2.bf16.xpose.msra.mxu0 0
        %5605 = vmatprep.subr.bf16.mxu0 0
        %5606 = vmatpush2.bf16.xpose.msra.mxu0 0
        %5607 = vmatprep.mubr.bf16.mxu0 0
        %5608 = vmatmul.mubr.bf16.gmra.mxu0 %v5573
        %v5609 = vpop.f32.mrf.mxu0
        %v5610 = vadd.f32 0.0, %v5609
        %v5611 = vpop.f32.mrf.mxu0
        %v5612 = vpop.f32.mrf.mxu0
        %v5613 = vpop.f32.mrf.mxu0
        %5614 = vdwg.mxu0
        %v5616 = vsel %vm698, %v5322, 0
        %5618 = vmatprep.subr.bf16.mxu0 0
        %5619 = vmatpush1.bf16.xpose.msra.mxu0 0
        %5620 = vmatprep.subr.bf16.mxu0 0
        %5621 = vmatpush1.bf16.xpose.msra.mxu0 0
        %5622 = vmatprep.subr.bf16.mxu0 0
        %5623 = vmatpush1.bf16.xpose.msra.mxu0 0
        %5624 = vmatprep.subr.bf16.mxu0 0
        %5625 = vmatpush1.bf16.xpose.msra.mxu0 0
        %5626 = vmatprep.subr.bf16.mxu0 0
        %5627 = vmatpush1.bf16.xpose.msra.mxu0 0
        %5628 = vmatprep.subr.bf16.mxu0 0
        %5629 = vmatpush1.bf16.xpose.msra.mxu0 0
        %5630 = vmatprep.subr.bf16.mxu0 0
        %5631 = vmatpush1.bf16.xpose.msra.mxu0 0
        %5632 = vmatprep.subr.bf16.mxu0 0
        %5633 = vmatpush1.bf16.xpose.msra.mxu0 %v1239
        %5634 = vmatprep.subr.bf16.mxu0 0
        %5635 = vmatpush2.bf16.xpose.msra.mxu0 0
        %5636 = vmatprep.subr.bf16.mxu0 0
        %5637 = vmatpush2.bf16.xpose.msra.mxu0 0
        %5638 = vmatprep.subr.bf16.mxu0 0
        %5639 = vmatpush2.bf16.xpose.msra.mxu0 0
        %5640 = vmatprep.subr.bf16.mxu0 0
        %5641 = vmatpush2.bf16.xpose.msra.mxu0 0
        %5642 = vmatprep.subr.bf16.mxu0 0
        %5643 = vmatpush2.bf16.xpose.msra.mxu0 0
        %5644 = vmatprep.subr.bf16.mxu0 0
        %5645 = vmatpush2.bf16.xpose.msra.mxu0 0
        %5646 = vmatprep.subr.bf16.mxu0 0
        %5647 = vmatpush2.bf16.xpose.msra.mxu0 0
        %5648 = vmatprep.subr.bf16.mxu0 0
        %5649 = vmatpush2.bf16.xpose.msra.mxu0 0
        %5650 = vmatprep.mubr.bf16.mxu0 0
        %5651 = vmatmul.mubr.bf16.gmra.mxu0 %v5616
        %v5652 = vpop.f32.mrf.mxu0
        %v5653 = vadd.f32 0.0, %v5652
        %v5654 = vpop.f32.mrf.mxu0
        %v5655 = vpop.f32.mrf.mxu0
        %v5656 = vpop.f32.mrf.mxu0
        %5657 = vdwg.mxu0
        %v5659 = vsel %vm698, %v5356, 0
        %5661 = vmatprep.subr.bf16.mxu0 0
        %5662 = vmatpush1.bf16.xpose.msra.mxu0 0
        %5663 = vmatprep.subr.bf16.mxu0 0
        %5664 = vmatpush1.bf16.xpose.msra.mxu0 0
        %5665 = vmatprep.subr.bf16.mxu0 0
        %5666 = vmatpush1.bf16.xpose.msra.mxu0 0
        %5667 = vmatprep.subr.bf16.mxu0 0
        %5668 = vmatpush1.bf16.xpose.msra.mxu0 0
        %5669 = vmatprep.subr.bf16.mxu0 0
        %5670 = vmatpush1.bf16.xpose.msra.mxu0 0
        %5671 = vmatprep.subr.bf16.mxu0 0
        %5672 = vmatpush1.bf16.xpose.msra.mxu0 0
        %5673 = vmatprep.subr.bf16.mxu0 0
        %5674 = vmatpush1.bf16.xpose.msra.mxu0 0
        %5675 = vmatprep.subr.bf16.mxu0 0
        %5676 = vmatpush1.bf16.xpose.msra.mxu0 %v1285
        %5677 = vmatprep.subr.bf16.mxu0 0
        %5678 = vmatpush2.bf16.xpose.msra.mxu0 0
        %5679 = vmatprep.subr.bf16.mxu0 0
        %5680 = vmatpush2.bf16.xpose.msra.mxu0 0
        %5681 = vmatprep.subr.bf16.mxu0 0
        %5682 = vmatpush2.bf16.xpose.msra.mxu0 0
        %5683 = vmatprep.subr.bf16.mxu0 0
        %5684 = vmatpush2.bf16.xpose.msra.mxu0 0
        %5685 = vmatprep.subr.bf16.mxu0 0
        %5686 = vmatpush2.bf16.xpose.msra.mxu0 0
        %5687 = vmatprep.subr.bf16.mxu0 0
        %5688 = vmatpush2.bf16.xpose.msra.mxu0 0
        %5689 = vmatprep.subr.bf16.mxu0 0
        %5690 = vmatpush2.bf16.xpose.msra.mxu0 0
        %5691 = vmatprep.subr.bf16.mxu0 0
        %5692 = vmatpush2.bf16.xpose.msra.mxu0 0
        %5693 = vmatprep.mubr.bf16.mxu0 0
        %5694 = vmatmul.mubr.bf16.gmra.mxu0 %v5659
        %v5695 = vpop.f32.mrf.mxu0
        %v5696 = vadd.f32 0.0, %v5695
        %v5697 = vpop.f32.mrf.mxu0
        %v5698 = vpop.f32.mrf.mxu0
        %v5699 = vpop.f32.mrf.mxu0
        %5700 = vdwg.mxu0
        %v5701 = vcombine.low %v5395, %v5481
        %v5703 = vunpack.c.l.s4 1983009808
        %v5704 = vunpack.c.0.s8 %v5703
        %v5705 = vlaneseq
        %v5706 = vshrl.u32 %v5705, 7
        %v5707 = vsub.s32 %v5704, %v5706
        %v5708 = vrot.slane %v5701, %v5707
        %v5709 = vcombine.low %v5438, %v5524
        %v5711 = vunpack.c.l.s4 1983009808
        %v5712 = vunpack.c.0.s8 %v5711
        %v5713 = vlaneseq
        %v5714 = vshrl.u32 %v5713, 7
        %v5715 = vsub.s32 %v5712, %v5714
        %v5716 = vrot.slane %v5709, %v5715
        %v5717 = vcombine.low %v5567, %v5653
        %v5719 = vunpack.c.l.s4 1983009808
        %v5720 = vunpack.c.0.s8 %v5719
        %v5721 = vlaneseq
        %v5722 = vshrl.u32 %v5721, 7
        %v5723 = vsub.s32 %v5720, %v5722
        %v5724 = vrot.slane %v5717, %v5723
        %v5725 = vcombine.low %v5610, %v5696
        %v5727 = vunpack.c.l.s4 1983009808
        %v5728 = vunpack.c.0.s8 %v5727
        %v5729 = vlaneseq
        %v5730 = vshrl.u32 %v5729, 7
        %v5731 = vsub.s32 %v5728, %v5730
        %v5732 = vrot.slane %v5725, %v5731
        %v5733 = vcombine.low %v5708, %v5716
        %v5734 = vcombine.high %v5708, %v5716
        %v5736 = vunpack.c.l.s4 1934713408
        %v5737 = vunpack.c.0.s8 %v5736
        %v5738 = vlaneseq
        %v5739 = vshrl.u32 %v5738, 7
        %v5740 = vsub.s32 %v5737, %v5739
        %v5741 = vrot.slane %v5733, %v5740
        %v5743 = vunpack.c.l.s4 1934713408
        %v5744 = vunpack.c.0.s8 %v5743
        %v5745 = vlaneseq
        %v5746 = vshrl.u32 %v5745, 7
        %v5747 = vsub.s32 %v5744, %v5746
        %v5748 = vrot.slane %v5734, %v5747
        %v5749 = vcombine.low %v5724, %v5732
        %v5750 = vcombine.high %v5724, %v5732
        %v5752 = vunpack.c.l.s4 1934713408
        %v5753 = vunpack.c.0.s8 %v5752
        %v5754 = vlaneseq
        %v5755 = vshrl.u32 %v5754, 7
        %v5756 = vsub.s32 %v5753, %v5755
        %v5757 = vrot.slane %v5749, %v5756
        %v5759 = vunpack.c.l.s4 1934713408
        %v5760 = vunpack.c.0.s8 %v5759
        %v5761 = vlaneseq
        %v5762 = vshrl.u32 %v5761, 7
        %v5763 = vsub.s32 %v5760, %v5762
        %v5764 = vrot.slane %v5750, %v5763
        %v5765 = vcombine.low %v5741, %v5757
        %v5766 = vcombine.high %v5741, %v5757
        %v5767 = vcombine.low %v5748, %v5764
        %v5768 = vcombine.high %v5748, %v5764
        %v5769 = vlaneseq
        %v5770 = vshrl.u32 %v5769, 7
        %v5771 = vsub.s32 0, %v5770
        %v5772 = vrot.slane %v5141, %v5771
        %5774 = vbcast.lane.b32.xlu0 %v5772, 256
        %v5775 = vpop.permute.xlu0 %5774
        %v5776 = vlaneseq
        %v5777 = vshrl.u32 %v5776, 7
        %v5778 = vsub.s32 1, %v5777
        %v5779 = vrot.slane %v5141, %v5778
        %5781 = vbcast.lane.b32.xlu0 %v5779, 256
        %v5782 = vpop.permute.xlu0 %5781
        %v5783 = vlaneseq
        %v5784 = vshrl.u32 %v5783, 7
        %v5785 = vsub.s32 2, %v5784
        %v5786 = vrot.slane %v5141, %v5785
        %5788 = vbcast.lane.b32.xlu0 %v5786, 256
        %v5789 = vpop.permute.xlu0 %5788
        %v5790 = vlaneseq
        %v5791 = vshrl.u32 %v5790, 7
        %v5792 = vsub.s32 3, %v5791
        %v5793 = vrot.slane %v5141, %v5792
        %5795 = vbcast.lane.b32.xlu0 %v5793, 256
        %v5796 = vpop.permute.xlu0 %5795
        %v5797 = vlaneseq
        %v5798 = vshrl.u32 %v5797, 7
        %v5799 = vsub.s32 4, %v5798
        %v5800 = vrot.slane %v5141, %v5799
        %5802 = vbcast.lane.b32.xlu0 %v5800, 256
        %v5803 = vpop.permute.xlu0 %5802
        %v5804 = vlaneseq
        %v5805 = vshrl.u32 %v5804, 7
        %v5806 = vsub.s32 5, %v5805
        %v5807 = vrot.slane %v5141, %v5806
        %5809 = vbcast.lane.b32.xlu0 %v5807, 256
        %v5810 = vpop.permute.xlu0 %5809
        %v5811 = vlaneseq
        %v5812 = vshrl.u32 %v5811, 7
        %v5813 = vsub.s32 6, %v5812
        %v5814 = vrot.slane %v5141, %v5813
        %5816 = vbcast.lane.b32.xlu0 %v5814, 256
        %v5817 = vpop.permute.xlu0 %5816
        %v5818 = vlaneseq
        %v5819 = vshrl.u32 %v5818, 7
        %v5820 = vsub.s32 7, %v5819
        %v5821 = vrot.slane %v5141, %v5820
        %5823 = vbcast.lane.b32.xlu0 %v5821, 256
        %v5824 = vpop.permute.xlu0 %5823
        %v5825 = vlaneseq
        %v5826 = vshrl.u32 %v5825, 7
        %v5827 = vsub.s32 0, %v5826
        %v5828 = vrot.slane %v5186, %v5827
        %5830 = vbcast.lane.b32.xlu0 %v5828, 256
        %v5831 = vpop.permute.xlu0 %5830
        %v5832 = vlaneseq
        %v5833 = vshrl.u32 %v5832, 7
        %v5834 = vsub.s32 1, %v5833
        %v5835 = vrot.slane %v5186, %v5834
        %5837 = vbcast.lane.b32.xlu0 %v5835, 256
        %v5838 = vpop.permute.xlu0 %5837
        %v5839 = vlaneseq
        %v5840 = vshrl.u32 %v5839, 7
        %v5841 = vsub.s32 2, %v5840
        %v5842 = vrot.slane %v5186, %v5841
        %5844 = vbcast.lane.b32.xlu0 %v5842, 256
        %v5845 = vpop.permute.xlu0 %5844
        %v5846 = vlaneseq
        %v5847 = vshrl.u32 %v5846, 7
        %v5848 = vsub.s32 3, %v5847
        %v5849 = vrot.slane %v5186, %v5848
        %5851 = vbcast.lane.b32.xlu0 %v5849, 256
        %v5852 = vpop.permute.xlu0 %5851
        %v5853 = vlaneseq
        %v5854 = vshrl.u32 %v5853, 7
        %v5855 = vsub.s32 4, %v5854
        %v5856 = vrot.slane %v5186, %v5855
        %5858 = vbcast.lane.b32.xlu0 %v5856, 256
        %v5859 = vpop.permute.xlu0 %5858
        %v5860 = vlaneseq
        %v5861 = vshrl.u32 %v5860, 7
        %v5862 = vsub.s32 5, %v5861
        %v5863 = vrot.slane %v5186, %v5862
        %5865 = vbcast.lane.b32.xlu0 %v5863, 256
        %v5866 = vpop.permute.xlu0 %5865
        %v5867 = vlaneseq
        %v5868 = vshrl.u32 %v5867, 7
        %v5869 = vsub.s32 6, %v5868
        %v5870 = vrot.slane %v5186, %v5869
        %5872 = vbcast.lane.b32.xlu0 %v5870, 256
        %v5873 = vpop.permute.xlu0 %5872
        %v5874 = vlaneseq
        %v5875 = vshrl.u32 %v5874, 7
        %v5876 = vsub.s32 7, %v5875
        %v5877 = vrot.slane %v5186, %v5876
        %5879 = vbcast.lane.b32.xlu0 %v5877, 256
        %v5880 = vpop.permute.xlu0 %5879
        %v5881 = vlaneseq
        %v5882 = vshrl.u32 %v5881, 7
        %v5883 = vsub.s32 0, %v5882
        %v5884 = vrot.slane %v5231, %v5883
        %5886 = vbcast.lane.b32.xlu0 %v5884, 256
        %v5887 = vpop.permute.xlu0 %5886
        %v5888 = vlaneseq
        %v5889 = vshrl.u32 %v5888, 7
        %v5890 = vsub.s32 1, %v5889
        %v5891 = vrot.slane %v5231, %v5890
        %5893 = vbcast.lane.b32.xlu0 %v5891, 256
        %v5894 = vpop.permute.xlu0 %5893
        %v5895 = vlaneseq
        %v5896 = vshrl.u32 %v5895, 7
        %v5897 = vsub.s32 2, %v5896
        %v5898 = vrot.slane %v5231, %v5897
        %5900 = vbcast.lane.b32.xlu0 %v5898, 256
        %v5901 = vpop.permute.xlu0 %5900
        %v5902 = vlaneseq
        %v5903 = vshrl.u32 %v5902, 7
        %v5904 = vsub.s32 3, %v5903
        %v5905 = vrot.slane %v5231, %v5904
        %5907 = vbcast.lane.b32.xlu0 %v5905, 256
        %v5908 = vpop.permute.xlu0 %5907
        %v5909 = vlaneseq
        %v5910 = vshrl.u32 %v5909, 7
        %v5911 = vsub.s32 4, %v5910
        %v5912 = vrot.slane %v5231, %v5911
        %5914 = vbcast.lane.b32.xlu0 %v5912, 256
        %v5915 = vpop.permute.xlu0 %5914
        %v5916 = vlaneseq
        %v5917 = vshrl.u32 %v5916, 7
        %v5918 = vsub.s32 5, %v5917
        %v5919 = vrot.slane %v5231, %v5918
        %5921 = vbcast.lane.b32.xlu0 %v5919, 256
        %v5922 = vpop.permute.xlu0 %5921
        %v5923 = vlaneseq
        %v5924 = vshrl.u32 %v5923, 7
        %v5925 = vsub.s32 6, %v5924
        %v5926 = vrot.slane %v5231, %v5925
        %5928 = vbcast.lane.b32.xlu0 %v5926, 256
        %v5929 = vpop.permute.xlu0 %5928
        %v5930 = vlaneseq
        %v5931 = vshrl.u32 %v5930, 7
        %v5932 = vsub.s32 7, %v5931
        %v5933 = vrot.slane %v5231, %v5932
        %5935 = vbcast.lane.b32.xlu0 %v5933, 256
        %v5936 = vpop.permute.xlu0 %5935
        %v5937 = vlaneseq
        %v5938 = vshrl.u32 %v5937, 7
        %v5939 = vsub.s32 0, %v5938
        %v5940 = vrot.slane %v5276, %v5939
        %5942 = vbcast.lane.b32.xlu0 %v5940, 256
        %v5943 = vpop.permute.xlu0 %5942
        %v5944 = vlaneseq
        %v5945 = vshrl.u32 %v5944, 7
        %v5946 = vsub.s32 1, %v5945
        %v5947 = vrot.slane %v5276, %v5946
        %5949 = vbcast.lane.b32.xlu0 %v5947, 256
        %v5950 = vpop.permute.xlu0 %5949
        %v5951 = vlaneseq
        %v5952 = vshrl.u32 %v5951, 7
        %v5953 = vsub.s32 2, %v5952
        %v5954 = vrot.slane %v5276, %v5953
        %5956 = vbcast.lane.b32.xlu0 %v5954, 256
        %v5957 = vpop.permute.xlu0 %5956
        %v5958 = vlaneseq
        %v5959 = vshrl.u32 %v5958, 7
        %v5960 = vsub.s32 3, %v5959
        %v5961 = vrot.slane %v5276, %v5960
        %5963 = vbcast.lane.b32.xlu0 %v5961, 256
        %v5964 = vpop.permute.xlu0 %5963
        %v5965 = vlaneseq
        %v5966 = vshrl.u32 %v5965, 7
        %v5967 = vsub.s32 4, %v5966
        %v5968 = vrot.slane %v5276, %v5967
        %5970 = vbcast.lane.b32.xlu0 %v5968, 256
        %v5971 = vpop.permute.xlu0 %5970
        %v5972 = vlaneseq
        %v5973 = vshrl.u32 %v5972, 7
        %v5974 = vsub.s32 5, %v5973
        %v5975 = vrot.slane %v5276, %v5974
        %5977 = vbcast.lane.b32.xlu0 %v5975, 256
        %v5978 = vpop.permute.xlu0 %5977
        %v5979 = vlaneseq
        %v5980 = vshrl.u32 %v5979, 7
        %v5981 = vsub.s32 6, %v5980
        %v5982 = vrot.slane %v5276, %v5981
        %5984 = vbcast.lane.b32.xlu0 %v5982, 256
        %v5985 = vpop.permute.xlu0 %5984
        %v5986 = vlaneseq
        %v5987 = vshrl.u32 %v5986, 7
        %v5988 = vsub.s32 7, %v5987
        %v5989 = vrot.slane %v5276, %v5988
        %5991 = vbcast.lane.b32.xlu0 %v5989, 256
        %v5992 = vpop.permute.xlu0 %5991
        %v5997 = vcombine.high %v5765, %v5765
        %v5999 = vunpack.c.l.s4 1966171168
        %v6000 = vunpack.c.0.s8 %v5999
        %v6001 = vlaneseq
        %v6002 = vshrl.u32 %v6001, 7
        %v6003 = vsub.s32 %v6000, %v6002
        %v6004 = vrot.slane %v5765, %v6003
        %v6006 = vunpack.c.l.s4 1966171168
        %v6007 = vunpack.c.0.s8 %v6006
        %v6008 = vlaneseq
        %v6009 = vshrl.u32 %v6008, 7
        %v6010 = vsub.s32 %v6007, %v6009
        %v6011 = vrot.slane %v5997, %v6010
        %v6012 = vcombine.high %v6004, %v6004
        %v6013 = vcombine.high %v6011, %v6011
        %v6015 = vunpack.c.l.s4 1966171168
        %v6016 = vunpack.c.0.s8 %v6015
        %v6017 = vlaneseq
        %v6018 = vshrl.u32 %v6017, 7
        %v6019 = vsub.s32 %v6016, %v6018
        %v6020 = vrot.slane %v6004, %v6019
        %v6022 = vunpack.c.l.s4 1966171168
        %v6023 = vunpack.c.0.s8 %v6022
        %v6024 = vlaneseq
        %v6025 = vshrl.u32 %v6024, 7
        %v6026 = vsub.s32 %v6023, %v6025
        %v6027 = vrot.slane %v6011, %v6026
        %v6029 = vunpack.c.l.s4 1966171168
        %v6030 = vunpack.c.0.s8 %v6029
        %v6031 = vlaneseq
        %v6032 = vshrl.u32 %v6031, 7
        %v6033 = vsub.s32 %v6030, %v6032
        %v6034 = vrot.slane %v6012, %v6033
        %v6036 = vunpack.c.l.s4 1966171168
        %v6037 = vunpack.c.0.s8 %v6036
        %v6038 = vlaneseq
        %v6039 = vshrl.u32 %v6038, 7
        %v6040 = vsub.s32 %v6037, %v6039
        %v6041 = vrot.slane %v6013, %v6040
        %v6042 = vcombine.high %v6020, %v6020
        %v6043 = vcombine.high %v6027, %v6027
        %v6044 = vcombine.high %v6034, %v6034
        %v6045 = vcombine.high %v6041, %v6041
        %v6046 = vcombine.high %v5766, %v5766
        %v6048 = vunpack.c.l.s4 1966171168
        %v6049 = vunpack.c.0.s8 %v6048
        %v6050 = vlaneseq
        %v6051 = vshrl.u32 %v6050, 7
        %v6052 = vsub.s32 %v6049, %v6051
        %v6053 = vrot.slane %v5766, %v6052
        %v6055 = vunpack.c.l.s4 1966171168
        %v6056 = vunpack.c.0.s8 %v6055
        %v6057 = vlaneseq
        %v6058 = vshrl.u32 %v6057, 7
        %v6059 = vsub.s32 %v6056, %v6058
        %v6060 = vrot.slane %v6046, %v6059
        %v6061 = vcombine.high %v6053, %v6053
        %v6062 = vcombine.high %v6060, %v6060
        %v6064 = vunpack.c.l.s4 1966171168
        %v6065 = vunpack.c.0.s8 %v6064
        %v6066 = vlaneseq
        %v6067 = vshrl.u32 %v6066, 7
        %v6068 = vsub.s32 %v6065, %v6067
        %v6069 = vrot.slane %v6053, %v6068
        %v6071 = vunpack.c.l.s4 1966171168
        %v6072 = vunpack.c.0.s8 %v6071
        %v6073 = vlaneseq
        %v6074 = vshrl.u32 %v6073, 7
        %v6075 = vsub.s32 %v6072, %v6074
        %v6076 = vrot.slane %v6060, %v6075
        %v6078 = vunpack.c.l.s4 1966171168
        %v6079 = vunpack.c.0.s8 %v6078
        %v6080 = vlaneseq
        %v6081 = vshrl.u32 %v6080, 7
        %v6082 = vsub.s32 %v6079, %v6081
        %v6083 = vrot.slane %v6061, %v6082
        %v6085 = vunpack.c.l.s4 1966171168
        %v6086 = vunpack.c.0.s8 %v6085
        %v6087 = vlaneseq
        %v6088 = vshrl.u32 %v6087, 7
        %v6089 = vsub.s32 %v6086, %v6088
        %v6090 = vrot.slane %v6062, %v6089
        %v6091 = vcombine.high %v6069, %v6069
        %v6092 = vcombine.high %v6076, %v6076
        %v6093 = vcombine.high %v6083, %v6083
        %v6094 = vcombine.high %v6090, %v6090
        %v6095 = vcombine.high %v5767, %v5767
        %v6097 = vunpack.c.l.s4 1966171168
        %v6098 = vunpack.c.0.s8 %v6097
        %v6099 = vlaneseq
        %v6100 = vshrl.u32 %v6099, 7
        %v6101 = vsub.s32 %v6098, %v6100
        %v6102 = vrot.slane %v5767, %v6101
        %v6104 = vunpack.c.l.s4 1966171168
        %v6105 = vunpack.c.0.s8 %v6104
        %v6106 = vlaneseq
        %v6107 = vshrl.u32 %v6106, 7
        %v6108 = vsub.s32 %v6105, %v6107
        %v6109 = vrot.slane %v6095, %v6108
        %v6110 = vcombine.high %v6102, %v6102
        %v6111 = vcombine.high %v6109, %v6109
        %v6113 = vunpack.c.l.s4 1966171168
        %v6114 = vunpack.c.0.s8 %v6113
        %v6115 = vlaneseq
        %v6116 = vshrl.u32 %v6115, 7
        %v6117 = vsub.s32 %v6114, %v6116
        %v6118 = vrot.slane %v6102, %v6117
        %v6120 = vunpack.c.l.s4 1966171168
        %v6121 = vunpack.c.0.s8 %v6120
        %v6122 = vlaneseq
        %v6123 = vshrl.u32 %v6122, 7
        %v6124 = vsub.s32 %v6121, %v6123
        %v6125 = vrot.slane %v6109, %v6124
        %v6127 = vunpack.c.l.s4 1966171168
        %v6128 = vunpack.c.0.s8 %v6127
        %v6129 = vlaneseq
        %v6130 = vshrl.u32 %v6129, 7
        %v6131 = vsub.s32 %v6128, %v6130
        %v6132 = vrot.slane %v6110, %v6131
        %v6134 = vunpack.c.l.s4 1966171168
        %v6135 = vunpack.c.0.s8 %v6134
        %v6136 = vlaneseq
        %v6137 = vshrl.u32 %v6136, 7
        %v6138 = vsub.s32 %v6135, %v6137
        %v6139 = vrot.slane %v6111, %v6138
        %v6140 = vcombine.high %v6118, %v6118
        %v6141 = vcombine.high %v6125, %v6125
        %v6142 = vcombine.high %v6132, %v6132
        %v6143 = vcombine.high %v6139, %v6139
        %v6144 = vcombine.high %v5768, %v5768
        %v6146 = vunpack.c.l.s4 1966171168
        %v6147 = vunpack.c.0.s8 %v6146
        %v6148 = vlaneseq
        %v6149 = vshrl.u32 %v6148, 7
        %v6150 = vsub.s32 %v6147, %v6149
        %v6151 = vrot.slane %v5768, %v6150
        %v6153 = vunpack.c.l.s4 1966171168
        %v6154 = vunpack.c.0.s8 %v6153
        %v6155 = vlaneseq
        %v6156 = vshrl.u32 %v6155, 7
        %v6157 = vsub.s32 %v6154, %v6156
        %v6158 = vrot.slane %v6144, %v6157
        %v6159 = vcombine.high %v6151, %v6151
        %v6160 = vcombine.high %v6158, %v6158
        %v6162 = vunpack.c.l.s4 1966171168
        %v6163 = vunpack.c.0.s8 %v6162
        %v6164 = vlaneseq
        %v6165 = vshrl.u32 %v6164, 7
        %v6166 = vsub.s32 %v6163, %v6165
        %v6167 = vrot.slane %v6151, %v6166
        %v6169 = vunpack.c.l.s4 1966171168
        %v6170 = vunpack.c.0.s8 %v6169
        %v6171 = vlaneseq
        %v6172 = vshrl.u32 %v6171, 7
        %v6173 = vsub.s32 %v6170, %v6172
        %v6174 = vrot.slane %v6158, %v6173
        %v6176 = vunpack.c.l.s4 1966171168
        %v6177 = vunpack.c.0.s8 %v6176
        %v6178 = vlaneseq
        %v6179 = vshrl.u32 %v6178, 7
        %v6180 = vsub.s32 %v6177, %v6179
        %v6181 = vrot.slane %v6159, %v6180
        %v6183 = vunpack.c.l.s4 1966171168
        %v6184 = vunpack.c.0.s8 %v6183
        %v6185 = vlaneseq
        %v6186 = vshrl.u32 %v6185, 7
        %v6187 = vsub.s32 %v6184, %v6186
        %v6188 = vrot.slane %v6160, %v6187
        %v6189 = vcombine.high %v6167, %v6167
        %v6190 = vcombine.high %v6174, %v6174
        %v6191 = vcombine.high %v6181, %v6181
        %v6192 = vcombine.high %v6188, %v6188
        %v6193 = vlaneseq
        %v6194 = vshrl.u32 %v6193, 7
        %v6195 = vsub.s32 0, %v6194
        %v6196 = vrot.slane %v6020, %v6195
        %v6197 = vlaneseq
        %v6198 = vshrl.u32 %v6197, 7
        %v6199 = vsub.s32 0, %v6198
        %v6200 = vrot.slane %v6034, %v6199
        %v6201 = vlaneseq
        %v6202 = vshrl.u32 %v6201, 7
        %v6203 = vsub.s32 0, %v6202
        %v6204 = vrot.slane %v6042, %v6203
        %v6205 = vlaneseq
        %v6206 = vshrl.u32 %v6205, 7
        %v6207 = vsub.s32 0, %v6206
        %v6208 = vrot.slane %v6044, %v6207
        %v6209 = vlaneseq
        %v6210 = vshrl.u32 %v6209, 7
        %v6211 = vsub.s32 0, %v6210
        %v6212 = vrot.slane %v6027, %v6211
        %v6213 = vlaneseq
        %v6214 = vshrl.u32 %v6213, 7
        %v6215 = vsub.s32 0, %v6214
        %v6216 = vrot.slane %v6041, %v6215
        %v6217 = vlaneseq
        %v6218 = vshrl.u32 %v6217, 7
        %v6219 = vsub.s32 0, %v6218
        %v6220 = vrot.slane %v6043, %v6219
        %v6221 = vlaneseq
        %v6222 = vshrl.u32 %v6221, 7
        %v6223 = vsub.s32 0, %v6222
        %v6224 = vrot.slane %v6045, %v6223
        %v6225 = vlaneseq
        %v6226 = vshrl.u32 %v6225, 7
        %v6227 = vsub.s32 0, %v6226
        %v6228 = vrot.slane %v6069, %v6227
        %v6229 = vlaneseq
        %v6230 = vshrl.u32 %v6229, 7
        %v6231 = vsub.s32 0, %v6230
        %v6232 = vrot.slane %v6083, %v6231
        %v6233 = vlaneseq
        %v6234 = vshrl.u32 %v6233, 7
        %v6235 = vsub.s32 0, %v6234
        %v6236 = vrot.slane %v6091, %v6235
        %v6237 = vlaneseq
        %v6238 = vshrl.u32 %v6237, 7
        %v6239 = vsub.s32 0, %v6238
        %v6240 = vrot.slane %v6093, %v6239
        %v6241 = vlaneseq
        %v6242 = vshrl.u32 %v6241, 7
        %v6243 = vsub.s32 0, %v6242
        %v6244 = vrot.slane %v6076, %v6243
        %v6245 = vlaneseq
        %v6246 = vshrl.u32 %v6245, 7
        %v6247 = vsub.s32 0, %v6246
        %v6248 = vrot.slane %v6090, %v6247
        %v6249 = vlaneseq
        %v6250 = vshrl.u32 %v6249, 7
        %v6251 = vsub.s32 0, %v6250
        %v6252 = vrot.slane %v6092, %v6251
        %v6253 = vlaneseq
        %v6254 = vshrl.u32 %v6253, 7
        %v6255 = vsub.s32 0, %v6254
        %v6256 = vrot.slane %v6094, %v6255
        %v6257 = vlaneseq
        %v6258 = vshrl.u32 %v6257, 7
        %v6259 = vsub.s32 0, %v6258
        %v6260 = vrot.slane %v6118, %v6259
        %v6261 = vlaneseq
        %v6262 = vshrl.u32 %v6261, 7
        %v6263 = vsub.s32 0, %v6262
        %v6264 = vrot.slane %v6132, %v6263
        %v6265 = vlaneseq
        %v6266 = vshrl.u32 %v6265, 7
        %v6267 = vsub.s32 0, %v6266
        %v6268 = vrot.slane %v6140, %v6267
        %v6269 = vlaneseq
        %v6270 = vshrl.u32 %v6269, 7
        %v6271 = vsub.s32 0, %v6270
        %v6272 = vrot.slane %v6142, %v6271
        %v6273 = vlaneseq
        %v6274 = vshrl.u32 %v6273, 7
        %v6275 = vsub.s32 0, %v6274
        %v6276 = vrot.slane %v6125, %v6275
        %v6277 = vlaneseq
        %v6278 = vshrl.u32 %v6277, 7
        %v6279 = vsub.s32 0, %v6278
        %v6280 = vrot.slane %v6139, %v6279
        %v6281 = vlaneseq
        %v6282 = vshrl.u32 %v6281, 7
        %v6283 = vsub.s32 0, %v6282
        %v6284 = vrot.slane %v6141, %v6283
        %v6285 = vlaneseq
        %v6286 = vshrl.u32 %v6285, 7
        %v6287 = vsub.s32 0, %v6286
        %v6288 = vrot.slane %v6143, %v6287
        %v6289 = vlaneseq
        %v6290 = vshrl.u32 %v6289, 7
        %v6291 = vsub.s32 0, %v6290
        %v6292 = vrot.slane %v6167, %v6291
        %v6293 = vlaneseq
        %v6294 = vshrl.u32 %v6293, 7
        %v6295 = vsub.s32 0, %v6294
        %v6296 = vrot.slane %v6181, %v6295
        %v6297 = vlaneseq
        %v6298 = vshrl.u32 %v6297, 7
        %v6299 = vsub.s32 0, %v6298
        %v6300 = vrot.slane %v6189, %v6299
        %v6301 = vlaneseq
        %v6302 = vshrl.u32 %v6301, 7
        %v6303 = vsub.s32 0, %v6302
        %v6304 = vrot.slane %v6191, %v6303
        %v6305 = vlaneseq
        %v6306 = vshrl.u32 %v6305, 7
        %v6307 = vsub.s32 0, %v6306
        %v6308 = vrot.slane %v6174, %v6307
        %v6309 = vlaneseq
        %v6310 = vshrl.u32 %v6309, 7
        %v6311 = vsub.s32 0, %v6310
        %v6312 = vrot.slane %v6188, %v6311
        %v6313 = vlaneseq
        %v6314 = vshrl.u32 %v6313, 7
        %v6315 = vsub.s32 0, %v6314
        %v6316 = vrot.slane %v6190, %v6315
        %v6317 = vlaneseq
        %v6318 = vshrl.u32 %v6317, 7
        %v6319 = vsub.s32 0, %v6318
        %v6320 = vrot.slane %v6192, %v6319
        %v6353 = vadd.f32 %v5775, %v6196
        %v6354 = vadd.f32 %v5782, %v6200
        %v6355 = vadd.f32 %v5789, %v6204
        %v6356 = vadd.f32 %v5796, %v6208
        %v6357 = vadd.f32 %v5803, %v6212
        %v6358 = vadd.f32 %v5810, %v6216
        %v6359 = vadd.f32 %v5817, %v6220
        %v6360 = vadd.f32 %v5824, %v6224
        %v6361 = vadd.f32 %v5831, %v6228
        %v6362 = vadd.f32 %v5838, %v6232
        %v6363 = vadd.f32 %v5845, %v6236
        %v6364 = vadd.f32 %v5852, %v6240
        %v6365 = vadd.f32 %v5859, %v6244
        %v6366 = vadd.f32 %v5866, %v6248
        %v6367 = vadd.f32 %v5873, %v6252
        %v6368 = vadd.f32 %v5880, %v6256
        %v6369 = vadd.f32 %v5887, %v6260
        %v6370 = vadd.f32 %v5894, %v6264
        %v6371 = vadd.f32 %v5901, %v6268
        %v6372 = vadd.f32 %v5908, %v6272
        %v6373 = vadd.f32 %v5915, %v6276
        %v6374 = vadd.f32 %v5922, %v6280
        %v6375 = vadd.f32 %v5929, %v6284
        %v6376 = vadd.f32 %v5936, %v6288
        %v6377 = vadd.f32 %v5943, %v6292
        %v6378 = vadd.f32 %v5950, %v6296
        %v6379 = vadd.f32 %v5957, %v6300
        %v6380 = vadd.f32 %v5964, %v6304
        %v6381 = vadd.f32 %v5971, %v6308
        %v6382 = vadd.f32 %v5978, %v6312
        %v6383 = vadd.f32 %v5985, %v6316
        %v6384 = vadd.f32 %v5992, %v6320
        %v6385 = vcombine.low %v6353, %v6355
        %v6386 = vcombine.high %v6353, %v6355
        %v6388 = vunpack.c.l.s4 1983009808
        %v6389 = vunpack.c.0.s8 %v6388
        %v6390 = vlaneseq
        %v6391 = vshrl.u32 %v6390, 7
        %v6392 = vsub.s32 %v6389, %v6391
        %v6393 = vrot.slane %v6385, %v6392
        %v6395 = vunpack.c.l.s4 1983009808
        %v6396 = vunpack.c.0.s8 %v6395
        %v6397 = vlaneseq
        %v6398 = vshrl.u32 %v6397, 7
        %v6399 = vsub.s32 %v6396, %v6398
        %v6400 = vrot.slane %v6386, %v6399
        %v6401 = vcombine.low %v6354, %v6356
        %v6402 = vcombine.high %v6354, %v6356
        %v6404 = vunpack.c.l.s4 1983009808
        %v6405 = vunpack.c.0.s8 %v6404
        %v6406 = vlaneseq
        %v6407 = vshrl.u32 %v6406, 7
        %v6408 = vsub.s32 %v6405, %v6407
        %v6409 = vrot.slane %v6401, %v6408
        %v6411 = vunpack.c.l.s4 1983009808
        %v6412 = vunpack.c.0.s8 %v6411
        %v6413 = vlaneseq
        %v6414 = vshrl.u32 %v6413, 7
        %v6415 = vsub.s32 %v6412, %v6414
        %v6416 = vrot.slane %v6402, %v6415
        %v6417 = vcombine.low %v6357, %v6359
        %v6418 = vcombine.high %v6357, %v6359
        %v6420 = vunpack.c.l.s4 1983009808
        %v6421 = vunpack.c.0.s8 %v6420
        %v6422 = vlaneseq
        %v6423 = vshrl.u32 %v6422, 7
        %v6424 = vsub.s32 %v6421, %v6423
        %v6425 = vrot.slane %v6417, %v6424
        %v6427 = vunpack.c.l.s4 1983009808
        %v6428 = vunpack.c.0.s8 %v6427
        %v6429 = vlaneseq
        %v6430 = vshrl.u32 %v6429, 7
        %v6431 = vsub.s32 %v6428, %v6430
        %v6432 = vrot.slane %v6418, %v6431
        %v6433 = vcombine.low %v6358, %v6360
        %v6434 = vcombine.high %v6358, %v6360
        %v6436 = vunpack.c.l.s4 1983009808
        %v6437 = vunpack.c.0.s8 %v6436
        %v6438 = vlaneseq
        %v6439 = vshrl.u32 %v6438, 7
        %v6440 = vsub.s32 %v6437, %v6439
        %v6441 = vrot.slane %v6433, %v6440
        %v6443 = vunpack.c.l.s4 1983009808
        %v6444 = vunpack.c.0.s8 %v6443
        %v6445 = vlaneseq
        %v6446 = vshrl.u32 %v6445, 7
        %v6447 = vsub.s32 %v6444, %v6446
        %v6448 = vrot.slane %v6434, %v6447
        %v6449 = vcombine.low %v6393, %v6409
        %v6450 = vcombine.high %v6393, %v6409
        %v6452 = vunpack.c.l.s4 1934713408
        %v6453 = vunpack.c.0.s8 %v6452
        %v6454 = vlaneseq
        %v6455 = vshrl.u32 %v6454, 7
        %v6456 = vsub.s32 %v6453, %v6455
        %v6457 = vrot.slane %v6449, %v6456
        %v6459 = vunpack.c.l.s4 1934713408
        %v6460 = vunpack.c.0.s8 %v6459
        %v6461 = vlaneseq
        %v6462 = vshrl.u32 %v6461, 7
        %v6463 = vsub.s32 %v6460, %v6462
        %v6464 = vrot.slane %v6450, %v6463
        %v6465 = vcombine.low %v6400, %v6416
        %v6466 = vcombine.high %v6400, %v6416
        %v6468 = vunpack.c.l.s4 1934713408
        %v6469 = vunpack.c.0.s8 %v6468
        %v6470 = vlaneseq
        %v6471 = vshrl.u32 %v6470, 7
        %v6472 = vsub.s32 %v6469, %v6471
        %v6473 = vrot.slane %v6465, %v6472
        %v6475 = vunpack.c.l.s4 1934713408
        %v6476 = vunpack.c.0.s8 %v6475
        %v6477 = vlaneseq
        %v6478 = vshrl.u32 %v6477, 7
        %v6479 = vsub.s32 %v6476, %v6478
        %v6480 = vrot.slane %v6466, %v6479
        %v6481 = vcombine.low %v6425, %v6441
        %v6482 = vcombine.high %v6425, %v6441
        %v6484 = vunpack.c.l.s4 1934713408
        %v6485 = vunpack.c.0.s8 %v6484
        %v6486 = vlaneseq
        %v6487 = vshrl.u32 %v6486, 7
        %v6488 = vsub.s32 %v6485, %v6487
        %v6489 = vrot.slane %v6481, %v6488
        %v6491 = vunpack.c.l.s4 1934713408
        %v6492 = vunpack.c.0.s8 %v6491
        %v6493 = vlaneseq
        %v6494 = vshrl.u32 %v6493, 7
        %v6495 = vsub.s32 %v6492, %v6494
        %v6496 = vrot.slane %v6482, %v6495
        %v6497 = vcombine.low %v6432, %v6448
        %v6498 = vcombine.high %v6432, %v6448
        %v6500 = vunpack.c.l.s4 1934713408
        %v6501 = vunpack.c.0.s8 %v6500
        %v6502 = vlaneseq
        %v6503 = vshrl.u32 %v6502, 7
        %v6504 = vsub.s32 %v6501, %v6503
        %v6505 = vrot.slane %v6497, %v6504
        %v6507 = vunpack.c.l.s4 1934713408
        %v6508 = vunpack.c.0.s8 %v6507
        %v6509 = vlaneseq
        %v6510 = vshrl.u32 %v6509, 7
        %v6511 = vsub.s32 %v6508, %v6510
        %v6512 = vrot.slane %v6498, %v6511
        %v6513 = vcombine.low %v6457, %v6489
        %v6514 = vcombine.high %v6457, %v6489
        %v6515 = vcombine.low %v6464, %v6496
        %v6516 = vcombine.high %v6464, %v6496
        %v6517 = vcombine.low %v6473, %v6505
        %v6518 = vcombine.high %v6473, %v6505
        %v6519 = vcombine.low %v6480, %v6512
        %v6520 = vcombine.high %v6480, %v6512
        %v6521 = vcombine.low %v6361, %v6363
        %v6522 = vcombine.high %v6361, %v6363
        %v6524 = vunpack.c.l.s4 1983009808
        %v6525 = vunpack.c.0.s8 %v6524
        %v6526 = vlaneseq
        %v6527 = vshrl.u32 %v6526, 7
        %v6528 = vsub.s32 %v6525, %v6527
        %v6529 = vrot.slane %v6521, %v6528
        %v6531 = vunpack.c.l.s4 1983009808
        %v6532 = vunpack.c.0.s8 %v6531
        %v6533 = vlaneseq
        %v6534 = vshrl.u32 %v6533, 7
        %v6535 = vsub.s32 %v6532, %v6534
        %v6536 = vrot.slane %v6522, %v6535
        %v6537 = vcombine.low %v6362, %v6364
        %v6538 = vcombine.high %v6362, %v6364
        %v6540 = vunpack.c.l.s4 1983009808
        %v6541 = vunpack.c.0.s8 %v6540
        %v6542 = vlaneseq
        %v6543 = vshrl.u32 %v6542, 7
        %v6544 = vsub.s32 %v6541, %v6543
        %v6545 = vrot.slane %v6537, %v6544
        %v6547 = vunpack.c.l.s4 1983009808
        %v6548 = vunpack.c.0.s8 %v6547
        %v6549 = vlaneseq
        %v6550 = vshrl.u32 %v6549, 7
        %v6551 = vsub.s32 %v6548, %v6550
        %v6552 = vrot.slane %v6538, %v6551
        %v6553 = vcombine.low %v6365, %v6367
        %v6554 = vcombine.high %v6365, %v6367
        %v6556 = vunpack.c.l.s4 1983009808
        %v6557 = vunpack.c.0.s8 %v6556
        %v6558 = vlaneseq
        %v6559 = vshrl.u32 %v6558, 7
        %v6560 = vsub.s32 %v6557, %v6559
        %v6561 = vrot.slane %v6553, %v6560
        %v6563 = vunpack.c.l.s4 1983009808
        %v6564 = vunpack.c.0.s8 %v6563
        %v6565 = vlaneseq
        %v6566 = vshrl.u32 %v6565, 7
        %v6567 = vsub.s32 %v6564, %v6566
        %v6568 = vrot.slane %v6554, %v6567
        %v6569 = vcombine.low %v6366, %v6368
        %v6570 = vcombine.high %v6366, %v6368
        %v6572 = vunpack.c.l.s4 1983009808
        %v6573 = vunpack.c.0.s8 %v6572
        %v6574 = vlaneseq
        %v6575 = vshrl.u32 %v6574, 7
        %v6576 = vsub.s32 %v6573, %v6575
        %v6577 = vrot.slane %v6569, %v6576
        %v6579 = vunpack.c.l.s4 1983009808
        %v6580 = vunpack.c.0.s8 %v6579
        %v6581 = vlaneseq
        %v6582 = vshrl.u32 %v6581, 7
        %v6583 = vsub.s32 %v6580, %v6582
        %v6584 = vrot.slane %v6570, %v6583
        %v6585 = vcombine.low %v6529, %v6545
        %v6586 = vcombine.high %v6529, %v6545
        %v6588 = vunpack.c.l.s4 1934713408
        %v6589 = vunpack.c.0.s8 %v6588
        %v6590 = vlaneseq
        %v6591 = vshrl.u32 %v6590, 7
        %v6592 = vsub.s32 %v6589, %v6591
        %v6593 = vrot.slane %v6585, %v6592
        %v6595 = vunpack.c.l.s4 1934713408
        %v6596 = vunpack.c.0.s8 %v6595
        %v6597 = vlaneseq
        %v6598 = vshrl.u32 %v6597, 7
        %v6599 = vsub.s32 %v6596, %v6598
        %v6600 = vrot.slane %v6586, %v6599
        %v6601 = vcombine.low %v6536, %v6552
        %v6602 = vcombine.high %v6536, %v6552
        %v6604 = vunpack.c.l.s4 1934713408
        %v6605 = vunpack.c.0.s8 %v6604
        %v6606 = vlaneseq
        %v6607 = vshrl.u32 %v6606, 7
        %v6608 = vsub.s32 %v6605, %v6607
        %v6609 = vrot.slane %v6601, %v6608
        %v6611 = vunpack.c.l.s4 1934713408
        %v6612 = vunpack.c.0.s8 %v6611
        %v6613 = vlaneseq
        %v6614 = vshrl.u32 %v6613, 7
        %v6615 = vsub.s32 %v6612, %v6614
        %v6616 = vrot.slane %v6602, %v6615
        %v6617 = vcombine.low %v6561, %v6577
        %v6618 = vcombine.high %v6561, %v6577
        %v6620 = vunpack.c.l.s4 1934713408
        %v6621 = vunpack.c.0.s8 %v6620
        %v6622 = vlaneseq
        %v6623 = vshrl.u32 %v6622, 7
        %v6624 = vsub.s32 %v6621, %v6623
        %v6625 = vrot.slane %v6617, %v6624
        %v6627 = vunpack.c.l.s4 1934713408
        %v6628 = vunpack.c.0.s8 %v6627
        %v6629 = vlaneseq
        %v6630 = vshrl.u32 %v6629, 7
        %v6631 = vsub.s32 %v6628, %v6630
        %v6632 = vrot.slane %v6618, %v6631
        %v6633 = vcombine.low %v6568, %v6584
        %v6634 = vcombine.high %v6568, %v6584
        %v6636 = vunpack.c.l.s4 1934713408
        %v6637 = vunpack.c.0.s8 %v6636
        %v6638 = vlaneseq
        %v6639 = vshrl.u32 %v6638, 7
        %v6640 = vsub.s32 %v6637, %v6639
        %v6641 = vrot.slane %v6633, %v6640
        %v6643 = vunpack.c.l.s4 1934713408
        %v6644 = vunpack.c.0.s8 %v6643
        %v6645 = vlaneseq
        %v6646 = vshrl.u32 %v6645, 7
        %v6647 = vsub.s32 %v6644, %v6646
        %v6648 = vrot.slane %v6634, %v6647
        %v6649 = vcombine.low %v6593, %v6625
        %v6650 = vcombine.high %v6593, %v6625
        %v6651 = vcombine.low %v6600, %v6632
        %v6652 = vcombine.high %v6600, %v6632
        %v6653 = vcombine.low %v6609, %v6641
        %v6654 = vcombine.high %v6609, %v6641
        %v6655 = vcombine.low %v6616, %v6648
        %v6656 = vcombine.high %v6616, %v6648
        %v6657 = vcombine.low %v6369, %v6371
        %v6658 = vcombine.high %v6369, %v6371
        %v6660 = vunpack.c.l.s4 1983009808
        %v6661 = vunpack.c.0.s8 %v6660
        %v6662 = vlaneseq
        %v6663 = vshrl.u32 %v6662, 7
        %v6664 = vsub.s32 %v6661, %v6663
        %v6665 = vrot.slane %v6657, %v6664
        %v6667 = vunpack.c.l.s4 1983009808
        %v6668 = vunpack.c.0.s8 %v6667
        %v6669 = vlaneseq
        %v6670 = vshrl.u32 %v6669, 7
        %v6671 = vsub.s32 %v6668, %v6670
        %v6672 = vrot.slane %v6658, %v6671
        %v6673 = vcombine.low %v6370, %v6372
        %v6674 = vcombine.high %v6370, %v6372
        %v6676 = vunpack.c.l.s4 1983009808
        %v6677 = vunpack.c.0.s8 %v6676
        %v6678 = vlaneseq
        %v6679 = vshrl.u32 %v6678, 7
        %v6680 = vsub.s32 %v6677, %v6679
        %v6681 = vrot.slane %v6673, %v6680
        %v6683 = vunpack.c.l.s4 1983009808
        %v6684 = vunpack.c.0.s8 %v6683
        %v6685 = vlaneseq
        %v6686 = vshrl.u32 %v6685, 7
        %v6687 = vsub.s32 %v6684, %v6686
        %v6688 = vrot.slane %v6674, %v6687
        %v6689 = vcombine.low %v6373, %v6375
        %v6690 = vcombine.high %v6373, %v6375
        %v6692 = vunpack.c.l.s4 1983009808
        %v6693 = vunpack.c.0.s8 %v6692
        %v6694 = vlaneseq
        %v6695 = vshrl.u32 %v6694, 7
        %v6696 = vsub.s32 %v6693, %v6695
        %v6697 = vrot.slane %v6689, %v6696
        %v6699 = vunpack.c.l.s4 1983009808
        %v6700 = vunpack.c.0.s8 %v6699
        %v6701 = vlaneseq
        %v6702 = vshrl.u32 %v6701, 7
        %v6703 = vsub.s32 %v6700, %v6702
        %v6704 = vrot.slane %v6690, %v6703
        %v6705 = vcombine.low %v6374, %v6376
        %v6706 = vcombine.high %v6374, %v6376
        %v6708 = vunpack.c.l.s4 1983009808
        %v6709 = vunpack.c.0.s8 %v6708
        %v6710 = vlaneseq
        %v6711 = vshrl.u32 %v6710, 7
        %v6712 = vsub.s32 %v6709, %v6711
        %v6713 = vrot.slane %v6705, %v6712
        %v6715 = vunpack.c.l.s4 1983009808
        %v6716 = vunpack.c.0.s8 %v6715
        %v6717 = vlaneseq
        %v6718 = vshrl.u32 %v6717, 7
        %v6719 = vsub.s32 %v6716, %v6718
        %v6720 = vrot.slane %v6706, %v6719
        %v6721 = vcombine.low %v6665, %v6681
        %v6722 = vcombine.high %v6665, %v6681
        %v6724 = vunpack.c.l.s4 1934713408
        %v6725 = vunpack.c.0.s8 %v6724
        %v6726 = vlaneseq
        %v6727 = vshrl.u32 %v6726, 7
        %v6728 = vsub.s32 %v6725, %v6727
        %v6729 = vrot.slane %v6721, %v6728
        %v6731 = vunpack.c.l.s4 1934713408
        %v6732 = vunpack.c.0.s8 %v6731
        %v6733 = vlaneseq
        %v6734 = vshrl.u32 %v6733, 7
        %v6735 = vsub.s32 %v6732, %v6734
        %v6736 = vrot.slane %v6722, %v6735
        %v6737 = vcombine.low %v6672, %v6688
        %v6738 = vcombine.high %v6672, %v6688
        %v6740 = vunpack.c.l.s4 1934713408
        %v6741 = vunpack.c.0.s8 %v6740
        %v6742 = vlaneseq
        %v6743 = vshrl.u32 %v6742, 7
        %v6744 = vsub.s32 %v6741, %v6743
        %v6745 = vrot.slane %v6737, %v6744
        %v6747 = vunpack.c.l.s4 1934713408
        %v6748 = vunpack.c.0.s8 %v6747
        %v6749 = vlaneseq
        %v6750 = vshrl.u32 %v6749, 7
        %v6751 = vsub.s32 %v6748, %v6750
        %v6752 = vrot.slane %v6738, %v6751
        %v6753 = vcombine.low %v6697, %v6713
        %v6754 = vcombine.high %v6697, %v6713
        %v6756 = vunpack.c.l.s4 1934713408
        %v6757 = vunpack.c.0.s8 %v6756
        %v6758 = vlaneseq
        %v6759 = vshrl.u32 %v6758, 7
        %v6760 = vsub.s32 %v6757, %v6759
        %v6761 = vrot.slane %v6753, %v6760
        %v6763 = vunpack.c.l.s4 1934713408
        %v6764 = vunpack.c.0.s8 %v6763
        %v6765 = vlaneseq
        %v6766 = vshrl.u32 %v6765, 7
        %v6767 = vsub.s32 %v6764, %v6766
        %v6768 = vrot.slane %v6754, %v6767
        %v6769 = vcombine.low %v6704, %v6720
        %v6770 = vcombine.high %v6704, %v6720
        %v6772 = vunpack.c.l.s4 1934713408
        %v6773 = vunpack.c.0.s8 %v6772
        %v6774 = vlaneseq
        %v6775 = vshrl.u32 %v6774, 7
        %v6776 = vsub.s32 %v6773, %v6775
        %v6777 = vrot.slane %v6769, %v6776
        %v6779 = vunpack.c.l.s4 1934713408
        %v6780 = vunpack.c.0.s8 %v6779
        %v6781 = vlaneseq
        %v6782 = vshrl.u32 %v6781, 7
        %v6783 = vsub.s32 %v6780, %v6782
        %v6784 = vrot.slane %v6770, %v6783
        %v6785 = vcombine.low %v6729, %v6761
        %v6786 = vcombine.high %v6729, %v6761
        %v6787 = vcombine.low %v6736, %v6768
        %v6788 = vcombine.high %v6736, %v6768
        %v6789 = vcombine.low %v6745, %v6777
        %v6790 = vcombine.high %v6745, %v6777
        %v6791 = vcombine.low %v6752, %v6784
        %v6792 = vcombine.high %v6752, %v6784
        %v6793 = vcombine.low %v6377, %v6379
        %v6794 = vcombine.high %v6377, %v6379
        %v6796 = vunpack.c.l.s4 1983009808
        %v6797 = vunpack.c.0.s8 %v6796
        %v6798 = vlaneseq
        %v6799 = vshrl.u32 %v6798, 7
        %v6800 = vsub.s32 %v6797, %v6799
        %v6801 = vrot.slane %v6793, %v6800
        %v6803 = vunpack.c.l.s4 1983009808
        %v6804 = vunpack.c.0.s8 %v6803
        %v6805 = vlaneseq
        %v6806 = vshrl.u32 %v6805, 7
        %v6807 = vsub.s32 %v6804, %v6806
        %v6808 = vrot.slane %v6794, %v6807
        %v6809 = vcombine.low %v6378, %v6380
        %v6810 = vcombine.high %v6378, %v6380
        %v6812 = vunpack.c.l.s4 1983009808
        %v6813 = vunpack.c.0.s8 %v6812
        %v6814 = vlaneseq
        %v6815 = vshrl.u32 %v6814, 7
        %v6816 = vsub.s32 %v6813, %v6815
        %v6817 = vrot.slane %v6809, %v6816
        %v6819 = vunpack.c.l.s4 1983009808
        %v6820 = vunpack.c.0.s8 %v6819
        %v6821 = vlaneseq
        %v6822 = vshrl.u32 %v6821, 7
        %v6823 = vsub.s32 %v6820, %v6822
        %v6824 = vrot.slane %v6810, %v6823
        %v6825 = vcombine.low %v6381, %v6383
        %v6826 = vcombine.high %v6381, %v6383
        %v6828 = vunpack.c.l.s4 1983009808
        %v6829 = vunpack.c.0.s8 %v6828
        %v6830 = vlaneseq
        %v6831 = vshrl.u32 %v6830, 7
        %v6832 = vsub.s32 %v6829, %v6831
        %v6833 = vrot.slane %v6825, %v6832
        %v6835 = vunpack.c.l.s4 1983009808
        %v6836 = vunpack.c.0.s8 %v6835
        %v6837 = vlaneseq
        %v6838 = vshrl.u32 %v6837, 7
        %v6839 = vsub.s32 %v6836, %v6838
        %v6840 = vrot.slane %v6826, %v6839
        %v6841 = vcombine.low %v6382, %v6384
        %v6842 = vcombine.high %v6382, %v6384
        %v6844 = vunpack.c.l.s4 1983009808
        %v6845 = vunpack.c.0.s8 %v6844
        %v6846 = vlaneseq
        %v6847 = vshrl.u32 %v6846, 7
        %v6848 = vsub.s32 %v6845, %v6847
        %v6849 = vrot.slane %v6841, %v6848
        %v6851 = vunpack.c.l.s4 1983009808
        %v6852 = vunpack.c.0.s8 %v6851
        %v6853 = vlaneseq
        %v6854 = vshrl.u32 %v6853, 7
        %v6855 = vsub.s32 %v6852, %v6854
        %v6856 = vrot.slane %v6842, %v6855
        %v6857 = vcombine.low %v6801, %v6817
        %v6858 = vcombine.high %v6801, %v6817
        %v6860 = vunpack.c.l.s4 1934713408
        %v6861 = vunpack.c.0.s8 %v6860
        %v6862 = vlaneseq
        %v6863 = vshrl.u32 %v6862, 7
        %v6864 = vsub.s32 %v6861, %v6863
        %v6865 = vrot.slane %v6857, %v6864
        %v6867 = vunpack.c.l.s4 1934713408
        %v6868 = vunpack.c.0.s8 %v6867
        %v6869 = vlaneseq
        %v6870 = vshrl.u32 %v6869, 7
        %v6871 = vsub.s32 %v6868, %v6870
        %v6872 = vrot.slane %v6858, %v6871
        %v6873 = vcombine.low %v6808, %v6824
        %v6874 = vcombine.high %v6808, %v6824
        %v6876 = vunpack.c.l.s4 1934713408
        %v6877 = vunpack.c.0.s8 %v6876
        %v6878 = vlaneseq
        %v6879 = vshrl.u32 %v6878, 7
        %v6880 = vsub.s32 %v6877, %v6879
        %v6881 = vrot.slane %v6873, %v6880
        %v6883 = vunpack.c.l.s4 1934713408
        %v6884 = vunpack.c.0.s8 %v6883
        %v6885 = vlaneseq
        %v6886 = vshrl.u32 %v6885, 7
        %v6887 = vsub.s32 %v6884, %v6886
        %v6888 = vrot.slane %v6874, %v6887
        %v6889 = vcombine.low %v6833, %v6849
        %v6890 = vcombine.high %v6833, %v6849
        %v6892 = vunpack.c.l.s4 1934713408
        %v6893 = vunpack.c.0.s8 %v6892
        %v6894 = vlaneseq
        %v6895 = vshrl.u32 %v6894, 7
        %v6896 = vsub.s32 %v6893, %v6895
        %v6897 = vrot.slane %v6889, %v6896
        %v6899 = vunpack.c.l.s4 1934713408
        %v6900 = vunpack.c.0.s8 %v6899
        %v6901 = vlaneseq
        %v6902 = vshrl.u32 %v6901, 7
        %v6903 = vsub.s32 %v6900, %v6902
        %v6904 = vrot.slane %v6890, %v6903
        %v6905 = vcombine.low %v6840, %v6856
        %v6906 = vcombine.high %v6840, %v6856
        %v6908 = vunpack.c.l.s4 1934713408
        %v6909 = vunpack.c.0.s8 %v6908
        %v6910 = vlaneseq
        %v6911 = vshrl.u32 %v6910, 7
        %v6912 = vsub.s32 %v6909, %v6911
        %v6913 = vrot.slane %v6905, %v6912
        %v6915 = vunpack.c.l.s4 1934713408
        %v6916 = vunpack.c.0.s8 %v6915
        %v6917 = vlaneseq
        %v6918 = vshrl.u32 %v6917, 7
        %v6919 = vsub.s32 %v6916, %v6918
        %v6920 = vrot.slane %v6906, %v6919
        %v6921 = vcombine.low %v6865, %v6897
        %v6922 = vcombine.high %v6865, %v6897
        %v6923 = vcombine.low %v6872, %v6904
        %v6924 = vcombine.high %v6872, %v6904
        %v6925 = vcombine.low %v6881, %v6913
        %v6926 = vcombine.high %v6881, %v6913
        %v6927 = vcombine.low %v6888, %v6920
        %v6928 = vcombine.high %v6888, %v6920
        %6933 = vrot.lane.b32.xlu0 %v6514, 8
        %v6934 = vpop.permute.xlu0 %6933
        %6935 = vrot.lane.b32.xlu0 %v6650, 8
        %v6936 = vpop.permute.xlu0 %6935
        %6937 = vrot.lane.b32.xlu0 %v6786, 8
        %v6938 = vpop.permute.xlu0 %6937
        %6939 = vrot.lane.b32.xlu0 %v6922, 8
        %v6940 = vpop.permute.xlu0 %6939
        %6949 = vrot.lane.b32.xlu0 %v6515, 16
        %v6950 = vpop.permute.xlu0 %6949
        %6951 = vrot.lane.b32.xlu0 %v6651, 16
        %v6952 = vpop.permute.xlu0 %6951
        %6953 = vrot.lane.b32.xlu0 %v6787, 16
        %v6954 = vpop.permute.xlu0 %6953
        %6955 = vrot.lane.b32.xlu0 %v6923, 16
        %v6956 = vpop.permute.xlu0 %6955
        %6965 = vrot.lane.b32.xlu0 %v6516, 24
        %v6966 = vpop.permute.xlu0 %6965
        %6967 = vrot.lane.b32.xlu0 %v6652, 24
        %v6968 = vpop.permute.xlu0 %6967
        %6969 = vrot.lane.b32.xlu0 %v6788, 24
        %v6970 = vpop.permute.xlu0 %6969
        %6971 = vrot.lane.b32.xlu0 %v6924, 24
        %v6972 = vpop.permute.xlu0 %6971
        %6981 = vrot.lane.b32.xlu0 %v6517, 32
        %v6982 = vpop.permute.xlu0 %6981
        %6983 = vrot.lane.b32.xlu0 %v6653, 32
        %v6984 = vpop.permute.xlu0 %6983
        %6985 = vrot.lane.b32.xlu0 %v6789, 32
        %v6986 = vpop.permute.xlu0 %6985
        %6987 = vrot.lane.b32.xlu0 %v6925, 32
        %v6988 = vpop.permute.xlu0 %6987
        %6997 = vrot.lane.b32.xlu0 %v6518, 40
        %v6998 = vpop.permute.xlu0 %6997
        %6999 = vrot.lane.b32.xlu0 %v6654, 40
        %v7000 = vpop.permute.xlu0 %6999
        %7001 = vrot.lane.b32.xlu0 %v6790, 40
        %v7002 = vpop.permute.xlu0 %7001
        %7003 = vrot.lane.b32.xlu0 %v6926, 40
        %v7004 = vpop.permute.xlu0 %7003
        %7013 = vrot.lane.b32.xlu0 %v6519, 48
        %v7014 = vpop.permute.xlu0 %7013
        %7015 = vrot.lane.b32.xlu0 %v6655, 48
        %v7016 = vpop.permute.xlu0 %7015
        %7017 = vrot.lane.b32.xlu0 %v6791, 48
        %v7018 = vpop.permute.xlu0 %7017
        %7019 = vrot.lane.b32.xlu0 %v6927, 48
        %v7020 = vpop.permute.xlu0 %7019
        %7029 = vrot.lane.b32.xlu0 %v6520, 56
        %v7030 = vpop.permute.xlu0 %7029
        %7031 = vrot.lane.b32.xlu0 %v6656, 56
        %v7032 = vpop.permute.xlu0 %7031
        %7033 = vrot.lane.b32.xlu0 %v6792, 56
        %v7034 = vpop.permute.xlu0 %7033
        %7035 = vrot.lane.b32.xlu0 %v6928, 56
        %v7036 = vpop.permute.xlu0 %7035
        %v7041 = vsel %vm698, %v6513, %v6934
        %v7042 = vsel %vm698, %v6649, %v6936
        %v7043 = vsel %vm698, %v6785, %v6938
        %v7044 = vsel %vm698, %v6921, %v6940
        %v7045 = vsel %vm2671, %v7041, %v6950
        %v7046 = vsel %vm2671, %v7042, %v6952
        %v7047 = vsel %vm2671, %v7043, %v6954
        %v7048 = vsel %vm2671, %v7044, %v6956
        %v7049 = vsel %vm2676, %v7045, %v6966
        %v7050 = vsel %vm2676, %v7046, %v6968
        %v7051 = vsel %vm2676, %v7047, %v6970
        %v7052 = vsel %vm2676, %v7048, %v6972
        %v7053 = vsel %vm610, %v7049, %v6982
        %v7054 = vsel %vm610, %v7050, %v6984
        %v7055 = vsel %vm610, %v7051, %v6986
        %v7056 = vsel %vm610, %v7052, %v6988
        %v7057 = vsel %vm2685, %v7053, %v6998
        %v7058 = vsel %vm2685, %v7054, %v7000
        %v7059 = vsel %vm2685, %v7055, %v7002
        %v7060 = vsel %vm2685, %v7056, %v7004
        %v7061 = vsel %vm2690, %v7057, %v7014
        %v7062 = vsel %vm2690, %v7058, %v7016
        %v7063 = vsel %vm2690, %v7059, %v7018
        %v7064 = vsel %vm2690, %v7060, %v7020
        %v7065 = vsel %vm2695, %v7061, %v7030
        %v7066 = vsel %vm2695, %v7062, %v7032
        %v7067 = vsel %vm2695, %v7063, %v7034
        %v7068 = vsel %vm2695, %v7064, %v7036
        %7069 = vrot.lane.b32.xlu0 %v666, 112
        %v7070 = vpop.permute.xlu0 %7069
        %7071 = vrot.lane.b32.xlu0 %v667, 112
        %v7072 = vpop.permute.xlu0 %7071
        %v7081 = vunpack.c.l.b16 %v5093
        %v7082 = vunpack.c.l.b16 %v5094
        %v7083 = vunpack.c.l.b16 %v5095
        %v7084 = vunpack.c.l.b16 %v5096
        %v7085 = vunpack.c.l.b16 %v5097
        %v7086 = vunpack.c.l.b16 %v5098
        %v7087 = vunpack.c.l.b16 %v5099
        %v7088 = vunpack.c.l.b16 %v5100
        %v7089 = vpack.c.b16 %v7082, %v7081
        %v7090 = vpack.c.b16 %v7084, %v7083
        %v7091 = vpack.c.b16 %v7086, %v7085
        %v7092 = vpack.c.b16 %v7088, %v7087
        %7093 = vrot.lane.b32.xlu0 %v7089, 112
        %v7094 = vpop.permute.xlu0 %7093
        %7095 = vrot.lane.b32.xlu0 %v7090, 112
        %v7096 = vpop.permute.xlu0 %7095
        %7097 = vrot.lane.b32.xlu0 %v7091, 112
        %v7098 = vpop.permute.xlu0 %7097
        %7099 = vrot.lane.b32.xlu0 %v7092, 112
        %v7100 = vpop.permute.xlu0 %7099
        %v7102 = vsel %vm698, %v7070, 0
        %v7105 = vsel %vm698, %v7072, 0
        %v7108 = vsel %vm698, %v7094, 0
        %v7111 = vsel %vm698, %v7096, 0
        %v7114 = vsel %vm698, %v7098, 0
        %v7117 = vsel %vm698, %v7100, 0
        %7119 = vmatprep.subr.bf16.mxu0 0
        %7120 = vmatpush1.bf16.xpose.msra.mxu0 0
        %7121 = vmatprep.subr.bf16.mxu0 0
        %7122 = vmatpush1.bf16.xpose.msra.mxu0 0
        %7123 = vmatprep.subr.bf16.mxu0 0
        %7124 = vmatpush1.bf16.xpose.msra.mxu0 0
        %7125 = vmatprep.subr.bf16.mxu0 0
        %7126 = vmatpush1.bf16.xpose.msra.mxu0 0
        %7127 = vmatprep.subr.bf16.mxu0 0
        %7128 = vmatpush1.bf16.xpose.msra.mxu0 %v7117
        %7129 = vmatprep.subr.bf16.mxu0 0
        %7130 = vmatpush1.bf16.xpose.msra.mxu0 %v7114
        %7131 = vmatprep.subr.bf16.mxu0 0
        %7132 = vmatpush1.bf16.xpose.msra.mxu0 %v7111
        %7133 = vmatprep.subr.bf16.mxu0 0
        %7134 = vmatpush1.bf16.xpose.msra.mxu0 %v7108
        %7135 = vmatprep.subr.bf16.mxu0 0
        %7136 = vmatpush2.bf16.xpose.msra.mxu0 0
        %7137 = vmatprep.subr.bf16.mxu0 0
        %7138 = vmatpush2.bf16.xpose.msra.mxu0 0
        %7139 = vmatprep.subr.bf16.mxu0 0
        %7140 = vmatpush2.bf16.xpose.msra.mxu0 0
        %7141 = vmatprep.subr.bf16.mxu0 0
        %7142 = vmatpush2.bf16.xpose.msra.mxu0 0
        %7143 = vmatprep.subr.bf16.mxu0 0
        %7144 = vmatpush2.bf16.xpose.msra.mxu0 0
        %7145 = vmatprep.subr.bf16.mxu0 0
        %7146 = vmatpush2.bf16.xpose.msra.mxu0 0
        %7147 = vmatprep.subr.bf16.mxu0 0
        %7148 = vmatpush2.bf16.xpose.msra.mxu0 0
        %7149 = vmatprep.subr.bf16.mxu0 0
        %7150 = vmatpush2.bf16.xpose.msra.mxu0 0
        %7151 = vmatprep.mubr.bf16.mxu0 0
        %7152 = vmatmul.mubr.bf16.gmra.mxu0 %v7102
        %v7153 = vpop.f32.mrf.mxu0
        %v7154 = vadd.f32 %v7065, %v7153
        %v7155 = vpop.f32.mrf.mxu0
        %v7156 = vpop.f32.mrf.mxu0
        %v7157 = vadd.f32 %v7066, %v7156
        %v7158 = vpop.f32.mrf.mxu0
        %7159 = vmatprep.mubr.bf16.mxu0 0
        %7160 = vmatmul.mubr.bf16.gmra.mxu0 %v7105
        %v7161 = vpop.f32.mrf.mxu0
        %v7162 = vadd.f32 %v7067, %v7161
        %v7163 = vpop.f32.mrf.mxu0
        %v7164 = vpop.f32.mrf.mxu0
        %v7165 = vadd.f32 %v7068, %v7164
        %v7166 = vpop.f32.mrf.mxu0
        %7167 = vdwg.mxu0
        %v7168 = vsel %vm2787, %v7154, -inf
        %7169 = vmax.xlane.f32.xlu0 %v7168
        %v7170 = vpop.xlane.xlu0 %7169
        %v7171 = vsel %vm2787, %v7157, -inf
        %7172 = vmax.xlane.f32.xlu0 %v7171
        %v7173 = vpop.xlane.xlu0 %7172
        %v7174 = vsel %vm2787, %v7162, -inf
        %7175 = vmax.xlane.f32.xlu0 %v7174
        %v7176 = vpop.xlane.xlu0 %7175
        %v7177 = vsel %vm2787, %v7165, -inf
        %7178 = vmax.xlane.f32.xlu0 %v7177
        %v7179 = vpop.xlane.xlu0 %7178
        %v7180 = vsub.f32 %v7154, %v7170
        %v7181 = vsub.f32 %v7157, %v7173
        %v7182 = vsub.f32 %v7162, %v7176
        %v7183 = vsub.f32 %v7165, %v7179
        %v7184 = vmul.f32 %v7180, 1.442695
        %v7185 = vpow.pop %v7184
        %v7186 = vmul.f32 %v7181, 1.442695
        %v7187 = vpow.pop %v7186
        %v7188 = vmul.f32 %v7182, 1.442695
        %v7189 = vpow.pop %v7188
        %v7190 = vmul.f32 %v7183, 1.442695
        %v7191 = vpow.pop %v7190
        %v7192 = vsel %vm2787, %v7185, 0.0
        %7193 = vadd.xlane.f32.xlu0 %v7192
        %v7194 = vpop.xlane.xlu0 %7193
        %v7195 = vsel %vm2787, %v7187, 0.0
        %7196 = vadd.xlane.f32.xlu0 %v7195
        %v7197 = vpop.xlane.xlu0 %7196
        %v7198 = vsel %vm2787, %v7189, 0.0
        %7199 = vadd.xlane.f32.xlu0 %v7198
        %v7200 = vpop.xlane.xlu0 %7199
        %v7201 = vsel %vm2787, %v7191, 0.0
        %7202 = vadd.xlane.f32.xlu0 %v7201
        %v7203 = vpop.xlane.xlu0 %7202
        %v7204 = vpack.c.bf16 %v7187, %v7185
        %v7205 = vpack.c.bf16 %v7191, %v7189
        %7206 = vrot.lane.b32.xlu0 %v7089, 80
        %v7207 = vpop.permute.xlu0 %7206
        %7208 = vrot.lane.b32.xlu0 %v7090, 80
        %v7209 = vpop.permute.xlu0 %7208
        %7210 = vrot.lane.b32.xlu0 %v7091, 80
        %v7211 = vpop.permute.xlu0 %7210
        %7212 = vrot.lane.b32.xlu0 %v7092, 80
        %v7213 = vpop.permute.xlu0 %7212
        %v7219 = vsel %vm2787, %v7204, 0
        %v7222 = vsel %vm2787, %v7205, 0
        %7224 = vmatprep.subr.bf16.mxu0 0
        %7225 = vmatpush1.bf16.msra.mxu0 0
        %7226 = vmatprep.subr.bf16.mxu0 0
        %7227 = vmatpush1.bf16.msra.mxu0 0
        %7228 = vmatprep.subr.bf16.mxu0 0
        %7229 = vmatpush1.bf16.msra.mxu0 0
        %7230 = vmatprep.subr.bf16.mxu0 0
        %7231 = vmatpush1.bf16.msra.mxu0 0
        %7232 = vmatprep.subr.bf16.mxu0 0
        %7233 = vmatpush1.bf16.msra.mxu0 %v7213
        %7234 = vmatprep.subr.bf16.mxu0 0
        %7235 = vmatpush1.bf16.msra.mxu0 %v7211
        %7236 = vmatprep.subr.bf16.mxu0 0
        %7237 = vmatpush1.bf16.msra.mxu0 %v7209
        %7238 = vmatprep.subr.bf16.mxu0 0
        %7239 = vmatpush1.bf16.msra.mxu0 %v7207
        %7240 = vmatprep.subr.bf16.mxu0 0
        %7241 = vmatpush2.bf16.msra.mxu0 0
        %7242 = vmatprep.subr.bf16.mxu0 0
        %7243 = vmatpush2.bf16.msra.mxu0 0
        %7244 = vmatprep.subr.bf16.mxu0 0
        %7245 = vmatpush2.bf16.msra.mxu0 0
        %7246 = vmatprep.subr.bf16.mxu0 0
        %7247 = vmatpush2.bf16.msra.mxu0 0
        %7248 = vmatprep.subr.bf16.mxu0 0
        %7249 = vmatpush2.bf16.msra.mxu0 0
        %7250 = vmatprep.subr.bf16.mxu0 0
        %7251 = vmatpush2.bf16.msra.mxu0 0
        %7252 = vmatprep.subr.bf16.mxu0 0
        %7253 = vmatpush2.bf16.msra.mxu0 0
        %7254 = vmatprep.subr.bf16.mxu0 0
        %7255 = vmatpush2.bf16.msra.mxu0 0
        %7256 = vmatprep.mubr.bf16.mxu0 0
        %7257 = vmatmul.mubr.bf16.gmra.mxu0 %v7219
        %v7258 = vpop.f32.mrf.mxu0
        %v7259 = vadd.f32 0.0, %v7258
        %v7260 = vpop.f32.mrf.mxu0
        %v7261 = vpop.f32.mrf.mxu0
        %v7262 = vadd.f32 0.0, %v7261
        %v7263 = vpop.f32.mrf.mxu0
        %7264 = vmatprep.mubr.bf16.mxu0 0
        %7265 = vmatmul.mubr.bf16.gmra.mxu0 %v7222
        %v7266 = vpop.f32.mrf.mxu0
        %v7267 = vadd.f32 0.0, %v7266
        %v7268 = vpop.f32.mrf.mxu0
        %v7269 = vpop.f32.mrf.mxu0
        %v7270 = vadd.f32 0.0, %v7269
        %v7271 = vpop.f32.mrf.mxu0
        %7272 = vdwg.mxu0
        %v7273 = vrcp.pop %v7194
        %v7274 = vrcp.pop %v7197
        %v7275 = vrcp.pop %v7200
        %v7276 = vrcp.pop %v7203
        %v7277 = vmul.f32 %v7259, %v7273
        %v7278 = vmul.f32 %v7262, %v7274
        %v7279 = vmul.f32 %v7267, %v7275
        %v7280 = vmul.f32 %v7270, %v7276
        %v7281 = vpack.c.bf16 %v7278, %v7277
        %v7282 = vpack.c.bf16 %v7280, %v7279
        %v7283 = vld [vmem:[#allocation2] sm:$0xf]
        %v7284 = vld [vmem:[#allocation2 + $0x4] sm:$0xf]
        %v7285 = vld [vmem:[#allocation2 + $0x8] sm:$0xf]
        %v7286 = vld [vmem:[#allocation2 + $0xc] sm:$0xf]
        %v7287 = vld [vmem:[#allocation2 + $0x10] sm:$0xf]
        %v7288 = vld [vmem:[#allocation2 + $0x14] sm:$0xf]
        %v7289 = vld [vmem:[#allocation2 + $0x18] sm:$0xf]
        %v7290 = vld [vmem:[#allocation2 + $0x1c] sm:$0xf]
        %7291 = vrot.lane.b32.xlu0 %v694, 104
        %v7292 = vpop.permute.xlu0 %7291
        %v7294 = vsel %vm698, %v7292, 0
        %7296 = vmatprep.subr.bf16.mxu0 0
        %7297 = vmatpush1.bf16.xpose.msra.mxu0 0
        %7298 = vmatprep.subr.bf16.mxu0 0
        %7299 = vmatpush1.bf16.xpose.msra.mxu0 0
        %7300 = vmatprep.subr.bf16.mxu0 0
        %7301 = vmatpush1.bf16.xpose.msra.mxu0 0
        %7302 = vmatprep.subr.bf16.mxu0 0
        %7303 = vmatpush1.bf16.xpose.msra.mxu0 0
        %7304 = vmatprep.subr.bf16.mxu0 0
        %7305 = vmatpush1.bf16.xpose.msra.mxu0 0
        %7306 = vmatprep.subr.bf16.mxu0 0
        %7307 = vmatpush1.bf16.xpose.msra.mxu0 0
        %7308 = vmatprep.subr.bf16.mxu0 0
        %7309 = vmatpush1.bf16.xpose.msra.mxu0 0
        %7310 = vmatprep.subr.bf16.mxu0 0
        %7311 = vmatpush1.bf16.xpose.msra.mxu0 %v703
        %7312 = vmatprep.subr.bf16.mxu0 0
        %7313 = vmatpush2.bf16.xpose.msra.mxu0 0
        %7314 = vmatprep.subr.bf16.mxu0 0
        %7315 = vmatpush2.bf16.xpose.msra.mxu0 0
        %7316 = vmatprep.subr.bf16.mxu0 0
        %7317 = vmatpush2.bf16.xpose.msra.mxu0 0
        %7318 = vmatprep.subr.bf16.mxu0 0
        %7319 = vmatpush2.bf16.xpose.msra.mxu0 0
        %7320 = vmatprep.subr.bf16.mxu0 0
        %7321 = vmatpush2.bf16.xpose.msra.mxu0 0
        %7322 = vmatprep.subr.bf16.mxu0 0
        %7323 = vmatpush2.bf16.xpose.msra.mxu0 0
        %7324 = vmatprep.subr.bf16.mxu0 0
        %7325 = vmatpush2.bf16.xpose.msra.mxu0 0
        %7326 = vmatprep.subr.bf16.mxu0 0
        %7327 = vmatpush2.bf16.xpose.msra.mxu0 0
        %7328 = vmatprep.mubr.bf16.mxu0 0
        %7329 = vmatmul.mubr.bf16.gmra.mxu0 %v7294
        %v7330 = vpop.f32.mrf.mxu0
        %v7331 = vadd.f32 0.0, %v7330
        %v7332 = vpop.f32.mrf.mxu0
        %v7333 = vpop.f32.mrf.mxu0
        %v7334 = vpop.f32.mrf.mxu0
        %7335 = vdwg.mxu0
        %7336 = vrot.lane.b32.xlu0 %v695, 104
        %v7337 = vpop.permute.xlu0 %7336
        %v7339 = vsel %vm698, %v7337, 0
        %7341 = vmatprep.subr.bf16.mxu0 0
        %7342 = vmatpush1.bf16.xpose.msra.mxu0 0
        %7343 = vmatprep.subr.bf16.mxu0 0
        %7344 = vmatpush1.bf16.xpose.msra.mxu0 0
        %7345 = vmatprep.subr.bf16.mxu0 0
        %7346 = vmatpush1.bf16.xpose.msra.mxu0 0
        %7347 = vmatprep.subr.bf16.mxu0 0
        %7348 = vmatpush1.bf16.xpose.msra.mxu0 0
        %7349 = vmatprep.subr.bf16.mxu0 0
        %7350 = vmatpush1.bf16.xpose.msra.mxu0 0
        %7351 = vmatprep.subr.bf16.mxu0 0
        %7352 = vmatpush1.bf16.xpose.msra.mxu0 0
        %7353 = vmatprep.subr.bf16.mxu0 0
        %7354 = vmatpush1.bf16.xpose.msra.mxu0 0
        %7355 = vmatprep.subr.bf16.mxu0 0
        %7356 = vmatpush1.bf16.xpose.msra.mxu0 %v749
        %7357 = vmatprep.subr.bf16.mxu0 0
        %7358 = vmatpush2.bf16.xpose.msra.mxu0 0
        %7359 = vmatprep.subr.bf16.mxu0 0
        %7360 = vmatpush2.bf16.xpose.msra.mxu0 0
        %7361 = vmatprep.subr.bf16.mxu0 0
        %7362 = vmatpush2.bf16.xpose.msra.mxu0 0
        %7363 = vmatprep.subr.bf16.mxu0 0
        %7364 = vmatpush2.bf16.xpose.msra.mxu0 0
        %7365 = vmatprep.subr.bf16.mxu0 0
        %7366 = vmatpush2.bf16.xpose.msra.mxu0 0
        %7367 = vmatprep.subr.bf16.mxu0 0
        %7368 = vmatpush2.bf16.xpose.msra.mxu0 0
        %7369 = vmatprep.subr.bf16.mxu0 0
        %7370 = vmatpush2.bf16.xpose.msra.mxu0 0
        %7371 = vmatprep.subr.bf16.mxu0 0
        %7372 = vmatpush2.bf16.xpose.msra.mxu0 0
        %7373 = vmatprep.mubr.bf16.mxu0 0
        %7374 = vmatmul.mubr.bf16.gmra.mxu0 %v7339
        %v7375 = vpop.f32.mrf.mxu0
        %v7376 = vadd.f32 0.0, %v7375
        %v7377 = vpop.f32.mrf.mxu0
        %v7378 = vpop.f32.mrf.mxu0
        %v7379 = vpop.f32.mrf.mxu0
        %7380 = vdwg.mxu0
        %7381 = vrot.lane.b32.xlu0 %v696, 104
        %v7382 = vpop.permute.xlu0 %7381
        %v7384 = vsel %vm698, %v7382, 0
        %7386 = vmatprep.subr.bf16.mxu0 0
        %7387 = vmatpush1.bf16.xpose.msra.mxu0 0
        %7388 = vmatprep.subr.bf16.mxu0 0
        %7389 = vmatpush1.bf16.xpose.msra.mxu0 0
        %7390 = vmatprep.subr.bf16.mxu0 0
        %7391 = vmatpush1.bf16.xpose.msra.mxu0 0
        %7392 = vmatprep.subr.bf16.mxu0 0
        %7393 = vmatpush1.bf16.xpose.msra.mxu0 0
        %7394 = vmatprep.subr.bf16.mxu0 0
        %7395 = vmatpush1.bf16.xpose.msra.mxu0 0
        %7396 = vmatprep.subr.bf16.mxu0 0
        %7397 = vmatpush1.bf16.xpose.msra.mxu0 0
        %7398 = vmatprep.subr.bf16.mxu0 0
        %7399 = vmatpush1.bf16.xpose.msra.mxu0 0
        %7400 = vmatprep.subr.bf16.mxu0 0
        %7401 = vmatpush1.bf16.xpose.msra.mxu0 %v795
        %7402 = vmatprep.subr.bf16.mxu0 0
        %7403 = vmatpush2.bf16.xpose.msra.mxu0 0
        %7404 = vmatprep.subr.bf16.mxu0 0
        %7405 = vmatpush2.bf16.xpose.msra.mxu0 0
        %7406 = vmatprep.subr.bf16.mxu0 0
        %7407 = vmatpush2.bf16.xpose.msra.mxu0 0
        %7408 = vmatprep.subr.bf16.mxu0 0
        %7409 = vmatpush2.bf16.xpose.msra.mxu0 0
        %7410 = vmatprep.subr.bf16.mxu0 0
        %7411 = vmatpush2.bf16.xpose.msra.mxu0 0
        %7412 = vmatprep.subr.bf16.mxu0 0
        %7413 = vmatpush2.bf16.xpose.msra.mxu0 0
        %7414 = vmatprep.subr.bf16.mxu0 0
        %7415 = vmatpush2.bf16.xpose.msra.mxu0 0
        %7416 = vmatprep.subr.bf16.mxu0 0
        %7417 = vmatpush2.bf16.xpose.msra.mxu0 0
        %7418 = vmatprep.mubr.bf16.mxu0 0
        %7419 = vmatmul.mubr.bf16.gmra.mxu0 %v7384
        %v7420 = vpop.f32.mrf.mxu0
        %v7421 = vadd.f32 0.0, %v7420
        %v7422 = vpop.f32.mrf.mxu0
        %v7423 = vpop.f32.mrf.mxu0
        %v7424 = vpop.f32.mrf.mxu0
        %7425 = vdwg.mxu0
        %7426 = vrot.lane.b32.xlu0 %v697, 104
        %v7427 = vpop.permute.xlu0 %7426
        %v7429 = vsel %vm698, %v7427, 0
        %7431 = vmatprep.subr.bf16.mxu0 0
        %7432 = vmatpush1.bf16.xpose.msra.mxu0 0
        %7433 = vmatprep.subr.bf16.mxu0 0
        %7434 = vmatpush1.bf16.xpose.msra.mxu0 0
        %7435 = vmatprep.subr.bf16.mxu0 0
        %7436 = vmatpush1.bf16.xpose.msra.mxu0 0
        %7437 = vmatprep.subr.bf16.mxu0 0
        %7438 = vmatpush1.bf16.xpose.msra.mxu0 0
        %7439 = vmatprep.subr.bf16.mxu0 0
        %7440 = vmatpush1.bf16.xpose.msra.mxu0 0
        %7441 = vmatprep.subr.bf16.mxu0 0
        %7442 = vmatpush1.bf16.xpose.msra.mxu0 0
        %7443 = vmatprep.subr.bf16.mxu0 0
        %7444 = vmatpush1.bf16.xpose.msra.mxu0 0
        %7445 = vmatprep.subr.bf16.mxu0 0
        %7446 = vmatpush1.bf16.xpose.msra.mxu0 %v841
        %7447 = vmatprep.subr.bf16.mxu0 0
        %7448 = vmatpush2.bf16.xpose.msra.mxu0 0
        %7449 = vmatprep.subr.bf16.mxu0 0
        %7450 = vmatpush2.bf16.xpose.msra.mxu0 0
        %7451 = vmatprep.subr.bf16.mxu0 0
        %7452 = vmatpush2.bf16.xpose.msra.mxu0 0
        %7453 = vmatprep.subr.bf16.mxu0 0
        %7454 = vmatpush2.bf16.xpose.msra.mxu0 0
        %7455 = vmatprep.subr.bf16.mxu0 0
        %7456 = vmatpush2.bf16.xpose.msra.mxu0 0
        %7457 = vmatprep.subr.bf16.mxu0 0
        %7458 = vmatpush2.bf16.xpose.msra.mxu0 0
        %7459 = vmatprep.subr.bf16.mxu0 0
        %7460 = vmatpush2.bf16.xpose.msra.mxu0 0
        %7461 = vmatprep.subr.bf16.mxu0 0
        %7462 = vmatpush2.bf16.xpose.msra.mxu0 0
        %7463 = vmatprep.mubr.bf16.mxu0 0
        %7464 = vmatmul.mubr.bf16.gmra.mxu0 %v7429
        %v7465 = vpop.f32.mrf.mxu0
        %v7466 = vadd.f32 0.0, %v7465
        %v7467 = vpop.f32.mrf.mxu0
        %v7468 = vpop.f32.mrf.mxu0
        %v7469 = vpop.f32.mrf.mxu0
        %7470 = vdwg.mxu0
        %v7471 = vpack.i.b16 %v7337, %v7292
        %v7472 = vshrl.u32 %v7292, 16
        %v7473 = vshrl.u32 %v7337, 16
        %v7474 = vpack.i.b16 %v7473, %v7472
        %v7475 = vpack.i.b16 %v7427, %v7382
        %v7476 = vshrl.u32 %v7382, 16
        %v7477 = vshrl.u32 %v7427, 16
        %v7478 = vpack.i.b16 %v7477, %v7476
        %v7481 = vunpack.c.l.s4 1983009808
        %v7482 = vunpack.c.0.s8 %v7481
        %v7483 = vlaneseq
        %v7484 = vshrl.u32 %v7483, 7
        %v7485 = vsub.s32 %v7482, %v7484
        %v7486 = vrot.slane %v7471, %v7485
        %v7489 = vunpack.c.l.s4 1983009808
        %v7490 = vunpack.c.0.s8 %v7489
        %v7491 = vlaneseq
        %v7492 = vshrl.u32 %v7491, 7
        %v7493 = vsub.s32 %v7490, %v7492
        %v7494 = vrot.slane %v7475, %v7493
        %v7495 = vcombine.low %v7486, %v7494
        %v7496 = vcombine.high %v7486, %v7494
        %v7498 = vunpack.c.l.s4 1934713408
        %v7499 = vunpack.c.0.s8 %v7498
        %v7500 = vlaneseq
        %v7501 = vshrl.u32 %v7500, 7
        %v7502 = vsub.s32 %v7499, %v7501
        %v7503 = vrot.slane %v7495, %v7502
        %v7505 = vunpack.c.l.s4 1934713408
        %v7506 = vunpack.c.0.s8 %v7505
        %v7507 = vlaneseq
        %v7508 = vshrl.u32 %v7507, 7
        %v7509 = vsub.s32 %v7506, %v7508
        %v7510 = vrot.slane %v7496, %v7509
        %v7511 = vcombine.high %v7503, 0
        %v7512 = vcombine.high %v7510, 0
        %v7515 = vunpack.c.l.s4 1983009808
        %v7516 = vunpack.c.0.s8 %v7515
        %v7517 = vlaneseq
        %v7518 = vshrl.u32 %v7517, 7
        %v7519 = vsub.s32 %v7516, %v7518
        %v7520 = vrot.slane %v7474, %v7519
        %v7523 = vunpack.c.l.s4 1983009808
        %v7524 = vunpack.c.0.s8 %v7523
        %v7525 = vlaneseq
        %v7526 = vshrl.u32 %v7525, 7
        %v7527 = vsub.s32 %v7524, %v7526
        %v7528 = vrot.slane %v7478, %v7527
        %v7529 = vcombine.low %v7520, %v7528
        %v7530 = vcombine.high %v7520, %v7528
        %v7532 = vunpack.c.l.s4 1934713408
        %v7533 = vunpack.c.0.s8 %v7532
        %v7534 = vlaneseq
        %v7535 = vshrl.u32 %v7534, 7
        %v7536 = vsub.s32 %v7533, %v7535
        %v7537 = vrot.slane %v7529, %v7536
        %v7539 = vunpack.c.l.s4 1934713408
        %v7540 = vunpack.c.0.s8 %v7539
        %v7541 = vlaneseq
        %v7542 = vshrl.u32 %v7541, 7
        %v7543 = vsub.s32 %v7540, %v7542
        %v7544 = vrot.slane %v7530, %v7543
        %v7545 = vcombine.high %v7537, 0
        %v7546 = vcombine.high %v7544, 0
        %v7548 = vsel %vm698, %v7503, 0
        %7550 = vmatprep.subr.bf16.mxu0 0
        %7551 = vmatpush1.bf16.xpose.msra.mxu0 0
        %7552 = vmatprep.subr.bf16.mxu0 0
        %7553 = vmatpush1.bf16.xpose.msra.mxu0 0
        %7554 = vmatprep.subr.bf16.mxu0 0
        %7555 = vmatpush1.bf16.xpose.msra.mxu0 0
        %7556 = vmatprep.subr.bf16.mxu0 0
        %7557 = vmatpush1.bf16.xpose.msra.mxu0 0
        %7558 = vmatprep.subr.bf16.mxu0 0
        %7559 = vmatpush1.bf16.xpose.msra.mxu0 0
        %7560 = vmatprep.subr.bf16.mxu0 0
        %7561 = vmatpush1.bf16.xpose.msra.mxu0 0
        %7562 = vmatprep.subr.bf16.mxu0 0
        %7563 = vmatpush1.bf16.xpose.msra.mxu0 0
        %7564 = vmatprep.subr.bf16.mxu0 0
        %7565 = vmatpush1.bf16.xpose.msra.mxu0 %v963
        %7566 = vmatprep.subr.bf16.mxu0 0
        %7567 = vmatpush2.bf16.xpose.msra.mxu0 0
        %7568 = vmatprep.subr.bf16.mxu0 0
        %7569 = vmatpush2.bf16.xpose.msra.mxu0 0
        %7570 = vmatprep.subr.bf16.mxu0 0
        %7571 = vmatpush2.bf16.xpose.msra.mxu0 0
        %7572 = vmatprep.subr.bf16.mxu0 0
        %7573 = vmatpush2.bf16.xpose.msra.mxu0 0
        %7574 = vmatprep.subr.bf16.mxu0 0
        %7575 = vmatpush2.bf16.xpose.msra.mxu0 0
        %7576 = vmatprep.subr.bf16.mxu0 0
        %7577 = vmatpush2.bf16.xpose.msra.mxu0 0
        %7578 = vmatprep.subr.bf16.mxu0 0
        %7579 = vmatpush2.bf16.xpose.msra.mxu0 0
        %7580 = vmatprep.subr.bf16.mxu0 0
        %7581 = vmatpush2.bf16.xpose.msra.mxu0 0
        %7582 = vmatprep.mubr.bf16.mxu0 0
        %7583 = vmatmul.mubr.bf16.gmra.mxu0 %v7548
        %v7584 = vpop.f32.mrf.mxu0
        %v7585 = vadd.f32 0.0, %v7584
        %v7586 = vpop.f32.mrf.mxu0
        %v7587 = vpop.f32.mrf.mxu0
        %v7588 = vpop.f32.mrf.mxu0
        %7589 = vdwg.mxu0
        %v7591 = vsel %vm698, %v7537, 0
        %7593 = vmatprep.subr.bf16.mxu0 0
        %7594 = vmatpush1.bf16.xpose.msra.mxu0 0
        %7595 = vmatprep.subr.bf16.mxu0 0
        %7596 = vmatpush1.bf16.xpose.msra.mxu0 0
        %7597 = vmatprep.subr.bf16.mxu0 0
        %7598 = vmatpush1.bf16.xpose.msra.mxu0 0
        %7599 = vmatprep.subr.bf16.mxu0 0
        %7600 = vmatpush1.bf16.xpose.msra.mxu0 0
        %7601 = vmatprep.subr.bf16.mxu0 0
        %7602 = vmatpush1.bf16.xpose.msra.mxu0 0
        %7603 = vmatprep.subr.bf16.mxu0 0
        %7604 = vmatpush1.bf16.xpose.msra.mxu0 0
        %7605 = vmatprep.subr.bf16.mxu0 0
        %7606 = vmatpush1.bf16.xpose.msra.mxu0 0
        %7607 = vmatprep.subr.bf16.mxu0 0
        %7608 = vmatpush1.bf16.xpose.msra.mxu0 %v1009
        %7609 = vmatprep.subr.bf16.mxu0 0
        %7610 = vmatpush2.bf16.xpose.msra.mxu0 0
        %7611 = vmatprep.subr.bf16.mxu0 0
        %7612 = vmatpush2.bf16.xpose.msra.mxu0 0
        %7613 = vmatprep.subr.bf16.mxu0 0
        %7614 = vmatpush2.bf16.xpose.msra.mxu0 0
        %7615 = vmatprep.subr.bf16.mxu0 0
        %7616 = vmatpush2.bf16.xpose.msra.mxu0 0
        %7617 = vmatprep.subr.bf16.mxu0 0
        %7618 = vmatpush2.bf16.xpose.msra.mxu0 0
        %7619 = vmatprep.subr.bf16.mxu0 0
        %7620 = vmatpush2.bf16.xpose.msra.mxu0 0
        %7621 = vmatprep.subr.bf16.mxu0 0
        %7622 = vmatpush2.bf16.xpose.msra.mxu0 0
        %7623 = vmatprep.subr.bf16.mxu0 0
        %7624 = vmatpush2.bf16.xpose.msra.mxu0 0
        %7625 = vmatprep.mubr.bf16.mxu0 0
        %7626 = vmatmul.mubr.bf16.gmra.mxu0 %v7591
        %v7627 = vpop.f32.mrf.mxu0
        %v7628 = vadd.f32 0.0, %v7627
        %v7629 = vpop.f32.mrf.mxu0
        %v7630 = vpop.f32.mrf.mxu0
        %v7631 = vpop.f32.mrf.mxu0
        %7632 = vdwg.mxu0
        %v7634 = vsel %vm698, %v7511, 0
        %7636 = vmatprep.subr.bf16.mxu0 0
        %7637 = vmatpush1.bf16.xpose.msra.mxu0 0
        %7638 = vmatprep.subr.bf16.mxu0 0
        %7639 = vmatpush1.bf16.xpose.msra.mxu0 0
        %7640 = vmatprep.subr.bf16.mxu0 0
        %7641 = vmatpush1.bf16.xpose.msra.mxu0 0
        %7642 = vmatprep.subr.bf16.mxu0 0
        %7643 = vmatpush1.bf16.xpose.msra.mxu0 0
        %7644 = vmatprep.subr.bf16.mxu0 0
        %7645 = vmatpush1.bf16.xpose.msra.mxu0 0
        %7646 = vmatprep.subr.bf16.mxu0 0
        %7647 = vmatpush1.bf16.xpose.msra.mxu0 0
        %7648 = vmatprep.subr.bf16.mxu0 0
        %7649 = vmatpush1.bf16.xpose.msra.mxu0 0
        %7650 = vmatprep.subr.bf16.mxu0 0
        %7651 = vmatpush1.bf16.xpose.msra.mxu0 %v1055
        %7652 = vmatprep.subr.bf16.mxu0 0
        %7653 = vmatpush2.bf16.xpose.msra.mxu0 0
        %7654 = vmatprep.subr.bf16.mxu0 0
        %7655 = vmatpush2.bf16.xpose.msra.mxu0 0
        %7656 = vmatprep.subr.bf16.mxu0 0
        %7657 = vmatpush2.bf16.xpose.msra.mxu0 0
        %7658 = vmatprep.subr.bf16.mxu0 0
        %7659 = vmatpush2.bf16.xpose.msra.mxu0 0
        %7660 = vmatprep.subr.bf16.mxu0 0
        %7661 = vmatpush2.bf16.xpose.msra.mxu0 0
        %7662 = vmatprep.subr.bf16.mxu0 0
        %7663 = vmatpush2.bf16.xpose.msra.mxu0 0
        %7664 = vmatprep.subr.bf16.mxu0 0
        %7665 = vmatpush2.bf16.xpose.msra.mxu0 0
        %7666 = vmatprep.subr.bf16.mxu0 0
        %7667 = vmatpush2.bf16.xpose.msra.mxu0 0
        %7668 = vmatprep.mubr.bf16.mxu0 0
        %7669 = vmatmul.mubr.bf16.gmra.mxu0 %v7634
        %v7670 = vpop.f32.mrf.mxu0
        %v7671 = vadd.f32 0.0, %v7670
        %v7672 = vpop.f32.mrf.mxu0
        %v7673 = vpop.f32.mrf.mxu0
        %v7674 = vpop.f32.mrf.mxu0
        %7675 = vdwg.mxu0
        %v7677 = vsel %vm698, %v7545, 0
        %7679 = vmatprep.subr.bf16.mxu0 0
        %7680 = vmatpush1.bf16.xpose.msra.mxu0 0
        %7681 = vmatprep.subr.bf16.mxu0 0
        %7682 = vmatpush1.bf16.xpose.msra.mxu0 0
        %7683 = vmatprep.subr.bf16.mxu0 0
        %7684 = vmatpush1.bf16.xpose.msra.mxu0 0
        %7685 = vmatprep.subr.bf16.mxu0 0
        %7686 = vmatpush1.bf16.xpose.msra.mxu0 0
        %7687 = vmatprep.subr.bf16.mxu0 0
        %7688 = vmatpush1.bf16.xpose.msra.mxu0 0
        %7689 = vmatprep.subr.bf16.mxu0 0
        %7690 = vmatpush1.bf16.xpose.msra.mxu0 0
        %7691 = vmatprep.subr.bf16.mxu0 0
        %7692 = vmatpush1.bf16.xpose.msra.mxu0 0
        %7693 = vmatprep.subr.bf16.mxu0 0
        %7694 = vmatpush1.bf16.xpose.msra.mxu0 %v1101
        %7695 = vmatprep.subr.bf16.mxu0 0
        %7696 = vmatpush2.bf16.xpose.msra.mxu0 0
        %7697 = vmatprep.subr.bf16.mxu0 0
        %7698 = vmatpush2.bf16.xpose.msra.mxu0 0
        %7699 = vmatprep.subr.bf16.mxu0 0
        %7700 = vmatpush2.bf16.xpose.msra.mxu0 0
        %7701 = vmatprep.subr.bf16.mxu0 0
        %7702 = vmatpush2.bf16.xpose.msra.mxu0 0
        %7703 = vmatprep.subr.bf16.mxu0 0
        %7704 = vmatpush2.bf16.xpose.msra.mxu0 0
        %7705 = vmatprep.subr.bf16.mxu0 0
        %7706 = vmatpush2.bf16.xpose.msra.mxu0 0
        %7707 = vmatprep.subr.bf16.mxu0 0
        %7708 = vmatpush2.bf16.xpose.msra.mxu0 0
        %7709 = vmatprep.subr.bf16.mxu0 0
        %7710 = vmatpush2.bf16.xpose.msra.mxu0 0
        %7711 = vmatprep.mubr.bf16.mxu0 0
        %7712 = vmatmul.mubr.bf16.gmra.mxu0 %v7677
        %v7713 = vpop.f32.mrf.mxu0
        %v7714 = vadd.f32 0.0, %v7713
        %v7715 = vpop.f32.mrf.mxu0
        %v7716 = vpop.f32.mrf.mxu0
        %v7717 = vpop.f32.mrf.mxu0
        %7718 = vdwg.mxu0
        %v7720 = vsel %vm698, %v7510, 0
        %7722 = vmatprep.subr.bf16.mxu0 0
        %7723 = vmatpush1.bf16.xpose.msra.mxu0 0
        %7724 = vmatprep.subr.bf16.mxu0 0
        %7725 = vmatpush1.bf16.xpose.msra.mxu0 0
        %7726 = vmatprep.subr.bf16.mxu0 0
        %7727 = vmatpush1.bf16.xpose.msra.mxu0 0
        %7728 = vmatprep.subr.bf16.mxu0 0
        %7729 = vmatpush1.bf16.xpose.msra.mxu0 0
        %7730 = vmatprep.subr.bf16.mxu0 0
        %7731 = vmatpush1.bf16.xpose.msra.mxu0 0
        %7732 = vmatprep.subr.bf16.mxu0 0
        %7733 = vmatpush1.bf16.xpose.msra.mxu0 0
        %7734 = vmatprep.subr.bf16.mxu0 0
        %7735 = vmatpush1.bf16.xpose.msra.mxu0 0
        %7736 = vmatprep.subr.bf16.mxu0 0
        %7737 = vmatpush1.bf16.xpose.msra.mxu0 %v1147
        %7738 = vmatprep.subr.bf16.mxu0 0
        %7739 = vmatpush2.bf16.xpose.msra.mxu0 0
        %7740 = vmatprep.subr.bf16.mxu0 0
        %7741 = vmatpush2.bf16.xpose.msra.mxu0 0
        %7742 = vmatprep.subr.bf16.mxu0 0
        %7743 = vmatpush2.bf16.xpose.msra.mxu0 0
        %7744 = vmatprep.subr.bf16.mxu0 0
        %7745 = vmatpush2.bf16.xpose.msra.mxu0 0
        %7746 = vmatprep.subr.bf16.mxu0 0
        %7747 = vmatpush2.bf16.xpose.msra.mxu0 0
        %7748 = vmatprep.subr.bf16.mxu0 0
        %7749 = vmatpush2.bf16.xpose.msra.mxu0 0
        %7750 = vmatprep.subr.bf16.mxu0 0
        %7751 = vmatpush2.bf16.xpose.msra.mxu0 0
        %7752 = vmatprep.subr.bf16.mxu0 0
        %7753 = vmatpush2.bf16.xpose.msra.mxu0 0
        %7754 = vmatprep.mubr.bf16.mxu0 0
        %7755 = vmatmul.mubr.bf16.gmra.mxu0 %v7720
        %v7756 = vpop.f32.mrf.mxu0
        %v7757 = vadd.f32 0.0, %v7756
        %v7758 = vpop.f32.mrf.mxu0
        %v7759 = vpop.f32.mrf.mxu0
        %v7760 = vpop.f32.mrf.mxu0
        %7761 = vdwg.mxu0
        %v7763 = vsel %vm698, %v7544, 0
        %7765 = vmatprep.subr.bf16.mxu0 0
        %7766 = vmatpush1.bf16.xpose.msra.mxu0 0
        %7767 = vmatprep.subr.bf16.mxu0 0
        %7768 = vmatpush1.bf16.xpose.msra.mxu0 0
        %7769 = vmatprep.subr.bf16.mxu0 0
        %7770 = vmatpush1.bf16.xpose.msra.mxu0 0
        %7771 = vmatprep.subr.bf16.mxu0 0
        %7772 = vmatpush1.bf16.xpose.msra.mxu0 0
        %7773 = vmatprep.subr.bf16.mxu0 0
        %7774 = vmatpush1.bf16.xpose.msra.mxu0 0
        %7775 = vmatprep.subr.bf16.mxu0 0
        %7776 = vmatpush1.bf16.xpose.msra.mxu0 0
        %7777 = vmatprep.subr.bf16.mxu0 0
        %7778 = vmatpush1.bf16.xpose.msra.mxu0 0
        %7779 = vmatprep.subr.bf16.mxu0 0
        %7780 = vmatpush1.bf16.xpose.msra.mxu0 %v1193
        %7781 = vmatprep.subr.bf16.mxu0 0
        %7782 = vmatpush2.bf16.xpose.msra.mxu0 0
        %7783 = vmatprep.subr.bf16.mxu0 0
        %7784 = vmatpush2.bf16.xpose.msra.mxu0 0
        %7785 = vmatprep.subr.bf16.mxu0 0
        %7786 = vmatpush2.bf16.xpose.msra.mxu0 0
        %7787 = vmatprep.subr.bf16.mxu0 0
        %7788 = vmatpush2.bf16.xpose.msra.mxu0 0
        %7789 = vmatprep.subr.bf16.mxu0 0
        %7790 = vmatpush2.bf16.xpose.msra.mxu0 0
        %7791 = vmatprep.subr.bf16.mxu0 0
        %7792 = vmatpush2.bf16.xpose.msra.mxu0 0
        %7793 = vmatprep.subr.bf16.mxu0 0
        %7794 = vmatpush2.bf16.xpose.msra.mxu0 0
        %7795 = vmatprep.subr.bf16.mxu0 0
        %7796 = vmatpush2.bf16.xpose.msra.mxu0 0
        %7797 = vmatprep.mubr.bf16.mxu0 0
        %7798 = vmatmul.mubr.bf16.gmra.mxu0 %v7763
        %v7799 = vpop.f32.mrf.mxu0
        %v7800 = vadd.f32 0.0, %v7799
        %v7801 = vpop.f32.mrf.mxu0
        %v7802 = vpop.f32.mrf.mxu0
        %v7803 = vpop.f32.mrf.mxu0
        %7804 = vdwg.mxu0
        %v7806 = vsel %vm698, %v7512, 0
        %7808 = vmatprep.subr.bf16.mxu0 0
        %7809 = vmatpush1.bf16.xpose.msra.mxu0 0
        %7810 = vmatprep.subr.bf16.mxu0 0
        %7811 = vmatpush1.bf16.xpose.msra.mxu0 0
        %7812 = vmatprep.subr.bf16.mxu0 0
        %7813 = vmatpush1.bf16.xpose.msra.mxu0 0
        %7814 = vmatprep.subr.bf16.mxu0 0
        %7815 = vmatpush1.bf16.xpose.msra.mxu0 0
        %7816 = vmatprep.subr.bf16.mxu0 0
        %7817 = vmatpush1.bf16.xpose.msra.mxu0 0
        %7818 = vmatprep.subr.bf16.mxu0 0
        %7819 = vmatpush1.bf16.xpose.msra.mxu0 0
        %7820 = vmatprep.subr.bf16.mxu0 0
        %7821 = vmatpush1.bf16.xpose.msra.mxu0 0
        %7822 = vmatprep.subr.bf16.mxu0 0
        %7823 = vmatpush1.bf16.xpose.msra.mxu0 %v1239
        %7824 = vmatprep.subr.bf16.mxu0 0
        %7825 = vmatpush2.bf16.xpose.msra.mxu0 0
        %7826 = vmatprep.subr.bf16.mxu0 0
        %7827 = vmatpush2.bf16.xpose.msra.mxu0 0
        %7828 = vmatprep.subr.bf16.mxu0 0
        %7829 = vmatpush2.bf16.xpose.msra.mxu0 0
        %7830 = vmatprep.subr.bf16.mxu0 0
        %7831 = vmatpush2.bf16.xpose.msra.mxu0 0
        %7832 = vmatprep.subr.bf16.mxu0 0
        %7833 = vmatpush2.bf16.xpose.msra.mxu0 0
        %7834 = vmatprep.subr.bf16.mxu0 0
        %7835 = vmatpush2.bf16.xpose.msra.mxu0 0
        %7836 = vmatprep.subr.bf16.mxu0 0
        %7837 = vmatpush2.bf16.xpose.msra.mxu0 0
        %7838 = vmatprep.subr.bf16.mxu0 0
        %7839 = vmatpush2.bf16.xpose.msra.mxu0 0
        %7840 = vmatprep.mubr.bf16.mxu0 0
        %7841 = vmatmul.mubr.bf16.gmra.mxu0 %v7806
        %v7842 = vpop.f32.mrf.mxu0
        %v7843 = vadd.f32 0.0, %v7842
        %v7844 = vpop.f32.mrf.mxu0
        %v7845 = vpop.f32.mrf.mxu0
        %v7846 = vpop.f32.mrf.mxu0
        %7847 = vdwg.mxu0
        %v7849 = vsel %vm698, %v7546, 0
        %7851 = vmatprep.subr.bf16.mxu0 0
        %7852 = vmatpush1.bf16.xpose.msra.mxu0 0
        %7853 = vmatprep.subr.bf16.mxu0 0
        %7854 = vmatpush1.bf16.xpose.msra.mxu0 0
        %7855 = vmatprep.subr.bf16.mxu0 0
        %7856 = vmatpush1.bf16.xpose.msra.mxu0 0
        %7857 = vmatprep.subr.bf16.mxu0 0
        %7858 = vmatpush1.bf16.xpose.msra.mxu0 0
        %7859 = vmatprep.subr.bf16.mxu0 0
        %7860 = vmatpush1.bf16.xpose.msra.mxu0 0
        %7861 = vmatprep.subr.bf16.mxu0 0
        %7862 = vmatpush1.bf16.xpose.msra.mxu0 0
        %7863 = vmatprep.subr.bf16.mxu0 0
        %7864 = vmatpush1.bf16.xpose.msra.mxu0 0
        %7865 = vmatprep.subr.bf16.mxu0 0
        %7866 = vmatpush1.bf16.xpose.msra.mxu0 %v1285
        %7867 = vmatprep.subr.bf16.mxu0 0
        %7868 = vmatpush2.bf16.xpose.msra.mxu0 0
        %7869 = vmatprep.subr.bf16.mxu0 0
        %7870 = vmatpush2.bf16.xpose.msra.mxu0 0
        %7871 = vmatprep.subr.bf16.mxu0 0
        %7872 = vmatpush2.bf16.xpose.msra.mxu0 0
        %7873 = vmatprep.subr.bf16.mxu0 0
        %7874 = vmatpush2.bf16.xpose.msra.mxu0 0
        %7875 = vmatprep.subr.bf16.mxu0 0
        %7876 = vmatpush2.bf16.xpose.msra.mxu0 0
        %7877 = vmatprep.subr.bf16.mxu0 0
        %7878 = vmatpush2.bf16.xpose.msra.mxu0 0
        %7879 = vmatprep.subr.bf16.mxu0 0
        %7880 = vmatpush2.bf16.xpose.msra.mxu0 0
        %7881 = vmatprep.subr.bf16.mxu0 0
        %7882 = vmatpush2.bf16.xpose.msra.mxu0 0
        %7883 = vmatprep.mubr.bf16.mxu0 0
        %7884 = vmatmul.mubr.bf16.gmra.mxu0 %v7849
        %v7885 = vpop.f32.mrf.mxu0
        %v7886 = vadd.f32 0.0, %v7885
        %v7887 = vpop.f32.mrf.mxu0
        %v7888 = vpop.f32.mrf.mxu0
        %v7889 = vpop.f32.mrf.mxu0
        %7890 = vdwg.mxu0
        %v7891 = vcombine.low %v7585, %v7671
        %v7893 = vunpack.c.l.s4 1983009808
        %v7894 = vunpack.c.0.s8 %v7893
        %v7895 = vlaneseq
        %v7896 = vshrl.u32 %v7895, 7
        %v7897 = vsub.s32 %v7894, %v7896
        %v7898 = vrot.slane %v7891, %v7897
        %v7899 = vcombine.low %v7628, %v7714
        %v7901 = vunpack.c.l.s4 1983009808
        %v7902 = vunpack.c.0.s8 %v7901
        %v7903 = vlaneseq
        %v7904 = vshrl.u32 %v7903, 7
        %v7905 = vsub.s32 %v7902, %v7904
        %v7906 = vrot.slane %v7899, %v7905
        %v7907 = vcombine.low %v7757, %v7843
        %v7909 = vunpack.c.l.s4 1983009808
        %v7910 = vunpack.c.0.s8 %v7909
        %v7911 = vlaneseq
        %v7912 = vshrl.u32 %v7911, 7
        %v7913 = vsub.s32 %v7910, %v7912
        %v7914 = vrot.slane %v7907, %v7913
        %v7915 = vcombine.low %v7800, %v7886
        %v7917 = vunpack.c.l.s4 1983009808
        %v7918 = vunpack.c.0.s8 %v7917
        %v7919 = vlaneseq
        %v7920 = vshrl.u32 %v7919, 7
        %v7921 = vsub.s32 %v7918, %v7920
        %v7922 = vrot.slane %v7915, %v7921
        %v7923 = vcombine.low %v7898, %v7906
        %v7924 = vcombine.high %v7898, %v7906
        %v7926 = vunpack.c.l.s4 1934713408
        %v7927 = vunpack.c.0.s8 %v7926
        %v7928 = vlaneseq
        %v7929 = vshrl.u32 %v7928, 7
        %v7930 = vsub.s32 %v7927, %v7929
        %v7931 = vrot.slane %v7923, %v7930
        %v7933 = vunpack.c.l.s4 1934713408
        %v7934 = vunpack.c.0.s8 %v7933
        %v7935 = vlaneseq
        %v7936 = vshrl.u32 %v7935, 7
        %v7937 = vsub.s32 %v7934, %v7936
        %v7938 = vrot.slane %v7924, %v7937
        %v7939 = vcombine.low %v7914, %v7922
        %v7940 = vcombine.high %v7914, %v7922
        %v7942 = vunpack.c.l.s4 1934713408
        %v7943 = vunpack.c.0.s8 %v7942
        %v7944 = vlaneseq
        %v7945 = vshrl.u32 %v7944, 7
        %v7946 = vsub.s32 %v7943, %v7945
        %v7947 = vrot.slane %v7939, %v7946
        %v7949 = vunpack.c.l.s4 1934713408
        %v7950 = vunpack.c.0.s8 %v7949
        %v7951 = vlaneseq
        %v7952 = vshrl.u32 %v7951, 7
        %v7953 = vsub.s32 %v7950, %v7952
        %v7954 = vrot.slane %v7940, %v7953
        %v7955 = vcombine.low %v7931, %v7947
        %v7956 = vcombine.high %v7931, %v7947
        %v7957 = vcombine.low %v7938, %v7954
        %v7958 = vcombine.high %v7938, %v7954
        %v7959 = vlaneseq
        %v7960 = vshrl.u32 %v7959, 7
        %v7961 = vsub.s32 0, %v7960
        %v7962 = vrot.slane %v7331, %v7961
        %7964 = vbcast.lane.b32.xlu0 %v7962, 256
        %v7965 = vpop.permute.xlu0 %7964
        %v7966 = vlaneseq
        %v7967 = vshrl.u32 %v7966, 7
        %v7968 = vsub.s32 1, %v7967
        %v7969 = vrot.slane %v7331, %v7968
        %7971 = vbcast.lane.b32.xlu0 %v7969, 256
        %v7972 = vpop.permute.xlu0 %7971
        %v7973 = vlaneseq
        %v7974 = vshrl.u32 %v7973, 7
        %v7975 = vsub.s32 2, %v7974
        %v7976 = vrot.slane %v7331, %v7975
        %7978 = vbcast.lane.b32.xlu0 %v7976, 256
        %v7979 = vpop.permute.xlu0 %7978
        %v7980 = vlaneseq
        %v7981 = vshrl.u32 %v7980, 7
        %v7982 = vsub.s32 3, %v7981
        %v7983 = vrot.slane %v7331, %v7982
        %7985 = vbcast.lane.b32.xlu0 %v7983, 256
        %v7986 = vpop.permute.xlu0 %7985
        %v7987 = vlaneseq
        %v7988 = vshrl.u32 %v7987, 7
        %v7989 = vsub.s32 4, %v7988
        %v7990 = vrot.slane %v7331, %v7989
        %7992 = vbcast.lane.b32.xlu0 %v7990, 256
        %v7993 = vpop.permute.xlu0 %7992
        %v7994 = vlaneseq
        %v7995 = vshrl.u32 %v7994, 7
        %v7996 = vsub.s32 5, %v7995
        %v7997 = vrot.slane %v7331, %v7996
        %7999 = vbcast.lane.b32.xlu0 %v7997, 256
        %v8000 = vpop.permute.xlu0 %7999
        %v8001 = vlaneseq
        %v8002 = vshrl.u32 %v8001, 7
        %v8003 = vsub.s32 6, %v8002
        %v8004 = vrot.slane %v7331, %v8003
        %8006 = vbcast.lane.b32.xlu0 %v8004, 256
        %v8007 = vpop.permute.xlu0 %8006
        %v8008 = vlaneseq
        %v8009 = vshrl.u32 %v8008, 7
        %v8010 = vsub.s32 7, %v8009
        %v8011 = vrot.slane %v7331, %v8010
        %8013 = vbcast.lane.b32.xlu0 %v8011, 256
        %v8014 = vpop.permute.xlu0 %8013
        %v8015 = vlaneseq
        %v8016 = vshrl.u32 %v8015, 7
        %v8017 = vsub.s32 0, %v8016
        %v8018 = vrot.slane %v7376, %v8017
        %8020 = vbcast.lane.b32.xlu0 %v8018, 256
        %v8021 = vpop.permute.xlu0 %8020
        %v8022 = vlaneseq
        %v8023 = vshrl.u32 %v8022, 7
        %v8024 = vsub.s32 1, %v8023
        %v8025 = vrot.slane %v7376, %v8024
        %8027 = vbcast.lane.b32.xlu0 %v8025, 256
        %v8028 = vpop.permute.xlu0 %8027
        %v8029 = vlaneseq
        %v8030 = vshrl.u32 %v8029, 7
        %v8031 = vsub.s32 2, %v8030
        %v8032 = vrot.slane %v7376, %v8031
        %8034 = vbcast.lane.b32.xlu0 %v8032, 256
        %v8035 = vpop.permute.xlu0 %8034
        %v8036 = vlaneseq
        %v8037 = vshrl.u32 %v8036, 7
        %v8038 = vsub.s32 3, %v8037
        %v8039 = vrot.slane %v7376, %v8038
        %8041 = vbcast.lane.b32.xlu0 %v8039, 256
        %v8042 = vpop.permute.xlu0 %8041
        %v8043 = vlaneseq
        %v8044 = vshrl.u32 %v8043, 7
        %v8045 = vsub.s32 4, %v8044
        %v8046 = vrot.slane %v7376, %v8045
        %8048 = vbcast.lane.b32.xlu0 %v8046, 256
        %v8049 = vpop.permute.xlu0 %8048
        %v8050 = vlaneseq
        %v8051 = vshrl.u32 %v8050, 7
        %v8052 = vsub.s32 5, %v8051
        %v8053 = vrot.slane %v7376, %v8052
        %8055 = vbcast.lane.b32.xlu0 %v8053, 256
        %v8056 = vpop.permute.xlu0 %8055
        %v8057 = vlaneseq
        %v8058 = vshrl.u32 %v8057, 7
        %v8059 = vsub.s32 6, %v8058
        %v8060 = vrot.slane %v7376, %v8059
        %8062 = vbcast.lane.b32.xlu0 %v8060, 256
        %v8063 = vpop.permute.xlu0 %8062
        %v8064 = vlaneseq
        %v8065 = vshrl.u32 %v8064, 7
        %v8066 = vsub.s32 7, %v8065
        %v8067 = vrot.slane %v7376, %v8066
        %8069 = vbcast.lane.b32.xlu0 %v8067, 256
        %v8070 = vpop.permute.xlu0 %8069
        %v8071 = vlaneseq
        %v8072 = vshrl.u32 %v8071, 7
        %v8073 = vsub.s32 0, %v8072
        %v8074 = vrot.slane %v7421, %v8073
        %8076 = vbcast.lane.b32.xlu0 %v8074, 256
        %v8077 = vpop.permute.xlu0 %8076
        %v8078 = vlaneseq
        %v8079 = vshrl.u32 %v8078, 7
        %v8080 = vsub.s32 1, %v8079
        %v8081 = vrot.slane %v7421, %v8080
        %8083 = vbcast.lane.b32.xlu0 %v8081, 256
        %v8084 = vpop.permute.xlu0 %8083
        %v8085 = vlaneseq
        %v8086 = vshrl.u32 %v8085, 7
        %v8087 = vsub.s32 2, %v8086
        %v8088 = vrot.slane %v7421, %v8087
        %8090 = vbcast.lane.b32.xlu0 %v8088, 256
        %v8091 = vpop.permute.xlu0 %8090
        %v8092 = vlaneseq
        %v8093 = vshrl.u32 %v8092, 7
        %v8094 = vsub.s32 3, %v8093
        %v8095 = vrot.slane %v7421, %v8094
        %8097 = vbcast.lane.b32.xlu0 %v8095, 256
        %v8098 = vpop.permute.xlu0 %8097
        %v8099 = vlaneseq
        %v8100 = vshrl.u32 %v8099, 7
        %v8101 = vsub.s32 4, %v8100
        %v8102 = vrot.slane %v7421, %v8101
        %8104 = vbcast.lane.b32.xlu0 %v8102, 256
        %v8105 = vpop.permute.xlu0 %8104
        %v8106 = vlaneseq
        %v8107 = vshrl.u32 %v8106, 7
        %v8108 = vsub.s32 5, %v8107
        %v8109 = vrot.slane %v7421, %v8108
        %8111 = vbcast.lane.b32.xlu0 %v8109, 256
        %v8112 = vpop.permute.xlu0 %8111
        %v8113 = vlaneseq
        %v8114 = vshrl.u32 %v8113, 7
        %v8115 = vsub.s32 6, %v8114
        %v8116 = vrot.slane %v7421, %v8115
        %8118 = vbcast.lane.b32.xlu0 %v8116, 256
        %v8119 = vpop.permute.xlu0 %8118
        %v8120 = vlaneseq
        %v8121 = vshrl.u32 %v8120, 7
        %v8122 = vsub.s32 7, %v8121
        %v8123 = vrot.slane %v7421, %v8122
        %8125 = vbcast.lane.b32.xlu0 %v8123, 256
        %v8126 = vpop.permute.xlu0 %8125
        %v8127 = vlaneseq
        %v8128 = vshrl.u32 %v8127, 7
        %v8129 = vsub.s32 0, %v8128
        %v8130 = vrot.slane %v7466, %v8129
        %8132 = vbcast.lane.b32.xlu0 %v8130, 256
        %v8133 = vpop.permute.xlu0 %8132
        %v8134 = vlaneseq
        %v8135 = vshrl.u32 %v8134, 7
        %v8136 = vsub.s32 1, %v8135
        %v8137 = vrot.slane %v7466, %v8136
        %8139 = vbcast.lane.b32.xlu0 %v8137, 256
        %v8140 = vpop.permute.xlu0 %8139
        %v8141 = vlaneseq
        %v8142 = vshrl.u32 %v8141, 7
        %v8143 = vsub.s32 2, %v8142
        %v8144 = vrot.slane %v7466, %v8143
        %8146 = vbcast.lane.b32.xlu0 %v8144, 256
        %v8147 = vpop.permute.xlu0 %8146
        %v8148 = vlaneseq
        %v8149 = vshrl.u32 %v8148, 7
        %v8150 = vsub.s32 3, %v8149
        %v8151 = vrot.slane %v7466, %v8150
        %8153 = vbcast.lane.b32.xlu0 %v8151, 256
        %v8154 = vpop.permute.xlu0 %8153
        %v8155 = vlaneseq
        %v8156 = vshrl.u32 %v8155, 7
        %v8157 = vsub.s32 4, %v8156
        %v8158 = vrot.slane %v7466, %v8157
        %8160 = vbcast.lane.b32.xlu0 %v8158, 256
        %v8161 = vpop.permute.xlu0 %8160
        %v8162 = vlaneseq
        %v8163 = vshrl.u32 %v8162, 7
        %v8164 = vsub.s32 5, %v8163
        %v8165 = vrot.slane %v7466, %v8164
        %8167 = vbcast.lane.b32.xlu0 %v8165, 256
        %v8168 = vpop.permute.xlu0 %8167
        %v8169 = vlaneseq
        %v8170 = vshrl.u32 %v8169, 7
        %v8171 = vsub.s32 6, %v8170
        %v8172 = vrot.slane %v7466, %v8171
        %8174 = vbcast.lane.b32.xlu0 %v8172, 256
        %v8175 = vpop.permute.xlu0 %8174
        %v8176 = vlaneseq
        %v8177 = vshrl.u32 %v8176, 7
        %v8178 = vsub.s32 7, %v8177
        %v8179 = vrot.slane %v7466, %v8178
        %8181 = vbcast.lane.b32.xlu0 %v8179, 256
        %v8182 = vpop.permute.xlu0 %8181
        %v8187 = vcombine.high %v7955, %v7955
        %v8189 = vunpack.c.l.s4 1966171168
        %v8190 = vunpack.c.0.s8 %v8189
        %v8191 = vlaneseq
        %v8192 = vshrl.u32 %v8191, 7
        %v8193 = vsub.s32 %v8190, %v8192
        %v8194 = vrot.slane %v7955, %v8193
        %v8196 = vunpack.c.l.s4 1966171168
        %v8197 = vunpack.c.0.s8 %v8196
        %v8198 = vlaneseq
        %v8199 = vshrl.u32 %v8198, 7
        %v8200 = vsub.s32 %v8197, %v8199
        %v8201 = vrot.slane %v8187, %v8200
        %v8202 = vcombine.high %v8194, %v8194
        %v8203 = vcombine.high %v8201, %v8201
        %v8205 = vunpack.c.l.s4 1966171168
        %v8206 = vunpack.c.0.s8 %v8205
        %v8207 = vlaneseq
        %v8208 = vshrl.u32 %v8207, 7
        %v8209 = vsub.s32 %v8206, %v8208
        %v8210 = vrot.slane %v8194, %v8209
        %v8212 = vunpack.c.l.s4 1966171168
        %v8213 = vunpack.c.0.s8 %v8212
        %v8214 = vlaneseq
        %v8215 = vshrl.u32 %v8214, 7
        %v8216 = vsub.s32 %v8213, %v8215
        %v8217 = vrot.slane %v8201, %v8216
        %v8219 = vunpack.c.l.s4 1966171168
        %v8220 = vunpack.c.0.s8 %v8219
        %v8221 = vlaneseq
        %v8222 = vshrl.u32 %v8221, 7
        %v8223 = vsub.s32 %v8220, %v8222
        %v8224 = vrot.slane %v8202, %v8223
        %v8226 = vunpack.c.l.s4 1966171168
        %v8227 = vunpack.c.0.s8 %v8226
        %v8228 = vlaneseq
        %v8229 = vshrl.u32 %v8228, 7
        %v8230 = vsub.s32 %v8227, %v8229
        %v8231 = vrot.slane %v8203, %v8230
        %v8232 = vcombine.high %v8210, %v8210
        %v8233 = vcombine.high %v8217, %v8217
        %v8234 = vcombine.high %v8224, %v8224
        %v8235 = vcombine.high %v8231, %v8231
        %v8236 = vcombine.high %v7956, %v7956
        %v8238 = vunpack.c.l.s4 1966171168
        %v8239 = vunpack.c.0.s8 %v8238
        %v8240 = vlaneseq
        %v8241 = vshrl.u32 %v8240, 7
        %v8242 = vsub.s32 %v8239, %v8241
        %v8243 = vrot.slane %v7956, %v8242
        %v8245 = vunpack.c.l.s4 1966171168
        %v8246 = vunpack.c.0.s8 %v8245
        %v8247 = vlaneseq
        %v8248 = vshrl.u32 %v8247, 7
        %v8249 = vsub.s32 %v8246, %v8248
        %v8250 = vrot.slane %v8236, %v8249
        %v8251 = vcombine.high %v8243, %v8243
        %v8252 = vcombine.high %v8250, %v8250
        %v8254 = vunpack.c.l.s4 1966171168
        %v8255 = vunpack.c.0.s8 %v8254
        %v8256 = vlaneseq
        %v8257 = vshrl.u32 %v8256, 7
        %v8258 = vsub.s32 %v8255, %v8257
        %v8259 = vrot.slane %v8243, %v8258
        %v8261 = vunpack.c.l.s4 1966171168
        %v8262 = vunpack.c.0.s8 %v8261
        %v8263 = vlaneseq
        %v8264 = vshrl.u32 %v8263, 7
        %v8265 = vsub.s32 %v8262, %v8264
        %v8266 = vrot.slane %v8250, %v8265
        %v8268 = vunpack.c.l.s4 1966171168
        %v8269 = vunpack.c.0.s8 %v8268
        %v8270 = vlaneseq
        %v8271 = vshrl.u32 %v8270, 7
        %v8272 = vsub.s32 %v8269, %v8271
        %v8273 = vrot.slane %v8251, %v8272
        %v8275 = vunpack.c.l.s4 1966171168
        %v8276 = vunpack.c.0.s8 %v8275
        %v8277 = vlaneseq
        %v8278 = vshrl.u32 %v8277, 7
        %v8279 = vsub.s32 %v8276, %v8278
        %v8280 = vrot.slane %v8252, %v8279
        %v8281 = vcombine.high %v8259, %v8259
        %v8282 = vcombine.high %v8266, %v8266
        %v8283 = vcombine.high %v8273, %v8273
        %v8284 = vcombine.high %v8280, %v8280
        %v8285 = vcombine.high %v7957, %v7957
        %v8287 = vunpack.c.l.s4 1966171168
        %v8288 = vunpack.c.0.s8 %v8287
        %v8289 = vlaneseq
        %v8290 = vshrl.u32 %v8289, 7
        %v8291 = vsub.s32 %v8288, %v8290
        %v8292 = vrot.slane %v7957, %v8291
        %v8294 = vunpack.c.l.s4 1966171168
        %v8295 = vunpack.c.0.s8 %v8294
        %v8296 = vlaneseq
        %v8297 = vshrl.u32 %v8296, 7
        %v8298 = vsub.s32 %v8295, %v8297
        %v8299 = vrot.slane %v8285, %v8298
        %v8300 = vcombine.high %v8292, %v8292
        %v8301 = vcombine.high %v8299, %v8299
        %v8303 = vunpack.c.l.s4 1966171168
        %v8304 = vunpack.c.0.s8 %v8303
        %v8305 = vlaneseq
        %v8306 = vshrl.u32 %v8305, 7
        %v8307 = vsub.s32 %v8304, %v8306
        %v8308 = vrot.slane %v8292, %v8307
        %v8310 = vunpack.c.l.s4 1966171168
        %v8311 = vunpack.c.0.s8 %v8310
        %v8312 = vlaneseq
        %v8313 = vshrl.u32 %v8312, 7
        %v8314 = vsub.s32 %v8311, %v8313
        %v8315 = vrot.slane %v8299, %v8314
        %v8317 = vunpack.c.l.s4 1966171168
        %v8318 = vunpack.c.0.s8 %v8317
        %v8319 = vlaneseq
        %v8320 = vshrl.u32 %v8319, 7
        %v8321 = vsub.s32 %v8318, %v8320
        %v8322 = vrot.slane %v8300, %v8321
        %v8324 = vunpack.c.l.s4 1966171168
        %v8325 = vunpack.c.0.s8 %v8324
        %v8326 = vlaneseq
        %v8327 = vshrl.u32 %v8326, 7
        %v8328 = vsub.s32 %v8325, %v8327
        %v8329 = vrot.slane %v8301, %v8328
        %v8330 = vcombine.high %v8308, %v8308
        %v8331 = vcombine.high %v8315, %v8315
        %v8332 = vcombine.high %v8322, %v8322
        %v8333 = vcombine.high %v8329, %v8329
        %v8334 = vcombine.high %v7958, %v7958
        %v8336 = vunpack.c.l.s4 1966171168
        %v8337 = vunpack.c.0.s8 %v8336
        %v8338 = vlaneseq
        %v8339 = vshrl.u32 %v8338, 7
        %v8340 = vsub.s32 %v8337, %v8339
        %v8341 = vrot.slane %v7958, %v8340
        %v8343 = vunpack.c.l.s4 1966171168
        %v8344 = vunpack.c.0.s8 %v8343
        %v8345 = vlaneseq
        %v8346 = vshrl.u32 %v8345, 7
        %v8347 = vsub.s32 %v8344, %v8346
        %v8348 = vrot.slane %v8334, %v8347
        %v8349 = vcombine.high %v8341, %v8341
        %v8350 = vcombine.high %v8348, %v8348
        %v8352 = vunpack.c.l.s4 1966171168
        %v8353 = vunpack.c.0.s8 %v8352
        %v8354 = vlaneseq
        %v8355 = vshrl.u32 %v8354, 7
        %v8356 = vsub.s32 %v8353, %v8355
        %v8357 = vrot.slane %v8341, %v8356
        %v8359 = vunpack.c.l.s4 1966171168
        %v8360 = vunpack.c.0.s8 %v8359
        %v8361 = vlaneseq
        %v8362 = vshrl.u32 %v8361, 7
        %v8363 = vsub.s32 %v8360, %v8362
        %v8364 = vrot.slane %v8348, %v8363
        %v8366 = vunpack.c.l.s4 1966171168
        %v8367 = vunpack.c.0.s8 %v8366
        %v8368 = vlaneseq
        %v8369 = vshrl.u32 %v8368, 7
        %v8370 = vsub.s32 %v8367, %v8369
        %v8371 = vrot.slane %v8349, %v8370
        %v8373 = vunpack.c.l.s4 1966171168
        %v8374 = vunpack.c.0.s8 %v8373
        %v8375 = vlaneseq
        %v8376 = vshrl.u32 %v8375, 7
        %v8377 = vsub.s32 %v8374, %v8376
        %v8378 = vrot.slane %v8350, %v8377
        %v8379 = vcombine.high %v8357, %v8357
        %v8380 = vcombine.high %v8364, %v8364
        %v8381 = vcombine.high %v8371, %v8371
        %v8382 = vcombine.high %v8378, %v8378
        %v8383 = vlaneseq
        %v8384 = vshrl.u32 %v8383, 7
        %v8385 = vsub.s32 0, %v8384
        %v8386 = vrot.slane %v8210, %v8385
        %v8387 = vlaneseq
        %v8388 = vshrl.u32 %v8387, 7
        %v8389 = vsub.s32 0, %v8388
        %v8390 = vrot.slane %v8224, %v8389
        %v8391 = vlaneseq
        %v8392 = vshrl.u32 %v8391, 7
        %v8393 = vsub.s32 0, %v8392
        %v8394 = vrot.slane %v8232, %v8393
        %v8395 = vlaneseq
        %v8396 = vshrl.u32 %v8395, 7
        %v8397 = vsub.s32 0, %v8396
        %v8398 = vrot.slane %v8234, %v8397
        %v8399 = vlaneseq
        %v8400 = vshrl.u32 %v8399, 7
        %v8401 = vsub.s32 0, %v8400
        %v8402 = vrot.slane %v8217, %v8401
        %v8403 = vlaneseq
        %v8404 = vshrl.u32 %v8403, 7
        %v8405 = vsub.s32 0, %v8404
        %v8406 = vrot.slane %v8231, %v8405
        %v8407 = vlaneseq
        %v8408 = vshrl.u32 %v8407, 7
        %v8409 = vsub.s32 0, %v8408
        %v8410 = vrot.slane %v8233, %v8409
        %v8411 = vlaneseq
        %v8412 = vshrl.u32 %v8411, 7
        %v8413 = vsub.s32 0, %v8412
        %v8414 = vrot.slane %v8235, %v8413
        %v8415 = vlaneseq
        %v8416 = vshrl.u32 %v8415, 7
        %v8417 = vsub.s32 0, %v8416
        %v8418 = vrot.slane %v8259, %v8417
        %v8419 = vlaneseq
        %v8420 = vshrl.u32 %v8419, 7
        %v8421 = vsub.s32 0, %v8420
        %v8422 = vrot.slane %v8273, %v8421
        %v8423 = vlaneseq
        %v8424 = vshrl.u32 %v8423, 7
        %v8425 = vsub.s32 0, %v8424
        %v8426 = vrot.slane %v8281, %v8425
        %v8427 = vlaneseq
        %v8428 = vshrl.u32 %v8427, 7
        %v8429 = vsub.s32 0, %v8428
        %v8430 = vrot.slane %v8283, %v8429
        %v8431 = vlaneseq
        %v8432 = vshrl.u32 %v8431, 7
        %v8433 = vsub.s32 0, %v8432
        %v8434 = vrot.slane %v8266, %v8433
        %v8435 = vlaneseq
        %v8436 = vshrl.u32 %v8435, 7
        %v8437 = vsub.s32 0, %v8436
        %v8438 = vrot.slane %v8280, %v8437
        %v8439 = vlaneseq
        %v8440 = vshrl.u32 %v8439, 7
        %v8441 = vsub.s32 0, %v8440
        %v8442 = vrot.slane %v8282, %v8441
        %v8443 = vlaneseq
        %v8444 = vshrl.u32 %v8443, 7
        %v8445 = vsub.s32 0, %v8444
        %v8446 = vrot.slane %v8284, %v8445
        %v8447 = vlaneseq
        %v8448 = vshrl.u32 %v8447, 7
        %v8449 = vsub.s32 0, %v8448
        %v8450 = vrot.slane %v8308, %v8449
        %v8451 = vlaneseq
        %v8452 = vshrl.u32 %v8451, 7
        %v8453 = vsub.s32 0, %v8452
        %v8454 = vrot.slane %v8322, %v8453
        %v8455 = vlaneseq
        %v8456 = vshrl.u32 %v8455, 7
        %v8457 = vsub.s32 0, %v8456
        %v8458 = vrot.slane %v8330, %v8457
        %v8459 = vlaneseq
        %v8460 = vshrl.u32 %v8459, 7
        %v8461 = vsub.s32 0, %v8460
        %v8462 = vrot.slane %v8332, %v8461
        %v8463 = vlaneseq
        %v8464 = vshrl.u32 %v8463, 7
        %v8465 = vsub.s32 0, %v8464
        %v8466 = vrot.slane %v8315, %v8465
        %v8467 = vlaneseq
        %v8468 = vshrl.u32 %v8467, 7
        %v8469 = vsub.s32 0, %v8468
        %v8470 = vrot.slane %v8329, %v8469
        %v8471 = vlaneseq
        %v8472 = vshrl.u32 %v8471, 7
        %v8473 = vsub.s32 0, %v8472
        %v8474 = vrot.slane %v8331, %v8473
        %v8475 = vlaneseq
        %v8476 = vshrl.u32 %v8475, 7
        %v8477 = vsub.s32 0, %v8476
        %v8478 = vrot.slane %v8333, %v8477
        %v8479 = vlaneseq
        %v8480 = vshrl.u32 %v8479, 7
        %v8481 = vsub.s32 0, %v8480
        %v8482 = vrot.slane %v8357, %v8481
        %v8483 = vlaneseq
        %v8484 = vshrl.u32 %v8483, 7
        %v8485 = vsub.s32 0, %v8484
        %v8486 = vrot.slane %v8371, %v8485
        %v8487 = vlaneseq
        %v8488 = vshrl.u32 %v8487, 7
        %v8489 = vsub.s32 0, %v8488
        %v8490 = vrot.slane %v8379, %v8489
        %v8491 = vlaneseq
        %v8492 = vshrl.u32 %v8491, 7
        %v8493 = vsub.s32 0, %v8492
        %v8494 = vrot.slane %v8381, %v8493
        %v8495 = vlaneseq
        %v8496 = vshrl.u32 %v8495, 7
        %v8497 = vsub.s32 0, %v8496
        %v8498 = vrot.slane %v8364, %v8497
        %v8499 = vlaneseq
        %v8500 = vshrl.u32 %v8499, 7
        %v8501 = vsub.s32 0, %v8500
        %v8502 = vrot.slane %v8378, %v8501
        %v8503 = vlaneseq
        %v8504 = vshrl.u32 %v8503, 7
        %v8505 = vsub.s32 0, %v8504
        %v8506 = vrot.slane %v8380, %v8505
        %v8507 = vlaneseq
        %v8508 = vshrl.u32 %v8507, 7
        %v8509 = vsub.s32 0, %v8508
        %v8510 = vrot.slane %v8382, %v8509
        %v8543 = vadd.f32 %v7965, %v8386
        %v8544 = vadd.f32 %v7972, %v8390
        %v8545 = vadd.f32 %v7979, %v8394
        %v8546 = vadd.f32 %v7986, %v8398
        %v8547 = vadd.f32 %v7993, %v8402
        %v8548 = vadd.f32 %v8000, %v8406
        %v8549 = vadd.f32 %v8007, %v8410
        %v8550 = vadd.f32 %v8014, %v8414
        %v8551 = vadd.f32 %v8021, %v8418
        %v8552 = vadd.f32 %v8028, %v8422
        %v8553 = vadd.f32 %v8035, %v8426
        %v8554 = vadd.f32 %v8042, %v8430
        %v8555 = vadd.f32 %v8049, %v8434
        %v8556 = vadd.f32 %v8056, %v8438
        %v8557 = vadd.f32 %v8063, %v8442
        %v8558 = vadd.f32 %v8070, %v8446
        %v8559 = vadd.f32 %v8077, %v8450
        %v8560 = vadd.f32 %v8084, %v8454
        %v8561 = vadd.f32 %v8091, %v8458
        %v8562 = vadd.f32 %v8098, %v8462
        %v8563 = vadd.f32 %v8105, %v8466
        %v8564 = vadd.f32 %v8112, %v8470
        %v8565 = vadd.f32 %v8119, %v8474
        %v8566 = vadd.f32 %v8126, %v8478
        %v8567 = vadd.f32 %v8133, %v8482
        %v8568 = vadd.f32 %v8140, %v8486
        %v8569 = vadd.f32 %v8147, %v8490
        %v8570 = vadd.f32 %v8154, %v8494
        %v8571 = vadd.f32 %v8161, %v8498
        %v8572 = vadd.f32 %v8168, %v8502
        %v8573 = vadd.f32 %v8175, %v8506
        %v8574 = vadd.f32 %v8182, %v8510
        %v8575 = vcombine.low %v8543, %v8545
        %v8576 = vcombine.high %v8543, %v8545
        %v8578 = vunpack.c.l.s4 1983009808
        %v8579 = vunpack.c.0.s8 %v8578
        %v8580 = vlaneseq
        %v8581 = vshrl.u32 %v8580, 7
        %v8582 = vsub.s32 %v8579, %v8581
        %v8583 = vrot.slane %v8575, %v8582
        %v8585 = vunpack.c.l.s4 1983009808
        %v8586 = vunpack.c.0.s8 %v8585
        %v8587 = vlaneseq
        %v8588 = vshrl.u32 %v8587, 7
        %v8589 = vsub.s32 %v8586, %v8588
        %v8590 = vrot.slane %v8576, %v8589
        %v8591 = vcombine.low %v8544, %v8546
        %v8592 = vcombine.high %v8544, %v8546
        %v8594 = vunpack.c.l.s4 1983009808
        %v8595 = vunpack.c.0.s8 %v8594
        %v8596 = vlaneseq
        %v8597 = vshrl.u32 %v8596, 7
        %v8598 = vsub.s32 %v8595, %v8597
        %v8599 = vrot.slane %v8591, %v8598
        %v8601 = vunpack.c.l.s4 1983009808
        %v8602 = vunpack.c.0.s8 %v8601
        %v8603 = vlaneseq
        %v8604 = vshrl.u32 %v8603, 7
        %v8605 = vsub.s32 %v8602, %v8604
        %v8606 = vrot.slane %v8592, %v8605
        %v8607 = vcombine.low %v8547, %v8549
        %v8608 = vcombine.high %v8547, %v8549
        %v8610 = vunpack.c.l.s4 1983009808
        %v8611 = vunpack.c.0.s8 %v8610
        %v8612 = vlaneseq
        %v8613 = vshrl.u32 %v8612, 7
        %v8614 = vsub.s32 %v8611, %v8613
        %v8615 = vrot.slane %v8607, %v8614
        %v8617 = vunpack.c.l.s4 1983009808
        %v8618 = vunpack.c.0.s8 %v8617
        %v8619 = vlaneseq
        %v8620 = vshrl.u32 %v8619, 7
        %v8621 = vsub.s32 %v8618, %v8620
        %v8622 = vrot.slane %v8608, %v8621
        %v8623 = vcombine.low %v8548, %v8550
        %v8624 = vcombine.high %v8548, %v8550
        %v8626 = vunpack.c.l.s4 1983009808
        %v8627 = vunpack.c.0.s8 %v8626
        %v8628 = vlaneseq
        %v8629 = vshrl.u32 %v8628, 7
        %v8630 = vsub.s32 %v8627, %v8629
        %v8631 = vrot.slane %v8623, %v8630
        %v8633 = vunpack.c.l.s4 1983009808
        %v8634 = vunpack.c.0.s8 %v8633
        %v8635 = vlaneseq
        %v8636 = vshrl.u32 %v8635, 7
        %v8637 = vsub.s32 %v8634, %v8636
        %v8638 = vrot.slane %v8624, %v8637
        %v8639 = vcombine.low %v8583, %v8599
        %v8640 = vcombine.high %v8583, %v8599
        %v8642 = vunpack.c.l.s4 1934713408
        %v8643 = vunpack.c.0.s8 %v8642
        %v8644 = vlaneseq
        %v8645 = vshrl.u32 %v8644, 7
        %v8646 = vsub.s32 %v8643, %v8645
        %v8647 = vrot.slane %v8639, %v8646
        %v8649 = vunpack.c.l.s4 1934713408
        %v8650 = vunpack.c.0.s8 %v8649
        %v8651 = vlaneseq
        %v8652 = vshrl.u32 %v8651, 7
        %v8653 = vsub.s32 %v8650, %v8652
        %v8654 = vrot.slane %v8640, %v8653
        %v8655 = vcombine.low %v8590, %v8606
        %v8656 = vcombine.high %v8590, %v8606
        %v8658 = vunpack.c.l.s4 1934713408
        %v8659 = vunpack.c.0.s8 %v8658
        %v8660 = vlaneseq
        %v8661 = vshrl.u32 %v8660, 7
        %v8662 = vsub.s32 %v8659, %v8661
        %v8663 = vrot.slane %v8655, %v8662
        %v8665 = vunpack.c.l.s4 1934713408
        %v8666 = vunpack.c.0.s8 %v8665
        %v8667 = vlaneseq
        %v8668 = vshrl.u32 %v8667, 7
        %v8669 = vsub.s32 %v8666, %v8668
        %v8670 = vrot.slane %v8656, %v8669
        %v8671 = vcombine.low %v8615, %v8631
        %v8672 = vcombine.high %v8615, %v8631
        %v8674 = vunpack.c.l.s4 1934713408
        %v8675 = vunpack.c.0.s8 %v8674
        %v8676 = vlaneseq
        %v8677 = vshrl.u32 %v8676, 7
        %v8678 = vsub.s32 %v8675, %v8677
        %v8679 = vrot.slane %v8671, %v8678
        %v8681 = vunpack.c.l.s4 1934713408
        %v8682 = vunpack.c.0.s8 %v8681
        %v8683 = vlaneseq
        %v8684 = vshrl.u32 %v8683, 7
        %v8685 = vsub.s32 %v8682, %v8684
        %v8686 = vrot.slane %v8672, %v8685
        %v8687 = vcombine.low %v8622, %v8638
        %v8688 = vcombine.high %v8622, %v8638
        %v8690 = vunpack.c.l.s4 1934713408
        %v8691 = vunpack.c.0.s8 %v8690
        %v8692 = vlaneseq
        %v8693 = vshrl.u32 %v8692, 7
        %v8694 = vsub.s32 %v8691, %v8693
        %v8695 = vrot.slane %v8687, %v8694
        %v8697 = vunpack.c.l.s4 1934713408
        %v8698 = vunpack.c.0.s8 %v8697
        %v8699 = vlaneseq
        %v8700 = vshrl.u32 %v8699, 7
        %v8701 = vsub.s32 %v8698, %v8700
        %v8702 = vrot.slane %v8688, %v8701
        %v8703 = vcombine.low %v8647, %v8679
        %v8704 = vcombine.high %v8647, %v8679
        %v8705 = vcombine.low %v8654, %v8686
        %v8706 = vcombine.high %v8654, %v8686
        %v8707 = vcombine.low %v8663, %v8695
        %v8708 = vcombine.high %v8663, %v8695
        %v8709 = vcombine.low %v8670, %v8702
        %v8710 = vcombine.high %v8670, %v8702
        %v8711 = vcombine.low %v8551, %v8553
        %v8712 = vcombine.high %v8551, %v8553
        %v8714 = vunpack.c.l.s4 1983009808
        %v8715 = vunpack.c.0.s8 %v8714
        %v8716 = vlaneseq
        %v8717 = vshrl.u32 %v8716, 7
        %v8718 = vsub.s32 %v8715, %v8717
        %v8719 = vrot.slane %v8711, %v8718
        %v8721 = vunpack.c.l.s4 1983009808
        %v8722 = vunpack.c.0.s8 %v8721
        %v8723 = vlaneseq
        %v8724 = vshrl.u32 %v8723, 7
        %v8725 = vsub.s32 %v8722, %v8724
        %v8726 = vrot.slane %v8712, %v8725
        %v8727 = vcombine.low %v8552, %v8554
        %v8728 = vcombine.high %v8552, %v8554
        %v8730 = vunpack.c.l.s4 1983009808
        %v8731 = vunpack.c.0.s8 %v8730
        %v8732 = vlaneseq
        %v8733 = vshrl.u32 %v8732, 7
        %v8734 = vsub.s32 %v8731, %v8733
        %v8735 = vrot.slane %v8727, %v8734
        %v8737 = vunpack.c.l.s4 1983009808
        %v8738 = vunpack.c.0.s8 %v8737
        %v8739 = vlaneseq
        %v8740 = vshrl.u32 %v8739, 7
        %v8741 = vsub.s32 %v8738, %v8740
        %v8742 = vrot.slane %v8728, %v8741
        %v8743 = vcombine.low %v8555, %v8557
        %v8744 = vcombine.high %v8555, %v8557
        %v8746 = vunpack.c.l.s4 1983009808
        %v8747 = vunpack.c.0.s8 %v8746
        %v8748 = vlaneseq
        %v8749 = vshrl.u32 %v8748, 7
        %v8750 = vsub.s32 %v8747, %v8749
        %v8751 = vrot.slane %v8743, %v8750
        %v8753 = vunpack.c.l.s4 1983009808
        %v8754 = vunpack.c.0.s8 %v8753
        %v8755 = vlaneseq
        %v8756 = vshrl.u32 %v8755, 7
        %v8757 = vsub.s32 %v8754, %v8756
        %v8758 = vrot.slane %v8744, %v8757
        %v8759 = vcombine.low %v8556, %v8558
        %v8760 = vcombine.high %v8556, %v8558
        %v8762 = vunpack.c.l.s4 1983009808
        %v8763 = vunpack.c.0.s8 %v8762
        %v8764 = vlaneseq
        %v8765 = vshrl.u32 %v8764, 7
        %v8766 = vsub.s32 %v8763, %v8765
        %v8767 = vrot.slane %v8759, %v8766
        %v8769 = vunpack.c.l.s4 1983009808
        %v8770 = vunpack.c.0.s8 %v8769
        %v8771 = vlaneseq
        %v8772 = vshrl.u32 %v8771, 7
        %v8773 = vsub.s32 %v8770, %v8772
        %v8774 = vrot.slane %v8760, %v8773
        %v8775 = vcombine.low %v8719, %v8735
        %v8776 = vcombine.high %v8719, %v8735
        %v8778 = vunpack.c.l.s4 1934713408
        %v8779 = vunpack.c.0.s8 %v8778
        %v8780 = vlaneseq
        %v8781 = vshrl.u32 %v8780, 7
        %v8782 = vsub.s32 %v8779, %v8781
        %v8783 = vrot.slane %v8775, %v8782
        %v8785 = vunpack.c.l.s4 1934713408
        %v8786 = vunpack.c.0.s8 %v8785
        %v8787 = vlaneseq
        %v8788 = vshrl.u32 %v8787, 7
        %v8789 = vsub.s32 %v8786, %v8788
        %v8790 = vrot.slane %v8776, %v8789
        %v8791 = vcombine.low %v8726, %v8742
        %v8792 = vcombine.high %v8726, %v8742
        %v8794 = vunpack.c.l.s4 1934713408
        %v8795 = vunpack.c.0.s8 %v8794
        %v8796 = vlaneseq
        %v8797 = vshrl.u32 %v8796, 7
        %v8798 = vsub.s32 %v8795, %v8797
        %v8799 = vrot.slane %v8791, %v8798
        %v8801 = vunpack.c.l.s4 1934713408
        %v8802 = vunpack.c.0.s8 %v8801
        %v8803 = vlaneseq
        %v8804 = vshrl.u32 %v8803, 7
        %v8805 = vsub.s32 %v8802, %v8804
        %v8806 = vrot.slane %v8792, %v8805
        %v8807 = vcombine.low %v8751, %v8767
        %v8808 = vcombine.high %v8751, %v8767
        %v8810 = vunpack.c.l.s4 1934713408
        %v8811 = vunpack.c.0.s8 %v8810
        %v8812 = vlaneseq
        %v8813 = vshrl.u32 %v8812, 7
        %v8814 = vsub.s32 %v8811, %v8813
        %v8815 = vrot.slane %v8807, %v8814
        %v8817 = vunpack.c.l.s4 1934713408
        %v8818 = vunpack.c.0.s8 %v8817
        %v8819 = vlaneseq
        %v8820 = vshrl.u32 %v8819, 7
        %v8821 = vsub.s32 %v8818, %v8820
        %v8822 = vrot.slane %v8808, %v8821
        %v8823 = vcombine.low %v8758, %v8774
        %v8824 = vcombine.high %v8758, %v8774
        %v8826 = vunpack.c.l.s4 1934713408
        %v8827 = vunpack.c.0.s8 %v8826
        %v8828 = vlaneseq
        %v8829 = vshrl.u32 %v8828, 7
        %v8830 = vsub.s32 %v8827, %v8829
        %v8831 = vrot.slane %v8823, %v8830
        %v8833 = vunpack.c.l.s4 1934713408
        %v8834 = vunpack.c.0.s8 %v8833
        %v8835 = vlaneseq
        %v8836 = vshrl.u32 %v8835, 7
        %v8837 = vsub.s32 %v8834, %v8836
        %v8838 = vrot.slane %v8824, %v8837
        %v8839 = vcombine.low %v8783, %v8815
        %v8840 = vcombine.high %v8783, %v8815
        %v8841 = vcombine.low %v8790, %v8822
        %v8842 = vcombine.high %v8790, %v8822
        %v8843 = vcombine.low %v8799, %v8831
        %v8844 = vcombine.high %v8799, %v8831
        %v8845 = vcombine.low %v8806, %v8838
        %v8846 = vcombine.high %v8806, %v8838
        %v8847 = vcombine.low %v8559, %v8561
        %v8848 = vcombine.high %v8559, %v8561
        %v8850 = vunpack.c.l.s4 1983009808
        %v8851 = vunpack.c.0.s8 %v8850
        %v8852 = vlaneseq
        %v8853 = vshrl.u32 %v8852, 7
        %v8854 = vsub.s32 %v8851, %v8853
        %v8855 = vrot.slane %v8847, %v8854
        %v8857 = vunpack.c.l.s4 1983009808
        %v8858 = vunpack.c.0.s8 %v8857
        %v8859 = vlaneseq
        %v8860 = vshrl.u32 %v8859, 7
        %v8861 = vsub.s32 %v8858, %v8860
        %v8862 = vrot.slane %v8848, %v8861
        %v8863 = vcombine.low %v8560, %v8562
        %v8864 = vcombine.high %v8560, %v8562
        %v8866 = vunpack.c.l.s4 1983009808
        %v8867 = vunpack.c.0.s8 %v8866
        %v8868 = vlaneseq
        %v8869 = vshrl.u32 %v8868, 7
        %v8870 = vsub.s32 %v8867, %v8869
        %v8871 = vrot.slane %v8863, %v8870
        %v8873 = vunpack.c.l.s4 1983009808
        %v8874 = vunpack.c.0.s8 %v8873
        %v8875 = vlaneseq
        %v8876 = vshrl.u32 %v8875, 7
        %v8877 = vsub.s32 %v8874, %v8876
        %v8878 = vrot.slane %v8864, %v8877
        %v8879 = vcombine.low %v8563, %v8565
        %v8880 = vcombine.high %v8563, %v8565
        %v8882 = vunpack.c.l.s4 1983009808
        %v8883 = vunpack.c.0.s8 %v8882
        %v8884 = vlaneseq
        %v8885 = vshrl.u32 %v8884, 7
        %v8886 = vsub.s32 %v8883, %v8885
        %v8887 = vrot.slane %v8879, %v8886
        %v8889 = vunpack.c.l.s4 1983009808
        %v8890 = vunpack.c.0.s8 %v8889
        %v8891 = vlaneseq
        %v8892 = vshrl.u32 %v8891, 7
        %v8893 = vsub.s32 %v8890, %v8892
        %v8894 = vrot.slane %v8880, %v8893
        %v8895 = vcombine.low %v8564, %v8566
        %v8896 = vcombine.high %v8564, %v8566
        %v8898 = vunpack.c.l.s4 1983009808
        %v8899 = vunpack.c.0.s8 %v8898
        %v8900 = vlaneseq
        %v8901 = vshrl.u32 %v8900, 7
        %v8902 = vsub.s32 %v8899, %v8901
        %v8903 = vrot.slane %v8895, %v8902
        %v8905 = vunpack.c.l.s4 1983009808
        %v8906 = vunpack.c.0.s8 %v8905
        %v8907 = vlaneseq
        %v8908 = vshrl.u32 %v8907, 7
        %v8909 = vsub.s32 %v8906, %v8908
        %v8910 = vrot.slane %v8896, %v8909
        %v8911 = vcombine.low %v8855, %v8871
        %v8912 = vcombine.high %v8855, %v8871
        %v8914 = vunpack.c.l.s4 1934713408
        %v8915 = vunpack.c.0.s8 %v8914
        %v8916 = vlaneseq
        %v8917 = vshrl.u32 %v8916, 7
        %v8918 = vsub.s32 %v8915, %v8917
        %v8919 = vrot.slane %v8911, %v8918
        %v8921 = vunpack.c.l.s4 1934713408
        %v8922 = vunpack.c.0.s8 %v8921
        %v8923 = vlaneseq
        %v8924 = vshrl.u32 %v8923, 7
        %v8925 = vsub.s32 %v8922, %v8924
        %v8926 = vrot.slane %v8912, %v8925
        %v8927 = vcombine.low %v8862, %v8878
        %v8928 = vcombine.high %v8862, %v8878
        %v8930 = vunpack.c.l.s4 1934713408
        %v8931 = vunpack.c.0.s8 %v8930
        %v8932 = vlaneseq
        %v8933 = vshrl.u32 %v8932, 7
        %v8934 = vsub.s32 %v8931, %v8933
        %v8935 = vrot.slane %v8927, %v8934
        %v8937 = vunpack.c.l.s4 1934713408
        %v8938 = vunpack.c.0.s8 %v8937
        %v8939 = vlaneseq
        %v8940 = vshrl.u32 %v8939, 7
        %v8941 = vsub.s32 %v8938, %v8940
        %v8942 = vrot.slane %v8928, %v8941
        %v8943 = vcombine.low %v8887, %v8903
        %v8944 = vcombine.high %v8887, %v8903
        %v8946 = vunpack.c.l.s4 1934713408
        %v8947 = vunpack.c.0.s8 %v8946
        %v8948 = vlaneseq
        %v8949 = vshrl.u32 %v8948, 7
        %v8950 = vsub.s32 %v8947, %v8949
        %v8951 = vrot.slane %v8943, %v8950
        %v8953 = vunpack.c.l.s4 1934713408
        %v8954 = vunpack.c.0.s8 %v8953
        %v8955 = vlaneseq
        %v8956 = vshrl.u32 %v8955, 7
        %v8957 = vsub.s32 %v8954, %v8956
        %v8958 = vrot.slane %v8944, %v8957
        %v8959 = vcombine.low %v8894, %v8910
        %v8960 = vcombine.high %v8894, %v8910
        %v8962 = vunpack.c.l.s4 1934713408
        %v8963 = vunpack.c.0.s8 %v8962
        %v8964 = vlaneseq
        %v8965 = vshrl.u32 %v8964, 7
        %v8966 = vsub.s32 %v8963, %v8965
        %v8967 = vrot.slane %v8959, %v8966
        %v8969 = vunpack.c.l.s4 1934713408
        %v8970 = vunpack.c.0.s8 %v8969
        %v8971 = vlaneseq
        %v8972 = vshrl.u32 %v8971, 7
        %v8973 = vsub.s32 %v8970, %v8972
        %v8974 = vrot.slane %v8960, %v8973
        %v8975 = vcombine.low %v8919, %v8951
        %v8976 = vcombine.high %v8919, %v8951
        %v8977 = vcombine.low %v8926, %v8958
        %v8978 = vcombine.high %v8926, %v8958
        %v8979 = vcombine.low %v8935, %v8967
        %v8980 = vcombine.high %v8935, %v8967
        %v8981 = vcombine.low %v8942, %v8974
        %v8982 = vcombine.high %v8942, %v8974
        %v8983 = vcombine.low %v8567, %v8569
        %v8984 = vcombine.high %v8567, %v8569
        %v8986 = vunpack.c.l.s4 1983009808
        %v8987 = vunpack.c.0.s8 %v8986
        %v8988 = vlaneseq
        %v8989 = vshrl.u32 %v8988, 7
        %v8990 = vsub.s32 %v8987, %v8989
        %v8991 = vrot.slane %v8983, %v8990
        %v8993 = vunpack.c.l.s4 1983009808
        %v8994 = vunpack.c.0.s8 %v8993
        %v8995 = vlaneseq
        %v8996 = vshrl.u32 %v8995, 7
        %v8997 = vsub.s32 %v8994, %v8996
        %v8998 = vrot.slane %v8984, %v8997
        %v8999 = vcombine.low %v8568, %v8570
        %v9000 = vcombine.high %v8568, %v8570
        %v9002 = vunpack.c.l.s4 1983009808
        %v9003 = vunpack.c.0.s8 %v9002
        %v9004 = vlaneseq
        %v9005 = vshrl.u32 %v9004, 7
        %v9006 = vsub.s32 %v9003, %v9005
        %v9007 = vrot.slane %v8999, %v9006
        %v9009 = vunpack.c.l.s4 1983009808
        %v9010 = vunpack.c.0.s8 %v9009
        %v9011 = vlaneseq
        %v9012 = vshrl.u32 %v9011, 7
        %v9013 = vsub.s32 %v9010, %v9012
        %v9014 = vrot.slane %v9000, %v9013
        %v9015 = vcombine.low %v8571, %v8573
        %v9016 = vcombine.high %v8571, %v8573
        %v9018 = vunpack.c.l.s4 1983009808
        %v9019 = vunpack.c.0.s8 %v9018
        %v9020 = vlaneseq
        %v9021 = vshrl.u32 %v9020, 7
        %v9022 = vsub.s32 %v9019, %v9021
        %v9023 = vrot.slane %v9015, %v9022
        %v9025 = vunpack.c.l.s4 1983009808
        %v9026 = vunpack.c.0.s8 %v9025
        %v9027 = vlaneseq
        %v9028 = vshrl.u32 %v9027, 7
        %v9029 = vsub.s32 %v9026, %v9028
        %v9030 = vrot.slane %v9016, %v9029
        %v9031 = vcombine.low %v8572, %v8574
        %v9032 = vcombine.high %v8572, %v8574
        %v9034 = vunpack.c.l.s4 1983009808
        %v9035 = vunpack.c.0.s8 %v9034
        %v9036 = vlaneseq
        %v9037 = vshrl.u32 %v9036, 7
        %v9038 = vsub.s32 %v9035, %v9037
        %v9039 = vrot.slane %v9031, %v9038
        %v9041 = vunpack.c.l.s4 1983009808
        %v9042 = vunpack.c.0.s8 %v9041
        %v9043 = vlaneseq
        %v9044 = vshrl.u32 %v9043, 7
        %v9045 = vsub.s32 %v9042, %v9044
        %v9046 = vrot.slane %v9032, %v9045
        %v9047 = vcombine.low %v8991, %v9007
        %v9048 = vcombine.high %v8991, %v9007
        %v9050 = vunpack.c.l.s4 1934713408
        %v9051 = vunpack.c.0.s8 %v9050
        %v9052 = vlaneseq
        %v9053 = vshrl.u32 %v9052, 7
        %v9054 = vsub.s32 %v9051, %v9053
        %v9055 = vrot.slane %v9047, %v9054
        %v9057 = vunpack.c.l.s4 1934713408
        %v9058 = vunpack.c.0.s8 %v9057
        %v9059 = vlaneseq
        %v9060 = vshrl.u32 %v9059, 7
        %v9061 = vsub.s32 %v9058, %v9060
        %v9062 = vrot.slane %v9048, %v9061
        %v9063 = vcombine.low %v8998, %v9014
        %v9064 = vcombine.high %v8998, %v9014
        %v9066 = vunpack.c.l.s4 1934713408
        %v9067 = vunpack.c.0.s8 %v9066
        %v9068 = vlaneseq
        %v9069 = vshrl.u32 %v9068, 7
        %v9070 = vsub.s32 %v9067, %v9069
        %v9071 = vrot.slane %v9063, %v9070
        %v9073 = vunpack.c.l.s4 1934713408
        %v9074 = vunpack.c.0.s8 %v9073
        %v9075 = vlaneseq
        %v9076 = vshrl.u32 %v9075, 7
        %v9077 = vsub.s32 %v9074, %v9076
        %v9078 = vrot.slane %v9064, %v9077
        %v9079 = vcombine.low %v9023, %v9039
        %v9080 = vcombine.high %v9023, %v9039
        %v9082 = vunpack.c.l.s4 1934713408
        %v9083 = vunpack.c.0.s8 %v9082
        %v9084 = vlaneseq
        %v9085 = vshrl.u32 %v9084, 7
        %v9086 = vsub.s32 %v9083, %v9085
        %v9087 = vrot.slane %v9079, %v9086
        %v9089 = vunpack.c.l.s4 1934713408
        %v9090 = vunpack.c.0.s8 %v9089
        %v9091 = vlaneseq
        %v9092 = vshrl.u32 %v9091, 7
        %v9093 = vsub.s32 %v9090, %v9092
        %v9094 = vrot.slane %v9080, %v9093
        %v9095 = vcombine.low %v9030, %v9046
        %v9096 = vcombine.high %v9030, %v9046
        %v9098 = vunpack.c.l.s4 1934713408
        %v9099 = vunpack.c.0.s8 %v9098
        %v9100 = vlaneseq
        %v9101 = vshrl.u32 %v9100, 7
        %v9102 = vsub.s32 %v9099, %v9101
        %v9103 = vrot.slane %v9095, %v9102
        %v9105 = vunpack.c.l.s4 1934713408
        %v9106 = vunpack.c.0.s8 %v9105
        %v9107 = vlaneseq
        %v9108 = vshrl.u32 %v9107, 7
        %v9109 = vsub.s32 %v9106, %v9108
        %v9110 = vrot.slane %v9096, %v9109
        %v9111 = vcombine.low %v9055, %v9087
        %v9112 = vcombine.high %v9055, %v9087
        %v9113 = vcombine.low %v9062, %v9094
        %v9114 = vcombine.high %v9062, %v9094
        %v9115 = vcombine.low %v9071, %v9103
        %v9116 = vcombine.high %v9071, %v9103
        %v9117 = vcombine.low %v9078, %v9110
        %v9118 = vcombine.high %v9078, %v9110
        %9123 = vrot.lane.b32.xlu0 %v8704, 8
        %v9124 = vpop.permute.xlu0 %9123
        %9125 = vrot.lane.b32.xlu0 %v8840, 8
        %v9126 = vpop.permute.xlu0 %9125
        %9127 = vrot.lane.b32.xlu0 %v8976, 8
        %v9128 = vpop.permute.xlu0 %9127
        %9129 = vrot.lane.b32.xlu0 %v9112, 8
        %v9130 = vpop.permute.xlu0 %9129
        %9139 = vrot.lane.b32.xlu0 %v8705, 16
        %v9140 = vpop.permute.xlu0 %9139
        %9141 = vrot.lane.b32.xlu0 %v8841, 16
        %v9142 = vpop.permute.xlu0 %9141
        %9143 = vrot.lane.b32.xlu0 %v8977, 16
        %v9144 = vpop.permute.xlu0 %9143
        %9145 = vrot.lane.b32.xlu0 %v9113, 16
        %v9146 = vpop.permute.xlu0 %9145
        %9155 = vrot.lane.b32.xlu0 %v8706, 24
        %v9156 = vpop.permute.xlu0 %9155
        %9157 = vrot.lane.b32.xlu0 %v8842, 24
        %v9158 = vpop.permute.xlu0 %9157
        %9159 = vrot.lane.b32.xlu0 %v8978, 24
        %v9160 = vpop.permute.xlu0 %9159
        %9161 = vrot.lane.b32.xlu0 %v9114, 24
        %v9162 = vpop.permute.xlu0 %9161
        %9171 = vrot.lane.b32.xlu0 %v8707, 32
        %v9172 = vpop.permute.xlu0 %9171
        %9173 = vrot.lane.b32.xlu0 %v8843, 32
        %v9174 = vpop.permute.xlu0 %9173
        %9175 = vrot.lane.b32.xlu0 %v8979, 32
        %v9176 = vpop.permute.xlu0 %9175
        %9177 = vrot.lane.b32.xlu0 %v9115, 32
        %v9178 = vpop.permute.xlu0 %9177
        %9187 = vrot.lane.b32.xlu0 %v8708, 40
        %v9188 = vpop.permute.xlu0 %9187
        %9189 = vrot.lane.b32.xlu0 %v8844, 40
        %v9190 = vpop.permute.xlu0 %9189
        %9191 = vrot.lane.b32.xlu0 %v8980, 40
        %v9192 = vpop.permute.xlu0 %9191
        %9193 = vrot.lane.b32.xlu0 %v9116, 40
        %v9194 = vpop.permute.xlu0 %9193
        %9203 = vrot.lane.b32.xlu0 %v8709, 48
        %v9204 = vpop.permute.xlu0 %9203
        %9205 = vrot.lane.b32.xlu0 %v8845, 48
        %v9206 = vpop.permute.xlu0 %9205
        %9207 = vrot.lane.b32.xlu0 %v8981, 48
        %v9208 = vpop.permute.xlu0 %9207
        %9209 = vrot.lane.b32.xlu0 %v9117, 48
        %v9210 = vpop.permute.xlu0 %9209
        %9219 = vrot.lane.b32.xlu0 %v8710, 56
        %v9220 = vpop.permute.xlu0 %9219
        %9221 = vrot.lane.b32.xlu0 %v8846, 56
        %v9222 = vpop.permute.xlu0 %9221
        %9223 = vrot.lane.b32.xlu0 %v8982, 56
        %v9224 = vpop.permute.xlu0 %9223
        %9225 = vrot.lane.b32.xlu0 %v9118, 56
        %v9226 = vpop.permute.xlu0 %9225
        %v9231 = vsel %vm698, %v8703, %v9124
        %v9232 = vsel %vm698, %v8839, %v9126
        %v9233 = vsel %vm698, %v8975, %v9128
        %v9234 = vsel %vm698, %v9111, %v9130
        %v9235 = vsel %vm2671, %v9231, %v9140
        %v9236 = vsel %vm2671, %v9232, %v9142
        %v9237 = vsel %vm2671, %v9233, %v9144
        %v9238 = vsel %vm2671, %v9234, %v9146
        %v9239 = vsel %vm2676, %v9235, %v9156
        %v9240 = vsel %vm2676, %v9236, %v9158
        %v9241 = vsel %vm2676, %v9237, %v9160
        %v9242 = vsel %vm2676, %v9238, %v9162
        %v9243 = vsel %vm610, %v9239, %v9172
        %v9244 = vsel %vm610, %v9240, %v9174
        %v9245 = vsel %vm610, %v9241, %v9176
        %v9246 = vsel %vm610, %v9242, %v9178
        %v9247 = vsel %vm2685, %v9243, %v9188
        %v9248 = vsel %vm2685, %v9244, %v9190
        %v9249 = vsel %vm2685, %v9245, %v9192
        %v9250 = vsel %vm2685, %v9246, %v9194
        %v9251 = vsel %vm2690, %v9247, %v9204
        %v9252 = vsel %vm2690, %v9248, %v9206
        %v9253 = vsel %vm2690, %v9249, %v9208
        %v9254 = vsel %vm2690, %v9250, %v9210
        %v9255 = vsel %vm2695, %v9251, %v9220
        %v9256 = vsel %vm2695, %v9252, %v9222
        %v9257 = vsel %vm2695, %v9253, %v9224
        %v9258 = vsel %vm2695, %v9254, %v9226
        %9259 = vrot.lane.b32.xlu0 %v666, 104
        %v9260 = vpop.permute.xlu0 %9259
        %9261 = vrot.lane.b32.xlu0 %v667, 104
        %v9262 = vpop.permute.xlu0 %9261
        %v9271 = vunpack.c.l.b16 %v7283
        %v9272 = vunpack.c.l.b16 %v7284
        %v9273 = vunpack.c.l.b16 %v7285
        %v9274 = vunpack.c.l.b16 %v7286
        %v9275 = vunpack.c.l.b16 %v7287
        %v9276 = vunpack.c.l.b16 %v7288
        %v9277 = vunpack.c.l.b16 %v7289
        %v9278 = vunpack.c.l.b16 %v7290
        %v9279 = vpack.c.b16 %v9272, %v9271
        %v9280 = vpack.c.b16 %v9274, %v9273
        %v9281 = vpack.c.b16 %v9276, %v9275
        %v9282 = vpack.c.b16 %v9278, %v9277
        %9283 = vrot.lane.b32.xlu0 %v9279, 104
        %v9284 = vpop.permute.xlu0 %9283
        %9285 = vrot.lane.b32.xlu0 %v9280, 104
        %v9286 = vpop.permute.xlu0 %9285
        %9287 = vrot.lane.b32.xlu0 %v9281, 104
        %v9288 = vpop.permute.xlu0 %9287
        %9289 = vrot.lane.b32.xlu0 %v9282, 104
        %v9290 = vpop.permute.xlu0 %9289
        %v9292 = vsel %vm698, %v9260, 0
        %v9295 = vsel %vm698, %v9262, 0
        %v9298 = vsel %vm698, %v9284, 0
        %v9301 = vsel %vm698, %v9286, 0
        %v9304 = vsel %vm698, %v9288, 0
        %v9307 = vsel %vm698, %v9290, 0
        %9309 = vmatprep.subr.bf16.mxu0 0
        %9310 = vmatpush1.bf16.xpose.msra.mxu0 0
        %9311 = vmatprep.subr.bf16.mxu0 0
        %9312 = vmatpush1.bf16.xpose.msra.mxu0 0
        %9313 = vmatprep.subr.bf16.mxu0 0
        %9314 = vmatpush1.bf16.xpose.msra.mxu0 0
        %9315 = vmatprep.subr.bf16.mxu0 0
        %9316 = vmatpush1.bf16.xpose.msra.mxu0 0
        %9317 = vmatprep.subr.bf16.mxu0 0
        %9318 = vmatpush1.bf16.xpose.msra.mxu0 %v9307
        %9319 = vmatprep.subr.bf16.mxu0 0
        %9320 = vmatpush1.bf16.xpose.msra.mxu0 %v9304
        %9321 = vmatprep.subr.bf16.mxu0 0
        %9322 = vmatpush1.bf16.xpose.msra.mxu0 %v9301
        %9323 = vmatprep.subr.bf16.mxu0 0
        %9324 = vmatpush1.bf16.xpose.msra.mxu0 %v9298
        %9325 = vmatprep.subr.bf16.mxu0 0
        %9326 = vmatpush2.bf16.xpose.msra.mxu0 0
        %9327 = vmatprep.subr.bf16.mxu0 0
        %9328 = vmatpush2.bf16.xpose.msra.mxu0 0
        %9329 = vmatprep.subr.bf16.mxu0 0
        %9330 = vmatpush2.bf16.xpose.msra.mxu0 0
        %9331 = vmatprep.subr.bf16.mxu0 0
        %9332 = vmatpush2.bf16.xpose.msra.mxu0 0
        %9333 = vmatprep.subr.bf16.mxu0 0
        %9334 = vmatpush2.bf16.xpose.msra.mxu0 0
        %9335 = vmatprep.subr.bf16.mxu0 0
        %9336 = vmatpush2.bf16.xpose.msra.mxu0 0
        %9337 = vmatprep.subr.bf16.mxu0 0
        %9338 = vmatpush2.bf16.xpose.msra.mxu0 0
        %9339 = vmatprep.subr.bf16.mxu0 0
        %9340 = vmatpush2.bf16.xpose.msra.mxu0 0
        %9341 = vmatprep.mubr.bf16.mxu0 0
        %9342 = vmatmul.mubr.bf16.gmra.mxu0 %v9292
        %v9343 = vpop.f32.mrf.mxu0
        %v9344 = vadd.f32 %v9255, %v9343
        %v9345 = vpop.f32.mrf.mxu0
        %v9346 = vpop.f32.mrf.mxu0
        %v9347 = vadd.f32 %v9256, %v9346
        %v9348 = vpop.f32.mrf.mxu0
        %9349 = vmatprep.mubr.bf16.mxu0 0
        %9350 = vmatmul.mubr.bf16.gmra.mxu0 %v9295
        %v9351 = vpop.f32.mrf.mxu0
        %v9352 = vadd.f32 %v9257, %v9351
        %v9353 = vpop.f32.mrf.mxu0
        %v9354 = vpop.f32.mrf.mxu0
        %v9355 = vadd.f32 %v9258, %v9354
        %v9356 = vpop.f32.mrf.mxu0
        %9357 = vdwg.mxu0
        %v9358 = vsel %vm2787, %v9344, -inf
        %9359 = vmax.xlane.f32.xlu0 %v9358
        %v9360 = vpop.xlane.xlu0 %9359
        %v9361 = vsel %vm2787, %v9347, -inf
        %9362 = vmax.xlane.f32.xlu0 %v9361
        %v9363 = vpop.xlane.xlu0 %9362
        %v9364 = vsel %vm2787, %v9352, -inf
        %9365 = vmax.xlane.f32.xlu0 %v9364
        %v9366 = vpop.xlane.xlu0 %9365
        %v9367 = vsel %vm2787, %v9355, -inf
        %9368 = vmax.xlane.f32.xlu0 %v9367
        %v9369 = vpop.xlane.xlu0 %9368
        %v9370 = vsub.f32 %v9344, %v9360
        %v9371 = vsub.f32 %v9347, %v9363
        %v9372 = vsub.f32 %v9352, %v9366
        %v9373 = vsub.f32 %v9355, %v9369
        %v9374 = vmul.f32 %v9370, 1.442695
        %v9375 = vpow.pop %v9374
        %v9376 = vmul.f32 %v9371, 1.442695
        %v9377 = vpow.pop %v9376
        %v9378 = vmul.f32 %v9372, 1.442695
        %v9379 = vpow.pop %v9378
        %v9380 = vmul.f32 %v9373, 1.442695
        %v9381 = vpow.pop %v9380
        %v9382 = vsel %vm2787, %v9375, 0.0
        %9383 = vadd.xlane.f32.xlu0 %v9382
        %v9384 = vpop.xlane.xlu0 %9383
        %v9385 = vsel %vm2787, %v9377, 0.0
        %9386 = vadd.xlane.f32.xlu0 %v9385
        %v9387 = vpop.xlane.xlu0 %9386
        %v9388 = vsel %vm2787, %v9379, 0.0
        %9389 = vadd.xlane.f32.xlu0 %v9388
        %v9390 = vpop.xlane.xlu0 %9389
        %v9391 = vsel %vm2787, %v9381, 0.0
        %9392 = vadd.xlane.f32.xlu0 %v9391
        %v9393 = vpop.xlane.xlu0 %9392
        %v9394 = vpack.c.bf16 %v9377, %v9375
        %v9395 = vpack.c.bf16 %v9381, %v9379
        %9396 = vrot.lane.b32.xlu0 %v9279, 72
        %v9397 = vpop.permute.xlu0 %9396
        %9398 = vrot.lane.b32.xlu0 %v9280, 72
        %v9399 = vpop.permute.xlu0 %9398
        %9400 = vrot.lane.b32.xlu0 %v9281, 72
        %v9401 = vpop.permute.xlu0 %9400
        %9402 = vrot.lane.b32.xlu0 %v9282, 72
        %v9403 = vpop.permute.xlu0 %9402
        %v9409 = vsel %vm2787, %v9394, 0
        %v9412 = vsel %vm2787, %v9395, 0
        %9414 = vmatprep.subr.bf16.mxu0 0
        %9415 = vmatpush1.bf16.msra.mxu0 0
        %9416 = vmatprep.subr.bf16.mxu0 0
        %9417 = vmatpush1.bf16.msra.mxu0 0
        %9418 = vmatprep.subr.bf16.mxu0 0
        %9419 = vmatpush1.bf16.msra.mxu0 0
        %9420 = vmatprep.subr.bf16.mxu0 0
        %9421 = vmatpush1.bf16.msra.mxu0 0
        %9422 = vmatprep.subr.bf16.mxu0 0
        %9423 = vmatpush1.bf16.msra.mxu0 %v9403
        %9424 = vmatprep.subr.bf16.mxu0 0
        %9425 = vmatpush1.bf16.msra.mxu0 %v9401
        %9426 = vmatprep.subr.bf16.mxu0 0
        %9427 = vmatpush1.bf16.msra.mxu0 %v9399
        %9428 = vmatprep.subr.bf16.mxu0 0
        %9429 = vmatpush1.bf16.msra.mxu0 %v9397
        %9430 = vmatprep.subr.bf16.mxu0 0
        %9431 = vmatpush2.bf16.msra.mxu0 0
        %9432 = vmatprep.subr.bf16.mxu0 0
        %9433 = vmatpush2.bf16.msra.mxu0 0
        %9434 = vmatprep.subr.bf16.mxu0 0
        %9435 = vmatpush2.bf16.msra.mxu0 0
        %9436 = vmatprep.subr.bf16.mxu0 0
        %9437 = vmatpush2.bf16.msra.mxu0 0
        %9438 = vmatprep.subr.bf16.mxu0 0
        %9439 = vmatpush2.bf16.msra.mxu0 0
        %9440 = vmatprep.subr.bf16.mxu0 0
        %9441 = vmatpush2.bf16.msra.mxu0 0
        %9442 = vmatprep.subr.bf16.mxu0 0
        %9443 = vmatpush2.bf16.msra.mxu0 0
        %9444 = vmatprep.subr.bf16.mxu0 0
        %9445 = vmatpush2.bf16.msra.mxu0 0
        %9446 = vmatprep.mubr.bf16.mxu0 0
        %9447 = vmatmul.mubr.bf16.gmra.mxu0 %v9409
        %v9448 = vpop.f32.mrf.mxu0
        %v9449 = vadd.f32 0.0, %v9448
        %v9450 = vpop.f32.mrf.mxu0
        %v9451 = vpop.f32.mrf.mxu0
        %v9452 = vadd.f32 0.0, %v9451
        %v9453 = vpop.f32.mrf.mxu0
        %9454 = vmatprep.mubr.bf16.mxu0 0
        %9455 = vmatmul.mubr.bf16.gmra.mxu0 %v9412
        %v9456 = vpop.f32.mrf.mxu0
        %v9457 = vadd.f32 0.0, %v9456
        %v9458 = vpop.f32.mrf.mxu0
        %v9459 = vpop.f32.mrf.mxu0
        %v9460 = vadd.f32 0.0, %v9459
        %v9461 = vpop.f32.mrf.mxu0
        %9462 = vdwg.mxu0
        %v9463 = vrcp.pop %v9384
        %v9464 = vrcp.pop %v9387
        %v9465 = vrcp.pop %v9390
        %v9466 = vrcp.pop %v9393
        %v9467 = vmul.f32 %v9449, %v9463
        %v9468 = vmul.f32 %v9452, %v9464
        %v9469 = vmul.f32 %v9457, %v9465
        %v9470 = vmul.f32 %v9460, %v9466
        %v9471 = vpack.c.bf16 %v9468, %v9467
        %v9472 = vpack.c.bf16 %v9470, %v9469
        %9475 = vrot.lane.b32.xlu0 %v5091, 8
        %v9476 = vpop.permute.xlu0 %9475
        %9477 = vrot.lane.b32.xlu0 %v5092, 8
        %v9478 = vpop.permute.xlu0 %9477
        %9481 = vrot.lane.b32.xlu0 %v7281, 16
        %v9482 = vpop.permute.xlu0 %9481
        %9483 = vrot.lane.b32.xlu0 %v7282, 16
        %v9484 = vpop.permute.xlu0 %9483
        %9487 = vrot.lane.b32.xlu0 %v9471, 24
        %v9488 = vpop.permute.xlu0 %9487
        %9489 = vrot.lane.b32.xlu0 %v9472, 24
        %v9490 = vpop.permute.xlu0 %9489
        %v9493 = vsel %vm698, %v2901, %v9476
        %v9496 = vsel %vm698, %v2902, %v9478
        %v9498 = vsel %vm2671, %v9493, %v9482
        %v9500 = vsel %vm2671, %v9496, %v9484
        %v9502 = vsel %vm2676, %v9498, %v9488
        %v9504 = vsel %vm2676, %v9500, %v9490
        %v9505 = vld [vmem:[#allocation3] sm:$0xf]
        %v9506 = vld [vmem:[#allocation3 + $0x4] sm:$0xf]
        %v9507 = vld [vmem:[#allocation3 + $0x8] sm:$0xf]
        %v9508 = vld [vmem:[#allocation3 + $0xc] sm:$0xf]
        %v9509 = vld [vmem:[%s8] sm:$0x1]
        %v9511 = vlaneseq
        %v9512 = vshrl.u32 %v9511, 7
        %v9513 = vsub.s32 0, %v9512
        %v9514 = vrot.slane %v9509, %v9513
        %v9520 = vunpack.c.l.b16 %v9505
        %v9521 = vunpack.c.l.b16 %v9506
        %v9522 = vunpack.c.l.b16 %v9507
        %v9523 = vunpack.c.l.b16 %v9508
        %v9524 = vpack.c.b16 %v9521, %v9520
        %v9525 = vpack.c.b16 %v9523, %v9522
        %v9528 = vsel %vm610, %v9502, 0
        %v9530 = vsel %vm610, %v9504, 0
        %9532 = vmatprep.subr.bf16.mxu0 0
        %9533 = vmatpush1.bf16.msra.mxu0 0
        %9534 = vmatprep.subr.bf16.mxu0 0
        %9535 = vmatpush1.bf16.msra.mxu0 0
        %9536 = vmatprep.subr.bf16.mxu0 0
        %9537 = vmatpush1.bf16.msra.mxu0 0
        %9538 = vmatprep.subr.bf16.mxu0 0
        %9539 = vmatpush1.bf16.msra.mxu0 0
        %9540 = vmatprep.subr.bf16.mxu0 0
        %9541 = vmatpush1.bf16.msra.mxu0 0
        %9542 = vmatprep.subr.bf16.mxu0 0
        %9543 = vmatpush1.bf16.msra.mxu0 0
        %9544 = vmatprep.subr.bf16.mxu0 0
        %9545 = vmatpush1.bf16.msra.mxu0 %v9525
        %9546 = vmatprep.subr.bf16.mxu0 0
        %9547 = vmatpush1.bf16.msra.mxu0 %v9524
        %9548 = vmatprep.subr.bf16.mxu0 0
        %9549 = vmatpush2.bf16.msra.mxu0 0
        %9550 = vmatprep.subr.bf16.mxu0 0
        %9551 = vmatpush2.bf16.msra.mxu0 0
        %9552 = vmatprep.subr.bf16.mxu0 0
        %9553 = vmatpush2.bf16.msra.mxu0 0
        %9554 = vmatprep.subr.bf16.mxu0 0
        %9555 = vmatpush2.bf16.msra.mxu0 0
        %9556 = vmatprep.subr.bf16.mxu0 0
        %9557 = vmatpush2.bf16.msra.mxu0 0
        %9558 = vmatprep.subr.bf16.mxu0 0
        %9559 = vmatpush2.bf16.msra.mxu0 0
        %9560 = vmatprep.subr.bf16.mxu0 0
        %9561 = vmatpush2.bf16.msra.mxu0 0
        %9562 = vmatprep.subr.bf16.mxu0 0
        %9563 = vmatpush2.bf16.msra.mxu0 0
        %9564 = vmatprep.mubr.bf16.mxu0 0
        %9565 = vmatmul.mubr.bf16.gmra.mxu0 %v9528
        %v9566 = vpop.f32.mrf.mxu0
        %v9567 = vadd.f32 %v9514, %v9566
        %v9568 = vpop.f32.mrf.mxu0
        %v9569 = vpop.f32.mrf.mxu0
        %v9570 = vadd.f32 %v9514, %v9569
        %v9571 = vpop.f32.mrf.mxu0
        %9572 = vmatprep.mubr.bf16.mxu0 0
        %9573 = vmatmul.mubr.bf16.gmra.mxu0 %v9530
        %v9574 = vpop.f32.mrf.mxu0
        %v9575 = vadd.f32 %v9514, %v9574
        %v9576 = vpop.f32.mrf.mxu0
        %v9577 = vpop.f32.mrf.mxu0
        %v9578 = vadd.f32 %v9514, %v9577
        %v9579 = vpop.f32.mrf.mxu0
        %9580 = vdwg.mxu0
        %9581 = vst.msk [vmem:[%s391] sm:$0xff] %vm610, %v9567
        %9582 = vst.msk [vmem:[%s391 + $0x8] sm:$0xff] %vm610, %v9570
        %9583 = vst.msk [vmem:[%s391 + $0x10] sm:$0xff] %vm610, %v9575
        %9584 = vst.msk [vmem:[%s391 + $0x18] sm:$0xff] %vm610, %v9578
        %s9585 = smul.u32 4, %s26
        %p9586 = scmp.lt.s32.totalorder %s25, 1
        %s9587 = scalar_select %p9586, %s25, 1
        %p9588 = scmp.lt.s32.totalorder %s9585, 7
        %s9589 = scalar_select %p9588, %s9585, 7
        %s9590 = smul.addr %s9587, 8
        %s9591 = sadd.s32 %s9589, %s9590
        %s9592 = smul.addr %s9591, 8
        %s9593 = scalar_lea.vmem %s9, %s9592
        // Predicated region
        $region65: #{tpu_custom_call.1} parent=55 // pred_check
          %p9594 = pneg %p252
        $region66: #{tpu_custom_call.1} parent=55 // pred_check_branch
          %9596 = sbr.rel (%p9594) target = $region68
        $region67: #{tpu_custom_call.1} parent=55 // pred_region
          %s9597 = smul.u32 4, %s26
        $region68: #{tpu_custom_call.1} parent=55 // pred_fallthru
          _
      $region56: #{tpu_custom_call.1} parent=5 // pred_fallthru
        _
      %p9598 = scmp.le.s32.totalorder 2, %s16
      // Predicated region
      $region69: #{tpu_custom_call.1} parent=5 // pred_check
        %p9599 = pneg %p9598
      $region70: #{tpu_custom_call.1} parent=5 // pred_check_branch
        %9601 = sbr.rel (%p9599) target = $region72
      $region71: #{tpu_custom_call.1} parent=5 // pred_region
        %s9602 = ssub.s32 %s16, 2
        // Predicated region
        $region73: #{tpu_custom_call.1} parent=71 // pred_check
          %p9603 = pneg %p258
        $region74: #{tpu_custom_call.1} parent=71 // pred_check_branch
          %9605 = sbr.rel (%p9603) target = $region76
        $region75: #{tpu_custom_call.1} parent=71 // pred_region
          %s9606 = smul.u32 4, %s28
          %p9607 = scmp.lt.s32.totalorder %s27, 1
          %s9608 = scalar_select %p9607, %s27, 1
          %p9609 = scmp.lt.s32.totalorder %s9606, 7
          %s9610 = scalar_select %p9609, %s9606, 7
          %s9611 = smul.addr %s9608, 8
          %s9612 = sadd.s32 %s9610, %s9611
          %s9613 = smul.addr %s9612, 8
          %s9614 = scalar_lea.vmem %s9, %s9613
        $region76: #{tpu_custom_call.1} parent=71 // pred_fallthru
          _
      $region72: #{tpu_custom_call.1} parent=5 // pred_fallthru
        _
    $region6: #{tpu_custom_call.1} parent=1 // loop_footer
      %s20 = sadd.s32 1, %s16
    $region7: #{tpu_custom_call.1} parent=1 // loop_footer_branch
      %15 = sbr.rel target = $region3
    $region8: #{tpu_custom_call.1} parent=1 // loop_exit
      _
    %9615 = vsyncpa [#allocation4], 1
    %s9616 = scalar_lea.sflag [#allocation4], 1
    %9617 = vsyncpa %s9616, 1

</llo_original>
